<compile_context>
chip_gen: v6e
topology: v6e:2x2x1
jax: 0.10.0
libtpu: 0.0.40
codegen_flags: <defaults>
</compile_context>

<pallas_src>
import functools

import jax
import jax.numpy as jnp
from jax.experimental import pallas as pl
from jax.experimental.pallas import tpu as pltpu

# Model constants fixed by the PyTorch spec: CNN = FeaturesDetector(1, 32) + MLP(3872, 52)
_CONV_COUT = (16, 24, 32)
_NUM_CLASSES = 52
_POOLED_HW = 11                                # 28 -> 26 -> 24 -> 22 -> pool2 -> 11
_FLAT = _POOLED_HW * _POOLED_HW * _CONV_COUT[2]  # 3872


def _round_up(n, m):
    return (n + m - 1) // m * m


# ----------------------------------------------------------------------------
# Pallas kernels
# ----------------------------------------------------------------------------
def _gemm_bias_act_kernel(x_ref, w_ref, b_ref, o_ref, *, apply_relu):
    # x: (TM, K) bf16   w: (K, Np) bf16   b: (1, Np) f32   o: (TM, Np)
    acc = jnp.dot(x_ref[...], w_ref[...], preferred_element_type=jnp.float32)
    acc = acc + b_ref[...]
    if apply_relu:
        acc = jnp.maximum(acc, 0.0)
    o_ref[...] = acc.astype(o_ref.dtype)


def _conv_pool_relu_kernel(x_ref, w_ref, b_ref, o_ref):
    # conv3 GEMM with the 2x2 maxpool + relu fused into the epilogue.
    # x: (4, TM, K) -- axis 0 enumerates the 4 members of each pooling window.
    w = w_ref[...]
    acc = jnp.dot(x_ref[0], w, preferred_element_type=jnp.float32)
    for k in range(1, 4):
        acc = jnp.maximum(acc, jnp.dot(x_ref[k], w, preferred_element_type=jnp.float32))
    # bias is uniform over the window, so max(conv+b) == max(conv)+b
    o_ref[...] = jnp.maximum(acc + b_ref[...], 0.0).astype(o_ref.dtype)


def _mlp_kernel(x_ref, w1_ref, b1_ref, w2_ref, b2_ref, w3_ref, b3_ref, o_ref):
    # fc1+relu -> fc2+relu -> fc3, all weights resident in VMEM.
    h = jnp.dot(x_ref[...], w1_ref[...], preferred_element_type=jnp.float32) + b1_ref[...]
    h = jnp.maximum(h, 0.0).astype(jnp.bfloat16)
    h = jnp.dot(h, w2_ref[...], preferred_element_type=jnp.float32) + b2_ref[...]
    h = jnp.maximum(h, 0.0).astype(jnp.bfloat16)
    out = jnp.dot(h, w3_ref[...], preferred_element_type=jnp.float32) + b3_ref[...]
    o_ref[...] = out.astype(o_ref.dtype)


# ----------------------------------------------------------------------------
# pallas_call wrappers
# ----------------------------------------------------------------------------
def _pad_rows(x, mp):
    m = x.shape[0]
    if mp == m:
        return x
    return jnp.zeros((mp,) + x.shape[1:], x.dtype).at[:m].set(x)


def gemm_bias_act(x, w, b, *, apply_relu, out_dtype=jnp.bfloat16, tm=512):
    """relu?(x @ w + b). Rows tiled over a parallel grid; bf16 MXU, f32 accumulate."""
    M, K = x.shape
    Kw, Np = w.shape
    assert K == Kw and Np % 128 == 0
    TM = min(tm, _round_up(M, 8))
    Mp = _round_up(M, TM)
    xp = _pad_rows(x.astype(jnp.bfloat16), Mp)
    cost = pl.CostEstimate(
        flops=2 * Mp * K * Np, transcendentals=0,
        bytes_accessed=Mp * K * 2 + K * Np * 2 + Np * 4
        + Mp * Np * jnp.dtype(out_dtype).itemsize)
    out = pl.pallas_call(
        functools.partial(_gemm_bias_act_kernel, apply_relu=apply_relu),
        out_shape=jax.ShapeDtypeStruct((Mp, Np), out_dtype),
        grid=(Mp // TM,),
        in_specs=[pl.BlockSpec((TM, K), lambda i: (i, 0)),
                  pl.BlockSpec((K, Np), lambda i: (0, 0)),
                  pl.BlockSpec((1, Np), lambda i: (0, 0))],
        out_specs=pl.BlockSpec((TM, Np), lambda i: (i, 0)),
        compiler_params=pltpu.CompilerParams(dimension_semantics=("parallel",)),
        cost_estimate=cost,
    )(xp, w, b)
    return out  # (Mp, Np) -- caller slices valid rows / channels


def conv_pool_relu(x4, w, b, *, tm=256):
    """relu(maxpool2x2(conv3(x))) as one GEMM with the pool+relu fused in the epilogue.
    x4: (4, Mpool, K) im2col patches grouped by 2x2 pooling window."""
    _, M, K = x4.shape
    Kw, Np = w.shape
    assert K == Kw and Np % 128 == 0
    TM = min(tm, _round_up(M, 8))
    Mp = _round_up(M, TM)
    xp = x4 if Mp == M else jnp.zeros((4, Mp, K), x4.dtype).at[:, :M].set(x4)
    cost = pl.CostEstimate(
        flops=8 * Mp * K * Np, transcendentals=0,
        bytes_accessed=4 * Mp * K * 2 + K * Np * 2 + Np * 4 + Mp * Np * 2)
    out = pl.pallas_call(
        _conv_pool_relu_kernel,
        out_shape=jax.ShapeDtypeStruct((Mp, Np), jnp.bfloat16),
        grid=(Mp // TM,),
        in_specs=[pl.BlockSpec((4, TM, K), lambda i: (0, i, 0)),
                  pl.BlockSpec((K, Np), lambda i: (0, 0)),
                  pl.BlockSpec((1, Np), lambda i: (0, 0))],
        out_specs=pl.BlockSpec((TM, Np), lambda i: (i, 0)),
        compiler_params=pltpu.CompilerParams(dimension_semantics=("parallel",)),
        cost_estimate=cost,
    )(xp, w, b)
    return out[:M]


def mlp_fused(x, w1, b1, w2, b2, w3, b3, *, tb=256):
    """fc1+relu -> fc2+relu -> fc3 in a single pallas_call (weights stay in VMEM)."""
    B, K1 = x.shape
    N1, N2, N3 = w1.shape[1], w2.shape[1], w3.shape[1]
    TB = min(tb, _round_up(B, 8))
    Bp = _round_up(B, TB)
    xp = _pad_rows(x.astype(jnp.bfloat16), Bp)
    flops = 2 * Bp * (K1 * N1 + N1 * N2 + N2 * N3)
    bytes_acc = (Bp * K1 * 2 + (K1 * N1 + N1 * N2 + N2 * N3) * 2
                 + (N1 + N2 + N3) * 4 + Bp * N3 * 4)
    out = pl.pallas_call(
        _mlp_kernel,
        out_shape=jax.ShapeDtypeStruct((Bp, N3), jnp.float32),
        grid=(Bp // TB,),
        in_specs=[pl.BlockSpec((TB, K1), lambda i: (i, 0)),
                  pl.BlockSpec((K1, N1), lambda i: (0, 0)),
                  pl.BlockSpec((1, N1), lambda i: (0, 0)),
                  pl.BlockSpec((N1, N2), lambda i: (0, 0)),
                  pl.BlockSpec((1, N2), lambda i: (0, 0)),
                  pl.BlockSpec((N2, N3), lambda i: (0, 0)),
                  pl.BlockSpec((1, N3), lambda i: (0, 0))],
        out_specs=pl.BlockSpec((TB, N3), lambda i: (i, 0)),
        compiler_params=pltpu.CompilerParams(dimension_semantics=("parallel",)),
        cost_estimate=pl.CostEstimate(flops=flops, transcendentals=0,
                                      bytes_accessed=bytes_acc),
    )(xp, w1, b1, w2, b2, w3, b3)
    return out[:B]


# ----------------------------------------------------------------------------
# im2col glue (XLA-fused gather; VALID 3x3, stride 1)
# ----------------------------------------------------------------------------
def _im2col(x_nhwc, kh=3, kw=3):
    # TODO(synk): move the patch gather into the conv kernels (index_map over output
    # rows) to avoid materializing the 9x-duplicated patch matrix in HBM.
    B, H, W, C = x_nhwc.shape
    OH, OW = H - kh + 1, W - kw + 1
    cols = [x_nhwc[:, i:i + OH, j:j + OW, :] for i in range(kh) for j in range(kw)]
    p = jnp.stack(cols, axis=-1)               # (B, OH, OW, C, kh*kw)
    return p.reshape(B, OH, OW, C * kh * kw)   # K ordered (c, i, j) to match torch weights


# ----------------------------------------------------------------------------
# Parameters: PyTorch-style init, then one-time preprocessing
# ----------------------------------------------------------------------------
def init_params(key):
    def uniform(k, shape, fan_in):
        bound = 1.0 / jnp.sqrt(fan_in)
        return jax.random.uniform(k, shape, jnp.float32, -bound, bound)

    keys = jax.random.split(key, 12)
    p = {}
    p["conv1_w"] = uniform(keys[0], (16, 1, 3, 3), 1 * 9)
    p["conv1_b"] = uniform(keys[1], (16,), 1 * 9)
    p["conv2_w"] = uniform(keys[2], (24, 16, 3, 3), 16 * 9)
    p["conv2_b"] = uniform(keys[3], (24,), 16 * 9)
    p["conv3_w"] = uniform(keys[4], (32, 24, 3, 3), 24 * 9)
    p["conv3_b"] = uniform(keys[5], (32,), 24 * 9)
    p["fc1_w"] = uniform(keys[6], (512, _FLAT), _FLAT)
    p["fc1_b"] = uniform(keys[7], (512,), _FLAT)
    p["fc2_w"] = uniform(keys[8], (256, 512), 512)
    p["fc2_b"] = uniform(keys[9], (256,), 512)
    p["fc3_w"] = uniform(keys[10], (_NUM_CLASSES, 256), 256)
    p["fc3_b"] = uniform(keys[11], (_NUM_CLASSES,), 256)
    return p


def preprocess_params(p):
    """One-time weight prep: transpose to (K, N), pad N to 128 lanes, absorb the
    NHWC->NCHW flatten into fc1's columns, cast matmul operands to bf16."""
    def conv_w(w):
        cout = w.shape[0]
        wm = w.reshape(cout, -1).T.astype(jnp.bfloat16)       # (Cin*9, Cout)
        np_ = _round_up(cout, 128)
        return jnp.zeros((wm.shape[0], np_), jnp.bfloat16).at[:, :cout].set(wm)

    def bias(b):
        n = b.shape[0]
        np_ = _round_up(n, 128)
        return jnp.zeros((1, np_), jnp.float32).at[0, :n].set(b.astype(jnp.float32))

    q = {}
    for i in (1, 2, 3):
        q[f"conv{i}_w"] = conv_w(p[f"conv{i}_w"])
        q[f"conv{i}_b"] = bias(p[f"conv{i}_b"])

    # torch flattens NCHW -> column order (c, h, w); our activations flatten (h, w, c).
    c3 = _CONV_COUT[2]
    w1 = (p["fc1_w"].reshape(512, c3, _POOLED_HW, _POOLED_HW)
          .transpose(0, 2, 3, 1).reshape(512, _FLAT))
    q["fc1_w"] = w1.T.astype(jnp.bfloat16)                    # (3872, 512)
    q["fc1_b"] = bias(p["fc1_b"])                             # (1, 512)
    q["fc2_w"] = p["fc2_w"].T.astype(jnp.bfloat16)            # (512, 256)
    q["fc2_b"] = bias(p["fc2_b"])                             # (1, 256)
    w3 = p["fc3_w"].T.astype(jnp.bfloat16)                    # (256, 52)
    np3 = _round_up(w3.shape[1], 128)
    q["fc3_w"] = jnp.zeros((w3.shape[0], np3), jnp.bfloat16).at[:, :w3.shape[1]].set(w3)
    q["fc3_b"] = bias(p["fc3_b"])                             # (1, 128)
    return q


# ----------------------------------------------------------------------------
# Forward pass (matches CNN.forward)
# ----------------------------------------------------------------------------
def cnn_forward(params, x_nchw):
    B = x_nchw.shape[0]
    x = jnp.transpose(x_nchw, (0, 2, 3, 1)).astype(jnp.bfloat16)   # NCHW -> NHWC

    # conv1 + relu  (K = 9, unpadded)
    p = _im2col(x)
    _, OH, OW, K = p.shape
    y = gemm_bias_act(p.reshape(B * OH * OW, K), params["conv1_w"], params["conv1_b"],
                      apply_relu=True)
    x = y[:B * OH * OW, :_CONV_COUT[0]].reshape(B, OH, OW, _CONV_COUT[0])

    # conv2 + relu  (K = 144)
    p = _im2col(x)
    _, OH, OW, K = p.shape
    y = gemm_bias_act(p.reshape(B * OH * OW, K), params["conv2_w"], params["conv2_b"],
                      apply_relu=True)
    x = y[:B * OH * OW, :_CONV_COUT[1]].reshape(B, OH, OW, _CONV_COUT[1])

    # conv3 -> maxpool2x2 -> relu, fused into one GEMM epilogue.
    # Patch rows are regrouped so the 4 members of each pooling window share a row index.
    p = _im2col(x)                                             # (B, 22, 22, 216)
    _, OH, OW, K = p.shape
    PH, PW = OH // 2, OW // 2
    p4 = (p.reshape(B, PH, 2, PW, 2, K)
          .transpose(2, 4, 0, 1, 3, 5)
          .reshape(4, B * PH * PW, K))
    y = conv_pool_relu(p4, params["conv3_w"], params["conv3_b"])  # (B*121, 128) bf16

    # Flatten in (h, w, c) order — fc1's columns were pre-permuted to absorb
    # torch.flatten's NCHW (c, h, w) ordering, so no activation transpose here.
    x = y[:, :_CONV_COUT[2]].reshape(B, _FLAT)

    logits = mlp_fused(x, params["fc1_w"], params["fc1_b"],
                       params["fc2_w"], params["fc2_b"],
                       params["fc3_w"], params["fc3_b"])
    return logits[:, :_NUM_CLASSES]


if __name__ == "__main__":
    key = jax.random.PRNGKey(0)
    pkey, xkey = jax.random.split(key)
    raw_params = init_params(pkey)
    params = preprocess_params(raw_params)       # one-time pad / transpose / permute
    # EMNIST-shaped input: the 3872-dim flatten forces 28x28 single-channel.
    x = jax.random.normal(xkey, (2, 1, 28, 28), jnp.float32)

    logits = jax.jit(cnn_forward)(params, x)
    logits = jax.block_until_ready(logits)
    assert logits.shape == (2, _NUM_CLASSES), logits.shape
    assert jnp.all(jnp.isfinite(logits))
    print("KERNEL_OK")
</pallas_src>

<mosaic_0001>
module attributes {stable_mosaic.version = 11 : i64} {
  func.func @_gemm_bias_act_kernel(%arg0: i32, %arg1: memref<512x9xbf16, #tpu.memory_space<vmem>>, %arg2: memref<9x128xbf16, #tpu.memory_space<vmem>>, %arg3: memref<1x128xf32, #tpu.memory_space<vmem>>, %arg4: memref<512x128xbf16, #tpu.memory_space<vmem>>) attributes {dimension_semantics = [#tpu.dimension_semantics<parallel>], iteration_bounds = array<i64: 3>, scalar_prefetch = 0 : i64, scratch_operands = 0 : i64, tpu.core_type = #tpu.core_type<tc>, window_params = [{transform_indices = @transform_0, window_bounds = array<i64: 512, 9>}, {pipeline_mode = #tpu.pipeline_mode<synchronous>, transform_indices = @transform_1, window_bounds = array<i64: 9, 128>}, {pipeline_mode = #tpu.pipeline_mode<synchronous>, transform_indices = @transform_2, window_bounds = array<i64: 1, 128>}, {transform_indices = @transform_3, window_bounds = array<i64: 512, 128>}]} {
    %c0 = arith.constant 0 : index
    %c0_0 = arith.constant 0 : index
    %0 = vector.load %arg1[%c0, %c0_0] : memref<512x9xbf16, #tpu.memory_space<vmem>>, vector<512x9xbf16>
    %c0_1 = arith.constant 0 : index
    %c0_2 = arith.constant 0 : index
    %1 = vector.load %arg2[%c0_1, %c0_2] : memref<9x128xbf16, #tpu.memory_space<vmem>>, vector<9x128xbf16>
    %cst = arith.constant dense<0.000000e+00> : vector<512x128xf32>
    %2 = tpu.matmul %0, %1, %cst {dimension_numbers = #tpu.dot_dimension_numbers<[1], [0], [0], [1], [0, 0, 1, 1], [], []>} : vector<512x9xbf16>, vector<9x128xbf16>, vector<512x128xf32> -> vector<512x128xf32>
    %c0_3 = arith.constant 0 : index
    %c0_4 = arith.constant 0 : index
    %3 = vector.load %arg3[%c0_3, %c0_4] : memref<1x128xf32, #tpu.memory_space<vmem>>, vector<1x128xf32>
    %4 = vector.broadcast %3 : vector<1x128xf32> to vector<512x128xf32>
    %5 = arith.addf %2, %4 : vector<512x128xf32>
    %cst_5 = arith.constant 0.000000e+00 : f32
    %6 = vector.broadcast %cst_5 : f32 to vector<512x128xf32>
    %7 = arith.maximumf %5, %6 : vector<512x128xf32>
    %8 = arith.truncf %7 : vector<512x128xf32> to vector<512x128xbf16>
    %c0_6 = arith.constant 0 : index
    %c0_7 = arith.constant 0 : index
    %9 = vector.load %arg4[%c0_6, %c0_7] : memref<512x128xbf16, #tpu.memory_space<vmem>>, vector<512x128xbf16>
    tpu.vector_store %arg4[%c0_6, %c0_7], %8 {strides = array<i32>} : memref<512x128xbf16, #tpu.memory_space<vmem>>, vector<512x128xbf16>,
    return
  }
  func.func @transform_0(%arg0: i32) -> (i32, i32) {
    %c0_i32 = arith.constant 0 : i32
    %c0_i32_0 = arith.constant 0 : i32
    return %arg0, %c0_i32 : i32, i32
  }
  func.func @transform_1(%arg0: i32) -> (i32, i32) {
    %c0_i32 = arith.constant 0 : i32
    %c0_i32_0 = arith.constant 0 : i32
    %c0_i32_1 = arith.constant 0 : i32
    return %c0_i32, %c0_i32_0 : i32, i32
  }
  func.func @transform_2(%arg0: i32) -> (i32, i32) {
    %c0_i32 = arith.constant 0 : i32
    %c0_i32_0 = arith.constant 0 : i32
    %c0_i32_1 = arith.constant 0 : i32
    return %c0_i32, %c0_i32_0 : i32, i32
  }
  func.func @transform_3(%arg0: i32) -> (i32, i32) {
    %c0_i32 = arith.constant 0 : i32
    %c0_i32_0 = arith.constant 0 : i32
    return %arg0, %c0_i32 : i32, i32
  }
}

module attributes {stable_mosaic.version = 11 : i64} {
  func.func @_gemm_bias_act_kernel(%arg0: i32, %arg1: memref<512x144xbf16, #tpu.memory_space<vmem>>, %arg2: memref<144x128xbf16, #tpu.memory_space<vmem>>, %arg3: memref<1x128xf32, #tpu.memory_space<vmem>>, %arg4: memref<512x128xbf16, #tpu.memory_space<vmem>>) attributes {dimension_semantics = [#tpu.dimension_semantics<parallel>], iteration_bounds = array<i64: 3>, scalar_prefetch = 0 : i64, scratch_operands = 0 : i64, tpu.core_type = #tpu.core_type<tc>, window_params = [{transform_indices = @transform_0, window_bounds = array<i64: 512, 144>}, {pipeline_mode = #tpu.pipeline_mode<synchronous>, transform_indices = @transform_1, window_bounds = array<i64: 144, 128>}, {pipeline_mode = #tpu.pipeline_mode<synchronous>, transform_indices = @transform_2, window_bounds = array<i64: 1, 128>}, {transform_indices = @transform_3, window_bounds = array<i64: 512, 128>}]} {
    %c0 = arith.constant 0 : index
    %c0_0 = arith.constant 0 : index
    %0 = vector.load %arg1[%c0, %c0_0] : memref<512x144xbf16, #tpu.memory_space<vmem>>, vector<512x144xbf16>
    %c0_1 = arith.constant 0 : index
    %c0_2 = arith.constant 0 : index
    %1 = vector.load %arg2[%c0_1, %c0_2] : memref<144x128xbf16, #tpu.memory_space<vmem>>, vector<144x128xbf16>
    %cst = arith.constant dense<0.000000e+00> : vector<512x128xf32>
    %2 = tpu.matmul %0, %1, %cst {dimension_numbers = #tpu.dot_dimension_numbers<[1], [0], [0], [1], [0, 0, 1, 1], [], []>} : vector<512x144xbf16>, vector<144x128xbf16>, vector<512x128xf32> -> vector<512x128xf32>
    %c0_3 = arith.constant 0 : index
    %c0_4 = arith.constant 0 : index
    %3 = vector.load %arg3[%c0_3, %c0_4] : memref<1x128xf32, #tpu.memory_space<vmem>>, vector<1x128xf32>
    %4 = vector.broadcast %3 : vector<1x128xf32> to vector<512x128xf32>
    %5 = arith.addf %2, %4 : vector<512x128xf32>
    %cst_5 = arith.constant 0.000000e+00 : f32
    %6 = vector.broadcast %cst_5 : f32 to vector<512x128xf32>
    %7 = arith.maximumf %5, %6 : vector<512x128xf32>
    %8 = arith.truncf %7 : vector<512x128xf32> to vector<512x128xbf16>
    %c0_6 = arith.constant 0 : index
    %c0_7 = arith.constant 0 : index
    %9 = vector.load %arg4[%c0_6, %c0_7] : memref<512x128xbf16, #tpu.memory_space<vmem>>, vector<512x128xbf16>
    tpu.vector_store %arg4[%c0_6, %c0_7], %8 {strides = array<i32>} : memref<512x128xbf16, #tpu.memory_space<vmem>>, vector<512x128xbf16>,
    return
  }
  func.func @transform_0(%arg0: i32) -> (i32, i32) {
    %c0_i32 = arith.constant 0 : i32
    %c0_i32_0 = arith.constant 0 : i32
    return %arg0, %c0_i32 : i32, i32
  }
  func.func @transform_1(%arg0: i32) -> (i32, i32) {
    %c0_i32 = arith.constant 0 : i32
    %c0_i32_0 = arith.constant 0 : i32
    %c0_i32_1 = arith.constant 0 : i32
    return %c0_i32, %c0_i32_0 : i32, i32
  }
  func.func @transform_2(%arg0: i32) -> (i32, i32) {
    %c0_i32 = arith.constant 0 : i32
    %c0_i32_0 = arith.constant 0 : i32
    %c0_i32_1 = arith.constant 0 : i32
    return %c0_i32, %c0_i32_0 : i32, i32
  }
  func.func @transform_3(%arg0: i32) -> (i32, i32) {
    %c0_i32 = arith.constant 0 : i32
    %c0_i32_0 = arith.constant 0 : i32
    return %arg0, %c0_i32 : i32, i32
  }
}

module attributes {stable_mosaic.version = 11 : i64} {
  func.func @_conv_pool_relu_kernel(%arg0: i32, %arg1: memref<4x248x216xbf16, #tpu.memory_space<vmem>>, %arg2: memref<216x128xbf16, #tpu.memory_space<vmem>>, %arg3: memref<1x128xf32, #tpu.memory_space<vmem>>, %arg4: memref<248x128xbf16, #tpu.memory_space<vmem>>) attributes {dimension_semantics = [#tpu.dimension_semantics<parallel>], iteration_bounds = array<i64: 1>, scalar_prefetch = 0 : i64, scratch_operands = 0 : i64, tpu.core_type = #tpu.core_type<tc>, window_params = [{transform_indices = @transform_0, window_bounds = array<i64: 4, 248, 216>}, {pipeline_mode = #tpu.pipeline_mode<synchronous>, transform_indices = @transform_1, window_bounds = array<i64: 216, 128>}, {pipeline_mode = #tpu.pipeline_mode<synchronous>, transform_indices = @transform_2, window_bounds = array<i64: 1, 128>}, {transform_indices = @transform_3, window_bounds = array<i64: 248, 128>}]} {
    %c0 = arith.constant 0 : index
    %c0_0 = arith.constant 0 : index
    %0 = vector.load %arg2[%c0, %c0_0] : memref<216x128xbf16, #tpu.memory_space<vmem>>, vector<216x128xbf16>
    %c0_1 = arith.constant 0 : index
    %c0_2 = arith.constant 0 : index
    %c0_3 = arith.constant 0 : index
    %1 = vector.load %arg1[%c0_1, %c0_2, %c0_3] : memref<4x248x216xbf16, #tpu.memory_space<vmem>>, vector<1x248x216xbf16>
    %2 = vector.shape_cast %1 : vector<1x248x216xbf16> to vector<248x216xbf16>
    %cst = arith.constant dense<0.000000e+00> : vector<248x128xf32>
    %3 = tpu.matmul %2, %0, %cst {dimension_numbers = #tpu.dot_dimension_numbers<[1], [0], [0], [1], [0, 0, 1, 1], [], []>} : vector<248x216xbf16>, vector<216x128xbf16>, vector<248x128xf32> -> vector<248x128xf32>
    %c1 = arith.constant 1 : index
    %c0_4 = arith.constant 0 : index
    %c0_5 = arith.constant 0 : index
    %4 = vector.load %arg1[%c1, %c0_4, %c0_5] : memref<4x248x216xbf16, #tpu.memory_space<vmem>>, vector<1x248x216xbf16>
    %5 = vector.shape_cast %4 : vector<1x248x216xbf16> to vector<248x216xbf16>
    %cst_6 = arith.constant dense<0.000000e+00> : vector<248x128xf32>
    %6 = tpu.matmul %5, %0, %cst_6 {dimension_numbers = #tpu.dot_dimension_numbers<[1], [0], [0], [1], [0, 0, 1, 1], [], []>} : vector<248x216xbf16>, vector<216x128xbf16>, vector<248x128xf32> -> vector<248x128xf32>
    %7 = arith.maximumf %3, %6 : vector<248x128xf32>
    %c2 = arith.constant 2 : index
    %c0_7 = arith.constant 0 : index
    %c0_8 = arith.constant 0 : index
    %8 = vector.load %arg1[%c2, %c0_7, %c0_8] : memref<4x248x216xbf16, #tpu.memory_space<vmem>>, vector<1x248x216xbf16>
    %9 = vector.shape_cast %8 : vector<1x248x216xbf16> to vector<248x216xbf16>
    %cst_9 = arith.constant dense<0.000000e+00> : vector<248x128xf32>
    %10 = tpu.matmul %9, %0, %cst_9 {dimension_numbers = #tpu.dot_dimension_numbers<[1], [0], [0], [1], [0, 0, 1, 1], [], []>} : vector<248x216xbf16>, vector<216x128xbf16>, vector<248x128xf32> -> vector<248x128xf32>
    %11 = arith.maximumf %7, %10 : vector<248x128xf32>
    %c3 = arith.constant 3 : index
    %c0_10 = arith.constant 0 : index
    %c0_11 = arith.constant 0 : index
    %12 = vector.load %arg1[%c3, %c0_10, %c0_11] : memref<4x248x216xbf16, #tpu.memory_space<vmem>>, vector<1x248x216xbf16>
    %13 = vector.shape_cast %12 : vector<1x248x216xbf16> to vector<248x216xbf16>
    %cst_12 = arith.constant dense<0.000000e+00> : vector<248x128xf32>
    %14 = tpu.matmul %13, %0, %cst_12 {dimension_numbers = #tpu.dot_dimension_numbers<[1], [0], [0], [1], [0, 0, 1, 1], [], []>} : vector<248x216xbf16>, vector<216x128xbf16>, vector<248x128xf32> -> vector<248x128xf32>
    %15 = arith.maximumf %11, %14 : vector<248x128xf32>
    %c0_13 = arith.constant 0 : index
    %c0_14 = arith.constant 0 : index
    %16 = vector.load %arg3[%c0_13, %c0_14] : memref<1x128xf32, #tpu.memory_space<vmem>>, vector<1x128xf32>
    %17 = vector.broadcast %16 : vector<1x128xf32> to vector<248x128xf32>
    %18 = arith.addf %15, %17 : vector<248x128xf32>
    %cst_15 = arith.constant 0.000000e+00 : f32
    %19 = vector.broadcast %cst_15 : f32 to vector<248x128xf32>
    %20 = arith.maximumf %18, %19 : vector<248x128xf32>
    %21 = arith.truncf %20 : vector<248x128xf32> to vector<248x128xbf16>
    %c0_16 = arith.constant 0 : index
    %c0_17 = arith.constant 0 : index
    %22 = vector.load %arg4[%c0_16, %c0_17] : memref<248x128xbf16, #tpu.memory_space<vmem>>, vector<248x128xbf16>
    tpu.vector_store %arg4[%c0_16, %c0_17], %21 {strides = array<i32>} : memref<248x128xbf16, #tpu.memory_space<vmem>>, vector<248x128xbf16>,
    return
  }
  func.func @transform_0(%arg0: i32) -> (i32, i32, i32) {
    %c0_i32 = arith.constant 0 : i32
    %c0_i32_0 = arith.constant 0 : i32
    %c0_i32_1 = arith.constant 0 : i32
    return %c0_i32, %arg0, %c0_i32_0 : i32, i32, i32
  }
  func.func @transform_1(%arg0: i32) -> (i32, i32) {
    %c0_i32 = arith.constant 0 : i32
    %c0_i32_0 = arith.constant 0 : i32
    %c0_i32_1 = arith.constant 0 : i32
    return %c0_i32, %c0_i32_0 : i32, i32
  }
  func.func @transform_2(%arg0: i32) -> (i32, i32) {
    %c0_i32 = arith.constant 0 : i32
    %c0_i32_0 = arith.constant 0 : i32
    %c0_i32_1 = arith.constant 0 : i32
    return %c0_i32, %c0_i32_0 : i32, i32
  }
  func.func @transform_3(%arg0: i32) -> (i32, i32) {
    %c0_i32 = arith.constant 0 : i32
    %c0_i32_0 = arith.constant 0 : i32
    return %arg0, %c0_i32 : i32, i32
  }
}

module attributes {stable_mosaic.version = 11 : i64} {
  func.func @_mlp_kernel(%arg0: i32, %arg1: memref<8x3872xbf16, #tpu.memory_space<vmem>>, %arg2: memref<3872x512xbf16, #tpu.memory_space<vmem>>, %arg3: memref<1x512xf32, #tpu.memory_space<vmem>>, %arg4: memref<512x256xbf16, #tpu.memory_space<vmem>>, %arg5: memref<1x256xf32, #tpu.memory_space<vmem>>, %arg6: memref<256x128xbf16, #tpu.memory_space<vmem>>, %arg7: memref<1x128xf32, #tpu.memory_space<vmem>>, %arg8: memref<8x128xf32, #tpu.memory_space<vmem>>) attributes {dimension_semantics = [#tpu.dimension_semantics<parallel>], iteration_bounds = array<i64: 1>, scalar_prefetch = 0 : i64, scratch_operands = 0 : i64, tpu.core_type = #tpu.core_type<tc>, window_params = [{transform_indices = @transform_0, window_bounds = array<i64: 8, 3872>}, {pipeline_mode = #tpu.pipeline_mode<synchronous>, transform_indices = @transform_1, window_bounds = array<i64: 3872, 512>}, {pipeline_mode = #tpu.pipeline_mode<synchronous>, transform_indices = @transform_2, window_bounds = array<i64: 1, 512>}, {pipeline_mode = #tpu.pipeline_mode<synchronous>, transform_indices = @transform_3, window_bounds = array<i64: 512, 256>}, {pipeline_mode = #tpu.pipeline_mode<synchronous>, transform_indices = @transform_4, window_bounds = array<i64: 1, 256>}, {pipeline_mode = #tpu.pipeline_mode<synchronous>, transform_indices = @transform_5, window_bounds = array<i64: 256, 128>}, {pipeline_mode = #tpu.pipeline_mode<synchronous>, transform_indices = @transform_6, window_bounds = array<i64: 1, 128>}, {transform_indices = @transform_7, window_bounds = array<i64: 8, 128>}]} {
    %c0 = arith.constant 0 : index
    %c0_0 = arith.constant 0 : index
    %0 = vector.load %arg1[%c0, %c0_0] : memref<8x3872xbf16, #tpu.memory_space<vmem>>, vector<8x3872xbf16>
    %c0_1 = arith.constant 0 : index
    %c0_2 = arith.constant 0 : index
    %1 = vector.load %arg2[%c0_1, %c0_2] : memref<3872x512xbf16, #tpu.memory_space<vmem>>, vector<3872x512xbf16>
    %cst = arith.constant dense<0.000000e+00> : vector<8x512xf32>
    %2 = tpu.matmul %0, %1, %cst {dimension_numbers = #tpu.dot_dimension_numbers<[1], [0], [0], [1], [0, 0, 1, 1], [], []>} : vector<8x3872xbf16>, vector<3872x512xbf16>, vector<8x512xf32> -> vector<8x512xf32>
    %c0_3 = arith.constant 0 : index
    %c0_4 = arith.constant 0 : index
    %3 = vector.load %arg3[%c0_3, %c0_4] : memref<1x512xf32, #tpu.memory_space<vmem>>, vector<1x512xf32>
    %4 = vector.broadcast %3 : vector<1x512xf32> to vector<8x512xf32>
    %5 = arith.addf %2, %4 : vector<8x512xf32>
    %cst_5 = arith.constant 0.000000e+00 : f32
    %6 = vector.broadcast %cst_5 : f32 to vector<8x512xf32>
    %7 = arith.maximumf %5, %6 : vector<8x512xf32>
    %8 = arith.truncf %7 : vector<8x512xf32> to vector<8x512xbf16>
    %c0_6 = arith.constant 0 : index
    %c0_7 = arith.constant 0 : index
    %9 = vector.load %arg4[%c0_6, %c0_7] : memref<512x256xbf16, #tpu.memory_space<vmem>>, vector<512x256xbf16>
    %cst_8 = arith.constant dense<0.000000e+00> : vector<8x256xf32>
    %10 = tpu.matmul %8, %9, %cst_8 {dimension_numbers = #tpu.dot_dimension_numbers<[1], [0], [0], [1], [0, 0, 1, 1], [], []>} : vector<8x512xbf16>, vector<512x256xbf16>, vector<8x256xf32> -> vector<8x256xf32>
    %c0_9 = arith.constant 0 : index
    %c0_10 = arith.constant 0 : index
    %11 = vector.load %arg5[%c0_9, %c0_10] : memref<1x256xf32, #tpu.memory_space<vmem>>, vector<1x256xf32>
    %12 = vector.broadcast %11 : vector<1x256xf32> to vector<8x256xf32>
    %13 = arith.addf %10, %12 : vector<8x256xf32>
    %cst_11 = arith.constant 0.000000e+00 : f32
    %14 = vector.broadcast %cst_11 : f32 to vector<8x256xf32>
    %15 = arith.maximumf %13, %14 : vector<8x256xf32>
    %16 = arith.truncf %15 : vector<8x256xf32> to vector<8x256xbf16>
    %c0_12 = arith.constant 0 : index
    %c0_13 = arith.constant 0 : index
    %17 = vector.load %arg6[%c0_12, %c0_13] : memref<256x128xbf16, #tpu.memory_space<vmem>>, vector<256x128xbf16>
    %cst_14 = arith.constant dense<0.000000e+00> : vector<8x128xf32>
    %18 = tpu.matmul %16, %17, %cst_14 {dimension_numbers = #tpu.dot_dimension_numbers<[1], [0], [0], [1], [0, 0, 1, 1], [], []>} : vector<8x256xbf16>, vector<256x128xbf16>, vector<8x128xf32> -> vector<8x128xf32>
    %c0_15 = arith.constant 0 : index
    %c0_16 = arith.constant 0 : index
    %19 = vector.load %arg7[%c0_15, %c0_16] : memref<1x128xf32, #tpu.memory_space<vmem>>, vector<1x128xf32>
    %20 = vector.broadcast %19 : vector<1x128xf32> to vector<8x128xf32>
    %21 = arith.addf %18, %20 : vector<8x128xf32>
    %c0_17 = arith.constant 0 : index
    %c0_18 = arith.constant 0 : index
    %22 = vector.load %arg8[%c0_17, %c0_18] : memref<8x128xf32, #tpu.memory_space<vmem>>, vector<8x128xf32>
    tpu.vector_store %arg8[%c0_17, %c0_18], %21 {strides = array<i32>} : memref<8x128xf32, #tpu.memory_space<vmem>>, vector<8x128xf32>,
    return
  }
  func.func @transform_0(%arg0: i32) -> (i32, i32) {
    %c0_i32 = arith.constant 0 : i32
    %c0_i32_0 = arith.constant 0 : i32
    return %arg0, %c0_i32 : i32, i32
  }
  func.func @transform_1(%arg0: i32) -> (i32, i32) {
    %c0_i32 = arith.constant 0 : i32
    %c0_i32_0 = arith.constant 0 : i32
    %c0_i32_1 = arith.constant 0 : i32
    return %c0_i32, %c0_i32_0 : i32, i32
  }
  func.func @transform_2(%arg0: i32) -> (i32, i32) {
    %c0_i32 = arith.constant 0 : i32
    %c0_i32_0 = arith.constant 0 : i32
    %c0_i32_1 = arith.constant 0 : i32
    return %c0_i32, %c0_i32_0 : i32, i32
  }
  func.func @transform_3(%arg0: i32) -> (i32, i32) {
    %c0_i32 = arith.constant 0 : i32
    %c0_i32_0 = arith.constant 0 : i32
    %c0_i32_1 = arith.constant 0 : i32
    return %c0_i32, %c0_i32_0 : i32, i32
  }
  func.func @transform_4(%arg0: i32) -> (i32, i32) {
    %c0_i32 = arith.constant 0 : i32
    %c0_i32_0 = arith.constant 0 : i32
    %c0_i32_1 = arith.constant 0 : i32
    return %c0_i32, %c0_i32_0 : i32, i32
  }
  func.func @transform_5(%arg0: i32) -> (i32, i32) {
    %c0_i32 = arith.constant 0 : i32
    %c0_i32_0 = arith.constant 0 : i32
    %c0_i32_1 = arith.constant 0 : i32
    return %c0_i32, %c0_i32_0 : i32, i32
  }
  func.func @transform_6(%arg0: i32) -> (i32, i32) {
    %c0_i32 = arith.constant 0 : i32
    %c0_i32_0 = arith.constant 0 : i32
    %c0_i32_1 = arith.constant 0 : i32
    return %c0_i32, %c0_i32_0 : i32, i32
  }
  func.func @transform_7(%arg0: i32) -> (i32, i32) {
    %c0_i32 = arith.constant 0 : i32
    %c0_i32_0 = arith.constant 0 : i32
    return %arg0, %c0_i32 : i32, i32
  }
}

</mosaic_0001>

<llo_original>
// kernel: cnn_forward.4
$region0: #{cnn_forward.4}
  #allocation0 [shape = 'u32[]', space=smem, size = 0x4, offset = 0x4, fixed_abs, tag = 'smem constant byte address 0x4 - core index']
  #allocation1 [shape = 'u32[144,128]{1,0:T(1,128)}', space=vmem, size = 0x12000, scoped, tag = 'internal scratch']
  %s0 = inlined_call_operand.vmem [shape: bf16[1536,9], index: 0, kind: input, shape index: {}]
  %s1 = inlined_call_operand.hbm [shape: bf16[9,128], index: 1, kind: input, shape index: {}]
  %s2 = inlined_call_operand.hbm [shape: f32[1,128], index: 2, kind: input, shape index: {}]
  %s3 = inlined_call_operand.vmem [shape: bf16[1536,128], index: 3, kind: output, shape index: {}]
  %s4 = sld [smem:[#allocation0]]
  $region53: #{cnn_forward.4} parent=0
    _
  %s6 = ssub.s32 1, %s4
  %s7 = scalar_select 0, %s6, %s4
  $region1: #{cnn_forward.4} parent=0
    #allocation2 [shape = 'u8[4096]{0}', space=vmem, size = 0x1000, scoped, tag = 'input window, operand 1, single buffered']
    #allocation3 [shape = 's32[2]{0}', space=sflag, size = 0x8, scoped, tag = 'scoped memory for cnn_forward.4']
    #allocation4 [shape = 'u8[512]{0}', space=vmem, size = 0x400, scoped, tag = 'input window, operand 2, single buffered']
    #allocation5 [shape = 's32[1]{0}', space=sflag, size = 0x4, scoped, tag = 'scoped memory for cnn_forward.4']
    %8 = vsyncpa [#allocation3], 0
    %9 = vsyncpa [#allocation5], 0
    loop: start=0, step=1, limit=5
    $region2: #{cnn_forward.4} parent=1 // loop_pre_header
      _
    $region3: #{cnn_forward.4} parent=1 // loop_header
      %s11 = sphi 0, %s15
      %p12 = scmp.ge.s32.totalorder %s11, 5
      %s21 = sphi 0, %s23
      %s24 = sphi 0, %s21
      %s25 = sphi 0, %s24
      %s41 = sphi 0, %s25
      %s45 = sphi 0, %s45
      %s47 = sphi 0, %s45
      %s48 = sphi 0, %s47
      %s62 = sphi 0, %s48
      %s66 = sphi 0, %s66
      %s68 = sphi 0, %s66
      %s69 = sphi 0, %s68
      %s83 = sphi 0, %s69
      %s89 = sphi 0, %s91
      %s92 = sphi 0, %s89
      %s93 = sphi 0, %s92
      %s109 = sphi 0, %s93
    $region4: #{cnn_forward.4} parent=1 // loop_header_branch
      %14 = sbr.rel (%p12) target = $region8
    $region5: #{cnn_forward.4} parent=1 // loop_body
      %s16 = ssub.s32 %s11, 1
      %s17 = ssub.s32 %s11, 2
      %s18 = sadd.s32 %s11, 1
      %s19 = ssub.s32 %s11, %s18
      %p20 = scmp.eq.s32.totalorder %s19, 0
      %s22 = sadd.s32 %s21, 1
      %s23 = scalar_select %p20, %s21, %s22
      %p26 = pneg %p20
      %p27 = scmp.eq.s32.totalorder %s11, 2
      %p28 = por %p26, %p27
      %p29 = scmp.ne.s32.totalorder %s21, %s24
      %p30 = scmp.eq.s32.totalorder %s11, 0
      %p31 = por %p29, %p30
      %p32 = scmp.ne.s32.totalorder %s21, %s24
      %p33 = scmp.eq.s32.totalorder %s16, 2
      %p34 = por %p32, %p33
      %p35 = scmp.ne.s32.totalorder %s24, %s25
      %p36 = scmp.eq.s32.totalorder %s16, 0
      %p37 = por %p35, %p36
      %p38 = scmp.ne.s32.totalorder %s24, %s25
      %p39 = scmp.eq.s32.totalorder %s17, 2
      %p40 = por %p38, %p39
      %p42 = scmp.ne.s32.totalorder %s25, %s41
      %p43 = scmp.eq.s32.totalorder %s17, 0
      %p44 = por %p42, %p43
      %s46 = sadd.s32 %s45, 1
      %p49 = scmp.eq.s32.totalorder %s11, 2
      %p50 = scmp.ne.s32.totalorder %s45, %s47
      %p51 = scmp.eq.s32.totalorder %s11, 0
      %p52 = por %p50, %p51
      %p53 = scmp.ne.s32.totalorder %s45, %s47
      %p54 = scmp.eq.s32.totalorder %s16, 2
      %p55 = por %p53, %p54
      %p56 = scmp.ne.s32.totalorder %s47, %s48
      %p57 = scmp.eq.s32.totalorder %s16, 0
      %p58 = por %p56, %p57
      %p59 = scmp.ne.s32.totalorder %s47, %s48
      %p60 = scmp.eq.s32.totalorder %s17, 2
      %p61 = por %p59, %p60
      %p63 = scmp.ne.s32.totalorder %s48, %s62
      %p64 = scmp.eq.s32.totalorder %s17, 0
      %p65 = por %p63, %p64
      %s67 = sadd.s32 %s66, 1
      %p70 = scmp.eq.s32.totalorder %s11, 2
      %p71 = scmp.ne.s32.totalorder %s66, %s68
      %p72 = scmp.eq.s32.totalorder %s11, 0
      %p73 = por %p71, %p72
      %p74 = scmp.ne.s32.totalorder %s66, %s68
      %p75 = scmp.eq.s32.totalorder %s16, 2
      %p76 = por %p74, %p75
      %p77 = scmp.ne.s32.totalorder %s68, %s69
      %p78 = scmp.eq.s32.totalorder %s16, 0
      %p79 = por %p77, %p78
      %p80 = scmp.ne.s32.totalorder %s68, %s69
      %p81 = scmp.eq.s32.totalorder %s17, 2
      %p82 = por %p80, %p81
      %p84 = scmp.ne.s32.totalorder %s69, %s83
      %p85 = scmp.eq.s32.totalorder %s17, 0
      %p86 = por %p84, %p85
      %s87 = ssub.s32 %s11, %s18
      %p88 = scmp.eq.s32.totalorder %s87, 0
      %s90 = sadd.s32 %s89, 1
      %s91 = scalar_select %p88, %s89, %s90
      %p94 = pneg %p88
      %p95 = scmp.eq.s32.totalorder %s11, 2
      %p96 = por %p94, %p95
      %p97 = scmp.ne.s32.totalorder %s89, %s92
      %p98 = scmp.eq.s32.totalorder %s11, 0
      %p99 = por %p97, %p98
      %p100 = scmp.ne.s32.totalorder %s89, %s92
      %p101 = scmp.eq.s32.totalorder %s16, 2
      %p102 = por %p100, %p101
      %p103 = scmp.ne.s32.totalorder %s92, %s93
      %p104 = scmp.eq.s32.totalorder %s16, 0
      %p105 = por %p103, %p104
      %p106 = scmp.ne.s32.totalorder %s92, %s93
      %p107 = scmp.eq.s32.totalorder %s17, 2
      %p108 = por %p106, %p107
      %p110 = scmp.ne.s32.totalorder %s93, %s109
      %p111 = scmp.eq.s32.totalorder %s17, 0
      %p112 = por %p110, %p111
      %p113 = scmp.le.s32.totalorder 1, %s11
      %p114 = scmp.lt.s32.totalorder %s11, 4
      %p115 = pnand %p113, %p114
      %p116 = pneg %p115
      // Predicated region
      $region9: #{cnn_forward.4} parent=5 // pred_check
        _
      $region10: #{cnn_forward.4} parent=5 // pred_check_branch
        %118 = sbr.rel (%p115) target = $region12
      $region11: #{cnn_forward.4} parent=5 // pred_region
        %s119 = ssub.s32 %s11, 1
        // Predicated region
        $region13: #{cnn_forward.4} parent=11 // pred_check
          %p120 = pneg %p58
        $region14: #{cnn_forward.4} parent=11 // pred_check_branch
          %122 = sbr.rel (%p120) target = $region16
        $region15: #{cnn_forward.4} parent=11 // pred_region
          %s124 = ssub.s32 128, 128
          %125 = vsyncadd [#allocation3], %s124
          %s126 = sshll.u32 [#allocation2], 4
          %s127 = int_to_ptr.vmem [resolvable:$true] %s126
          %132 = dma.hbm_to_vmem [thread:$0]  %s1, 128, %s127, [#allocation3], 64, 64, 4
        $region16: #{cnn_forward.4} parent=11 // pred_fallthru
          _
        // Predicated region
        $region17: #{cnn_forward.4} parent=11 // pred_check
          %p133 = pneg %p79
        $region18: #{cnn_forward.4} parent=11 // pred_check_branch
          %135 = sbr.rel (%p133) target = $region20
        $region19: #{cnn_forward.4} parent=11 // pred_region
          %s137 = ssub.s32 16, 16
          %138 = vsyncadd [#allocation5], %s137
          %s140 = sshll.u32 [#allocation4], 4
          %s141 = int_to_ptr.vmem [resolvable:$true] %s140
          %143 = dma.hbm_to_vmem [thread:$0]  %s2, 16, %s141, [#allocation5]
        $region20: #{cnn_forward.4} parent=11 // pred_fallthru
          _
      $region12: #{cnn_forward.4} parent=5 // pred_fallthru
        _
      %p144 = scmp.lt.s32.totalorder %s11, 3
      // Predicated region
      $region21: #{cnn_forward.4} parent=5 // pred_check
        %p145 = pneg %p144
      $region22: #{cnn_forward.4} parent=5 // pred_check_branch
        %147 = sbr.rel (%p145) target = $region24
      $region23: #{cnn_forward.4} parent=5 // pred_region
        // Predicated region
        $region25: #{cnn_forward.4} parent=23 // pred_check
          %p148 = pneg %p31
        $region26: #{cnn_forward.4} parent=23 // pred_check_branch
          %150 = sbr.rel (%p148) target = $region28
        $region27: #{cnn_forward.4} parent=23 // pred_region
          %s151 = smul.u32 64, %s11
          %p152 = scmp.lt.s32.totalorder %s151, 191
          %s153 = scalar_select %p152, %s151, 191
          %s154 = smul.addr %s153, 4
          %s155 = scalar_lea.vmem %s0, %s154
          %s156 = smul.u32 64, %s11
        $region28: #{cnn_forward.4} parent=23 // pred_fallthru
          _
      $region24: #{cnn_forward.4} parent=5 // pred_fallthru
        _
      %p157 = scmp.le.s32.totalorder 1, %s11
      %p158 = scmp.lt.s32.totalorder %s11, 4
      %p159 = pnand %p157, %p158
      %p160 = pneg %p159
      // Predicated region
      $region29: #{cnn_forward.4} parent=5 // pred_check
        _
      $region30: #{cnn_forward.4} parent=5 // pred_check_branch
        %162 = sbr.rel (%p159) target = $region32
      $region31: #{cnn_forward.4} parent=5 // pred_region
        %s163 = ssub.s32 %s11, 1
        // Predicated region
        $region33: #{cnn_forward.4} parent=31 // pred_check
          %p164 = pneg %p58
        $region34: #{cnn_forward.4} parent=31 // pred_check_branch
          %166 = sbr.rel (%p164) target = $region36
        $region35: #{cnn_forward.4} parent=31 // pred_region
          %167 = dma.done [#allocation3], 128
        $region36: #{cnn_forward.4} parent=31 // pred_fallthru
          _
        // Predicated region
        $region37: #{cnn_forward.4} parent=31 // pred_check
          %p168 = pneg %p79
        $region38: #{cnn_forward.4} parent=31 // pred_check_branch
          %170 = sbr.rel (%p168) target = $region40
        $region39: #{cnn_forward.4} parent=31 // pred_region
          %171 = dma.done [#allocation5], 16
        $region40: #{cnn_forward.4} parent=31 // pred_fallthru
          _
        %s172 = smul.u32 64, %s16
        %p173 = scmp.lt.s32.totalorder %s172, 191
        %s174 = scalar_select %p173, %s172, 191
        %s175 = smul.addr %s174, 4
        %s176 = scalar_lea.vmem %s0, %s175
        %p177 = pneg %p37
        %p178 = pneg %p34
        %p179 = pneg %p58
        %p180 = pneg %p55
        %p181 = pneg %p79
        %p182 = pneg %p76
        %p183 = pneg %p105
        %p184 = pneg %p102
        %s185 = smul.u32 64, %s16
        %p186 = scmp.lt.s32.totalorder %s185, 191
        %s187 = scalar_select %p186, %s185, 191
        %s188 = smul.addr %s187, 4
        %s189 = scalar_lea.vmem %s3, %s188
        %s190 = smul.u32 64, %s16
        %p191 = scmp.lt.s32.totalorder %s190, 191
        %s192 = scalar_select %p191, %s190, 191
        %s193 = smul.addr %s192, 4
        %s194 = scalar_lea.vmem %s0, %s193
        %s195 = smul.u32 64, %s16
        %s196 = smul.u32 64, %s16
        %p197 = scmp.lt.s32.totalorder %s196, 191
        %s198 = scalar_select %p197, %s196, 191
        %s199 = smul.addr %s198, 4
        %s200 = scalar_lea.vmem %s3, %s199
        %s201 = smul.u32 64, %s16
        %v203 = vld [vmem:[%s194] sm:$0xf]
        %v204 = vld [vmem:[%s194 + $0x4] sm:$0xf]
        %v205 = vld [vmem:[%s194 + $0x8] sm:$0xf]
        %v206 = vld [vmem:[%s194 + $0xc] sm:$0xf]
        %v207 = vld [vmem:[%s194 + $0x10] sm:$0xf]
        %v208 = vld [vmem:[%s194 + $0x14] sm:$0xf]
        %v209 = vld [vmem:[%s194 + $0x18] sm:$0xf]
        %v210 = vld [vmem:[%s194 + $0x1c] sm:$0xf]
        %v211 = vld [vmem:[%s194 + $0x20] sm:$0xf]
        %v212 = vld [vmem:[%s194 + $0x24] sm:$0xf]
        %v213 = vld [vmem:[%s194 + $0x28] sm:$0xf]
        %v214 = vld [vmem:[%s194 + $0x2c] sm:$0xf]
        %v215 = vld [vmem:[%s194 + $0x30] sm:$0xf]
        %v216 = vld [vmem:[%s194 + $0x34] sm:$0xf]
        %v217 = vld [vmem:[%s194 + $0x38] sm:$0xf]
        %v218 = vld [vmem:[%s194 + $0x3c] sm:$0xf]
        %v219 = vld [vmem:[%s194 + $0x40] sm:$0xf]
        %v220 = vld [vmem:[%s194 + $0x44] sm:$0xf]
        %v221 = vld [vmem:[%s194 + $0x48] sm:$0xf]
        %v222 = vld [vmem:[%s194 + $0x4c] sm:$0xf]
        %v223 = vld [vmem:[%s194 + $0x50] sm:$0xf]
        %v224 = vld [vmem:[%s194 + $0x54] sm:$0xf]
        %v225 = vld [vmem:[%s194 + $0x58] sm:$0xf]
        %v226 = vld [vmem:[%s194 + $0x5c] sm:$0xf]
        %v227 = vld [vmem:[%s194 + $0x60] sm:$0xf]
        %v228 = vld [vmem:[%s194 + $0x64] sm:$0xf]
        %v229 = vld [vmem:[%s194 + $0x68] sm:$0xf]
        %v230 = vld [vmem:[%s194 + $0x6c] sm:$0xf]
        %v231 = vld [vmem:[%s194 + $0x70] sm:$0xf]
        %v232 = vld [vmem:[%s194 + $0x74] sm:$0xf]
        %v233 = vld [vmem:[%s194 + $0x78] sm:$0xf]
        %v234 = vld [vmem:[%s194 + $0x7c] sm:$0xf]
        %v235 = vld [vmem:[%s194 + $0x80] sm:$0xf]
        %v236 = vld [vmem:[%s194 + $0x84] sm:$0xf]
        %v237 = vld [vmem:[%s194 + $0x88] sm:$0xf]
        %v238 = vld [vmem:[%s194 + $0x8c] sm:$0xf]
        %v239 = vld [vmem:[%s194 + $0x90] sm:$0xf]
        %v240 = vld [vmem:[%s194 + $0x94] sm:$0xf]
        %v241 = vld [vmem:[%s194 + $0x98] sm:$0xf]
        %v242 = vld [vmem:[%s194 + $0x9c] sm:$0xf]
        %v243 = vld [vmem:[%s194 + $0xa0] sm:$0xf]
        %v244 = vld [vmem:[%s194 + $0xa4] sm:$0xf]
        %v245 = vld [vmem:[%s194 + $0xa8] sm:$0xf]
        %v246 = vld [vmem:[%s194 + $0xac] sm:$0xf]
        %v247 = vld [vmem:[%s194 + $0xb0] sm:$0xf]
        %v248 = vld [vmem:[%s194 + $0xb4] sm:$0xf]
        %v249 = vld [vmem:[%s194 + $0xb8] sm:$0xf]
        %v250 = vld [vmem:[%s194 + $0xbc] sm:$0xf]
        %v251 = vld [vmem:[%s194 + $0xc0] sm:$0xf]
        %v252 = vld [vmem:[%s194 + $0xc4] sm:$0xf]
        %v253 = vld [vmem:[%s194 + $0xc8] sm:$0xf]
        %v254 = vld [vmem:[%s194 + $0xcc] sm:$0xf]
        %v255 = vld [vmem:[%s194 + $0xd0] sm:$0xf]
        %v256 = vld [vmem:[%s194 + $0xd4] sm:$0xf]
        %v257 = vld [vmem:[%s194 + $0xd8] sm:$0xf]
        %v258 = vld [vmem:[%s194 + $0xdc] sm:$0xf]
        %v259 = vld [vmem:[%s194 + $0xe0] sm:$0xf]
        %v260 = vld [vmem:[%s194 + $0xe4] sm:$0xf]
        %v261 = vld [vmem:[%s194 + $0xe8] sm:$0xf]
        %v262 = vld [vmem:[%s194 + $0xec] sm:$0xf]
        %v263 = vld [vmem:[%s194 + $0xf0] sm:$0xf]
        %v264 = vld [vmem:[%s194 + $0xf4] sm:$0xf]
        %v265 = vld [vmem:[%s194 + $0xf8] sm:$0xf]
        %v266 = vld [vmem:[%s194 + $0xfc] sm:$0xf]
        %v267 = vld [vmem:[#allocation2] sm:$0xf]
        %v268 = vld [vmem:[#allocation2 + $0x4] sm:$0x1]
        %v269 = vld [vmem:[#allocation4] sm:$0x1]
        %v271 = vlaneseq
        %v272 = vshrl.u32 %v271, 7
        %v273 = vsub.s32 0, %v272
        %v274 = vrot.slane %v269, %v273
        %v340 = vunpack.c.l.b16 %v203
        %v341 = vunpack.c.l.b16 %v204
        %v342 = vunpack.c.l.b16 %v205
        %v343 = vunpack.c.l.b16 %v206
        %v344 = vunpack.c.l.b16 %v207
        %v345 = vunpack.c.l.b16 %v208
        %v346 = vunpack.c.l.b16 %v209
        %v347 = vunpack.c.l.b16 %v210
        %v348 = vunpack.c.l.b16 %v211
        %v349 = vunpack.c.l.b16 %v212
        %v350 = vunpack.c.l.b16 %v213
        %v351 = vunpack.c.l.b16 %v214
        %v352 = vunpack.c.l.b16 %v215
        %v353 = vunpack.c.l.b16 %v216
        %v354 = vunpack.c.l.b16 %v217
        %v355 = vunpack.c.l.b16 %v218
        %v356 = vunpack.c.l.b16 %v219
        %v357 = vunpack.c.l.b16 %v220
        %v358 = vunpack.c.l.b16 %v221
        %v359 = vunpack.c.l.b16 %v222
        %v360 = vunpack.c.l.b16 %v223
        %v361 = vunpack.c.l.b16 %v224
        %v362 = vunpack.c.l.b16 %v225
        %v363 = vunpack.c.l.b16 %v226
        %v364 = vunpack.c.l.b16 %v227
        %v365 = vunpack.c.l.b16 %v228
        %v366 = vunpack.c.l.b16 %v229
        %v367 = vunpack.c.l.b16 %v230
        %v368 = vunpack.c.l.b16 %v231
        %v369 = vunpack.c.l.b16 %v232
        %v370 = vunpack.c.l.b16 %v233
        %v371 = vunpack.c.l.b16 %v234
        %v372 = vunpack.c.l.b16 %v235
        %v373 = vunpack.c.l.b16 %v236
        %v374 = vunpack.c.l.b16 %v237
        %v375 = vunpack.c.l.b16 %v238
        %v376 = vunpack.c.l.b16 %v239
        %v377 = vunpack.c.l.b16 %v240
        %v378 = vunpack.c.l.b16 %v241
        %v379 = vunpack.c.l.b16 %v242
        %v380 = vunpack.c.l.b16 %v243
        %v381 = vunpack.c.l.b16 %v244
        %v382 = vunpack.c.l.b16 %v245
        %v383 = vunpack.c.l.b16 %v246
        %v384 = vunpack.c.l.b16 %v247
        %v385 = vunpack.c.l.b16 %v248
        %v386 = vunpack.c.l.b16 %v249
        %v387 = vunpack.c.l.b16 %v250
        %v388 = vunpack.c.l.b16 %v251
        %v389 = vunpack.c.l.b16 %v252
        %v390 = vunpack.c.l.b16 %v253
        %v391 = vunpack.c.l.b16 %v254
        %v392 = vunpack.c.l.b16 %v255
        %v393 = vunpack.c.l.b16 %v256
        %v394 = vunpack.c.l.b16 %v257
        %v395 = vunpack.c.l.b16 %v258
        %v396 = vunpack.c.l.b16 %v259
        %v397 = vunpack.c.l.b16 %v260
        %v398 = vunpack.c.l.b16 %v261
        %v399 = vunpack.c.l.b16 %v262
        %v400 = vunpack.c.l.b16 %v263
        %v401 = vunpack.c.l.b16 %v264
        %v402 = vunpack.c.l.b16 %v265
        %v403 = vunpack.c.l.b16 %v266
        %v404 = vpack.c.b16 %v341, %v340
        %v405 = vpack.c.b16 %v343, %v342
        %v406 = vpack.c.b16 %v345, %v344
        %v407 = vpack.c.b16 %v347, %v346
        %v408 = vpack.c.b16 %v349, %v348
        %v409 = vpack.c.b16 %v351, %v350
        %v410 = vpack.c.b16 %v353, %v352
        %v411 = vpack.c.b16 %v355, %v354
        %v412 = vpack.c.b16 %v357, %v356
        %v413 = vpack.c.b16 %v359, %v358
        %v414 = vpack.c.b16 %v361, %v360
        %v415 = vpack.c.b16 %v363, %v362
        %v416 = vpack.c.b16 %v365, %v364
        %v417 = vpack.c.b16 %v367, %v366
        %v418 = vpack.c.b16 %v369, %v368
        %v419 = vpack.c.b16 %v371, %v370
        %v420 = vpack.c.b16 %v373, %v372
        %v421 = vpack.c.b16 %v375, %v374
        %v422 = vpack.c.b16 %v377, %v376
        %v423 = vpack.c.b16 %v379, %v378
        %v424 = vpack.c.b16 %v381, %v380
        %v425 = vpack.c.b16 %v383, %v382
        %v426 = vpack.c.b16 %v385, %v384
        %v427 = vpack.c.b16 %v387, %v386
        %v428 = vpack.c.b16 %v389, %v388
        %v429 = vpack.c.b16 %v391, %v390
        %v430 = vpack.c.b16 %v393, %v392
        %v431 = vpack.c.b16 %v395, %v394
        %v432 = vpack.c.b16 %v397, %v396
        %v433 = vpack.c.b16 %v399, %v398
        %v434 = vpack.c.b16 %v401, %v400
        %v435 = vpack.c.b16 %v403, %v402
        %v438 = vunpack.c.l.b16 %v267
        %v439 = vunpack.c.l.b16 %v268
        %v440 = vpack.c.b16 %v439, %v438
        %vm441 = vcmask 72704
        %v443 = vsel %vm441, %v404, 0
        %v446 = vsel %vm441, %v405, 0
        %v449 = vsel %vm441, %v406, 0
        %v452 = vsel %vm441, %v407, 0
        %v455 = vsel %vm441, %v408, 0
        %v458 = vsel %vm441, %v409, 0
        %v461 = vsel %vm441, %v410, 0
        %v464 = vsel %vm441, %v411, 0
        %v467 = vsel %vm441, %v412, 0
        %v470 = vsel %vm441, %v413, 0
        %v473 = vsel %vm441, %v414, 0
        %v476 = vsel %vm441, %v415, 0
        %v479 = vsel %vm441, %v416, 0
        %v482 = vsel %vm441, %v417, 0
        %v485 = vsel %vm441, %v418, 0
        %v488 = vsel %vm441, %v419, 0
        %v491 = vsel %vm441, %v420, 0
        %v494 = vsel %vm441, %v421, 0
        %v497 = vsel %vm441, %v422, 0
        %v500 = vsel %vm441, %v423, 0
        %v503 = vsel %vm441, %v424, 0
        %v506 = vsel %vm441, %v425, 0
        %v509 = vsel %vm441, %v426, 0
        %v512 = vsel %vm441, %v427, 0
        %v515 = vsel %vm441, %v428, 0
        %v518 = vsel %vm441, %v429, 0
        %v521 = vsel %vm441, %v430, 0
        %v524 = vsel %vm441, %v431, 0
        %v527 = vsel %vm441, %v432, 0
        %v530 = vsel %vm441, %v433, 0
        %v533 = vsel %vm441, %v434, 0
        %v536 = vsel %vm441, %v435, 0
        %vm538 = vcmask 1043456
        %vm539 = vcmask 1044480
        %v540 = vsel %vm538, 4294967295, 65535
        %v541 = vsel %vm539, %v540, 0
        %v543 = vand.u32 %v440, %v541
        %545 = vmatprep.subr.bf16.mxu0 0
        %546 = vmatpush1.bf16.msra.mxu0 0
        %547 = vmatprep.subr.bf16.mxu0 0
        %548 = vmatpush1.bf16.msra.mxu0 0
        %549 = vmatprep.subr.bf16.mxu0 0
        %550 = vmatpush1.bf16.msra.mxu0 0
        %551 = vmatprep.subr.bf16.mxu0 0
        %552 = vmatpush1.bf16.msra.mxu0 0
        %553 = vmatprep.subr.bf16.mxu0 0
        %554 = vmatpush1.bf16.msra.mxu0 0
        %555 = vmatprep.subr.bf16.mxu0 0
        %556 = vmatpush1.bf16.msra.mxu0 0
        %557 = vmatprep.subr.bf16.mxu0 0
        %558 = vmatpush1.bf16.msra.mxu0 0
        %559 = vmatprep.subr.bf16.mxu0 0
        %560 = vmatpush1.bf16.msra.mxu0 %v543
        %561 = vmatprep.subr.bf16.mxu0 0
        %562 = vmatpush2.bf16.msra.mxu0 0
        %563 = vmatprep.subr.bf16.mxu0 0
        %564 = vmatpush2.bf16.msra.mxu0 0
        %565 = vmatprep.subr.bf16.mxu0 0
        %566 = vmatpush2.bf16.msra.mxu0 0
        %567 = vmatprep.subr.bf16.mxu0 0
        %568 = vmatpush2.bf16.msra.mxu0 0
        %569 = vmatprep.subr.bf16.mxu0 0
        %570 = vmatpush2.bf16.msra.mxu0 0
        %571 = vmatprep.subr.bf16.mxu0 0
        %572 = vmatpush2.bf16.msra.mxu0 0
        %573 = vmatprep.subr.bf16.mxu0 0
        %574 = vmatpush2.bf16.msra.mxu0 0
        %575 = vmatprep.subr.bf16.mxu0 0
        %576 = vmatpush2.bf16.msra.mxu0 0
        %577 = vmatprep.mubr.bf16.mxu0 0
        %578 = vmatmul.mubr.bf16.gmra.mxu0 %v443
        %v579 = vpop.f32.mrf.mxu0
        %v580 = vadd.f32 %v274, %v579
        %v581 = vpop.f32.mrf.mxu0
        %v582 = vpop.f32.mrf.mxu0
        %v583 = vadd.f32 %v274, %v582
        %v584 = vpop.f32.mrf.mxu0
        %585 = vmatprep.mubr.bf16.mxu0 0
        %586 = vmatmul.mubr.bf16.gmra.mxu0 %v446
        %v587 = vpop.f32.mrf.mxu0
        %v588 = vadd.f32 %v274, %v587
        %v589 = vpop.f32.mrf.mxu0
        %v590 = vpop.f32.mrf.mxu0
        %v591 = vadd.f32 %v274, %v590
        %v592 = vpop.f32.mrf.mxu0
        %593 = vmatprep.mubr.bf16.mxu0 0
        %594 = vmatmul.mubr.bf16.gmra.mxu0 %v449
        %v595 = vpop.f32.mrf.mxu0
        %v596 = vadd.f32 %v274, %v595
        %v597 = vpop.f32.mrf.mxu0
        %v598 = vpop.f32.mrf.mxu0
        %v599 = vadd.f32 %v274, %v598
        %v600 = vpop.f32.mrf.mxu0
        %601 = vmatprep.mubr.bf16.mxu0 0
        %602 = vmatmul.mubr.bf16.gmra.mxu0 %v452
        %v603 = vpop.f32.mrf.mxu0
        %v604 = vadd.f32 %v274, %v603
        %v605 = vpop.f32.mrf.mxu0
        %v606 = vpop.f32.mrf.mxu0
        %v607 = vadd.f32 %v274, %v606
        %v608 = vpop.f32.mrf.mxu0
        %609 = vmatprep.mubr.bf16.mxu0 0
        %610 = vmatmul.mubr.bf16.gmra.mxu0 %v455
        %v611 = vpop.f32.mrf.mxu0
        %v612 = vadd.f32 %v274, %v611
        %v613 = vpop.f32.mrf.mxu0
        %v614 = vpop.f32.mrf.mxu0
        %v615 = vadd.f32 %v274, %v614
        %v616 = vpop.f32.mrf.mxu0
        %617 = vmatprep.mubr.bf16.mxu0 0
        %618 = vmatmul.mubr.bf16.gmra.mxu0 %v458
        %v619 = vpop.f32.mrf.mxu0
        %v620 = vadd.f32 %v274, %v619
        %v621 = vpop.f32.mrf.mxu0
        %v622 = vpop.f32.mrf.mxu0
        %v623 = vadd.f32 %v274, %v622
        %v624 = vpop.f32.mrf.mxu0
        %625 = vmatprep.mubr.bf16.mxu0 0
        %626 = vmatmul.mubr.bf16.gmra.mxu0 %v461
        %v627 = vpop.f32.mrf.mxu0
        %v628 = vadd.f32 %v274, %v627
        %v629 = vpop.f32.mrf.mxu0
        %v630 = vpop.f32.mrf.mxu0
        %v631 = vadd.f32 %v274, %v630
        %v632 = vpop.f32.mrf.mxu0
        %633 = vmatprep.mubr.bf16.mxu0 0
        %634 = vmatmul.mubr.bf16.gmra.mxu0 %v464
        %v635 = vpop.f32.mrf.mxu0
        %v636 = vadd.f32 %v274, %v635
        %v637 = vpop.f32.mrf.mxu0
        %v638 = vpop.f32.mrf.mxu0
        %v639 = vadd.f32 %v274, %v638
        %v640 = vpop.f32.mrf.mxu0
        %641 = vmatprep.mubr.bf16.mxu0 0
        %642 = vmatmul.mubr.bf16.gmra.mxu0 %v467
        %v643 = vpop.f32.mrf.mxu0
        %v644 = vadd.f32 %v274, %v643
        %v645 = vpop.f32.mrf.mxu0
        %v646 = vpop.f32.mrf.mxu0
        %v647 = vadd.f32 %v274, %v646
        %v648 = vpop.f32.mrf.mxu0
        %649 = vmatprep.mubr.bf16.mxu0 0
        %650 = vmatmul.mubr.bf16.gmra.mxu0 %v470
        %v651 = vpop.f32.mrf.mxu0
        %v652 = vadd.f32 %v274, %v651
        %v653 = vpop.f32.mrf.mxu0
        %v654 = vpop.f32.mrf.mxu0
        %v655 = vadd.f32 %v274, %v654
        %v656 = vpop.f32.mrf.mxu0
        %657 = vmatprep.mubr.bf16.mxu0 0
        %658 = vmatmul.mubr.bf16.gmra.mxu0 %v473
        %v659 = vpop.f32.mrf.mxu0
        %v660 = vadd.f32 %v274, %v659
        %v661 = vpop.f32.mrf.mxu0
        %v662 = vpop.f32.mrf.mxu0
        %v663 = vadd.f32 %v274, %v662
        %v664 = vpop.f32.mrf.mxu0
        %665 = vmatprep.mubr.bf16.mxu0 0
        %666 = vmatmul.mubr.bf16.gmra.mxu0 %v476
        %v667 = vpop.f32.mrf.mxu0
        %v668 = vadd.f32 %v274, %v667
        %v669 = vpop.f32.mrf.mxu0
        %v670 = vpop.f32.mrf.mxu0
        %v671 = vadd.f32 %v274, %v670
        %v672 = vpop.f32.mrf.mxu0
        %673 = vmatprep.mubr.bf16.mxu0 0
        %674 = vmatmul.mubr.bf16.gmra.mxu0 %v479
        %v675 = vpop.f32.mrf.mxu0
        %v676 = vadd.f32 %v274, %v675
        %v677 = vpop.f32.mrf.mxu0
        %v678 = vpop.f32.mrf.mxu0
        %v679 = vadd.f32 %v274, %v678
        %v680 = vpop.f32.mrf.mxu0
        %681 = vmatprep.mubr.bf16.mxu0 0
        %682 = vmatmul.mubr.bf16.gmra.mxu0 %v482
        %v683 = vpop.f32.mrf.mxu0
        %v684 = vadd.f32 %v274, %v683
        %v685 = vpop.f32.mrf.mxu0
        %v686 = vpop.f32.mrf.mxu0
        %v687 = vadd.f32 %v274, %v686
        %v688 = vpop.f32.mrf.mxu0
        %689 = vmatprep.mubr.bf16.mxu0 0
        %690 = vmatmul.mubr.bf16.gmra.mxu0 %v485
        %v691 = vpop.f32.mrf.mxu0
        %v692 = vadd.f32 %v274, %v691
        %v693 = vpop.f32.mrf.mxu0
        %v694 = vpop.f32.mrf.mxu0
        %v695 = vadd.f32 %v274, %v694
        %v696 = vpop.f32.mrf.mxu0
        %697 = vmatprep.mubr.bf16.mxu0 0
        %698 = vmatmul.mubr.bf16.gmra.mxu0 %v488
        %v699 = vpop.f32.mrf.mxu0
        %v700 = vadd.f32 %v274, %v699
        %v701 = vpop.f32.mrf.mxu0
        %v702 = vpop.f32.mrf.mxu0
        %v703 = vadd.f32 %v274, %v702
        %v704 = vpop.f32.mrf.mxu0
        %705 = vmatprep.mubr.bf16.mxu0 0
        %706 = vmatmul.mubr.bf16.gmra.mxu0 %v491
        %v707 = vpop.f32.mrf.mxu0
        %v708 = vadd.f32 %v274, %v707
        %v709 = vpop.f32.mrf.mxu0
        %v710 = vpop.f32.mrf.mxu0
        %v711 = vadd.f32 %v274, %v710
        %v712 = vpop.f32.mrf.mxu0
        %713 = vmatprep.mubr.bf16.mxu0 0
        %714 = vmatmul.mubr.bf16.gmra.mxu0 %v494
        %v715 = vpop.f32.mrf.mxu0
        %v716 = vadd.f32 %v274, %v715
        %v717 = vpop.f32.mrf.mxu0
        %v718 = vpop.f32.mrf.mxu0
        %v719 = vadd.f32 %v274, %v718
        %v720 = vpop.f32.mrf.mxu0
        %721 = vmatprep.mubr.bf16.mxu0 0
        %722 = vmatmul.mubr.bf16.gmra.mxu0 %v497
        %v723 = vpop.f32.mrf.mxu0
        %v724 = vadd.f32 %v274, %v723
        %v725 = vpop.f32.mrf.mxu0
        %v726 = vpop.f32.mrf.mxu0
        %v727 = vadd.f32 %v274, %v726
        %v728 = vpop.f32.mrf.mxu0
        %729 = vmatprep.mubr.bf16.mxu0 0
        %730 = vmatmul.mubr.bf16.gmra.mxu0 %v500
        %v731 = vpop.f32.mrf.mxu0
        %v732 = vadd.f32 %v274, %v731
        %v733 = vpop.f32.mrf.mxu0
        %v734 = vpop.f32.mrf.mxu0
        %v735 = vadd.f32 %v274, %v734
        %v736 = vpop.f32.mrf.mxu0
        %737 = vmatprep.mubr.bf16.mxu0 0
        %738 = vmatmul.mubr.bf16.gmra.mxu0 %v503
        %v739 = vpop.f32.mrf.mxu0
        %v740 = vadd.f32 %v274, %v739
        %v741 = vpop.f32.mrf.mxu0
        %v742 = vpop.f32.mrf.mxu0
        %v743 = vadd.f32 %v274, %v742
        %v744 = vpop.f32.mrf.mxu0
        %745 = vmatprep.mubr.bf16.mxu0 0
        %746 = vmatmul.mubr.bf16.gmra.mxu0 %v506
        %v747 = vpop.f32.mrf.mxu0
        %v748 = vadd.f32 %v274, %v747
        %v749 = vpop.f32.mrf.mxu0
        %v750 = vpop.f32.mrf.mxu0
        %v751 = vadd.f32 %v274, %v750
        %v752 = vpop.f32.mrf.mxu0
        %753 = vmatprep.mubr.bf16.mxu0 0
        %754 = vmatmul.mubr.bf16.gmra.mxu0 %v509
        %v755 = vpop.f32.mrf.mxu0
        %v756 = vadd.f32 %v274, %v755
        %v757 = vpop.f32.mrf.mxu0
        %v758 = vpop.f32.mrf.mxu0
        %v759 = vadd.f32 %v274, %v758
        %v760 = vpop.f32.mrf.mxu0
        %761 = vmatprep.mubr.bf16.mxu0 0
        %762 = vmatmul.mubr.bf16.gmra.mxu0 %v512
        %v763 = vpop.f32.mrf.mxu0
        %v764 = vadd.f32 %v274, %v763
        %v765 = vpop.f32.mrf.mxu0
        %v766 = vpop.f32.mrf.mxu0
        %v767 = vadd.f32 %v274, %v766
        %v768 = vpop.f32.mrf.mxu0
        %769 = vmatprep.mubr.bf16.mxu0 0
        %770 = vmatmul.mubr.bf16.gmra.mxu0 %v515
        %v771 = vpop.f32.mrf.mxu0
        %v772 = vadd.f32 %v274, %v771
        %v773 = vpop.f32.mrf.mxu0
        %v774 = vpop.f32.mrf.mxu0
        %v775 = vadd.f32 %v274, %v774
        %v776 = vpop.f32.mrf.mxu0
        %777 = vmatprep.mubr.bf16.mxu0 0
        %778 = vmatmul.mubr.bf16.gmra.mxu0 %v518
        %v779 = vpop.f32.mrf.mxu0
        %v780 = vadd.f32 %v274, %v779
        %v781 = vpop.f32.mrf.mxu0
        %v782 = vpop.f32.mrf.mxu0
        %v783 = vadd.f32 %v274, %v782
        %v784 = vpop.f32.mrf.mxu0
        %785 = vmatprep.mubr.bf16.mxu0 0
        %786 = vmatmul.mubr.bf16.gmra.mxu0 %v521
        %v787 = vpop.f32.mrf.mxu0
        %v788 = vadd.f32 %v274, %v787
        %v789 = vpop.f32.mrf.mxu0
        %v790 = vpop.f32.mrf.mxu0
        %v791 = vadd.f32 %v274, %v790
        %v792 = vpop.f32.mrf.mxu0
        %793 = vmatprep.mubr.bf16.mxu0 0
        %794 = vmatmul.mubr.bf16.gmra.mxu0 %v524
        %v795 = vpop.f32.mrf.mxu0
        %v796 = vadd.f32 %v274, %v795
        %v797 = vpop.f32.mrf.mxu0
        %v798 = vpop.f32.mrf.mxu0
        %v799 = vadd.f32 %v274, %v798
        %v800 = vpop.f32.mrf.mxu0
        %801 = vmatprep.mubr.bf16.mxu0 0
        %802 = vmatmul.mubr.bf16.gmra.mxu0 %v527
        %v803 = vpop.f32.mrf.mxu0
        %v804 = vadd.f32 %v274, %v803
        %v805 = vpop.f32.mrf.mxu0
        %v806 = vpop.f32.mrf.mxu0
        %v807 = vadd.f32 %v274, %v806
        %v808 = vpop.f32.mrf.mxu0
        %809 = vmatprep.mubr.bf16.mxu0 0
        %810 = vmatmul.mubr.bf16.gmra.mxu0 %v530
        %v811 = vpop.f32.mrf.mxu0
        %v812 = vadd.f32 %v274, %v811
        %v813 = vpop.f32.mrf.mxu0
        %v814 = vpop.f32.mrf.mxu0
        %v815 = vadd.f32 %v274, %v814
        %v816 = vpop.f32.mrf.mxu0
        %817 = vmatprep.mubr.bf16.mxu0 0
        %818 = vmatmul.mubr.bf16.gmra.mxu0 %v533
        %v819 = vpop.f32.mrf.mxu0
        %v820 = vadd.f32 %v274, %v819
        %v821 = vpop.f32.mrf.mxu0
        %v822 = vpop.f32.mrf.mxu0
        %v823 = vadd.f32 %v274, %v822
        %v824 = vpop.f32.mrf.mxu0
        %825 = vmatprep.mubr.bf16.mxu0 0
        %826 = vmatmul.mubr.bf16.gmra.mxu0 %v536
        %v827 = vpop.f32.mrf.mxu0
        %v828 = vadd.f32 %v274, %v827
        %v829 = vpop.f32.mrf.mxu0
        %v830 = vpop.f32.mrf.mxu0
        %v831 = vadd.f32 %v274, %v830
        %v832 = vpop.f32.mrf.mxu0
        %833 = vdwg.mxu0
        %v834 = vmax.f32 %v580, 0.0
        %v835 = vmax.f32 %v583, 0.0
        %v836 = vmax.f32 %v588, 0.0
        %v837 = vmax.f32 %v591, 0.0
        %v838 = vmax.f32 %v596, 0.0
        %v839 = vmax.f32 %v599, 0.0
        %v840 = vmax.f32 %v604, 0.0
        %v841 = vmax.f32 %v607, 0.0
        %v842 = vmax.f32 %v612, 0.0
        %v843 = vmax.f32 %v615, 0.0
        %v844 = vmax.f32 %v620, 0.0
        %v845 = vmax.f32 %v623, 0.0
        %v846 = vmax.f32 %v628, 0.0
        %v847 = vmax.f32 %v631, 0.0
        %v848 = vmax.f32 %v636, 0.0
        %v849 = vmax.f32 %v639, 0.0
        %v850 = vmax.f32 %v644, 0.0
        %v851 = vmax.f32 %v647, 0.0
        %v852 = vmax.f32 %v652, 0.0
        %v853 = vmax.f32 %v655, 0.0
        %v854 = vmax.f32 %v660, 0.0
        %v855 = vmax.f32 %v663, 0.0
        %v856 = vmax.f32 %v668, 0.0
        %v857 = vmax.f32 %v671, 0.0
        %v858 = vmax.f32 %v676, 0.0
        %v859 = vmax.f32 %v679, 0.0
        %v860 = vmax.f32 %v684, 0.0
        %v861 = vmax.f32 %v687, 0.0
        %v862 = vmax.f32 %v692, 0.0
        %v863 = vmax.f32 %v695, 0.0
        %v864 = vmax.f32 %v700, 0.0
        %v865 = vmax.f32 %v703, 0.0
        %v866 = vmax.f32 %v708, 0.0
        %v867 = vmax.f32 %v711, 0.0
        %v868 = vmax.f32 %v716, 0.0
        %v869 = vmax.f32 %v719, 0.0
        %v870 = vmax.f32 %v724, 0.0
        %v871 = vmax.f32 %v727, 0.0
        %v872 = vmax.f32 %v732, 0.0
        %v873 = vmax.f32 %v735, 0.0
        %v874 = vmax.f32 %v740, 0.0
        %v875 = vmax.f32 %v743, 0.0
        %v876 = vmax.f32 %v748, 0.0
        %v877 = vmax.f32 %v751, 0.0
        %v878 = vmax.f32 %v756, 0.0
        %v879 = vmax.f32 %v759, 0.0
        %v880 = vmax.f32 %v764, 0.0
        %v881 = vmax.f32 %v767, 0.0
        %v882 = vmax.f32 %v772, 0.0
        %v883 = vmax.f32 %v775, 0.0
        %v884 = vmax.f32 %v780, 0.0
        %v885 = vmax.f32 %v783, 0.0
        %v886 = vmax.f32 %v788, 0.0
        %v887 = vmax.f32 %v791, 0.0
        %v888 = vmax.f32 %v796, 0.0
        %v889 = vmax.f32 %v799, 0.0
        %v890 = vmax.f32 %v804, 0.0
        %v891 = vmax.f32 %v807, 0.0
        %v892 = vmax.f32 %v812, 0.0
        %v893 = vmax.f32 %v815, 0.0
        %v894 = vmax.f32 %v820, 0.0
        %v895 = vmax.f32 %v823, 0.0
        %v896 = vmax.f32 %v828, 0.0
        %v897 = vmax.f32 %v831, 0.0
        %v898 = vpack.c.bf16 %v835, %v834
        %v899 = vpack.c.bf16 %v837, %v836
        %v900 = vpack.c.bf16 %v839, %v838
        %v901 = vpack.c.bf16 %v841, %v840
        %v902 = vpack.c.bf16 %v843, %v842
        %v903 = vpack.c.bf16 %v845, %v844
        %v904 = vpack.c.bf16 %v847, %v846
        %v905 = vpack.c.bf16 %v849, %v848
        %v906 = vpack.c.bf16 %v851, %v850
        %v907 = vpack.c.bf16 %v853, %v852
        %v908 = vpack.c.bf16 %v855, %v854
        %v909 = vpack.c.bf16 %v857, %v856
        %v910 = vpack.c.bf16 %v859, %v858
        %v911 = vpack.c.bf16 %v861, %v860
        %v912 = vpack.c.bf16 %v863, %v862
        %v913 = vpack.c.bf16 %v865, %v864
        %v914 = vpack.c.bf16 %v867, %v866
        %v915 = vpack.c.bf16 %v869, %v868
        %v916 = vpack.c.bf16 %v871, %v870
        %v917 = vpack.c.bf16 %v873, %v872
        %v918 = vpack.c.bf16 %v875, %v874
        %v919 = vpack.c.bf16 %v877, %v876
        %v920 = vpack.c.bf16 %v879, %v878
        %v921 = vpack.c.bf16 %v881, %v880
        %v922 = vpack.c.bf16 %v883, %v882
        %v923 = vpack.c.bf16 %v885, %v884
        %v924 = vpack.c.bf16 %v887, %v886
        %v925 = vpack.c.bf16 %v889, %v888
        %v926 = vpack.c.bf16 %v891, %v890
        %v927 = vpack.c.bf16 %v893, %v892
        %v928 = vpack.c.bf16 %v895, %v894
        %v929 = vpack.c.bf16 %v897, %v896
        %v962 = vunpack.c.l.b16 %v898
        %v963 = vunpack.c.h.b16 %v898
        %v964 = vunpack.c.l.b16 %v899
        %v965 = vunpack.c.h.b16 %v899
        %v966 = vunpack.c.l.b16 %v900
        %v967 = vunpack.c.h.b16 %v900
        %v968 = vunpack.c.l.b16 %v901
        %v969 = vunpack.c.h.b16 %v901
        %v970 = vunpack.c.l.b16 %v902
        %v971 = vunpack.c.h.b16 %v902
        %v972 = vunpack.c.l.b16 %v903
        %v973 = vunpack.c.h.b16 %v903
        %v974 = vunpack.c.l.b16 %v904
        %v975 = vunpack.c.h.b16 %v904
        %v976 = vunpack.c.l.b16 %v905
        %v977 = vunpack.c.h.b16 %v905
        %v978 = vunpack.c.l.b16 %v906
        %v979 = vunpack.c.h.b16 %v906
        %v980 = vunpack.c.l.b16 %v907
        %v981 = vunpack.c.h.b16 %v907
        %v982 = vunpack.c.l.b16 %v908
        %v983 = vunpack.c.h.b16 %v908
        %v984 = vunpack.c.l.b16 %v909
        %v985 = vunpack.c.h.b16 %v909
        %v986 = vunpack.c.l.b16 %v910
        %v987 = vunpack.c.h.b16 %v910
        %v988 = vunpack.c.l.b16 %v911
        %v989 = vunpack.c.h.b16 %v911
        %v990 = vunpack.c.l.b16 %v912
        %v991 = vunpack.c.h.b16 %v912
        %v992 = vunpack.c.l.b16 %v913
        %v993 = vunpack.c.h.b16 %v913
        %v994 = vunpack.c.l.b16 %v914
        %v995 = vunpack.c.h.b16 %v914
        %v996 = vunpack.c.l.b16 %v915
        %v997 = vunpack.c.h.b16 %v915
        %v998 = vunpack.c.l.b16 %v916
        %v999 = vunpack.c.h.b16 %v916
        %v1000 = vunpack.c.l.b16 %v917
        %v1001 = vunpack.c.h.b16 %v917
        %v1002 = vunpack.c.l.b16 %v918
        %v1003 = vunpack.c.h.b16 %v918
        %v1004 = vunpack.c.l.b16 %v919
        %v1005 = vunpack.c.h.b16 %v919
        %v1006 = vunpack.c.l.b16 %v920
        %v1007 = vunpack.c.h.b16 %v920
        %v1008 = vunpack.c.l.b16 %v921
        %v1009 = vunpack.c.h.b16 %v921
        %v1010 = vunpack.c.l.b16 %v922
        %v1011 = vunpack.c.h.b16 %v922
        %v1012 = vunpack.c.l.b16 %v923
        %v1013 = vunpack.c.h.b16 %v923
        %v1014 = vunpack.c.l.b16 %v924
        %v1015 = vunpack.c.h.b16 %v924
        %v1016 = vunpack.c.l.b16 %v925
        %v1017 = vunpack.c.h.b16 %v925
        %v1018 = vunpack.c.l.b16 %v926
        %v1019 = vunpack.c.h.b16 %v926
        %v1020 = vunpack.c.l.b16 %v927
        %v1021 = vunpack.c.h.b16 %v927
        %v1022 = vunpack.c.l.b16 %v928
        %v1023 = vunpack.c.h.b16 %v928
        %v1024 = vunpack.c.l.b16 %v929
        %v1025 = vunpack.c.h.b16 %v929
        %v1026 = vpack.c.b16 %v962, %v962
        %v1027 = vpack.c.b16 %v963, %v963
        %v1028 = vpack.c.b16 %v964, %v964
        %v1029 = vpack.c.b16 %v965, %v965
        %v1030 = vpack.c.b16 %v966, %v966
        %v1031 = vpack.c.b16 %v967, %v967
        %v1032 = vpack.c.b16 %v968, %v968
        %v1033 = vpack.c.b16 %v969, %v969
        %v1034 = vpack.c.b16 %v970, %v970
        %v1035 = vpack.c.b16 %v971, %v971
        %v1036 = vpack.c.b16 %v972, %v972
        %v1037 = vpack.c.b16 %v973, %v973
        %v1038 = vpack.c.b16 %v974, %v974
        %v1039 = vpack.c.b16 %v975, %v975
        %v1040 = vpack.c.b16 %v976, %v976
        %v1041 = vpack.c.b16 %v977, %v977
        %v1042 = vpack.c.b16 %v978, %v978
        %v1043 = vpack.c.b16 %v979, %v979
        %v1044 = vpack.c.b16 %v980, %v980
        %v1045 = vpack.c.b16 %v981, %v981
        %v1046 = vpack.c.b16 %v982, %v982
        %v1047 = vpack.c.b16 %v983, %v983
        %v1048 = vpack.c.b16 %v984, %v984
        %v1049 = vpack.c.b16 %v985, %v985
        %v1050 = vpack.c.b16 %v986, %v986
        %v1051 = vpack.c.b16 %v987, %v987
        %v1052 = vpack.c.b16 %v988, %v988
        %v1053 = vpack.c.b16 %v989, %v989
        %v1054 = vpack.c.b16 %v990, %v990
        %v1055 = vpack.c.b16 %v991, %v991
        %v1056 = vpack.c.b16 %v992, %v992
        %v1057 = vpack.c.b16 %v993, %v993
        %v1058 = vpack.c.b16 %v994, %v994
        %v1059 = vpack.c.b16 %v995, %v995
        %v1060 = vpack.c.b16 %v996, %v996
        %v1061 = vpack.c.b16 %v997, %v997
        %v1062 = vpack.c.b16 %v998, %v998
        %v1063 = vpack.c.b16 %v999, %v999
        %v1064 = vpack.c.b16 %v1000, %v1000
        %v1065 = vpack.c.b16 %v1001, %v1001
        %v1066 = vpack.c.b16 %v1002, %v1002
        %v1067 = vpack.c.b16 %v1003, %v1003
        %v1068 = vpack.c.b16 %v1004, %v1004
        %v1069 = vpack.c.b16 %v1005, %v1005
        %v1070 = vpack.c.b16 %v1006, %v1006
        %v1071 = vpack.c.b16 %v1007, %v1007
        %v1072 = vpack.c.b16 %v1008, %v1008
        %v1073 = vpack.c.b16 %v1009, %v1009
        %v1074 = vpack.c.b16 %v1010, %v1010
        %v1075 = vpack.c.b16 %v1011, %v1011
        %v1076 = vpack.c.b16 %v1012, %v1012
        %v1077 = vpack.c.b16 %v1013, %v1013
        %v1078 = vpack.c.b16 %v1014, %v1014
        %v1079 = vpack.c.b16 %v1015, %v1015
        %v1080 = vpack.c.b16 %v1016, %v1016
        %v1081 = vpack.c.b16 %v1017, %v1017
        %v1082 = vpack.c.b16 %v1018, %v1018
        %v1083 = vpack.c.b16 %v1019, %v1019
        %v1084 = vpack.c.b16 %v1020, %v1020
        %v1085 = vpack.c.b16 %v1021, %v1021
        %v1086 = vpack.c.b16 %v1022, %v1022
        %v1087 = vpack.c.b16 %v1023, %v1023
        %v1088 = vpack.c.b16 %v1024, %v1024
        %v1089 = vpack.c.b16 %v1025, %v1025
        %1154 = vst [vmem:[%s200] sm:$0xf] %v1026
        %1155 = vst [vmem:[%s200 + $0x4] sm:$0xf] %v1027
        %1156 = vst [vmem:[%s200 + $0x8] sm:$0xf] %v1028
        %1157 = vst [vmem:[%s200 + $0xc] sm:$0xf] %v1029
        %1158 = vst [vmem:[%s200 + $0x10] sm:$0xf] %v1030
        %1159 = vst [vmem:[%s200 + $0x14] sm:$0xf] %v1031
        %1160 = vst [vmem:[%s200 + $0x18] sm:$0xf] %v1032
        %1161 = vst [vmem:[%s200 + $0x1c] sm:$0xf] %v1033
        %1162 = vst [vmem:[%s200 + $0x20] sm:$0xf] %v1034
        %1163 = vst [vmem:[%s200 + $0x24] sm:$0xf] %v1035
        %1164 = vst [vmem:[%s200 + $0x28] sm:$0xf] %v1036
        %1165 = vst [vmem:[%s200 + $0x2c] sm:$0xf] %v1037
        %1166 = vst [vmem:[%s200 + $0x30] sm:$0xf] %v1038
        %1167 = vst [vmem:[%s200 + $0x34] sm:$0xf] %v1039
        %1168 = vst [vmem:[%s200 + $0x38] sm:$0xf] %v1040
        %1169 = vst [vmem:[%s200 + $0x3c] sm:$0xf] %v1041
        %1170 = vst [vmem:[%s200 + $0x40] sm:$0xf] %v1042
        %1171 = vst [vmem:[%s200 + $0x44] sm:$0xf] %v1043
        %1172 = vst [vmem:[%s200 + $0x48] sm:$0xf] %v1044
        %1173 = vst [vmem:[%s200 + $0x4c] sm:$0xf] %v1045
        %1174 = vst [vmem:[%s200 + $0x50] sm:$0xf] %v1046
        %1175 = vst [vmem:[%s200 + $0x54] sm:$0xf] %v1047
        %1176 = vst [vmem:[%s200 + $0x58] sm:$0xf] %v1048
        %1177 = vst [vmem:[%s200 + $0x5c] sm:$0xf] %v1049
        %1178 = vst [vmem:[%s200 + $0x60] sm:$0xf] %v1050
        %1179 = vst [vmem:[%s200 + $0x64] sm:$0xf] %v1051
        %1180 = vst [vmem:[%s200 + $0x68] sm:$0xf] %v1052
        %1181 = vst [vmem:[%s200 + $0x6c] sm:$0xf] %v1053
        %1182 = vst [vmem:[%s200 + $0x70] sm:$0xf] %v1054
        %1183 = vst [vmem:[%s200 + $0x74] sm:$0xf] %v1055
        %1184 = vst [vmem:[%s200 + $0x78] sm:$0xf] %v1056
        %1185 = vst [vmem:[%s200 + $0x7c] sm:$0xf] %v1057
        %1186 = vst [vmem:[%s200 + $0x80] sm:$0xf] %v1058
        %1187 = vst [vmem:[%s200 + $0x84] sm:$0xf] %v1059
        %1188 = vst [vmem:[%s200 + $0x88] sm:$0xf] %v1060
        %1189 = vst [vmem:[%s200 + $0x8c] sm:$0xf] %v1061
        %1190 = vst [vmem:[%s200 + $0x90] sm:$0xf] %v1062
        %1191 = vst [vmem:[%s200 + $0x94] sm:$0xf] %v1063
        %1192 = vst [vmem:[%s200 + $0x98] sm:$0xf] %v1064
        %1193 = vst [vmem:[%s200 + $0x9c] sm:$0xf] %v1065
        %1194 = vst [vmem:[%s200 + $0xa0] sm:$0xf] %v1066
        %1195 = vst [vmem:[%s200 + $0xa4] sm:$0xf] %v1067
        %1196 = vst [vmem:[%s200 + $0xa8] sm:$0xf] %v1068
        %1197 = vst [vmem:[%s200 + $0xac] sm:$0xf] %v1069
        %1198 = vst [vmem:[%s200 + $0xb0] sm:$0xf] %v1070
        %1199 = vst [vmem:[%s200 + $0xb4] sm:$0xf] %v1071
        %1200 = vst [vmem:[%s200 + $0xb8] sm:$0xf] %v1072
        %1201 = vst [vmem:[%s200 + $0xbc] sm:$0xf] %v1073
        %1202 = vst [vmem:[%s200 + $0xc0] sm:$0xf] %v1074
        %1203 = vst [vmem:[%s200 + $0xc4] sm:$0xf] %v1075
        %1204 = vst [vmem:[%s200 + $0xc8] sm:$0xf] %v1076
        %1205 = vst [vmem:[%s200 + $0xcc] sm:$0xf] %v1077
        %1206 = vst [vmem:[%s200 + $0xd0] sm:$0xf] %v1078
        %1207 = vst [vmem:[%s200 + $0xd4] sm:$0xf] %v1079
        %1208 = vst [vmem:[%s200 + $0xd8] sm:$0xf] %v1080
        %1209 = vst [vmem:[%s200 + $0xdc] sm:$0xf] %v1081
        %1210 = vst [vmem:[%s200 + $0xe0] sm:$0xf] %v1082
        %1211 = vst [vmem:[%s200 + $0xe4] sm:$0xf] %v1083
        %1212 = vst [vmem:[%s200 + $0xe8] sm:$0xf] %v1084
        %1213 = vst [vmem:[%s200 + $0xec] sm:$0xf] %v1085
        %1214 = vst [vmem:[%s200 + $0xf0] sm:$0xf] %v1086
        %1215 = vst [vmem:[%s200 + $0xf4] sm:$0xf] %v1087
        %1216 = vst [vmem:[%s200 + $0xf8] sm:$0xf] %v1088
        %1217 = vst [vmem:[%s200 + $0xfc] sm:$0xf] %v1089
        %s1218 = smul.u32 64, %s16
        %p1219 = scmp.lt.s32.totalorder %s1218, 191
        %s1220 = scalar_select %p1219, %s1218, 191
        %s1221 = smul.addr %s1220, 4
        %s1222 = scalar_lea.vmem %s3, %s1221
        // Predicated region
        $region41: #{cnn_forward.4} parent=31 // pred_check
          %p1223 = pneg %p102
        $region42: #{cnn_forward.4} parent=31 // pred_check_branch
          %1225 = sbr.rel (%p1223) target = $region44
        $region43: #{cnn_forward.4} parent=31 // pred_region
          %s1226 = smul.u32 64, %s16
        $region44: #{cnn_forward.4} parent=31 // pred_fallthru
          _
      $region32: #{cnn_forward.4} parent=5 // pred_fallthru
        _
      %p1227 = scmp.le.s32.totalorder 2, %s11
      // Predicated region
      $region45: #{cnn_forward.4} parent=5 // pred_check
        %p1228 = pneg %p1227
      $region46: #{cnn_forward.4} parent=5 // pred_check_branch
        %1230 = sbr.rel (%p1228) target = $region48
      $region47: #{cnn_forward.4} parent=5 // pred_region
        %s1231 = ssub.s32 %s11, 2
        // Predicated region
        $region49: #{cnn_forward.4} parent=47 // pred_check
          %p1232 = pneg %p108
        $region50: #{cnn_forward.4} parent=47 // pred_check_branch
          %1234 = sbr.rel (%p1232) target = $region52
        $region51: #{cnn_forward.4} parent=47 // pred_region
          %s1235 = smul.u32 64, %s17
          %p1236 = scmp.lt.s32.totalorder %s1235, 191
          %s1237 = scalar_select %p1236, %s1235, 191
          %s1238 = smul.addr %s1237, 4
          %s1239 = scalar_lea.vmem %s3, %s1238
        $region52: #{cnn_forward.4} parent=47 // pred_fallthru
          _
      $region48: #{cnn_forward.4} parent=5 // pred_fallthru
        _
    $region6: #{cnn_forward.4} parent=1 // loop_footer
      %s15 = sadd.s32 1, %s11
    $region7: #{cnn_forward.4} parent=1 // loop_footer_branch
      %10 = sbr.rel target = $region3
    $region8: #{cnn_forward.4} parent=1 // loop_exit
      _
    %1240 = vsyncpa [#allocation3], 1
    %s1241 = scalar_lea.sflag [#allocation3], 1
    %1242 = vsyncpa %s1241, 1
    %1243 = vsyncpa [#allocation5], 1

// kernel: cnn_forward.5
$region0: #{cnn_forward.5}
  #allocation0 [shape = 'u32[]', space=smem, size = 0x4, offset = 0x4, fixed_abs, tag = 'smem constant byte address 0x4 - core index']
  #allocation1 [shape = 'u32[144,128]{1,0:T(1,128)}', space=vmem, size = 0x12000, scoped, tag = 'internal scratch']
  %s0 = inlined_call_operand.vmem [shape: bf16[1536,144], index: 0, kind: input, shape index: {}]
  %s1 = inlined_call_operand.vmem [shape: bf16[144,128], index: 1, kind: input, shape index: {}]
  %s2 = inlined_call_operand.vmem [shape: f32[1,128], index: 2, kind: input, shape index: {}]
  %s3 = inlined_call_operand.vmem [shape: bf16[1536,128], index: 3, kind: output, shape index: {}]
  %s4 = sld [smem:[#allocation0]]
  $region45: #{cnn_forward.5} parent=0
    _
  %s6 = ssub.s32 1, %s4
  %s7 = scalar_select 0, %s6, %s4
  loop: start=0, step=1, limit=5
  $region2: #{cnn_forward.5} parent=0 // loop_pre_header
    _
  $region3: #{cnn_forward.5} parent=0 // loop_header
    %s9 = sphi 0, %s13
    %p10 = scmp.ge.s32.totalorder %s9, 5
    %s19 = sphi 0, %s21
    %s22 = sphi 0, %s19
    %s23 = sphi 0, %s22
    %s39 = sphi 0, %s23
    %s43 = sphi 0, %s43
    %s45 = sphi 0, %s43
    %s46 = sphi 0, %s45
    %s60 = sphi 0, %s46
    %s64 = sphi 0, %s64
    %s66 = sphi 0, %s64
    %s67 = sphi 0, %s66
    %s81 = sphi 0, %s67
    %s87 = sphi 0, %s89
    %s90 = sphi 0, %s87
    %s91 = sphi 0, %s90
    %s107 = sphi 0, %s91
  $region4: #{cnn_forward.5} parent=0 // loop_header_branch
    %12 = sbr.rel (%p10) target = $region8
  $region5: #{cnn_forward.5} parent=0 // loop_body
    %s14 = ssub.s32 %s9, 1
    %s15 = ssub.s32 %s9, 2
    %s16 = sadd.s32 %s9, 1
    %s17 = ssub.s32 %s9, %s16
    %p18 = scmp.eq.s32.totalorder %s17, 0
    %s20 = sadd.s32 %s19, 1
    %s21 = scalar_select %p18, %s19, %s20
    %p24 = pneg %p18
    %p25 = scmp.eq.s32.totalorder %s9, 2
    %p26 = por %p24, %p25
    %p27 = scmp.ne.s32.totalorder %s19, %s22
    %p28 = scmp.eq.s32.totalorder %s9, 0
    %p29 = por %p27, %p28
    %p30 = scmp.ne.s32.totalorder %s19, %s22
    %p31 = scmp.eq.s32.totalorder %s14, 2
    %p32 = por %p30, %p31
    %p33 = scmp.ne.s32.totalorder %s22, %s23
    %p34 = scmp.eq.s32.totalorder %s14, 0
    %p35 = por %p33, %p34
    %p36 = scmp.ne.s32.totalorder %s22, %s23
    %p37 = scmp.eq.s32.totalorder %s15, 2
    %p38 = por %p36, %p37
    %p40 = scmp.ne.s32.totalorder %s23, %s39
    %p41 = scmp.eq.s32.totalorder %s15, 0
    %p42 = por %p40, %p41
    %s44 = sadd.s32 %s43, 1
    %p47 = scmp.eq.s32.totalorder %s9, 2
    %p48 = scmp.ne.s32.totalorder %s43, %s45
    %p49 = scmp.eq.s32.totalorder %s9, 0
    %p50 = por %p48, %p49
    %p51 = scmp.ne.s32.totalorder %s43, %s45
    %p52 = scmp.eq.s32.totalorder %s14, 2
    %p53 = por %p51, %p52
    %p54 = scmp.ne.s32.totalorder %s45, %s46
    %p55 = scmp.eq.s32.totalorder %s14, 0
    %p56 = por %p54, %p55
    %p57 = scmp.ne.s32.totalorder %s45, %s46
    %p58 = scmp.eq.s32.totalorder %s15, 2
    %p59 = por %p57, %p58
    %p61 = scmp.ne.s32.totalorder %s46, %s60
    %p62 = scmp.eq.s32.totalorder %s15, 0
    %p63 = por %p61, %p62
    %s65 = sadd.s32 %s64, 1
    %p68 = scmp.eq.s32.totalorder %s9, 2
    %p69 = scmp.ne.s32.totalorder %s64, %s66
    %p70 = scmp.eq.s32.totalorder %s9, 0
    %p71 = por %p69, %p70
    %p72 = scmp.ne.s32.totalorder %s64, %s66
    %p73 = scmp.eq.s32.totalorder %s14, 2
    %p74 = por %p72, %p73
    %p75 = scmp.ne.s32.totalorder %s66, %s67
    %p76 = scmp.eq.s32.totalorder %s14, 0
    %p77 = por %p75, %p76
    %p78 = scmp.ne.s32.totalorder %s66, %s67
    %p79 = scmp.eq.s32.totalorder %s15, 2
    %p80 = por %p78, %p79
    %p82 = scmp.ne.s32.totalorder %s67, %s81
    %p83 = scmp.eq.s32.totalorder %s15, 0
    %p84 = por %p82, %p83
    %s85 = ssub.s32 %s9, %s16
    %p86 = scmp.eq.s32.totalorder %s85, 0
    %s88 = sadd.s32 %s87, 1
    %s89 = scalar_select %p86, %s87, %s88
    %p92 = pneg %p86
    %p93 = scmp.eq.s32.totalorder %s9, 2
    %p94 = por %p92, %p93
    %p95 = scmp.ne.s32.totalorder %s87, %s90
    %p96 = scmp.eq.s32.totalorder %s9, 0
    %p97 = por %p95, %p96
    %p98 = scmp.ne.s32.totalorder %s87, %s90
    %p99 = scmp.eq.s32.totalorder %s14, 2
    %p100 = por %p98, %p99
    %p101 = scmp.ne.s32.totalorder %s90, %s91
    %p102 = scmp.eq.s32.totalorder %s14, 0
    %p103 = por %p101, %p102
    %p104 = scmp.ne.s32.totalorder %s90, %s91
    %p105 = scmp.eq.s32.totalorder %s15, 2
    %p106 = por %p104, %p105
    %p108 = scmp.ne.s32.totalorder %s91, %s107
    %p109 = scmp.eq.s32.totalorder %s15, 0
    %p110 = por %p108, %p109
    %p111 = scmp.le.s32.totalorder 1, %s9
    %p112 = scmp.lt.s32.totalorder %s9, 4
    %p113 = pnand %p111, %p112
    %p114 = pneg %p113
    // Predicated region
    $region9: #{cnn_forward.5} parent=5 // pred_check
      _
    $region10: #{cnn_forward.5} parent=5 // pred_check_branch
      %116 = sbr.rel (%p113) target = $region12
    $region11: #{cnn_forward.5} parent=5 // pred_region
      %s117 = ssub.s32 %s9, 1
      // Predicated region
      $region13: #{cnn_forward.5} parent=11 // pred_check
        %p118 = pneg %p56
      $region14: #{cnn_forward.5} parent=11 // pred_check_branch
        %120 = sbr.rel (%p118) target = $region16
      $region15: #{cnn_forward.5} parent=11 // pred_region
        _
      $region16: #{cnn_forward.5} parent=11 // pred_fallthru
        _
      // Predicated region
      $region17: #{cnn_forward.5} parent=11 // pred_check
        %p121 = pneg %p77
      $region18: #{cnn_forward.5} parent=11 // pred_check_branch
        %123 = sbr.rel (%p121) target = $region20
      $region19: #{cnn_forward.5} parent=11 // pred_region
        _
      $region20: #{cnn_forward.5} parent=11 // pred_fallthru
        _
    $region12: #{cnn_forward.5} parent=5 // pred_fallthru
      _
    %p124 = scmp.lt.s32.totalorder %s9, 3
    // Predicated region
    $region21: #{cnn_forward.5} parent=5 // pred_check
      %p125 = pneg %p124
    $region22: #{cnn_forward.5} parent=5 // pred_check_branch
      %127 = sbr.rel (%p125) target = $region24
    $region23: #{cnn_forward.5} parent=5 // pred_region
      // Predicated region
      $region25: #{cnn_forward.5} parent=23 // pred_check
        %p128 = pneg %p29
      $region26: #{cnn_forward.5} parent=23 // pred_check_branch
        %130 = sbr.rel (%p128) target = $region28
      $region27: #{cnn_forward.5} parent=23 // pred_region
        %s131 = smul.u32 64, %s9
        %p132 = scmp.lt.s32.totalorder %s131, 191
        %s133 = scalar_select %p132, %s131, 191
        %s134 = smul.addr %s133, 2
        %s135 = smul.addr %s134, 4
        %s136 = scalar_lea.vmem %s0, %s135
        %s137 = smul.u32 64, %s9
      $region28: #{cnn_forward.5} parent=23 // pred_fallthru
        _
    $region24: #{cnn_forward.5} parent=5 // pred_fallthru
      _
    %p138 = scmp.le.s32.totalorder 1, %s9
    %p139 = scmp.lt.s32.totalorder %s9, 4
    %p140 = pnand %p138, %p139
    %p141 = pneg %p140
    // Predicated region
    $region29: #{cnn_forward.5} parent=5 // pred_check
      _
    $region30: #{cnn_forward.5} parent=5 // pred_check_branch
      %143 = sbr.rel (%p140) target = $region32
    $region31: #{cnn_forward.5} parent=5 // pred_region
      %s144 = ssub.s32 %s9, 1
      %s145 = smul.u32 64, %s14
      %p146 = scmp.lt.s32.totalorder %s145, 191
      %s147 = scalar_select %p146, %s145, 191
      %s148 = smul.addr %s147, 2
      %s149 = smul.addr %s148, 4
      %s150 = scalar_lea.vmem %s0, %s149
      %p151 = pneg %p35
      %p152 = pneg %p32
      %p153 = pneg %p56
      %p154 = pneg %p53
      %p155 = pneg %p77
      %p156 = pneg %p74
      %p157 = pneg %p103
      %p158 = pneg %p100
      %s159 = smul.u32 64, %s14
      %p160 = scmp.lt.s32.totalorder %s159, 191
      %s161 = scalar_select %p160, %s159, 191
      %s162 = smul.addr %s161, 4
      %s163 = scalar_lea.vmem %s3, %s162
      %s164 = smul.u32 64, %s14
      %p165 = scmp.lt.s32.totalorder %s164, 191
      %s166 = scalar_select %p165, %s164, 191
      %s167 = smul.addr %s166, 2
      %s168 = smul.addr %s167, 4
      %s169 = scalar_lea.vmem %s0, %s168
      %s170 = smul.u32 64, %s14
      %s171 = smul.u32 64, %s14
      %p172 = scmp.lt.s32.totalorder %s171, 191
      %s173 = scalar_select %p172, %s171, 191
      %s174 = smul.addr %s173, 4
      %s175 = scalar_lea.vmem %s3, %s174
      %s176 = smul.u32 64, %s14
      %v178 = vld [vmem:[%s169] sm:$0xff]
      %v179 = vld [vmem:[%s169 + $0x8] sm:$0xff]
      %v180 = vld [vmem:[%s169 + $0x10] sm:$0xff]
      %v181 = vld [vmem:[%s169 + $0x18] sm:$0xff]
      %v182 = vld [vmem:[%s169 + $0x20] sm:$0xff]
      %v183 = vld [vmem:[%s169 + $0x28] sm:$0xff]
      %v184 = vld [vmem:[%s169 + $0x30] sm:$0xff]
      %v185 = vld [vmem:[%s169 + $0x38] sm:$0xff]
      %v186 = vld [vmem:[%s169 + $0x40] sm:$0xff]
      %v187 = vld [vmem:[%s169 + $0x48] sm:$0xff]
      %v188 = vld [vmem:[%s169 + $0x50] sm:$0xff]
      %v189 = vld [vmem:[%s169 + $0x58] sm:$0xff]
      %v190 = vld [vmem:[%s169 + $0x60] sm:$0xff]
      %v191 = vld [vmem:[%s169 + $0x68] sm:$0xff]
      %v192 = vld [vmem:[%s169 + $0x70] sm:$0xff]
      %v193 = vld [vmem:[%s169 + $0x78] sm:$0xff]
      %v194 = vld [vmem:[%s169 + $0x80] sm:$0xff]
      %v195 = vld [vmem:[%s169 + $0x88] sm:$0xff]
      %v196 = vld [vmem:[%s169 + $0x90] sm:$0xff]
      %v197 = vld [vmem:[%s169 + $0x98] sm:$0xff]
      %v198 = vld [vmem:[%s169 + $0xa0] sm:$0xff]
      %v199 = vld [vmem:[%s169 + $0xa8] sm:$0xff]
      %v200 = vld [vmem:[%s169 + $0xb0] sm:$0xff]
      %v201 = vld [vmem:[%s169 + $0xb8] sm:$0xff]
      %v202 = vld [vmem:[%s169 + $0xc0] sm:$0xff]
      %v203 = vld [vmem:[%s169 + $0xc8] sm:$0xff]
      %v204 = vld [vmem:[%s169 + $0xd0] sm:$0xff]
      %v205 = vld [vmem:[%s169 + $0xd8] sm:$0xff]
      %v206 = vld [vmem:[%s169 + $0xe0] sm:$0xff]
      %v207 = vld [vmem:[%s169 + $0xe8] sm:$0xff]
      %v208 = vld [vmem:[%s169 + $0xf0] sm:$0xff]
      %v209 = vld [vmem:[%s169 + $0xf8] sm:$0xff]
      %v210 = vld [vmem:[%s169 + $0x100] sm:$0xff]
      %v211 = vld [vmem:[%s169 + $0x108] sm:$0xff]
      %v212 = vld [vmem:[%s169 + $0x110] sm:$0xff]
      %v213 = vld [vmem:[%s169 + $0x118] sm:$0xff]
      %v214 = vld [vmem:[%s169 + $0x120] sm:$0xff]
      %v215 = vld [vmem:[%s169 + $0x128] sm:$0xff]
      %v216 = vld [vmem:[%s169 + $0x130] sm:$0xff]
      %v217 = vld [vmem:[%s169 + $0x138] sm:$0xff]
      %v218 = vld [vmem:[%s169 + $0x140] sm:$0xff]
      %v219 = vld [vmem:[%s169 + $0x148] sm:$0xff]
      %v220 = vld [vmem:[%s169 + $0x150] sm:$0xff]
      %v221 = vld [vmem:[%s169 + $0x158] sm:$0xff]
      %v222 = vld [vmem:[%s169 + $0x160] sm:$0xff]
      %v223 = vld [vmem:[%s169 + $0x168] sm:$0xff]
      %v224 = vld [vmem:[%s169 + $0x170] sm:$0xff]
      %v225 = vld [vmem:[%s169 + $0x178] sm:$0xff]
      %v226 = vld [vmem:[%s169 + $0x180] sm:$0xff]
      %v227 = vld [vmem:[%s169 + $0x188] sm:$0xff]
      %v228 = vld [vmem:[%s169 + $0x190] sm:$0xff]
      %v229 = vld [vmem:[%s169 + $0x198] sm:$0xff]
      %v230 = vld [vmem:[%s169 + $0x1a0] sm:$0xff]
      %v231 = vld [vmem:[%s169 + $0x1a8] sm:$0xff]
      %v232 = vld [vmem:[%s169 + $0x1b0] sm:$0xff]
      %v233 = vld [vmem:[%s169 + $0x1b8] sm:$0xff]
      %v234 = vld [vmem:[%s169 + $0x1c0] sm:$0xff]
      %v235 = vld [vmem:[%s169 + $0x1c8] sm:$0xff]
      %v236 = vld [vmem:[%s169 + $0x1d0] sm:$0xff]
      %v237 = vld [vmem:[%s169 + $0x1d8] sm:$0xff]
      %v238 = vld [vmem:[%s169 + $0x1e0] sm:$0xff]
      %v239 = vld [vmem:[%s169 + $0x1e8] sm:$0xff]
      %v240 = vld [vmem:[%s169 + $0x1f0] sm:$0xff]
      %v241 = vld [vmem:[%s169 + $0x1f8] sm:$0xff]
      %v242 = vld [vmem:[%s1] sm:$0xf]
      %v243 = vld [vmem:[%s1 + $0x4] sm:$0xf]
      %v244 = vld [vmem:[%s1 + $0x8] sm:$0xf]
      %v245 = vld [vmem:[%s1 + $0xc] sm:$0xf]
      %v246 = vld [vmem:[%s1 + $0x10] sm:$0xf]
      %v247 = vld [vmem:[%s1 + $0x14] sm:$0xf]
      %v248 = vld [vmem:[%s1 + $0x18] sm:$0xf]
      %v249 = vld [vmem:[%s1 + $0x1c] sm:$0xf]
      %v250 = vld [vmem:[%s1 + $0x20] sm:$0xf]
      %v251 = vld [vmem:[%s1 + $0x24] sm:$0xf]
      %v252 = vld [vmem:[%s1 + $0x28] sm:$0xf]
      %v253 = vld [vmem:[%s1 + $0x2c] sm:$0xf]
      %v254 = vld [vmem:[%s1 + $0x30] sm:$0xf]
      %v255 = vld [vmem:[%s1 + $0x34] sm:$0xf]
      %v256 = vld [vmem:[%s1 + $0x38] sm:$0xf]
      %v257 = vld [vmem:[%s1 + $0x3c] sm:$0xf]
      %v258 = vld [vmem:[%s1 + $0x40] sm:$0xf]
      %v259 = vld [vmem:[%s1 + $0x44] sm:$0xf]
      %v260 = vld [vmem:[%s2] sm:$0x1]
      %v262 = vlaneseq
      %v263 = vshrl.u32 %v262, 7
      %v264 = vsub.s32 0, %v263
      %v265 = vrot.slane %v260, %v264
      %v331 = vunpack.c.l.b16 %v178
      %v332 = vunpack.c.h.b16 %v178
      %v333 = vunpack.c.l.b16 %v179
      %v334 = vunpack.c.h.b16 %v179
      %v335 = vunpack.c.l.b16 %v180
      %v336 = vunpack.c.h.b16 %v180
      %v337 = vunpack.c.l.b16 %v181
      %v338 = vunpack.c.h.b16 %v181
      %v339 = vunpack.c.l.b16 %v182
      %v340 = vunpack.c.h.b16 %v182
      %v341 = vunpack.c.l.b16 %v183
      %v342 = vunpack.c.h.b16 %v183
      %v343 = vunpack.c.l.b16 %v184
      %v344 = vunpack.c.h.b16 %v184
      %v345 = vunpack.c.l.b16 %v185
      %v346 = vunpack.c.h.b16 %v185
      %v347 = vunpack.c.l.b16 %v186
      %v348 = vunpack.c.h.b16 %v186
      %v349 = vunpack.c.l.b16 %v187
      %v350 = vunpack.c.h.b16 %v187
      %v351 = vunpack.c.l.b16 %v188
      %v352 = vunpack.c.h.b16 %v188
      %v353 = vunpack.c.l.b16 %v189
      %v354 = vunpack.c.h.b16 %v189
      %v355 = vunpack.c.l.b16 %v190
      %v356 = vunpack.c.h.b16 %v190
      %v357 = vunpack.c.l.b16 %v191
      %v358 = vunpack.c.h.b16 %v191
      %v359 = vunpack.c.l.b16 %v192
      %v360 = vunpack.c.h.b16 %v192
      %v361 = vunpack.c.l.b16 %v193
      %v362 = vunpack.c.h.b16 %v193
      %v363 = vunpack.c.l.b16 %v194
      %v364 = vunpack.c.h.b16 %v194
      %v365 = vunpack.c.l.b16 %v195
      %v366 = vunpack.c.h.b16 %v195
      %v367 = vunpack.c.l.b16 %v196
      %v368 = vunpack.c.h.b16 %v196
      %v369 = vunpack.c.l.b16 %v197
      %v370 = vunpack.c.h.b16 %v197
      %v371 = vunpack.c.l.b16 %v198
      %v372 = vunpack.c.h.b16 %v198
      %v373 = vunpack.c.l.b16 %v199
      %v374 = vunpack.c.h.b16 %v199
      %v375 = vunpack.c.l.b16 %v200
      %v376 = vunpack.c.h.b16 %v200
      %v377 = vunpack.c.l.b16 %v201
      %v378 = vunpack.c.h.b16 %v201
      %v379 = vunpack.c.l.b16 %v202
      %v380 = vunpack.c.h.b16 %v202
      %v381 = vunpack.c.l.b16 %v203
      %v382 = vunpack.c.h.b16 %v203
      %v383 = vunpack.c.l.b16 %v204
      %v384 = vunpack.c.h.b16 %v204
      %v385 = vunpack.c.l.b16 %v205
      %v386 = vunpack.c.h.b16 %v205
      %v387 = vunpack.c.l.b16 %v206
      %v388 = vunpack.c.h.b16 %v206
      %v389 = vunpack.c.l.b16 %v207
      %v390 = vunpack.c.h.b16 %v207
      %v391 = vunpack.c.l.b16 %v208
      %v392 = vunpack.c.h.b16 %v208
      %v393 = vunpack.c.l.b16 %v209
      %v394 = vunpack.c.h.b16 %v209
      %v395 = vunpack.c.l.b16 %v210
      %v396 = vunpack.c.h.b16 %v210
      %v397 = vunpack.c.l.b16 %v211
      %v398 = vunpack.c.h.b16 %v211
      %v399 = vunpack.c.l.b16 %v212
      %v400 = vunpack.c.h.b16 %v212
      %v401 = vunpack.c.l.b16 %v213
      %v402 = vunpack.c.h.b16 %v213
      %v403 = vunpack.c.l.b16 %v214
      %v404 = vunpack.c.h.b16 %v214
      %v405 = vunpack.c.l.b16 %v215
      %v406 = vunpack.c.h.b16 %v215
      %v407 = vunpack.c.l.b16 %v216
      %v408 = vunpack.c.h.b16 %v216
      %v409 = vunpack.c.l.b16 %v217
      %v410 = vunpack.c.h.b16 %v217
      %v411 = vunpack.c.l.b16 %v218
      %v412 = vunpack.c.h.b16 %v218
      %v413 = vunpack.c.l.b16 %v219
      %v414 = vunpack.c.h.b16 %v219
      %v415 = vunpack.c.l.b16 %v220
      %v416 = vunpack.c.h.b16 %v220
      %v417 = vunpack.c.l.b16 %v221
      %v418 = vunpack.c.h.b16 %v221
      %v419 = vunpack.c.l.b16 %v222
      %v420 = vunpack.c.h.b16 %v222
      %v421 = vunpack.c.l.b16 %v223
      %v422 = vunpack.c.h.b16 %v223
      %v423 = vunpack.c.l.b16 %v224
      %v424 = vunpack.c.h.b16 %v224
      %v425 = vunpack.c.l.b16 %v225
      %v426 = vunpack.c.h.b16 %v225
      %v427 = vunpack.c.l.b16 %v226
      %v428 = vunpack.c.h.b16 %v226
      %v429 = vunpack.c.l.b16 %v227
      %v430 = vunpack.c.h.b16 %v227
      %v431 = vunpack.c.l.b16 %v228
      %v432 = vunpack.c.h.b16 %v228
      %v433 = vunpack.c.l.b16 %v229
      %v434 = vunpack.c.h.b16 %v229
      %v435 = vunpack.c.l.b16 %v230
      %v436 = vunpack.c.h.b16 %v230
      %v437 = vunpack.c.l.b16 %v231
      %v438 = vunpack.c.h.b16 %v231
      %v439 = vunpack.c.l.b16 %v232
      %v440 = vunpack.c.h.b16 %v232
      %v441 = vunpack.c.l.b16 %v233
      %v442 = vunpack.c.h.b16 %v233
      %v443 = vunpack.c.l.b16 %v234
      %v444 = vunpack.c.h.b16 %v234
      %v445 = vunpack.c.l.b16 %v235
      %v446 = vunpack.c.h.b16 %v235
      %v447 = vunpack.c.l.b16 %v236
      %v448 = vunpack.c.h.b16 %v236
      %v449 = vunpack.c.l.b16 %v237
      %v450 = vunpack.c.h.b16 %v237
      %v451 = vunpack.c.l.b16 %v238
      %v452 = vunpack.c.h.b16 %v238
      %v453 = vunpack.c.l.b16 %v239
      %v454 = vunpack.c.h.b16 %v239
      %v455 = vunpack.c.l.b16 %v240
      %v456 = vunpack.c.h.b16 %v240
      %v457 = vunpack.c.l.b16 %v241
      %v458 = vunpack.c.h.b16 %v241
      %v459 = vpack.c.b16 %v333, %v331
      %v460 = vpack.c.b16 %v334, %v332
      %v461 = vpack.c.b16 %v337, %v335
      %v462 = vpack.c.b16 %v338, %v336
      %v463 = vpack.c.b16 %v341, %v339
      %v464 = vpack.c.b16 %v342, %v340
      %v465 = vpack.c.b16 %v345, %v343
      %v466 = vpack.c.b16 %v346, %v344
      %v467 = vpack.c.b16 %v349, %v347
      %v468 = vpack.c.b16 %v350, %v348
      %v469 = vpack.c.b16 %v353, %v351
      %v470 = vpack.c.b16 %v354, %v352
      %v471 = vpack.c.b16 %v357, %v355
      %v472 = vpack.c.b16 %v358, %v356
      %v473 = vpack.c.b16 %v361, %v359
      %v474 = vpack.c.b16 %v362, %v360
      %v475 = vpack.c.b16 %v365, %v363
      %v476 = vpack.c.b16 %v366, %v364
      %v477 = vpack.c.b16 %v369, %v367
      %v478 = vpack.c.b16 %v370, %v368
      %v479 = vpack.c.b16 %v373, %v371
      %v480 = vpack.c.b16 %v374, %v372
      %v481 = vpack.c.b16 %v377, %v375
      %v482 = vpack.c.b16 %v378, %v376
      %v483 = vpack.c.b16 %v381, %v379
      %v484 = vpack.c.b16 %v382, %v380
      %v485 = vpack.c.b16 %v385, %v383
      %v486 = vpack.c.b16 %v386, %v384
      %v487 = vpack.c.b16 %v389, %v387
      %v488 = vpack.c.b16 %v390, %v388
      %v489 = vpack.c.b16 %v393, %v391
      %v490 = vpack.c.b16 %v394, %v392
      %v491 = vpack.c.b16 %v397, %v395
      %v492 = vpack.c.b16 %v398, %v396
      %v493 = vpack.c.b16 %v401, %v399
      %v494 = vpack.c.b16 %v402, %v400
      %v495 = vpack.c.b16 %v405, %v403
      %v496 = vpack.c.b16 %v406, %v404
      %v497 = vpack.c.b16 %v409, %v407
      %v498 = vpack.c.b16 %v410, %v408
      %v499 = vpack.c.b16 %v413, %v411
      %v500 = vpack.c.b16 %v414, %v412
      %v501 = vpack.c.b16 %v417, %v415
      %v502 = vpack.c.b16 %v418, %v416
      %v503 = vpack.c.b16 %v421, %v419
      %v504 = vpack.c.b16 %v422, %v420
      %v505 = vpack.c.b16 %v425, %v423
      %v506 = vpack.c.b16 %v426, %v424
      %v507 = vpack.c.b16 %v429, %v427
      %v508 = vpack.c.b16 %v430, %v428
      %v509 = vpack.c.b16 %v433, %v431
      %v510 = vpack.c.b16 %v434, %v432
      %v511 = vpack.c.b16 %v437, %v435
      %v512 = vpack.c.b16 %v438, %v436
      %v513 = vpack.c.b16 %v441, %v439
      %v514 = vpack.c.b16 %v442, %v440
      %v515 = vpack.c.b16 %v445, %v443
      %v516 = vpack.c.b16 %v446, %v444
      %v517 = vpack.c.b16 %v449, %v447
      %v518 = vpack.c.b16 %v450, %v448
      %v519 = vpack.c.b16 %v453, %v451
      %v520 = vpack.c.b16 %v454, %v452
      %v521 = vpack.c.b16 %v457, %v455
      %v522 = vpack.c.b16 %v458, %v456
      %v573 = vunpack.c.l.b16 %v242
      %v574 = vunpack.c.l.b16 %v243
      %v575 = vunpack.c.l.b16 %v244
      %v576 = vunpack.c.l.b16 %v245
      %v577 = vunpack.c.l.b16 %v246
      %v578 = vunpack.c.l.b16 %v247
      %v579 = vunpack.c.l.b16 %v248
      %v580 = vunpack.c.l.b16 %v249
      %v581 = vunpack.c.l.b16 %v250
      %v582 = vunpack.c.l.b16 %v251
      %v583 = vunpack.c.l.b16 %v252
      %v584 = vunpack.c.l.b16 %v253
      %v585 = vunpack.c.l.b16 %v254
      %v586 = vunpack.c.l.b16 %v255
      %v587 = vunpack.c.l.b16 %v256
      %v588 = vunpack.c.l.b16 %v257
      %v589 = vunpack.c.l.b16 %v258
      %v590 = vunpack.c.l.b16 %v259
      %v591 = vpack.c.b16 %v574, %v573
      %v592 = vpack.c.b16 %v576, %v575
      %v593 = vpack.c.b16 %v578, %v577
      %v594 = vpack.c.b16 %v580, %v579
      %v595 = vpack.c.b16 %v582, %v581
      %v596 = vpack.c.b16 %v584, %v583
      %v597 = vpack.c.b16 %v586, %v585
      %v598 = vpack.c.b16 %v588, %v587
      %v599 = vpack.c.b16 %v590, %v589
      %vm609 = vcmask 130048
      %v611 = vsel %vm609, %v460, 0
      %v614 = vsel %vm609, %v462, 0
      %v617 = vsel %vm609, %v464, 0
      %v620 = vsel %vm609, %v466, 0
      %v623 = vsel %vm609, %v468, 0
      %v626 = vsel %vm609, %v470, 0
      %v629 = vsel %vm609, %v472, 0
      %v632 = vsel %vm609, %v474, 0
      %v635 = vsel %vm609, %v476, 0
      %v638 = vsel %vm609, %v478, 0
      %v641 = vsel %vm609, %v480, 0
      %v644 = vsel %vm609, %v482, 0
      %v647 = vsel %vm609, %v484, 0
      %v650 = vsel %vm609, %v486, 0
      %v653 = vsel %vm609, %v488, 0
      %v656 = vsel %vm609, %v490, 0
      %v659 = vsel %vm609, %v492, 0
      %v662 = vsel %vm609, %v494, 0
      %v665 = vsel %vm609, %v496, 0
      %v668 = vsel %vm609, %v498, 0
      %v671 = vsel %vm609, %v500, 0
      %v674 = vsel %vm609, %v502, 0
      %v677 = vsel %vm609, %v504, 0
      %v680 = vsel %vm609, %v506, 0
      %v683 = vsel %vm609, %v508, 0
      %v686 = vsel %vm609, %v510, 0
      %v689 = vsel %vm609, %v512, 0
      %v692 = vsel %vm609, %v514, 0
      %v695 = vsel %vm609, %v516, 0
      %v698 = vsel %vm609, %v518, 0
      %v701 = vsel %vm609, %v520, 0
      %v704 = vsel %vm609, %v522, 0
      %706 = vmatprep.subr.bf16.mxu0 0
      %707 = vmatpush1.bf16.msra.mxu0 %v598
      %708 = vmatprep.subr.bf16.mxu0 0
      %709 = vmatpush1.bf16.msra.mxu0 %v597
      %710 = vmatprep.subr.bf16.mxu0 0
      %711 = vmatpush1.bf16.msra.mxu0 %v596
      %712 = vmatprep.subr.bf16.mxu0 0
      %713 = vmatpush1.bf16.msra.mxu0 %v595
      %714 = vmatprep.subr.bf16.mxu0 0
      %715 = vmatpush1.bf16.msra.mxu0 %v594
      %716 = vmatprep.subr.bf16.mxu0 0
      %717 = vmatpush1.bf16.msra.mxu0 %v593
      %718 = vmatprep.subr.bf16.mxu0 0
      %719 = vmatpush1.bf16.msra.mxu0 %v592
      %720 = vmatprep.subr.bf16.mxu0 0
      %721 = vmatpush1.bf16.msra.mxu0 %v591
      %722 = vmatprep.subr.bf16.mxu0 0
      %723 = vmatpush2.bf16.msra.mxu0 0
      %724 = vmatprep.subr.bf16.mxu0 0
      %725 = vmatpush2.bf16.msra.mxu0 0
      %726 = vmatprep.subr.bf16.mxu0 0
      %727 = vmatpush2.bf16.msra.mxu0 0
      %728 = vmatprep.subr.bf16.mxu0 0
      %729 = vmatpush2.bf16.msra.mxu0 0
      %730 = vmatprep.subr.bf16.mxu0 0
      %731 = vmatpush2.bf16.msra.mxu0 0
      %732 = vmatprep.subr.bf16.mxu0 0
      %733 = vmatpush2.bf16.msra.mxu0 0
      %734 = vmatprep.subr.bf16.mxu0 0
      %735 = vmatpush2.bf16.msra.mxu0 0
      %736 = vmatprep.subr.bf16.mxu0 0
      %737 = vmatpush2.bf16.msra.mxu0 %v599
      %738 = vmatprep.mubr.bf16.mxu0 %v611
      %739 = vmatmul.mubr.bf16.gmra.mxu0 %v459
      %v740 = vpop.f32.mrf.mxu0
      %v741 = vadd.f32 %v265, %v740
      %v742 = vpop.f32.mrf.mxu0
      %v743 = vpop.f32.mrf.mxu0
      %v744 = vadd.f32 %v265, %v743
      %v745 = vpop.f32.mrf.mxu0
      %746 = vmatprep.mubr.bf16.mxu0 %v614
      %747 = vmatmul.mubr.bf16.gmra.mxu0 %v461
      %v748 = vpop.f32.mrf.mxu0
      %v749 = vadd.f32 %v265, %v748
      %v750 = vpop.f32.mrf.mxu0
      %v751 = vpop.f32.mrf.mxu0
      %v752 = vadd.f32 %v265, %v751
      %v753 = vpop.f32.mrf.mxu0
      %754 = vmatprep.mubr.bf16.mxu0 %v617
      %755 = vmatmul.mubr.bf16.gmra.mxu0 %v463
      %v756 = vpop.f32.mrf.mxu0
      %v757 = vadd.f32 %v265, %v756
      %v758 = vpop.f32.mrf.mxu0
      %v759 = vpop.f32.mrf.mxu0
      %v760 = vadd.f32 %v265, %v759
      %v761 = vpop.f32.mrf.mxu0
      %762 = vmatprep.mubr.bf16.mxu0 %v620
      %763 = vmatmul.mubr.bf16.gmra.mxu0 %v465
      %v764 = vpop.f32.mrf.mxu0
      %v765 = vadd.f32 %v265, %v764
      %v766 = vpop.f32.mrf.mxu0
      %v767 = vpop.f32.mrf.mxu0
      %v768 = vadd.f32 %v265, %v767
      %v769 = vpop.f32.mrf.mxu0
      %770 = vmatprep.mubr.bf16.mxu0 %v623
      %771 = vmatmul.mubr.bf16.gmra.mxu0 %v467
      %v772 = vpop.f32.mrf.mxu0
      %v773 = vadd.f32 %v265, %v772
      %v774 = vpop.f32.mrf.mxu0
      %v775 = vpop.f32.mrf.mxu0
      %v776 = vadd.f32 %v265, %v775
      %v777 = vpop.f32.mrf.mxu0
      %778 = vmatprep.mubr.bf16.mxu0 %v626
      %779 = vmatmul.mubr.bf16.gmra.mxu0 %v469
      %v780 = vpop.f32.mrf.mxu0
      %v781 = vadd.f32 %v265, %v780
      %v782 = vpop.f32.mrf.mxu0
      %v783 = vpop.f32.mrf.mxu0
      %v784 = vadd.f32 %v265, %v783
      %v785 = vpop.f32.mrf.mxu0
      %786 = vmatprep.mubr.bf16.mxu0 %v629
      %787 = vmatmul.mubr.bf16.gmra.mxu0 %v471
      %v788 = vpop.f32.mrf.mxu0
      %v789 = vadd.f32 %v265, %v788
      %v790 = vpop.f32.mrf.mxu0
      %v791 = vpop.f32.mrf.mxu0
      %v792 = vadd.f32 %v265, %v791
      %v793 = vpop.f32.mrf.mxu0
      %794 = vmatprep.mubr.bf16.mxu0 %v632
      %795 = vmatmul.mubr.bf16.gmra.mxu0 %v473
      %v796 = vpop.f32.mrf.mxu0
      %v797 = vadd.f32 %v265, %v796
      %v798 = vpop.f32.mrf.mxu0
      %v799 = vpop.f32.mrf.mxu0
      %v800 = vadd.f32 %v265, %v799
      %v801 = vpop.f32.mrf.mxu0
      %802 = vmatprep.mubr.bf16.mxu0 %v635
      %803 = vmatmul.mubr.bf16.gmra.mxu0 %v475
      %v804 = vpop.f32.mrf.mxu0
      %v805 = vadd.f32 %v265, %v804
      %v806 = vpop.f32.mrf.mxu0
      %v807 = vpop.f32.mrf.mxu0
      %v808 = vadd.f32 %v265, %v807
      %v809 = vpop.f32.mrf.mxu0
      %810 = vmatprep.mubr.bf16.mxu0 %v638
      %811 = vmatmul.mubr.bf16.gmra.mxu0 %v477
      %v812 = vpop.f32.mrf.mxu0
      %v813 = vadd.f32 %v265, %v812
      %v814 = vpop.f32.mrf.mxu0
      %v815 = vpop.f32.mrf.mxu0
      %v816 = vadd.f32 %v265, %v815
      %v817 = vpop.f32.mrf.mxu0
      %818 = vmatprep.mubr.bf16.mxu0 %v641
      %819 = vmatmul.mubr.bf16.gmra.mxu0 %v479
      %v820 = vpop.f32.mrf.mxu0
      %v821 = vadd.f32 %v265, %v820
      %v822 = vpop.f32.mrf.mxu0
      %v823 = vpop.f32.mrf.mxu0
      %v824 = vadd.f32 %v265, %v823
      %v825 = vpop.f32.mrf.mxu0
      %826 = vmatprep.mubr.bf16.mxu0 %v644
      %827 = vmatmul.mubr.bf16.gmra.mxu0 %v481
      %v828 = vpop.f32.mrf.mxu0
      %v829 = vadd.f32 %v265, %v828
      %v830 = vpop.f32.mrf.mxu0
      %v831 = vpop.f32.mrf.mxu0
      %v832 = vadd.f32 %v265, %v831
      %v833 = vpop.f32.mrf.mxu0
      %834 = vmatprep.mubr.bf16.mxu0 %v647
      %835 = vmatmul.mubr.bf16.gmra.mxu0 %v483
      %v836 = vpop.f32.mrf.mxu0
      %v837 = vadd.f32 %v265, %v836
      %v838 = vpop.f32.mrf.mxu0
      %v839 = vpop.f32.mrf.mxu0
      %v840 = vadd.f32 %v265, %v839
      %v841 = vpop.f32.mrf.mxu0
      %842 = vmatprep.mubr.bf16.mxu0 %v650
      %843 = vmatmul.mubr.bf16.gmra.mxu0 %v485
      %v844 = vpop.f32.mrf.mxu0
      %v845 = vadd.f32 %v265, %v844
      %v846 = vpop.f32.mrf.mxu0
      %v847 = vpop.f32.mrf.mxu0
      %v848 = vadd.f32 %v265, %v847
      %v849 = vpop.f32.mrf.mxu0
      %850 = vmatprep.mubr.bf16.mxu0 %v653
      %851 = vmatmul.mubr.bf16.gmra.mxu0 %v487
      %v852 = vpop.f32.mrf.mxu0
      %v853 = vadd.f32 %v265, %v852
      %v854 = vpop.f32.mrf.mxu0
      %v855 = vpop.f32.mrf.mxu0
      %v856 = vadd.f32 %v265, %v855
      %v857 = vpop.f32.mrf.mxu0
      %858 = vmatprep.mubr.bf16.mxu0 %v656
      %859 = vmatmul.mubr.bf16.gmra.mxu0 %v489
      %v860 = vpop.f32.mrf.mxu0
      %v861 = vadd.f32 %v265, %v860
      %v862 = vpop.f32.mrf.mxu0
      %v863 = vpop.f32.mrf.mxu0
      %v864 = vadd.f32 %v265, %v863
      %v865 = vpop.f32.mrf.mxu0
      %866 = vmatprep.mubr.bf16.mxu0 %v659
      %867 = vmatmul.mubr.bf16.gmra.mxu0 %v491
      %v868 = vpop.f32.mrf.mxu0
      %v869 = vadd.f32 %v265, %v868
      %v870 = vpop.f32.mrf.mxu0
      %v871 = vpop.f32.mrf.mxu0
      %v872 = vadd.f32 %v265, %v871
      %v873 = vpop.f32.mrf.mxu0
      %874 = vmatprep.mubr.bf16.mxu0 %v662
      %875 = vmatmul.mubr.bf16.gmra.mxu0 %v493
      %v876 = vpop.f32.mrf.mxu0
      %v877 = vadd.f32 %v265, %v876
      %v878 = vpop.f32.mrf.mxu0
      %v879 = vpop.f32.mrf.mxu0
      %v880 = vadd.f32 %v265, %v879
      %v881 = vpop.f32.mrf.mxu0
      %882 = vmatprep.mubr.bf16.mxu0 %v665
      %883 = vmatmul.mubr.bf16.gmra.mxu0 %v495
      %v884 = vpop.f32.mrf.mxu0
      %v885 = vadd.f32 %v265, %v884
      %v886 = vpop.f32.mrf.mxu0
      %v887 = vpop.f32.mrf.mxu0
      %v888 = vadd.f32 %v265, %v887
      %v889 = vpop.f32.mrf.mxu0
      %890 = vmatprep.mubr.bf16.mxu0 %v668
      %891 = vmatmul.mubr.bf16.gmra.mxu0 %v497
      %v892 = vpop.f32.mrf.mxu0
      %v893 = vadd.f32 %v265, %v892
      %v894 = vpop.f32.mrf.mxu0
      %v895 = vpop.f32.mrf.mxu0
      %v896 = vadd.f32 %v265, %v895
      %v897 = vpop.f32.mrf.mxu0
      %898 = vmatprep.mubr.bf16.mxu0 %v671
      %899 = vmatmul.mubr.bf16.gmra.mxu0 %v499
      %v900 = vpop.f32.mrf.mxu0
      %v901 = vadd.f32 %v265, %v900
      %v902 = vpop.f32.mrf.mxu0
      %v903 = vpop.f32.mrf.mxu0
      %v904 = vadd.f32 %v265, %v903
      %v905 = vpop.f32.mrf.mxu0
      %906 = vmatprep.mubr.bf16.mxu0 %v674
      %907 = vmatmul.mubr.bf16.gmra.mxu0 %v501
      %v908 = vpop.f32.mrf.mxu0
      %v909 = vadd.f32 %v265, %v908
      %v910 = vpop.f32.mrf.mxu0
      %v911 = vpop.f32.mrf.mxu0
      %v912 = vadd.f32 %v265, %v911
      %v913 = vpop.f32.mrf.mxu0
      %914 = vmatprep.mubr.bf16.mxu0 %v677
      %915 = vmatmul.mubr.bf16.gmra.mxu0 %v503
      %v916 = vpop.f32.mrf.mxu0
      %v917 = vadd.f32 %v265, %v916
      %v918 = vpop.f32.mrf.mxu0
      %v919 = vpop.f32.mrf.mxu0
      %v920 = vadd.f32 %v265, %v919
      %v921 = vpop.f32.mrf.mxu0
      %922 = vmatprep.mubr.bf16.mxu0 %v680
      %923 = vmatmul.mubr.bf16.gmra.mxu0 %v505
      %v924 = vpop.f32.mrf.mxu0
      %v925 = vadd.f32 %v265, %v924
      %v926 = vpop.f32.mrf.mxu0
      %v927 = vpop.f32.mrf.mxu0
      %v928 = vadd.f32 %v265, %v927
      %v929 = vpop.f32.mrf.mxu0
      %930 = vmatprep.mubr.bf16.mxu0 %v683
      %931 = vmatmul.mubr.bf16.gmra.mxu0 %v507
      %v932 = vpop.f32.mrf.mxu0
      %v933 = vadd.f32 %v265, %v932
      %v934 = vpop.f32.mrf.mxu0
      %v935 = vpop.f32.mrf.mxu0
      %v936 = vadd.f32 %v265, %v935
      %v937 = vpop.f32.mrf.mxu0
      %938 = vmatprep.mubr.bf16.mxu0 %v686
      %939 = vmatmul.mubr.bf16.gmra.mxu0 %v509
      %v940 = vpop.f32.mrf.mxu0
      %v941 = vadd.f32 %v265, %v940
      %v942 = vpop.f32.mrf.mxu0
      %v943 = vpop.f32.mrf.mxu0
      %v944 = vadd.f32 %v265, %v943
      %v945 = vpop.f32.mrf.mxu0
      %946 = vmatprep.mubr.bf16.mxu0 %v689
      %947 = vmatmul.mubr.bf16.gmra.mxu0 %v511
      %v948 = vpop.f32.mrf.mxu0
      %v949 = vadd.f32 %v265, %v948
      %v950 = vpop.f32.mrf.mxu0
      %v951 = vpop.f32.mrf.mxu0
      %v952 = vadd.f32 %v265, %v951
      %v953 = vpop.f32.mrf.mxu0
      %954 = vmatprep.mubr.bf16.mxu0 %v692
      %955 = vmatmul.mubr.bf16.gmra.mxu0 %v513
      %v956 = vpop.f32.mrf.mxu0
      %v957 = vadd.f32 %v265, %v956
      %v958 = vpop.f32.mrf.mxu0
      %v959 = vpop.f32.mrf.mxu0
      %v960 = vadd.f32 %v265, %v959
      %v961 = vpop.f32.mrf.mxu0
      %962 = vmatprep.mubr.bf16.mxu0 %v695
      %963 = vmatmul.mubr.bf16.gmra.mxu0 %v515
      %v964 = vpop.f32.mrf.mxu0
      %v965 = vadd.f32 %v265, %v964
      %v966 = vpop.f32.mrf.mxu0
      %v967 = vpop.f32.mrf.mxu0
      %v968 = vadd.f32 %v265, %v967
      %v969 = vpop.f32.mrf.mxu0
      %970 = vmatprep.mubr.bf16.mxu0 %v698
      %971 = vmatmul.mubr.bf16.gmra.mxu0 %v517
      %v972 = vpop.f32.mrf.mxu0
      %v973 = vadd.f32 %v265, %v972
      %v974 = vpop.f32.mrf.mxu0
      %v975 = vpop.f32.mrf.mxu0
      %v976 = vadd.f32 %v265, %v975
      %v977 = vpop.f32.mrf.mxu0
      %978 = vmatprep.mubr.bf16.mxu0 %v701
      %979 = vmatmul.mubr.bf16.gmra.mxu0 %v519
      %v980 = vpop.f32.mrf.mxu0
      %v981 = vadd.f32 %v265, %v980
      %v982 = vpop.f32.mrf.mxu0
      %v983 = vpop.f32.mrf.mxu0
      %v984 = vadd.f32 %v265, %v983
      %v985 = vpop.f32.mrf.mxu0
      %986 = vmatprep.mubr.bf16.mxu0 %v704
      %987 = vmatmul.mubr.bf16.gmra.mxu0 %v521
      %v988 = vpop.f32.mrf.mxu0
      %v989 = vadd.f32 %v265, %v988
      %v990 = vpop.f32.mrf.mxu0
      %v991 = vpop.f32.mrf.mxu0
      %v992 = vadd.f32 %v265, %v991
      %v993 = vpop.f32.mrf.mxu0
      %994 = vdwg.mxu0
      %v995 = vmax.f32 %v741, 0.0
      %v996 = vmax.f32 %v744, 0.0
      %v997 = vmax.f32 %v749, 0.0
      %v998 = vmax.f32 %v752, 0.0
      %v999 = vmax.f32 %v757, 0.0
      %v1000 = vmax.f32 %v760, 0.0
      %v1001 = vmax.f32 %v765, 0.0
      %v1002 = vmax.f32 %v768, 0.0
      %v1003 = vmax.f32 %v773, 0.0
      %v1004 = vmax.f32 %v776, 0.0
      %v1005 = vmax.f32 %v781, 0.0
      %v1006 = vmax.f32 %v784, 0.0
      %v1007 = vmax.f32 %v789, 0.0
      %v1008 = vmax.f32 %v792, 0.0
      %v1009 = vmax.f32 %v797, 0.0
      %v1010 = vmax.f32 %v800, 0.0
      %v1011 = vmax.f32 %v805, 0.0
      %v1012 = vmax.f32 %v808, 0.0
      %v1013 = vmax.f32 %v813, 0.0
      %v1014 = vmax.f32 %v816, 0.0
      %v1015 = vmax.f32 %v821, 0.0
      %v1016 = vmax.f32 %v824, 0.0
      %v1017 = vmax.f32 %v829, 0.0
      %v1018 = vmax.f32 %v832, 0.0
      %v1019 = vmax.f32 %v837, 0.0
      %v1020 = vmax.f32 %v840, 0.0
      %v1021 = vmax.f32 %v845, 0.0
      %v1022 = vmax.f32 %v848, 0.0
      %v1023 = vmax.f32 %v853, 0.0
      %v1024 = vmax.f32 %v856, 0.0
      %v1025 = vmax.f32 %v861, 0.0
      %v1026 = vmax.f32 %v864, 0.0
      %v1027 = vmax.f32 %v869, 0.0
      %v1028 = vmax.f32 %v872, 0.0
      %v1029 = vmax.f32 %v877, 0.0
      %v1030 = vmax.f32 %v880, 0.0
      %v1031 = vmax.f32 %v885, 0.0
      %v1032 = vmax.f32 %v888, 0.0
      %v1033 = vmax.f32 %v893, 0.0
      %v1034 = vmax.f32 %v896, 0.0
      %v1035 = vmax.f32 %v901, 0.0
      %v1036 = vmax.f32 %v904, 0.0
      %v1037 = vmax.f32 %v909, 0.0
      %v1038 = vmax.f32 %v912, 0.0
      %v1039 = vmax.f32 %v917, 0.0
      %v1040 = vmax.f32 %v920, 0.0
      %v1041 = vmax.f32 %v925, 0.0
      %v1042 = vmax.f32 %v928, 0.0
      %v1043 = vmax.f32 %v933, 0.0
      %v1044 = vmax.f32 %v936, 0.0
      %v1045 = vmax.f32 %v941, 0.0
      %v1046 = vmax.f32 %v944, 0.0
      %v1047 = vmax.f32 %v949, 0.0
      %v1048 = vmax.f32 %v952, 0.0
      %v1049 = vmax.f32 %v957, 0.0
      %v1050 = vmax.f32 %v960, 0.0
      %v1051 = vmax.f32 %v965, 0.0
      %v1052 = vmax.f32 %v968, 0.0
      %v1053 = vmax.f32 %v973, 0.0
      %v1054 = vmax.f32 %v976, 0.0
      %v1055 = vmax.f32 %v981, 0.0
      %v1056 = vmax.f32 %v984, 0.0
      %v1057 = vmax.f32 %v989, 0.0
      %v1058 = vmax.f32 %v992, 0.0
      %v1059 = vpack.c.bf16 %v996, %v995
      %v1060 = vpack.c.bf16 %v998, %v997
      %v1061 = vpack.c.bf16 %v1000, %v999
      %v1062 = vpack.c.bf16 %v1002, %v1001
      %v1063 = vpack.c.bf16 %v1004, %v1003
      %v1064 = vpack.c.bf16 %v1006, %v1005
      %v1065 = vpack.c.bf16 %v1008, %v1007
      %v1066 = vpack.c.bf16 %v1010, %v1009
      %v1067 = vpack.c.bf16 %v1012, %v1011
      %v1068 = vpack.c.bf16 %v1014, %v1013
      %v1069 = vpack.c.bf16 %v1016, %v1015
      %v1070 = vpack.c.bf16 %v1018, %v1017
      %v1071 = vpack.c.bf16 %v1020, %v1019
      %v1072 = vpack.c.bf16 %v1022, %v1021
      %v1073 = vpack.c.bf16 %v1024, %v1023
      %v1074 = vpack.c.bf16 %v1026, %v1025
      %v1075 = vpack.c.bf16 %v1028, %v1027
      %v1076 = vpack.c.bf16 %v1030, %v1029
      %v1077 = vpack.c.bf16 %v1032, %v1031
      %v1078 = vpack.c.bf16 %v1034, %v1033
      %v1079 = vpack.c.bf16 %v1036, %v1035
      %v1080 = vpack.c.bf16 %v1038, %v1037
      %v1081 = vpack.c.bf16 %v1040, %v1039
      %v1082 = vpack.c.bf16 %v1042, %v1041
      %v1083 = vpack.c.bf16 %v1044, %v1043
      %v1084 = vpack.c.bf16 %v1046, %v1045
      %v1085 = vpack.c.bf16 %v1048, %v1047
      %v1086 = vpack.c.bf16 %v1050, %v1049
      %v1087 = vpack.c.bf16 %v1052, %v1051
      %v1088 = vpack.c.bf16 %v1054, %v1053
      %v1089 = vpack.c.bf16 %v1056, %v1055
      %v1090 = vpack.c.bf16 %v1058, %v1057
      %v1123 = vunpack.c.l.b16 %v1059
      %v1124 = vunpack.c.h.b16 %v1059
      %v1125 = vunpack.c.l.b16 %v1060
      %v1126 = vunpack.c.h.b16 %v1060
      %v1127 = vunpack.c.l.b16 %v1061
      %v1128 = vunpack.c.h.b16 %v1061
      %v1129 = vunpack.c.l.b16 %v1062
      %v1130 = vunpack.c.h.b16 %v1062
      %v1131 = vunpack.c.l.b16 %v1063
      %v1132 = vunpack.c.h.b16 %v1063
      %v1133 = vunpack.c.l.b16 %v1064
      %v1134 = vunpack.c.h.b16 %v1064
      %v1135 = vunpack.c.l.b16 %v1065
      %v1136 = vunpack.c.h.b16 %v1065
      %v1137 = vunpack.c.l.b16 %v1066
      %v1138 = vunpack.c.h.b16 %v1066
      %v1139 = vunpack.c.l.b16 %v1067
      %v1140 = vunpack.c.h.b16 %v1067
      %v1141 = vunpack.c.l.b16 %v1068
      %v1142 = vunpack.c.h.b16 %v1068
      %v1143 = vunpack.c.l.b16 %v1069
      %v1144 = vunpack.c.h.b16 %v1069
      %v1145 = vunpack.c.l.b16 %v1070
      %v1146 = vunpack.c.h.b16 %v1070
      %v1147 = vunpack.c.l.b16 %v1071
      %v1148 = vunpack.c.h.b16 %v1071
      %v1149 = vunpack.c.l.b16 %v1072
      %v1150 = vunpack.c.h.b16 %v1072
      %v1151 = vunpack.c.l.b16 %v1073
      %v1152 = vunpack.c.h.b16 %v1073
      %v1153 = vunpack.c.l.b16 %v1074
      %v1154 = vunpack.c.h.b16 %v1074
      %v1155 = vunpack.c.l.b16 %v1075
      %v1156 = vunpack.c.h.b16 %v1075
      %v1157 = vunpack.c.l.b16 %v1076
      %v1158 = vunpack.c.h.b16 %v1076
      %v1159 = vunpack.c.l.b16 %v1077
      %v1160 = vunpack.c.h.b16 %v1077
      %v1161 = vunpack.c.l.b16 %v1078
      %v1162 = vunpack.c.h.b16 %v1078
      %v1163 = vunpack.c.l.b16 %v1079
      %v1164 = vunpack.c.h.b16 %v1079
      %v1165 = vunpack.c.l.b16 %v1080
      %v1166 = vunpack.c.h.b16 %v1080
      %v1167 = vunpack.c.l.b16 %v1081
      %v1168 = vunpack.c.h.b16 %v1081
      %v1169 = vunpack.c.l.b16 %v1082
      %v1170 = vunpack.c.h.b16 %v1082
      %v1171 = vunpack.c.l.b16 %v1083
      %v1172 = vunpack.c.h.b16 %v1083
      %v1173 = vunpack.c.l.b16 %v1084
      %v1174 = vunpack.c.h.b16 %v1084
      %v1175 = vunpack.c.l.b16 %v1085
      %v1176 = vunpack.c.h.b16 %v1085
      %v1177 = vunpack.c.l.b16 %v1086
      %v1178 = vunpack.c.h.b16 %v1086
      %v1179 = vunpack.c.l.b16 %v1087
      %v1180 = vunpack.c.h.b16 %v1087
      %v1181 = vunpack.c.l.b16 %v1088
      %v1182 = vunpack.c.h.b16 %v1088
      %v1183 = vunpack.c.l.b16 %v1089
      %v1184 = vunpack.c.h.b16 %v1089
      %v1185 = vunpack.c.l.b16 %v1090
      %v1186 = vunpack.c.h.b16 %v1090
      %v1187 = vpack.c.b16 %v1123, %v1123
      %v1188 = vpack.c.b16 %v1124, %v1124
      %v1189 = vpack.c.b16 %v1125, %v1125
      %v1190 = vpack.c.b16 %v1126, %v1126
      %v1191 = vpack.c.b16 %v1127, %v1127
      %v1192 = vpack.c.b16 %v1128, %v1128
      %v1193 = vpack.c.b16 %v1129, %v1129
      %v1194 = vpack.c.b16 %v1130, %v1130
      %v1195 = vpack.c.b16 %v1131, %v1131
      %v1196 = vpack.c.b16 %v1132, %v1132
      %v1197 = vpack.c.b16 %v1133, %v1133
      %v1198 = vpack.c.b16 %v1134, %v1134
      %v1199 = vpack.c.b16 %v1135, %v1135
      %v1200 = vpack.c.b16 %v1136, %v1136
      %v1201 = vpack.c.b16 %v1137, %v1137
      %v1202 = vpack.c.b16 %v1138, %v1138
      %v1203 = vpack.c.b16 %v1139, %v1139
      %v1204 = vpack.c.b16 %v1140, %v1140
      %v1205 = vpack.c.b16 %v1141, %v1141
      %v1206 = vpack.c.b16 %v1142, %v1142
      %v1207 = vpack.c.b16 %v1143, %v1143
      %v1208 = vpack.c.b16 %v1144, %v1144
      %v1209 = vpack.c.b16 %v1145, %v1145
      %v1210 = vpack.c.b16 %v1146, %v1146
      %v1211 = vpack.c.b16 %v1147, %v1147
      %v1212 = vpack.c.b16 %v1148, %v1148
      %v1213 = vpack.c.b16 %v1149, %v1149
      %v1214 = vpack.c.b16 %v1150, %v1150
      %v1215 = vpack.c.b16 %v1151, %v1151
      %v1216 = vpack.c.b16 %v1152, %v1152
      %v1217 = vpack.c.b16 %v1153, %v1153
      %v1218 = vpack.c.b16 %v1154, %v1154
      %v1219 = vpack.c.b16 %v1155, %v1155
      %v1220 = vpack.c.b16 %v1156, %v1156
      %v1221 = vpack.c.b16 %v1157, %v1157
      %v1222 = vpack.c.b16 %v1158, %v1158
      %v1223 = vpack.c.b16 %v1159, %v1159
      %v1224 = vpack.c.b16 %v1160, %v1160
      %v1225 = vpack.c.b16 %v1161, %v1161
      %v1226 = vpack.c.b16 %v1162, %v1162
      %v1227 = vpack.c.b16 %v1163, %v1163
      %v1228 = vpack.c.b16 %v1164, %v1164
      %v1229 = vpack.c.b16 %v1165, %v1165
      %v1230 = vpack.c.b16 %v1166, %v1166
      %v1231 = vpack.c.b16 %v1167, %v1167
      %v1232 = vpack.c.b16 %v1168, %v1168
      %v1233 = vpack.c.b16 %v1169, %v1169
      %v1234 = vpack.c.b16 %v1170, %v1170
      %v1235 = vpack.c.b16 %v1171, %v1171
      %v1236 = vpack.c.b16 %v1172, %v1172
      %v1237 = vpack.c.b16 %v1173, %v1173
      %v1238 = vpack.c.b16 %v1174, %v1174
      %v1239 = vpack.c.b16 %v1175, %v1175
      %v1240 = vpack.c.b16 %v1176, %v1176
      %v1241 = vpack.c.b16 %v1177, %v1177
      %v1242 = vpack.c.b16 %v1178, %v1178
      %v1243 = vpack.c.b16 %v1179, %v1179
      %v1244 = vpack.c.b16 %v1180, %v1180
      %v1245 = vpack.c.b16 %v1181, %v1181
      %v1246 = vpack.c.b16 %v1182, %v1182
      %v1247 = vpack.c.b16 %v1183, %v1183
      %v1248 = vpack.c.b16 %v1184, %v1184
      %v1249 = vpack.c.b16 %v1185, %v1185
      %v1250 = vpack.c.b16 %v1186, %v1186
      %1315 = vst [vmem:[%s175] sm:$0xf] %v1187
      %1316 = vst [vmem:[%s175 + $0x4] sm:$0xf] %v1188
      %1317 = vst [vmem:[%s175 + $0x8] sm:$0xf] %v1189
      %1318 = vst [vmem:[%s175 + $0xc] sm:$0xf] %v1190
      %1319 = vst [vmem:[%s175 + $0x10] sm:$0xf] %v1191
      %1320 = vst [vmem:[%s175 + $0x14] sm:$0xf] %v1192
      %1321 = vst [vmem:[%s175 + $0x18] sm:$0xf] %v1193
      %1322 = vst [vmem:[%s175 + $0x1c] sm:$0xf] %v1194
      %1323 = vst [vmem:[%s175 + $0x20] sm:$0xf] %v1195
      %1324 = vst [vmem:[%s175 + $0x24] sm:$0xf] %v1196
      %1325 = vst [vmem:[%s175 + $0x28] sm:$0xf] %v1197
      %1326 = vst [vmem:[%s175 + $0x2c] sm:$0xf] %v1198
      %1327 = vst [vmem:[%s175 + $0x30] sm:$0xf] %v1199
      %1328 = vst [vmem:[%s175 + $0x34] sm:$0xf] %v1200
      %1329 = vst [vmem:[%s175 + $0x38] sm:$0xf] %v1201
      %1330 = vst [vmem:[%s175 + $0x3c] sm:$0xf] %v1202
      %1331 = vst [vmem:[%s175 + $0x40] sm:$0xf] %v1203
      %1332 = vst [vmem:[%s175 + $0x44] sm:$0xf] %v1204
      %1333 = vst [vmem:[%s175 + $0x48] sm:$0xf] %v1205
      %1334 = vst [vmem:[%s175 + $0x4c] sm:$0xf] %v1206
      %1335 = vst [vmem:[%s175 + $0x50] sm:$0xf] %v1207
      %1336 = vst [vmem:[%s175 + $0x54] sm:$0xf] %v1208
      %1337 = vst [vmem:[%s175 + $0x58] sm:$0xf] %v1209
      %1338 = vst [vmem:[%s175 + $0x5c] sm:$0xf] %v1210
      %1339 = vst [vmem:[%s175 + $0x60] sm:$0xf] %v1211
      %1340 = vst [vmem:[%s175 + $0x64] sm:$0xf] %v1212
      %1341 = vst [vmem:[%s175 + $0x68] sm:$0xf] %v1213
      %1342 = vst [vmem:[%s175 + $0x6c] sm:$0xf] %v1214
      %1343 = vst [vmem:[%s175 + $0x70] sm:$0xf] %v1215
      %1344 = vst [vmem:[%s175 + $0x74] sm:$0xf] %v1216
      %1345 = vst [vmem:[%s175 + $0x78] sm:$0xf] %v1217
      %1346 = vst [vmem:[%s175 + $0x7c] sm:$0xf] %v1218
      %1347 = vst [vmem:[%s175 + $0x80] sm:$0xf] %v1219
      %1348 = vst [vmem:[%s175 + $0x84] sm:$0xf] %v1220
      %1349 = vst [vmem:[%s175 + $0x88] sm:$0xf] %v1221
      %1350 = vst [vmem:[%s175 + $0x8c] sm:$0xf] %v1222
      %1351 = vst [vmem:[%s175 + $0x90] sm:$0xf] %v1223
      %1352 = vst [vmem:[%s175 + $0x94] sm:$0xf] %v1224
      %1353 = vst [vmem:[%s175 + $0x98] sm:$0xf] %v1225
      %1354 = vst [vmem:[%s175 + $0x9c] sm:$0xf] %v1226
      %1355 = vst [vmem:[%s175 + $0xa0] sm:$0xf] %v1227
      %1356 = vst [vmem:[%s175 + $0xa4] sm:$0xf] %v1228
      %1357 = vst [vmem:[%s175 + $0xa8] sm:$0xf] %v1229
      %1358 = vst [vmem:[%s175 + $0xac] sm:$0xf] %v1230
      %1359 = vst [vmem:[%s175 + $0xb0] sm:$0xf] %v1231
      %1360 = vst [vmem:[%s175 + $0xb4] sm:$0xf] %v1232
      %1361 = vst [vmem:[%s175 + $0xb8] sm:$0xf] %v1233
      %1362 = vst [vmem:[%s175 + $0xbc] sm:$0xf] %v1234
      %1363 = vst [vmem:[%s175 + $0xc0] sm:$0xf] %v1235
      %1364 = vst [vmem:[%s175 + $0xc4] sm:$0xf] %v1236
      %1365 = vst [vmem:[%s175 + $0xc8] sm:$0xf] %v1237
      %1366 = vst [vmem:[%s175 + $0xcc] sm:$0xf] %v1238
      %1367 = vst [vmem:[%s175 + $0xd0] sm:$0xf] %v1239
      %1368 = vst [vmem:[%s175 + $0xd4] sm:$0xf] %v1240
      %1369 = vst [vmem:[%s175 + $0xd8] sm:$0xf] %v1241
      %1370 = vst [vmem:[%s175 + $0xdc] sm:$0xf] %v1242
      %1371 = vst [vmem:[%s175 + $0xe0] sm:$0xf] %v1243
      %1372 = vst [vmem:[%s175 + $0xe4] sm:$0xf] %v1244
      %1373 = vst [vmem:[%s175 + $0xe8] sm:$0xf] %v1245
      %1374 = vst [vmem:[%s175 + $0xec] sm:$0xf] %v1246
      %1375 = vst [vmem:[%s175 + $0xf0] sm:$0xf] %v1247
      %1376 = vst [vmem:[%s175 + $0xf4] sm:$0xf] %v1248
      %1377 = vst [vmem:[%s175 + $0xf8] sm:$0xf] %v1249
      %1378 = vst [vmem:[%s175 + $0xfc] sm:$0xf] %v1250
      %s1379 = smul.u32 64, %s14
      %p1380 = scmp.lt.s32.totalorder %s1379, 191
      %s1381 = scalar_select %p1380, %s1379, 191
      %s1382 = smul.addr %s1381, 4
      %s1383 = scalar_lea.vmem %s3, %s1382
      // Predicated region
      $region33: #{cnn_forward.5} parent=31 // pred_check
        %p1384 = pneg %p100
      $region34: #{cnn_forward.5} parent=31 // pred_check_branch
        %1386 = sbr.rel (%p1384) target = $region36
      $region35: #{cnn_forward.5} parent=31 // pred_region
        %s1387 = smul.u32 64, %s14
      $region36: #{cnn_forward.5} parent=31 // pred_fallthru
        _
    $region32: #{cnn_forward.5} parent=5 // pred_fallthru
      _
    %p1388 = scmp.le.s32.totalorder 2, %s9
    // Predicated region
    $region37: #{cnn_forward.5} parent=5 // pred_check
      %p1389 = pneg %p1388
    $region38: #{cnn_forward.5} parent=5 // pred_check_branch
      %1391 = sbr.rel (%p1389) target = $region40
    $region39: #{cnn_forward.5} parent=5 // pred_region
      %s1392 = ssub.s32 %s9, 2
      // Predicated region
      $region41: #{cnn_forward.5} parent=39 // pred_check
        %p1393 = pneg %p106
      $region42: #{cnn_forward.5} parent=39 // pred_check_branch
        %1395 = sbr.rel (%p1393) target = $region44
      $region43: #{cnn_forward.5} parent=39 // pred_region
        %s1396 = smul.u32 64, %s15
        %p1397 = scmp.lt.s32.totalorder %s1396, 191
        %s1398 = scalar_select %p1397, %s1396, 191
        %s1399 = smul.addr %s1398, 4
        %s1400 = scalar_lea.vmem %s3, %s1399
      $region44: #{cnn_forward.5} parent=39 // pred_fallthru
        _
    $region40: #{cnn_forward.5} parent=5 // pred_fallthru
      _
  $region6: #{cnn_forward.5} parent=0 // loop_footer
    %s13 = sadd.s32 1, %s9
  $region7: #{cnn_forward.5} parent=0 // loop_footer_branch
    %8 = sbr.rel target = $region3
  $region8: #{cnn_forward.5} parent=0 // loop_exit
    _

// kernel: cnn_forward.6
$region0: #{cnn_forward.6}
  #allocation0 [shape = 'u32[]', space=smem, size = 0x4, offset = 0x4, fixed_abs, tag = 'smem constant byte address 0x4 - core index']
  #allocation1 [shape = 'u32[144,128]{1,0:T(1,128)}', space=vmem, size = 0x12000, scoped, tag = 'internal scratch']
  %s0 = inlined_call_operand.vmem [shape: bf16[4,248,216], index: 0, kind: input, shape index: {}]
  %s1 = inlined_call_operand.vmem [shape: bf16[216,128], index: 1, kind: input, shape index: {}]
  %s2 = inlined_call_operand.vmem [shape: f32[1,128], index: 2, kind: input, shape index: {}]
  %s3 = inlined_call_operand.vmem [shape: bf16[248,128], index: 3, kind: output, shape index: {}]
  %s4 = sld [smem:[#allocation0]]
  $region22: #{cnn_forward.6} parent=0
    _
  %s6 = ssub.s32 1, %s4
  %s7 = scalar_select 0, %s6, %s4
  // Predicated region
  $region2: #{cnn_forward.6} parent=0 // pred_check
    _
  $region3: #{cnn_forward.6} parent=0 // pred_check_branch
    %9 = sbr.rel (0) target = $region5
  $region4: #{cnn_forward.6} parent=0 // pred_region
    _
  $region5: #{cnn_forward.6} parent=0 // pred_fallthru
    _
  // Predicated region
  $region6: #{cnn_forward.6} parent=0 // pred_check
    _
  $region7: #{cnn_forward.6} parent=0 // pred_check_branch
    %11 = sbr.rel (0) target = $region9
  $region8: #{cnn_forward.6} parent=0 // pred_region
    _
  $region9: #{cnn_forward.6} parent=0 // pred_fallthru
    _
  // Predicated region
  $region10: #{cnn_forward.6} parent=0 // pred_check
    _
  $region11: #{cnn_forward.6} parent=0 // pred_check_branch
    %13 = sbr.rel (0) target = $region13
  $region12: #{cnn_forward.6} parent=0 // pred_region
    _
  $region13: #{cnn_forward.6} parent=0 // pred_fallthru
    _
  %v15 = vld [vmem:[%s1] sm:$0xf]
  %v16 = vld [vmem:[%s1 + $0x4] sm:$0xf]
  %v17 = vld [vmem:[%s1 + $0x8] sm:$0xf]
  %v18 = vld [vmem:[%s1 + $0xc] sm:$0xf]
  %v19 = vld [vmem:[%s1 + $0x10] sm:$0xf]
  %v20 = vld [vmem:[%s1 + $0x14] sm:$0xf]
  %v21 = vld [vmem:[%s1 + $0x18] sm:$0xf]
  %v22 = vld [vmem:[%s1 + $0x1c] sm:$0xf]
  %v23 = vld [vmem:[%s1 + $0x20] sm:$0xf]
  %v24 = vld [vmem:[%s1 + $0x24] sm:$0xf]
  %v25 = vld [vmem:[%s1 + $0x28] sm:$0xf]
  %v26 = vld [vmem:[%s1 + $0x2c] sm:$0xf]
  %v27 = vld [vmem:[%s1 + $0x30] sm:$0xf]
  %v28 = vld [vmem:[%s1 + $0x34] sm:$0xf]
  %v29 = vld [vmem:[%s1 + $0x38] sm:$0xf]
  %v30 = vld [vmem:[%s1 + $0x3c] sm:$0xf]
  %v31 = vld [vmem:[%s1 + $0x40] sm:$0xf]
  %v32 = vld [vmem:[%s1 + $0x44] sm:$0xf]
  %v33 = vld [vmem:[%s1 + $0x48] sm:$0xf]
  %v34 = vld [vmem:[%s1 + $0x4c] sm:$0xf]
  %v35 = vld [vmem:[%s1 + $0x50] sm:$0xf]
  %v36 = vld [vmem:[%s1 + $0x54] sm:$0xf]
  %v37 = vld [vmem:[%s1 + $0x58] sm:$0xf]
  %v38 = vld [vmem:[%s1 + $0x5c] sm:$0xf]
  %v39 = vld [vmem:[%s1 + $0x60] sm:$0xf]
  %v40 = vld [vmem:[%s1 + $0x64] sm:$0xf]
  %v41 = vld [vmem:[%s1 + $0x68] sm:$0xf]
  %v42 = vld [vmem:[%s0] sm:$0xff]
  %v43 = vld [vmem:[%s0 + $0x8] sm:$0xff]
  %v44 = vld [vmem:[%s0 + $0x10] sm:$0xff]
  %v45 = vld [vmem:[%s0 + $0x18] sm:$0xff]
  %v46 = vld [vmem:[%s0 + $0x20] sm:$0xff]
  %v47 = vld [vmem:[%s0 + $0x28] sm:$0xff]
  %v48 = vld [vmem:[%s0 + $0x30] sm:$0xff]
  %v49 = vld [vmem:[%s0 + $0x38] sm:$0xff]
  %v50 = vld [vmem:[%s0 + $0x40] sm:$0xff]
  %v51 = vld [vmem:[%s0 + $0x48] sm:$0xff]
  %v52 = vld [vmem:[%s0 + $0x50] sm:$0xff]
  %v53 = vld [vmem:[%s0 + $0x58] sm:$0xff]
  %v54 = vld [vmem:[%s0 + $0x60] sm:$0xff]
  %v55 = vld [vmem:[%s0 + $0x68] sm:$0xff]
  %v56 = vld [vmem:[%s0 + $0x70] sm:$0xff]
  %v57 = vld [vmem:[%s0 + $0x78] sm:$0xff]
  %v58 = vld [vmem:[%s0 + $0x80] sm:$0xff]
  %v59 = vld [vmem:[%s0 + $0x88] sm:$0xff]
  %v60 = vld [vmem:[%s0 + $0x90] sm:$0xff]
  %v61 = vld [vmem:[%s0 + $0x98] sm:$0xff]
  %v62 = vld [vmem:[%s0 + $0xa0] sm:$0xff]
  %v63 = vld [vmem:[%s0 + $0xa8] sm:$0xff]
  %v64 = vld [vmem:[%s0 + $0xb0] sm:$0xff]
  %v65 = vld [vmem:[%s0 + $0xb8] sm:$0xff]
  %v66 = vld [vmem:[%s0 + $0xc0] sm:$0xff]
  %v67 = vld [vmem:[%s0 + $0xc8] sm:$0xff]
  %v68 = vld [vmem:[%s0 + $0xd0] sm:$0xff]
  %v69 = vld [vmem:[%s0 + $0xd8] sm:$0xff]
  %v70 = vld [vmem:[%s0 + $0xe0] sm:$0xff]
  %v71 = vld [vmem:[%s0 + $0xe8] sm:$0xff]
  %v72 = vld [vmem:[%s0 + $0xf0] sm:$0xff]
  %v104 = vunpack.c.l.b16 %v42
  %v105 = vunpack.c.h.b16 %v42
  %v106 = vunpack.c.l.b16 %v43
  %v107 = vunpack.c.h.b16 %v43
  %v108 = vunpack.c.l.b16 %v44
  %v109 = vunpack.c.h.b16 %v44
  %v110 = vunpack.c.l.b16 %v45
  %v111 = vunpack.c.h.b16 %v45
  %v112 = vunpack.c.l.b16 %v46
  %v113 = vunpack.c.h.b16 %v46
  %v114 = vunpack.c.l.b16 %v47
  %v115 = vunpack.c.h.b16 %v47
  %v116 = vunpack.c.l.b16 %v48
  %v117 = vunpack.c.h.b16 %v48
  %v118 = vunpack.c.l.b16 %v49
  %v119 = vunpack.c.h.b16 %v49
  %v120 = vunpack.c.l.b16 %v50
  %v121 = vunpack.c.h.b16 %v50
  %v122 = vunpack.c.l.b16 %v51
  %v123 = vunpack.c.h.b16 %v51
  %v124 = vunpack.c.l.b16 %v52
  %v125 = vunpack.c.h.b16 %v52
  %v126 = vunpack.c.l.b16 %v53
  %v127 = vunpack.c.h.b16 %v53
  %v128 = vunpack.c.l.b16 %v54
  %v129 = vunpack.c.h.b16 %v54
  %v130 = vunpack.c.l.b16 %v55
  %v131 = vunpack.c.h.b16 %v55
  %v132 = vunpack.c.l.b16 %v56
  %v133 = vunpack.c.h.b16 %v56
  %v134 = vunpack.c.l.b16 %v57
  %v135 = vunpack.c.h.b16 %v57
  %v136 = vunpack.c.l.b16 %v58
  %v137 = vunpack.c.h.b16 %v58
  %v138 = vunpack.c.l.b16 %v59
  %v139 = vunpack.c.h.b16 %v59
  %v140 = vunpack.c.l.b16 %v60
  %v141 = vunpack.c.h.b16 %v60
  %v142 = vunpack.c.l.b16 %v61
  %v143 = vunpack.c.h.b16 %v61
  %v144 = vunpack.c.l.b16 %v62
  %v145 = vunpack.c.h.b16 %v62
  %v146 = vunpack.c.l.b16 %v63
  %v147 = vunpack.c.h.b16 %v63
  %v148 = vunpack.c.l.b16 %v64
  %v149 = vunpack.c.h.b16 %v64
  %v150 = vunpack.c.l.b16 %v65
  %v151 = vunpack.c.h.b16 %v65
  %v152 = vunpack.c.l.b16 %v66
  %v153 = vunpack.c.h.b16 %v66
  %v154 = vunpack.c.l.b16 %v67
  %v155 = vunpack.c.h.b16 %v67
  %v156 = vunpack.c.l.b16 %v68
  %v157 = vunpack.c.h.b16 %v68
  %v158 = vunpack.c.l.b16 %v69
  %v159 = vunpack.c.h.b16 %v69
  %v160 = vunpack.c.l.b16 %v70
  %v161 = vunpack.c.h.b16 %v70
  %v162 = vunpack.c.l.b16 %v71
  %v163 = vunpack.c.h.b16 %v71
  %v164 = vunpack.c.l.b16 %v72
  %v165 = vunpack.c.h.b16 %v72
  %v166 = vpack.c.b16 %v106, %v104
  %v167 = vpack.c.b16 %v107, %v105
  %v168 = vpack.c.b16 %v110, %v108
  %v169 = vpack.c.b16 %v111, %v109
  %v170 = vpack.c.b16 %v114, %v112
  %v171 = vpack.c.b16 %v115, %v113
  %v172 = vpack.c.b16 %v118, %v116
  %v173 = vpack.c.b16 %v119, %v117
  %v174 = vpack.c.b16 %v122, %v120
  %v175 = vpack.c.b16 %v123, %v121
  %v176 = vpack.c.b16 %v126, %v124
  %v177 = vpack.c.b16 %v127, %v125
  %v178 = vpack.c.b16 %v130, %v128
  %v179 = vpack.c.b16 %v131, %v129
  %v180 = vpack.c.b16 %v134, %v132
  %v181 = vpack.c.b16 %v135, %v133
  %v182 = vpack.c.b16 %v138, %v136
  %v183 = vpack.c.b16 %v139, %v137
  %v184 = vpack.c.b16 %v142, %v140
  %v185 = vpack.c.b16 %v143, %v141
  %v186 = vpack.c.b16 %v146, %v144
  %v187 = vpack.c.b16 %v147, %v145
  %v188 = vpack.c.b16 %v150, %v148
  %v189 = vpack.c.b16 %v151, %v149
  %v190 = vpack.c.b16 %v154, %v152
  %v191 = vpack.c.b16 %v155, %v153
  %v192 = vpack.c.b16 %v158, %v156
  %v193 = vpack.c.b16 %v159, %v157
  %v194 = vpack.c.b16 %v162, %v160
  %v195 = vpack.c.b16 %v163, %v161
  %v196 = vpack.c.b16 %v164, %v164
  %v197 = vpack.c.b16 %v165, %v165
  %v241 = vunpack.c.l.b16 %v15
  %v242 = vunpack.c.l.b16 %v16
  %v243 = vunpack.c.l.b16 %v17
  %v244 = vunpack.c.l.b16 %v18
  %v245 = vunpack.c.l.b16 %v19
  %v246 = vunpack.c.l.b16 %v20
  %v247 = vunpack.c.l.b16 %v21
  %v248 = vunpack.c.l.b16 %v22
  %v249 = vunpack.c.l.b16 %v23
  %v250 = vunpack.c.l.b16 %v24
  %v251 = vunpack.c.l.b16 %v25
  %v252 = vunpack.c.l.b16 %v26
  %v253 = vunpack.c.l.b16 %v27
  %v254 = vunpack.c.l.b16 %v28
  %v255 = vunpack.c.l.b16 %v29
  %v256 = vunpack.c.l.b16 %v30
  %v257 = vunpack.c.l.b16 %v31
  %v258 = vunpack.c.l.b16 %v32
  %v259 = vunpack.c.l.b16 %v33
  %v260 = vunpack.c.l.b16 %v34
  %v261 = vunpack.c.l.b16 %v35
  %v262 = vunpack.c.l.b16 %v36
  %v263 = vunpack.c.l.b16 %v37
  %v264 = vunpack.c.l.b16 %v38
  %v265 = vunpack.c.l.b16 %v39
  %v266 = vunpack.c.l.b16 %v40
  %v267 = vunpack.c.l.b16 %v41
  %v268 = vpack.c.b16 %v242, %v241
  %v269 = vpack.c.b16 %v244, %v243
  %v270 = vpack.c.b16 %v246, %v245
  %v271 = vpack.c.b16 %v248, %v247
  %v272 = vpack.c.b16 %v250, %v249
  %v273 = vpack.c.b16 %v252, %v251
  %v274 = vpack.c.b16 %v254, %v253
  %v275 = vpack.c.b16 %v256, %v255
  %v276 = vpack.c.b16 %v258, %v257
  %v277 = vpack.c.b16 %v260, %v259
  %v278 = vpack.c.b16 %v262, %v261
  %v279 = vpack.c.b16 %v264, %v263
  %v280 = vpack.c.b16 %v266, %v265
  %v281 = vpack.c.b16 %v267, %v267
  %vm295 = vcmask 719872
  %v297 = vsel %vm295, %v167, 0
  %v300 = vsel %vm295, %v169, 0
  %v303 = vsel %vm295, %v171, 0
  %v306 = vsel %vm295, %v173, 0
  %v309 = vsel %vm295, %v175, 0
  %v312 = vsel %vm295, %v177, 0
  %v315 = vsel %vm295, %v179, 0
  %v318 = vsel %vm295, %v181, 0
  %v321 = vsel %vm295, %v183, 0
  %v324 = vsel %vm295, %v185, 0
  %v327 = vsel %vm295, %v187, 0
  %v330 = vsel %vm295, %v189, 0
  %v333 = vsel %vm295, %v191, 0
  %v336 = vsel %vm295, %v193, 0
  %v339 = vsel %vm295, %v195, 0
  %v342 = vsel %vm295, %v197, 0
  %vm344 = vcmask 1043456
  %v346 = vsel %vm344, %v281, 0
  %348 = vmatprep.subr.bf16.mxu0 0
  %349 = vmatpush1.bf16.msra.mxu0 %v275
  %350 = vmatprep.subr.bf16.mxu0 0
  %351 = vmatpush1.bf16.msra.mxu0 %v274
  %352 = vmatprep.subr.bf16.mxu0 0
  %353 = vmatpush1.bf16.msra.mxu0 %v273
  %354 = vmatprep.subr.bf16.mxu0 0
  %355 = vmatpush1.bf16.msra.mxu0 %v272
  %356 = vmatprep.subr.bf16.mxu0 0
  %357 = vmatpush1.bf16.msra.mxu0 %v271
  %358 = vmatprep.subr.bf16.mxu0 0
  %359 = vmatpush1.bf16.msra.mxu0 %v270
  %360 = vmatprep.subr.bf16.mxu0 0
  %361 = vmatpush1.bf16.msra.mxu0 %v269
  %362 = vmatprep.subr.bf16.mxu0 0
  %363 = vmatpush1.bf16.msra.mxu0 %v268
  %364 = vmatprep.subr.bf16.mxu0 0
  %365 = vmatpush2.bf16.msra.mxu0 0
  %366 = vmatprep.subr.bf16.mxu0 0
  %367 = vmatpush2.bf16.msra.mxu0 0
  %368 = vmatprep.subr.bf16.mxu0 0
  %369 = vmatpush2.bf16.msra.mxu0 %v346
  %370 = vmatprep.subr.bf16.mxu0 0
  %371 = vmatpush2.bf16.msra.mxu0 %v280
  %372 = vmatprep.subr.bf16.mxu0 0
  %373 = vmatpush2.bf16.msra.mxu0 %v279
  %374 = vmatprep.subr.bf16.mxu0 0
  %375 = vmatpush2.bf16.msra.mxu0 %v278
  %376 = vmatprep.subr.bf16.mxu0 0
  %377 = vmatpush2.bf16.msra.mxu0 %v277
  %378 = vmatprep.subr.bf16.mxu0 0
  %379 = vmatpush2.bf16.msra.mxu0 %v276
  %380 = vmatprep.mubr.bf16.mxu0 %v297
  %381 = vmatmul.mubr.bf16.gmra.mxu0 %v166
  %v382 = vpop.f32.mrf.mxu0
  %v383 = vadd.f32 0.0, %v382
  %v384 = vpop.f32.mrf.mxu0
  %v385 = vpop.f32.mrf.mxu0
  %v386 = vadd.f32 0.0, %v385
  %v387 = vpop.f32.mrf.mxu0
  %388 = vmatprep.mubr.bf16.mxu0 %v300
  %389 = vmatmul.mubr.bf16.gmra.mxu0 %v168
  %v390 = vpop.f32.mrf.mxu0
  %v391 = vadd.f32 0.0, %v390
  %v392 = vpop.f32.mrf.mxu0
  %v393 = vpop.f32.mrf.mxu0
  %v394 = vadd.f32 0.0, %v393
  %v395 = vpop.f32.mrf.mxu0
  %396 = vmatprep.mubr.bf16.mxu0 %v303
  %397 = vmatmul.mubr.bf16.gmra.mxu0 %v170
  %v398 = vpop.f32.mrf.mxu0
  %v399 = vadd.f32 0.0, %v398
  %v400 = vpop.f32.mrf.mxu0
  %v401 = vpop.f32.mrf.mxu0
  %v402 = vadd.f32 0.0, %v401
  %v403 = vpop.f32.mrf.mxu0
  %404 = vmatprep.mubr.bf16.mxu0 %v306
  %405 = vmatmul.mubr.bf16.gmra.mxu0 %v172
  %v406 = vpop.f32.mrf.mxu0
  %v407 = vadd.f32 0.0, %v406
  %v408 = vpop.f32.mrf.mxu0
  %v409 = vpop.f32.mrf.mxu0
  %v410 = vadd.f32 0.0, %v409
  %v411 = vpop.f32.mrf.mxu0
  %412 = vmatprep.mubr.bf16.mxu0 %v309
  %413 = vmatmul.mubr.bf16.gmra.mxu0 %v174
  %v414 = vpop.f32.mrf.mxu0
  %v415 = vadd.f32 0.0, %v414
  %v416 = vpop.f32.mrf.mxu0
  %v417 = vpop.f32.mrf.mxu0
  %v418 = vadd.f32 0.0, %v417
  %v419 = vpop.f32.mrf.mxu0
  %420 = vmatprep.mubr.bf16.mxu0 %v312
  %421 = vmatmul.mubr.bf16.gmra.mxu0 %v176
  %v422 = vpop.f32.mrf.mxu0
  %v423 = vadd.f32 0.0, %v422
  %v424 = vpop.f32.mrf.mxu0
  %v425 = vpop.f32.mrf.mxu0
  %v426 = vadd.f32 0.0, %v425
  %v427 = vpop.f32.mrf.mxu0
  %428 = vmatprep.mubr.bf16.mxu0 %v315
  %429 = vmatmul.mubr.bf16.gmra.mxu0 %v178
  %v430 = vpop.f32.mrf.mxu0
  %v431 = vadd.f32 0.0, %v430
  %v432 = vpop.f32.mrf.mxu0
  %v433 = vpop.f32.mrf.mxu0
  %v434 = vadd.f32 0.0, %v433
  %v435 = vpop.f32.mrf.mxu0
  %436 = vmatprep.mubr.bf16.mxu0 %v318
  %437 = vmatmul.mubr.bf16.gmra.mxu0 %v180
  %v438 = vpop.f32.mrf.mxu0
  %v439 = vadd.f32 0.0, %v438
  %v440 = vpop.f32.mrf.mxu0
  %v441 = vpop.f32.mrf.mxu0
  %v442 = vadd.f32 0.0, %v441
  %v443 = vpop.f32.mrf.mxu0
  %444 = vmatprep.mubr.bf16.mxu0 %v321
  %445 = vmatmul.mubr.bf16.gmra.mxu0 %v182
  %v446 = vpop.f32.mrf.mxu0
  %v447 = vadd.f32 0.0, %v446
  %v448 = vpop.f32.mrf.mxu0
  %v449 = vpop.f32.mrf.mxu0
  %v450 = vadd.f32 0.0, %v449
  %v451 = vpop.f32.mrf.mxu0
  %452 = vmatprep.mubr.bf16.mxu0 %v324
  %453 = vmatmul.mubr.bf16.gmra.mxu0 %v184
  %v454 = vpop.f32.mrf.mxu0
  %v455 = vadd.f32 0.0, %v454
  %v456 = vpop.f32.mrf.mxu0
  %v457 = vpop.f32.mrf.mxu0
  %v458 = vadd.f32 0.0, %v457
  %v459 = vpop.f32.mrf.mxu0
  %460 = vmatprep.mubr.bf16.mxu0 %v327
  %461 = vmatmul.mubr.bf16.gmra.mxu0 %v186
  %v462 = vpop.f32.mrf.mxu0
  %v463 = vadd.f32 0.0, %v462
  %v464 = vpop.f32.mrf.mxu0
  %v465 = vpop.f32.mrf.mxu0
  %v466 = vadd.f32 0.0, %v465
  %v467 = vpop.f32.mrf.mxu0
  %468 = vmatprep.mubr.bf16.mxu0 %v330
  %469 = vmatmul.mubr.bf16.gmra.mxu0 %v188
  %v470 = vpop.f32.mrf.mxu0
  %v471 = vadd.f32 0.0, %v470
  %v472 = vpop.f32.mrf.mxu0
  %v473 = vpop.f32.mrf.mxu0
  %v474 = vadd.f32 0.0, %v473
  %v475 = vpop.f32.mrf.mxu0
  %476 = vmatprep.mubr.bf16.mxu0 %v333
  %477 = vmatmul.mubr.bf16.gmra.mxu0 %v190
  %v478 = vpop.f32.mrf.mxu0
  %v479 = vadd.f32 0.0, %v478
  %v480 = vpop.f32.mrf.mxu0
  %v481 = vpop.f32.mrf.mxu0
  %v482 = vadd.f32 0.0, %v481
  %v483 = vpop.f32.mrf.mxu0
  %484 = vmatprep.mubr.bf16.mxu0 %v336
  %485 = vmatmul.mubr.bf16.gmra.mxu0 %v192
  %v486 = vpop.f32.mrf.mxu0
  %v487 = vadd.f32 0.0, %v486
  %v488 = vpop.f32.mrf.mxu0
  %v489 = vpop.f32.mrf.mxu0
  %v490 = vadd.f32 0.0, %v489
  %v491 = vpop.f32.mrf.mxu0
  %492 = vmatprep.mubr.bf16.mxu0 %v339
  %493 = vmatmul.mubr.bf16.gmra.mxu0 %v194
  %v494 = vpop.f32.mrf.mxu0
  %v495 = vadd.f32 0.0, %v494
  %v496 = vpop.f32.mrf.mxu0
  %v497 = vpop.f32.mrf.mxu0
  %v498 = vadd.f32 0.0, %v497
  %v499 = vpop.f32.mrf.mxu0
  %500 = vmatprep.mubr.bf16.mxu0 %v342
  %501 = vmatmul.mubr.bf16.gmra.mxu0 %v196
  %v502 = vpop.f32.mrf.mxu0
  %v503 = vadd.f32 0.0, %v502
  %v504 = vpop.f32.mrf.mxu0
  %v505 = vpop.f32.mrf.mxu0
  %v506 = vpop.f32.mrf.mxu0
  %507 = vdwg.mxu0
  %s508 = scalar_lea.vmem %s0, 248
  %v509 = vld [vmem:[%s508] sm:$0xff]
  %v510 = vld [vmem:[%s508 + $0x8] sm:$0xff]
  %v511 = vld [vmem:[%s508 + $0x10] sm:$0xff]
  %v512 = vld [vmem:[%s508 + $0x18] sm:$0xff]
  %v513 = vld [vmem:[%s508 + $0x20] sm:$0xff]
  %v514 = vld [vmem:[%s508 + $0x28] sm:$0xff]
  %v515 = vld [vmem:[%s508 + $0x30] sm:$0xff]
  %v516 = vld [vmem:[%s508 + $0x38] sm:$0xff]
  %v517 = vld [vmem:[%s508 + $0x40] sm:$0xff]
  %v518 = vld [vmem:[%s508 + $0x48] sm:$0xff]
  %v519 = vld [vmem:[%s508 + $0x50] sm:$0xff]
  %v520 = vld [vmem:[%s508 + $0x58] sm:$0xff]
  %v521 = vld [vmem:[%s508 + $0x60] sm:$0xff]
  %v522 = vld [vmem:[%s508 + $0x68] sm:$0xff]
  %v523 = vld [vmem:[%s508 + $0x70] sm:$0xff]
  %v524 = vld [vmem:[%s508 + $0x78] sm:$0xff]
  %v525 = vld [vmem:[%s508 + $0x80] sm:$0xff]
  %v526 = vld [vmem:[%s508 + $0x88] sm:$0xff]
  %v527 = vld [vmem:[%s508 + $0x90] sm:$0xff]
  %v528 = vld [vmem:[%s508 + $0x98] sm:$0xff]
  %v529 = vld [vmem:[%s508 + $0xa0] sm:$0xff]
  %v530 = vld [vmem:[%s508 + $0xa8] sm:$0xff]
  %v531 = vld [vmem:[%s508 + $0xb0] sm:$0xff]
  %v532 = vld [vmem:[%s508 + $0xb8] sm:$0xff]
  %v533 = vld [vmem:[%s508 + $0xc0] sm:$0xff]
  %v534 = vld [vmem:[%s508 + $0xc8] sm:$0xff]
  %v535 = vld [vmem:[%s508 + $0xd0] sm:$0xff]
  %v536 = vld [vmem:[%s508 + $0xd8] sm:$0xff]
  %v537 = vld [vmem:[%s508 + $0xe0] sm:$0xff]
  %v538 = vld [vmem:[%s508 + $0xe8] sm:$0xff]
  %v539 = vld [vmem:[%s508 + $0xf0] sm:$0xff]
  %v571 = vunpack.c.l.b16 %v509
  %v572 = vunpack.c.h.b16 %v509
  %v573 = vunpack.c.l.b16 %v510
  %v574 = vunpack.c.h.b16 %v510
  %v575 = vunpack.c.l.b16 %v511
  %v576 = vunpack.c.h.b16 %v511
  %v577 = vunpack.c.l.b16 %v512
  %v578 = vunpack.c.h.b16 %v512
  %v579 = vunpack.c.l.b16 %v513
  %v580 = vunpack.c.h.b16 %v513
  %v581 = vunpack.c.l.b16 %v514
  %v582 = vunpack.c.h.b16 %v514
  %v583 = vunpack.c.l.b16 %v515
  %v584 = vunpack.c.h.b16 %v515
  %v585 = vunpack.c.l.b16 %v516
  %v586 = vunpack.c.h.b16 %v516
  %v587 = vunpack.c.l.b16 %v517
  %v588 = vunpack.c.h.b16 %v517
  %v589 = vunpack.c.l.b16 %v518
  %v590 = vunpack.c.h.b16 %v518
  %v591 = vunpack.c.l.b16 %v519
  %v592 = vunpack.c.h.b16 %v519
  %v593 = vunpack.c.l.b16 %v520
  %v594 = vunpack.c.h.b16 %v520
  %v595 = vunpack.c.l.b16 %v521
  %v596 = vunpack.c.h.b16 %v521
  %v597 = vunpack.c.l.b16 %v522
  %v598 = vunpack.c.h.b16 %v522
  %v599 = vunpack.c.l.b16 %v523
  %v600 = vunpack.c.h.b16 %v523
  %v601 = vunpack.c.l.b16 %v524
  %v602 = vunpack.c.h.b16 %v524
  %v603 = vunpack.c.l.b16 %v525
  %v604 = vunpack.c.h.b16 %v525
  %v605 = vunpack.c.l.b16 %v526
  %v606 = vunpack.c.h.b16 %v526
  %v607 = vunpack.c.l.b16 %v527
  %v608 = vunpack.c.h.b16 %v527
  %v609 = vunpack.c.l.b16 %v528
  %v610 = vunpack.c.h.b16 %v528
  %v611 = vunpack.c.l.b16 %v529
  %v612 = vunpack.c.h.b16 %v529
  %v613 = vunpack.c.l.b16 %v530
  %v614 = vunpack.c.h.b16 %v530
  %v615 = vunpack.c.l.b16 %v531
  %v616 = vunpack.c.h.b16 %v531
  %v617 = vunpack.c.l.b16 %v532
  %v618 = vunpack.c.h.b16 %v532
  %v619 = vunpack.c.l.b16 %v533
  %v620 = vunpack.c.h.b16 %v533
  %v621 = vunpack.c.l.b16 %v534
  %v622 = vunpack.c.h.b16 %v534
  %v623 = vunpack.c.l.b16 %v535
  %v624 = vunpack.c.h.b16 %v535
  %v625 = vunpack.c.l.b16 %v536
  %v626 = vunpack.c.h.b16 %v536
  %v627 = vunpack.c.l.b16 %v537
  %v628 = vunpack.c.h.b16 %v537
  %v629 = vunpack.c.l.b16 %v538
  %v630 = vunpack.c.h.b16 %v538
  %v631 = vunpack.c.l.b16 %v539
  %v632 = vunpack.c.h.b16 %v539
  %v633 = vpack.c.b16 %v573, %v571
  %v634 = vpack.c.b16 %v574, %v572
  %v635 = vpack.c.b16 %v577, %v575
  %v636 = vpack.c.b16 %v578, %v576
  %v637 = vpack.c.b16 %v581, %v579
  %v638 = vpack.c.b16 %v582, %v580
  %v639 = vpack.c.b16 %v585, %v583
  %v640 = vpack.c.b16 %v586, %v584
  %v641 = vpack.c.b16 %v589, %v587
  %v642 = vpack.c.b16 %v590, %v588
  %v643 = vpack.c.b16 %v593, %v591
  %v644 = vpack.c.b16 %v594, %v592
  %v645 = vpack.c.b16 %v597, %v595
  %v646 = vpack.c.b16 %v598, %v596
  %v647 = vpack.c.b16 %v601, %v599
  %v648 = vpack.c.b16 %v602, %v600
  %v649 = vpack.c.b16 %v605, %v603
  %v650 = vpack.c.b16 %v606, %v604
  %v651 = vpack.c.b16 %v609, %v607
  %v652 = vpack.c.b16 %v610, %v608
  %v653 = vpack.c.b16 %v613, %v611
  %v654 = vpack.c.b16 %v614, %v612
  %v655 = vpack.c.b16 %v617, %v615
  %v656 = vpack.c.b16 %v618, %v616
  %v657 = vpack.c.b16 %v621, %v619
  %v658 = vpack.c.b16 %v622, %v620
  %v659 = vpack.c.b16 %v625, %v623
  %v660 = vpack.c.b16 %v626, %v624
  %v661 = vpack.c.b16 %v629, %v627
  %v662 = vpack.c.b16 %v630, %v628
  %v663 = vpack.c.b16 %v631, %v631
  %v664 = vpack.c.b16 %v632, %v632
  %v682 = vsel %vm295, %v634, 0
  %v685 = vsel %vm295, %v636, 0
  %v688 = vsel %vm295, %v638, 0
  %v691 = vsel %vm295, %v640, 0
  %v694 = vsel %vm295, %v642, 0
  %v697 = vsel %vm295, %v644, 0
  %v700 = vsel %vm295, %v646, 0
  %v703 = vsel %vm295, %v648, 0
  %v706 = vsel %vm295, %v650, 0
  %v709 = vsel %vm295, %v652, 0
  %v712 = vsel %vm295, %v654, 0
  %v715 = vsel %vm295, %v656, 0
  %v718 = vsel %vm295, %v658, 0
  %v721 = vsel %vm295, %v660, 0
  %v724 = vsel %vm295, %v662, 0
  %v727 = vsel %vm295, %v664, 0
  %729 = vmatprep.subr.bf16.mxu0 0
  %730 = vmatpush1.bf16.msra.mxu0 %v275
  %731 = vmatprep.subr.bf16.mxu0 0
  %732 = vmatpush1.bf16.msra.mxu0 %v274
  %733 = vmatprep.subr.bf16.mxu0 0
  %734 = vmatpush1.bf16.msra.mxu0 %v273
  %735 = vmatprep.subr.bf16.mxu0 0
  %736 = vmatpush1.bf16.msra.mxu0 %v272
  %737 = vmatprep.subr.bf16.mxu0 0
  %738 = vmatpush1.bf16.msra.mxu0 %v271
  %739 = vmatprep.subr.bf16.mxu0 0
  %740 = vmatpush1.bf16.msra.mxu0 %v270
  %741 = vmatprep.subr.bf16.mxu0 0
  %742 = vmatpush1.bf16.msra.mxu0 %v269
  %743 = vmatprep.subr.bf16.mxu0 0
  %744 = vmatpush1.bf16.msra.mxu0 %v268
  %745 = vmatprep.subr.bf16.mxu0 0
  %746 = vmatpush2.bf16.msra.mxu0 0
  %747 = vmatprep.subr.bf16.mxu0 0
  %748 = vmatpush2.bf16.msra.mxu0 0
  %749 = vmatprep.subr.bf16.mxu0 0
  %750 = vmatpush2.bf16.msra.mxu0 %v346
  %751 = vmatprep.subr.bf16.mxu0 0
  %752 = vmatpush2.bf16.msra.mxu0 %v280
  %753 = vmatprep.subr.bf16.mxu0 0
  %754 = vmatpush2.bf16.msra.mxu0 %v279
  %755 = vmatprep.subr.bf16.mxu0 0
  %756 = vmatpush2.bf16.msra.mxu0 %v278
  %757 = vmatprep.subr.bf16.mxu0 0
  %758 = vmatpush2.bf16.msra.mxu0 %v277
  %759 = vmatprep.subr.bf16.mxu0 0
  %760 = vmatpush2.bf16.msra.mxu0 %v276
  %761 = vmatprep.mubr.bf16.mxu0 %v682
  %762 = vmatmul.mubr.bf16.gmra.mxu0 %v633
  %v763 = vpop.f32.mrf.mxu0
  %v764 = vadd.f32 0.0, %v763
  %v765 = vpop.f32.mrf.mxu0
  %v766 = vpop.f32.mrf.mxu0
  %v767 = vadd.f32 0.0, %v766
  %v768 = vpop.f32.mrf.mxu0
  %769 = vmatprep.mubr.bf16.mxu0 %v685
  %770 = vmatmul.mubr.bf16.gmra.mxu0 %v635
  %v771 = vpop.f32.mrf.mxu0
  %v772 = vadd.f32 0.0, %v771
  %v773 = vpop.f32.mrf.mxu0
  %v774 = vpop.f32.mrf.mxu0
  %v775 = vadd.f32 0.0, %v774
  %v776 = vpop.f32.mrf.mxu0
  %777 = vmatprep.mubr.bf16.mxu0 %v688
  %778 = vmatmul.mubr.bf16.gmra.mxu0 %v637
  %v779 = vpop.f32.mrf.mxu0
  %v780 = vadd.f32 0.0, %v779
  %v781 = vpop.f32.mrf.mxu0
  %v782 = vpop.f32.mrf.mxu0
  %v783 = vadd.f32 0.0, %v782
  %v784 = vpop.f32.mrf.mxu0
  %785 = vmatprep.mubr.bf16.mxu0 %v691
  %786 = vmatmul.mubr.bf16.gmra.mxu0 %v639
  %v787 = vpop.f32.mrf.mxu0
  %v788 = vadd.f32 0.0, %v787
  %v789 = vpop.f32.mrf.mxu0
  %v790 = vpop.f32.mrf.mxu0
  %v791 = vadd.f32 0.0, %v790
  %v792 = vpop.f32.mrf.mxu0
  %793 = vmatprep.mubr.bf16.mxu0 %v694
  %794 = vmatmul.mubr.bf16.gmra.mxu0 %v641
  %v795 = vpop.f32.mrf.mxu0
  %v796 = vadd.f32 0.0, %v795
  %v797 = vpop.f32.mrf.mxu0
  %v798 = vpop.f32.mrf.mxu0
  %v799 = vadd.f32 0.0, %v798
  %v800 = vpop.f32.mrf.mxu0
  %801 = vmatprep.mubr.bf16.mxu0 %v697
  %802 = vmatmul.mubr.bf16.gmra.mxu0 %v643
  %v803 = vpop.f32.mrf.mxu0
  %v804 = vadd.f32 0.0, %v803
  %v805 = vpop.f32.mrf.mxu0
  %v806 = vpop.f32.mrf.mxu0
  %v807 = vadd.f32 0.0, %v806
  %v808 = vpop.f32.mrf.mxu0
  %809 = vmatprep.mubr.bf16.mxu0 %v700
  %810 = vmatmul.mubr.bf16.gmra.mxu0 %v645
  %v811 = vpop.f32.mrf.mxu0
  %v812 = vadd.f32 0.0, %v811
  %v813 = vpop.f32.mrf.mxu0
  %v814 = vpop.f32.mrf.mxu0
  %v815 = vadd.f32 0.0, %v814
  %v816 = vpop.f32.mrf.mxu0
  %817 = vmatprep.mubr.bf16.mxu0 %v703
  %818 = vmatmul.mubr.bf16.gmra.mxu0 %v647
  %v819 = vpop.f32.mrf.mxu0
  %v820 = vadd.f32 0.0, %v819
  %v821 = vpop.f32.mrf.mxu0
  %v822 = vpop.f32.mrf.mxu0
  %v823 = vadd.f32 0.0, %v822
  %v824 = vpop.f32.mrf.mxu0
  %825 = vmatprep.mubr.bf16.mxu0 %v706
  %826 = vmatmul.mubr.bf16.gmra.mxu0 %v649
  %v827 = vpop.f32.mrf.mxu0
  %v828 = vadd.f32 0.0, %v827
  %v829 = vpop.f32.mrf.mxu0
  %v830 = vpop.f32.mrf.mxu0
  %v831 = vadd.f32 0.0, %v830
  %v832 = vpop.f32.mrf.mxu0
  %833 = vmatprep.mubr.bf16.mxu0 %v709
  %834 = vmatmul.mubr.bf16.gmra.mxu0 %v651
  %v835 = vpop.f32.mrf.mxu0
  %v836 = vadd.f32 0.0, %v835
  %v837 = vpop.f32.mrf.mxu0
  %v838 = vpop.f32.mrf.mxu0
  %v839 = vadd.f32 0.0, %v838
  %v840 = vpop.f32.mrf.mxu0
  %841 = vmatprep.mubr.bf16.mxu0 %v712
  %842 = vmatmul.mubr.bf16.gmra.mxu0 %v653
  %v843 = vpop.f32.mrf.mxu0
  %v844 = vadd.f32 0.0, %v843
  %v845 = vpop.f32.mrf.mxu0
  %v846 = vpop.f32.mrf.mxu0
  %v847 = vadd.f32 0.0, %v846
  %v848 = vpop.f32.mrf.mxu0
  %849 = vmatprep.mubr.bf16.mxu0 %v715
  %850 = vmatmul.mubr.bf16.gmra.mxu0 %v655
  %v851 = vpop.f32.mrf.mxu0
  %v852 = vadd.f32 0.0, %v851
  %v853 = vpop.f32.mrf.mxu0
  %v854 = vpop.f32.mrf.mxu0
  %v855 = vadd.f32 0.0, %v854
  %v856 = vpop.f32.mrf.mxu0
  %857 = vmatprep.mubr.bf16.mxu0 %v718
  %858 = vmatmul.mubr.bf16.gmra.mxu0 %v657
  %v859 = vpop.f32.mrf.mxu0
  %v860 = vadd.f32 0.0, %v859
  %v861 = vpop.f32.mrf.mxu0
  %v862 = vpop.f32.mrf.mxu0
  %v863 = vadd.f32 0.0, %v862
  %v864 = vpop.f32.mrf.mxu0
  %865 = vmatprep.mubr.bf16.mxu0 %v721
  %866 = vmatmul.mubr.bf16.gmra.mxu0 %v659
  %v867 = vpop.f32.mrf.mxu0
  %v868 = vadd.f32 0.0, %v867
  %v869 = vpop.f32.mrf.mxu0
  %v870 = vpop.f32.mrf.mxu0
  %v871 = vadd.f32 0.0, %v870
  %v872 = vpop.f32.mrf.mxu0
  %873 = vmatprep.mubr.bf16.mxu0 %v724
  %874 = vmatmul.mubr.bf16.gmra.mxu0 %v661
  %v875 = vpop.f32.mrf.mxu0
  %v876 = vadd.f32 0.0, %v875
  %v877 = vpop.f32.mrf.mxu0
  %v878 = vpop.f32.mrf.mxu0
  %v879 = vadd.f32 0.0, %v878
  %v880 = vpop.f32.mrf.mxu0
  %881 = vmatprep.mubr.bf16.mxu0 %v727
  %882 = vmatmul.mubr.bf16.gmra.mxu0 %v663
  %v883 = vpop.f32.mrf.mxu0
  %v884 = vadd.f32 0.0, %v883
  %v885 = vpop.f32.mrf.mxu0
  %v886 = vpop.f32.mrf.mxu0
  %v887 = vpop.f32.mrf.mxu0
  %888 = vdwg.mxu0
  %v889 = vmax.f32 %v383, %v764
  %v890 = vmax.f32 %v386, %v767
  %v891 = vmax.f32 %v391, %v772
  %v892 = vmax.f32 %v394, %v775
  %v893 = vmax.f32 %v399, %v780
  %v894 = vmax.f32 %v402, %v783
  %v895 = vmax.f32 %v407, %v788
  %v896 = vmax.f32 %v410, %v791
  %v897 = vmax.f32 %v415, %v796
  %v898 = vmax.f32 %v418, %v799
  %v899 = vmax.f32 %v423, %v804
  %v900 = vmax.f32 %v426, %v807
  %v901 = vmax.f32 %v431, %v812
  %v902 = vmax.f32 %v434, %v815
  %v903 = vmax.f32 %v439, %v820
  %v904 = vmax.f32 %v442, %v823
  %v905 = vmax.f32 %v447, %v828
  %v906 = vmax.f32 %v450, %v831
  %v907 = vmax.f32 %v455, %v836
  %v908 = vmax.f32 %v458, %v839
  %v909 = vmax.f32 %v463, %v844
  %v910 = vmax.f32 %v466, %v847
  %v911 = vmax.f32 %v471, %v852
  %v912 = vmax.f32 %v474, %v855
  %v913 = vmax.f32 %v479, %v860
  %v914 = vmax.f32 %v482, %v863
  %v915 = vmax.f32 %v487, %v868
  %v916 = vmax.f32 %v490, %v871
  %v917 = vmax.f32 %v495, %v876
  %v918 = vmax.f32 %v498, %v879
  %v919 = vmax.f32 %v503, %v884
  %s920 = scalar_lea.vmem %s0, 496
  %v921 = vld [vmem:[%s920] sm:$0xff]
  %v922 = vld [vmem:[%s920 + $0x8] sm:$0xff]
  %v923 = vld [vmem:[%s920 + $0x10] sm:$0xff]
  %v924 = vld [vmem:[%s920 + $0x18] sm:$0xff]
  %v925 = vld [vmem:[%s920 + $0x20] sm:$0xff]
  %v926 = vld [vmem:[%s920 + $0x28] sm:$0xff]
  %v927 = vld [vmem:[%s920 + $0x30] sm:$0xff]
  %v928 = vld [vmem:[%s920 + $0x38] sm:$0xff]
  %v929 = vld [vmem:[%s920 + $0x40] sm:$0xff]
  %v930 = vld [vmem:[%s920 + $0x48] sm:$0xff]
  %v931 = vld [vmem:[%s920 + $0x50] sm:$0xff]
  %v932 = vld [vmem:[%s920 + $0x58] sm:$0xff]
  %v933 = vld [vmem:[%s920 + $0x60] sm:$0xff]
  %v934 = vld [vmem:[%s920 + $0x68] sm:$0xff]
  %v935 = vld [vmem:[%s920 + $0x70] sm:$0xff]
  %v936 = vld [vmem:[%s920 + $0x78] sm:$0xff]
  %v937 = vld [vmem:[%s920 + $0x80] sm:$0xff]
  %v938 = vld [vmem:[%s920 + $0x88] sm:$0xff]
  %v939 = vld [vmem:[%s920 + $0x90] sm:$0xff]
  %v940 = vld [vmem:[%s920 + $0x98] sm:$0xff]
  %v941 = vld [vmem:[%s920 + $0xa0] sm:$0xff]
  %v942 = vld [vmem:[%s920 + $0xa8] sm:$0xff]
  %v943 = vld [vmem:[%s920 + $0xb0] sm:$0xff]
  %v944 = vld [vmem:[%s920 + $0xb8] sm:$0xff]
  %v945 = vld [vmem:[%s920 + $0xc0] sm:$0xff]
  %v946 = vld [vmem:[%s920 + $0xc8] sm:$0xff]
  %v947 = vld [vmem:[%s920 + $0xd0] sm:$0xff]
  %v948 = vld [vmem:[%s920 + $0xd8] sm:$0xff]
  %v949 = vld [vmem:[%s920 + $0xe0] sm:$0xff]
  %v950 = vld [vmem:[%s920 + $0xe8] sm:$0xff]
  %v951 = vld [vmem:[%s920 + $0xf0] sm:$0xff]
  %v983 = vunpack.c.l.b16 %v921
  %v984 = vunpack.c.h.b16 %v921
  %v985 = vunpack.c.l.b16 %v922
  %v986 = vunpack.c.h.b16 %v922
  %v987 = vunpack.c.l.b16 %v923
  %v988 = vunpack.c.h.b16 %v923
  %v989 = vunpack.c.l.b16 %v924
  %v990 = vunpack.c.h.b16 %v924
  %v991 = vunpack.c.l.b16 %v925
  %v992 = vunpack.c.h.b16 %v925
  %v993 = vunpack.c.l.b16 %v926
  %v994 = vunpack.c.h.b16 %v926
  %v995 = vunpack.c.l.b16 %v927
  %v996 = vunpack.c.h.b16 %v927
  %v997 = vunpack.c.l.b16 %v928
  %v998 = vunpack.c.h.b16 %v928
  %v999 = vunpack.c.l.b16 %v929
  %v1000 = vunpack.c.h.b16 %v929
  %v1001 = vunpack.c.l.b16 %v930
  %v1002 = vunpack.c.h.b16 %v930
  %v1003 = vunpack.c.l.b16 %v931
  %v1004 = vunpack.c.h.b16 %v931
  %v1005 = vunpack.c.l.b16 %v932
  %v1006 = vunpack.c.h.b16 %v932
  %v1007 = vunpack.c.l.b16 %v933
  %v1008 = vunpack.c.h.b16 %v933
  %v1009 = vunpack.c.l.b16 %v934
  %v1010 = vunpack.c.h.b16 %v934
  %v1011 = vunpack.c.l.b16 %v935
  %v1012 = vunpack.c.h.b16 %v935
  %v1013 = vunpack.c.l.b16 %v936
  %v1014 = vunpack.c.h.b16 %v936
  %v1015 = vunpack.c.l.b16 %v937
  %v1016 = vunpack.c.h.b16 %v937
  %v1017 = vunpack.c.l.b16 %v938
  %v1018 = vunpack.c.h.b16 %v938
  %v1019 = vunpack.c.l.b16 %v939
  %v1020 = vunpack.c.h.b16 %v939
  %v1021 = vunpack.c.l.b16 %v940
  %v1022 = vunpack.c.h.b16 %v940
  %v1023 = vunpack.c.l.b16 %v941
  %v1024 = vunpack.c.h.b16 %v941
  %v1025 = vunpack.c.l.b16 %v942
  %v1026 = vunpack.c.h.b16 %v942
  %v1027 = vunpack.c.l.b16 %v943
  %v1028 = vunpack.c.h.b16 %v943
  %v1029 = vunpack.c.l.b16 %v944
  %v1030 = vunpack.c.h.b16 %v944
  %v1031 = vunpack.c.l.b16 %v945
  %v1032 = vunpack.c.h.b16 %v945
  %v1033 = vunpack.c.l.b16 %v946
  %v1034 = vunpack.c.h.b16 %v946
  %v1035 = vunpack.c.l.b16 %v947
  %v1036 = vunpack.c.h.b16 %v947
  %v1037 = vunpack.c.l.b16 %v948
  %v1038 = vunpack.c.h.b16 %v948
  %v1039 = vunpack.c.l.b16 %v949
  %v1040 = vunpack.c.h.b16 %v949
  %v1041 = vunpack.c.l.b16 %v950
  %v1042 = vunpack.c.h.b16 %v950
  %v1043 = vunpack.c.l.b16 %v951
  %v1044 = vunpack.c.h.b16 %v951
  %v1045 = vpack.c.b16 %v985, %v983
  %v1046 = vpack.c.b16 %v986, %v984
  %v1047 = vpack.c.b16 %v989, %v987
  %v1048 = vpack.c.b16 %v990, %v988
  %v1049 = vpack.c.b16 %v993, %v991
  %v1050 = vpack.c.b16 %v994, %v992
  %v1051 = vpack.c.b16 %v997, %v995
  %v1052 = vpack.c.b16 %v998, %v996
  %v1053 = vpack.c.b16 %v1001, %v999
  %v1054 = vpack.c.b16 %v1002, %v1000
  %v1055 = vpack.c.b16 %v1005, %v1003
  %v1056 = vpack.c.b16 %v1006, %v1004
  %v1057 = vpack.c.b16 %v1009, %v1007
  %v1058 = vpack.c.b16 %v1010, %v1008
  %v1059 = vpack.c.b16 %v1013, %v1011
  %v1060 = vpack.c.b16 %v1014, %v1012
  %v1061 = vpack.c.b16 %v1017, %v1015
  %v1062 = vpack.c.b16 %v1018, %v1016
  %v1063 = vpack.c.b16 %v1021, %v1019
  %v1064 = vpack.c.b16 %v1022, %v1020
  %v1065 = vpack.c.b16 %v1025, %v1023
  %v1066 = vpack.c.b16 %v1026, %v1024
  %v1067 = vpack.c.b16 %v1029, %v1027
  %v1068 = vpack.c.b16 %v1030, %v1028
  %v1069 = vpack.c.b16 %v1033, %v1031
  %v1070 = vpack.c.b16 %v1034, %v1032
  %v1071 = vpack.c.b16 %v1037, %v1035
  %v1072 = vpack.c.b16 %v1038, %v1036
  %v1073 = vpack.c.b16 %v1041, %v1039
  %v1074 = vpack.c.b16 %v1042, %v1040
  %v1075 = vpack.c.b16 %v1043, %v1043
  %v1076 = vpack.c.b16 %v1044, %v1044
  %v1094 = vsel %vm295, %v1046, 0
  %v1097 = vsel %vm295, %v1048, 0
  %v1100 = vsel %vm295, %v1050, 0
  %v1103 = vsel %vm295, %v1052, 0
  %v1106 = vsel %vm295, %v1054, 0
  %v1109 = vsel %vm295, %v1056, 0
  %v1112 = vsel %vm295, %v1058, 0
  %v1115 = vsel %vm295, %v1060, 0
  %v1118 = vsel %vm295, %v1062, 0
  %v1121 = vsel %vm295, %v1064, 0
  %v1124 = vsel %vm295, %v1066, 0
  %v1127 = vsel %vm295, %v1068, 0
  %v1130 = vsel %vm295, %v1070, 0
  %v1133 = vsel %vm295, %v1072, 0
  %v1136 = vsel %vm295, %v1074, 0
  %v1139 = vsel %vm295, %v1076, 0
  %1141 = vmatprep.subr.bf16.mxu0 0
  %1142 = vmatpush1.bf16.msra.mxu0 %v275
  %1143 = vmatprep.subr.bf16.mxu0 0
  %1144 = vmatpush1.bf16.msra.mxu0 %v274
  %1145 = vmatprep.subr.bf16.mxu0 0
  %1146 = vmatpush1.bf16.msra.mxu0 %v273
  %1147 = vmatprep.subr.bf16.mxu0 0
  %1148 = vmatpush1.bf16.msra.mxu0 %v272
  %1149 = vmatprep.subr.bf16.mxu0 0
  %1150 = vmatpush1.bf16.msra.mxu0 %v271
  %1151 = vmatprep.subr.bf16.mxu0 0
  %1152 = vmatpush1.bf16.msra.mxu0 %v270
  %1153 = vmatprep.subr.bf16.mxu0 0
  %1154 = vmatpush1.bf16.msra.mxu0 %v269
  %1155 = vmatprep.subr.bf16.mxu0 0
  %1156 = vmatpush1.bf16.msra.mxu0 %v268
  %1157 = vmatprep.subr.bf16.mxu0 0
  %1158 = vmatpush2.bf16.msra.mxu0 0
  %1159 = vmatprep.subr.bf16.mxu0 0
  %1160 = vmatpush2.bf16.msra.mxu0 0
  %1161 = vmatprep.subr.bf16.mxu0 0
  %1162 = vmatpush2.bf16.msra.mxu0 %v346
  %1163 = vmatprep.subr.bf16.mxu0 0
  %1164 = vmatpush2.bf16.msra.mxu0 %v280
  %1165 = vmatprep.subr.bf16.mxu0 0
  %1166 = vmatpush2.bf16.msra.mxu0 %v279
  %1167 = vmatprep.subr.bf16.mxu0 0
  %1168 = vmatpush2.bf16.msra.mxu0 %v278
  %1169 = vmatprep.subr.bf16.mxu0 0
  %1170 = vmatpush2.bf16.msra.mxu0 %v277
  %1171 = vmatprep.subr.bf16.mxu0 0
  %1172 = vmatpush2.bf16.msra.mxu0 %v276
  %1173 = vmatprep.mubr.bf16.mxu0 %v1094
  %1174 = vmatmul.mubr.bf16.gmra.mxu0 %v1045
  %v1175 = vpop.f32.mrf.mxu0
  %v1176 = vadd.f32 0.0, %v1175
  %v1177 = vpop.f32.mrf.mxu0
  %v1178 = vpop.f32.mrf.mxu0
  %v1179 = vadd.f32 0.0, %v1178
  %v1180 = vpop.f32.mrf.mxu0
  %1181 = vmatprep.mubr.bf16.mxu0 %v1097
  %1182 = vmatmul.mubr.bf16.gmra.mxu0 %v1047
  %v1183 = vpop.f32.mrf.mxu0
  %v1184 = vadd.f32 0.0, %v1183
  %v1185 = vpop.f32.mrf.mxu0
  %v1186 = vpop.f32.mrf.mxu0
  %v1187 = vadd.f32 0.0, %v1186
  %v1188 = vpop.f32.mrf.mxu0
  %1189 = vmatprep.mubr.bf16.mxu0 %v1100
  %1190 = vmatmul.mubr.bf16.gmra.mxu0 %v1049
  %v1191 = vpop.f32.mrf.mxu0
  %v1192 = vadd.f32 0.0, %v1191
  %v1193 = vpop.f32.mrf.mxu0
  %v1194 = vpop.f32.mrf.mxu0
  %v1195 = vadd.f32 0.0, %v1194
  %v1196 = vpop.f32.mrf.mxu0
  %1197 = vmatprep.mubr.bf16.mxu0 %v1103
  %1198 = vmatmul.mubr.bf16.gmra.mxu0 %v1051
  %v1199 = vpop.f32.mrf.mxu0
  %v1200 = vadd.f32 0.0, %v1199
  %v1201 = vpop.f32.mrf.mxu0
  %v1202 = vpop.f32.mrf.mxu0
  %v1203 = vadd.f32 0.0, %v1202
  %v1204 = vpop.f32.mrf.mxu0
  %1205 = vmatprep.mubr.bf16.mxu0 %v1106
  %1206 = vmatmul.mubr.bf16.gmra.mxu0 %v1053
  %v1207 = vpop.f32.mrf.mxu0
  %v1208 = vadd.f32 0.0, %v1207
  %v1209 = vpop.f32.mrf.mxu0
  %v1210 = vpop.f32.mrf.mxu0
  %v1211 = vadd.f32 0.0, %v1210
  %v1212 = vpop.f32.mrf.mxu0
  %1213 = vmatprep.mubr.bf16.mxu0 %v1109
  %1214 = vmatmul.mubr.bf16.gmra.mxu0 %v1055
  %v1215 = vpop.f32.mrf.mxu0
  %v1216 = vadd.f32 0.0, %v1215
  %v1217 = vpop.f32.mrf.mxu0
  %v1218 = vpop.f32.mrf.mxu0
  %v1219 = vadd.f32 0.0, %v1218
  %v1220 = vpop.f32.mrf.mxu0
  %1221 = vmatprep.mubr.bf16.mxu0 %v1112
  %1222 = vmatmul.mubr.bf16.gmra.mxu0 %v1057
  %v1223 = vpop.f32.mrf.mxu0
  %v1224 = vadd.f32 0.0, %v1223
  %v1225 = vpop.f32.mrf.mxu0
  %v1226 = vpop.f32.mrf.mxu0
  %v1227 = vadd.f32 0.0, %v1226
  %v1228 = vpop.f32.mrf.mxu0
  %1229 = vmatprep.mubr.bf16.mxu0 %v1115
  %1230 = vmatmul.mubr.bf16.gmra.mxu0 %v1059
  %v1231 = vpop.f32.mrf.mxu0
  %v1232 = vadd.f32 0.0, %v1231
  %v1233 = vpop.f32.mrf.mxu0
  %v1234 = vpop.f32.mrf.mxu0
  %v1235 = vadd.f32 0.0, %v1234
  %v1236 = vpop.f32.mrf.mxu0
  %1237 = vmatprep.mubr.bf16.mxu0 %v1118
  %1238 = vmatmul.mubr.bf16.gmra.mxu0 %v1061
  %v1239 = vpop.f32.mrf.mxu0
  %v1240 = vadd.f32 0.0, %v1239
  %v1241 = vpop.f32.mrf.mxu0
  %v1242 = vpop.f32.mrf.mxu0
  %v1243 = vadd.f32 0.0, %v1242
  %v1244 = vpop.f32.mrf.mxu0
  %1245 = vmatprep.mubr.bf16.mxu0 %v1121
  %1246 = vmatmul.mubr.bf16.gmra.mxu0 %v1063
  %v1247 = vpop.f32.mrf.mxu0
  %v1248 = vadd.f32 0.0, %v1247
  %v1249 = vpop.f32.mrf.mxu0
  %v1250 = vpop.f32.mrf.mxu0
  %v1251 = vadd.f32 0.0, %v1250
  %v1252 = vpop.f32.mrf.mxu0
  %1253 = vmatprep.mubr.bf16.mxu0 %v1124
  %1254 = vmatmul.mubr.bf16.gmra.mxu0 %v1065
  %v1255 = vpop.f32.mrf.mxu0
  %v1256 = vadd.f32 0.0, %v1255
  %v1257 = vpop.f32.mrf.mxu0
  %v1258 = vpop.f32.mrf.mxu0
  %v1259 = vadd.f32 0.0, %v1258
  %v1260 = vpop.f32.mrf.mxu0
  %1261 = vmatprep.mubr.bf16.mxu0 %v1127
  %1262 = vmatmul.mubr.bf16.gmra.mxu0 %v1067
  %v1263 = vpop.f32.mrf.mxu0
  %v1264 = vadd.f32 0.0, %v1263
  %v1265 = vpop.f32.mrf.mxu0
  %v1266 = vpop.f32.mrf.mxu0
  %v1267 = vadd.f32 0.0, %v1266
  %v1268 = vpop.f32.mrf.mxu0
  %1269 = vmatprep.mubr.bf16.mxu0 %v1130
  %1270 = vmatmul.mubr.bf16.gmra.mxu0 %v1069
  %v1271 = vpop.f32.mrf.mxu0
  %v1272 = vadd.f32 0.0, %v1271
  %v1273 = vpop.f32.mrf.mxu0
  %v1274 = vpop.f32.mrf.mxu0
  %v1275 = vadd.f32 0.0, %v1274
  %v1276 = vpop.f32.mrf.mxu0
  %1277 = vmatprep.mubr.bf16.mxu0 %v1133
  %1278 = vmatmul.mubr.bf16.gmra.mxu0 %v1071
  %v1279 = vpop.f32.mrf.mxu0
  %v1280 = vadd.f32 0.0, %v1279
  %v1281 = vpop.f32.mrf.mxu0
  %v1282 = vpop.f32.mrf.mxu0
  %v1283 = vadd.f32 0.0, %v1282
  %v1284 = vpop.f32.mrf.mxu0
  %1285 = vmatprep.mubr.bf16.mxu0 %v1136
  %1286 = vmatmul.mubr.bf16.gmra.mxu0 %v1073
  %v1287 = vpop.f32.mrf.mxu0
  %v1288 = vadd.f32 0.0, %v1287
  %v1289 = vpop.f32.mrf.mxu0
  %v1290 = vpop.f32.mrf.mxu0
  %v1291 = vadd.f32 0.0, %v1290
  %v1292 = vpop.f32.mrf.mxu0
  %1293 = vmatprep.mubr.bf16.mxu0 %v1139
  %1294 = vmatmul.mubr.bf16.gmra.mxu0 %v1075
  %v1295 = vpop.f32.mrf.mxu0
  %v1296 = vadd.f32 0.0, %v1295
  %v1297 = vpop.f32.mrf.mxu0
  %v1298 = vpop.f32.mrf.mxu0
  %v1299 = vpop.f32.mrf.mxu0
  %1300 = vdwg.mxu0
  %v1301 = vmax.f32 %v889, %v1176
  %v1302 = vmax.f32 %v890, %v1179
  %v1303 = vmax.f32 %v891, %v1184
  %v1304 = vmax.f32 %v892, %v1187
  %v1305 = vmax.f32 %v893, %v1192
  %v1306 = vmax.f32 %v894, %v1195
  %v1307 = vmax.f32 %v895, %v1200
  %v1308 = vmax.f32 %v896, %v1203
  %v1309 = vmax.f32 %v897, %v1208
  %v1310 = vmax.f32 %v898, %v1211
  %v1311 = vmax.f32 %v899, %v1216
  %v1312 = vmax.f32 %v900, %v1219
  %v1313 = vmax.f32 %v901, %v1224
  %v1314 = vmax.f32 %v902, %v1227
  %v1315 = vmax.f32 %v903, %v1232
  %v1316 = vmax.f32 %v904, %v1235
  %v1317 = vmax.f32 %v905, %v1240
  %v1318 = vmax.f32 %v906, %v1243
  %v1319 = vmax.f32 %v907, %v1248
  %v1320 = vmax.f32 %v908, %v1251
  %v1321 = vmax.f32 %v909, %v1256
  %v1322 = vmax.f32 %v910, %v1259
  %v1323 = vmax.f32 %v911, %v1264
  %v1324 = vmax.f32 %v912, %v1267
  %v1325 = vmax.f32 %v913, %v1272
  %v1326 = vmax.f32 %v914, %v1275
  %v1327 = vmax.f32 %v915, %v1280
  %v1328 = vmax.f32 %v916, %v1283
  %v1329 = vmax.f32 %v917, %v1288
  %v1330 = vmax.f32 %v918, %v1291
  %v1331 = vmax.f32 %v919, %v1296
  %s1332 = scalar_lea.vmem %s0, 744
  %v1333 = vld [vmem:[%s1332] sm:$0xff]
  %v1334 = vld [vmem:[%s1332 + $0x8] sm:$0xff]
  %v1335 = vld [vmem:[%s1332 + $0x10] sm:$0xff]
  %v1336 = vld [vmem:[%s1332 + $0x18] sm:$0xff]
  %v1337 = vld [vmem:[%s1332 + $0x20] sm:$0xff]
  %v1338 = vld [vmem:[%s1332 + $0x28] sm:$0xff]
  %v1339 = vld [vmem:[%s1332 + $0x30] sm:$0xff]
  %v1340 = vld [vmem:[%s1332 + $0x38] sm:$0xff]
  %v1341 = vld [vmem:[%s1332 + $0x40] sm:$0xff]
  %v1342 = vld [vmem:[%s1332 + $0x48] sm:$0xff]
  %v1343 = vld [vmem:[%s1332 + $0x50] sm:$0xff]
  %v1344 = vld [vmem:[%s1332 + $0x58] sm:$0xff]
  %v1345 = vld [vmem:[%s1332 + $0x60] sm:$0xff]
  %v1346 = vld [vmem:[%s1332 + $0x68] sm:$0xff]
  %v1347 = vld [vmem:[%s1332 + $0x70] sm:$0xff]
  %v1348 = vld [vmem:[%s1332 + $0x78] sm:$0xff]
  %v1349 = vld [vmem:[%s1332 + $0x80] sm:$0xff]
  %v1350 = vld [vmem:[%s1332 + $0x88] sm:$0xff]
  %v1351 = vld [vmem:[%s1332 + $0x90] sm:$0xff]
  %v1352 = vld [vmem:[%s1332 + $0x98] sm:$0xff]
  %v1353 = vld [vmem:[%s1332 + $0xa0] sm:$0xff]
  %v1354 = vld [vmem:[%s1332 + $0xa8] sm:$0xff]
  %v1355 = vld [vmem:[%s1332 + $0xb0] sm:$0xff]
  %v1356 = vld [vmem:[%s1332 + $0xb8] sm:$0xff]
  %v1357 = vld [vmem:[%s1332 + $0xc0] sm:$0xff]
  %v1358 = vld [vmem:[%s1332 + $0xc8] sm:$0xff]
  %v1359 = vld [vmem:[%s1332 + $0xd0] sm:$0xff]
  %v1360 = vld [vmem:[%s1332 + $0xd8] sm:$0xff]
  %v1361 = vld [vmem:[%s1332 + $0xe0] sm:$0xff]
  %v1362 = vld [vmem:[%s1332 + $0xe8] sm:$0xff]
  %v1363 = vld [vmem:[%s1332 + $0xf0] sm:$0xff]
  %v1395 = vunpack.c.l.b16 %v1333
  %v1396 = vunpack.c.h.b16 %v1333
  %v1397 = vunpack.c.l.b16 %v1334
  %v1398 = vunpack.c.h.b16 %v1334
  %v1399 = vunpack.c.l.b16 %v1335
  %v1400 = vunpack.c.h.b16 %v1335
  %v1401 = vunpack.c.l.b16 %v1336
  %v1402 = vunpack.c.h.b16 %v1336
  %v1403 = vunpack.c.l.b16 %v1337
  %v1404 = vunpack.c.h.b16 %v1337
  %v1405 = vunpack.c.l.b16 %v1338
  %v1406 = vunpack.c.h.b16 %v1338
  %v1407 = vunpack.c.l.b16 %v1339
  %v1408 = vunpack.c.h.b16 %v1339
  %v1409 = vunpack.c.l.b16 %v1340
  %v1410 = vunpack.c.h.b16 %v1340
  %v1411 = vunpack.c.l.b16 %v1341
  %v1412 = vunpack.c.h.b16 %v1341
  %v1413 = vunpack.c.l.b16 %v1342
  %v1414 = vunpack.c.h.b16 %v1342
  %v1415 = vunpack.c.l.b16 %v1343
  %v1416 = vunpack.c.h.b16 %v1343
  %v1417 = vunpack.c.l.b16 %v1344
  %v1418 = vunpack.c.h.b16 %v1344
  %v1419 = vunpack.c.l.b16 %v1345
  %v1420 = vunpack.c.h.b16 %v1345
  %v1421 = vunpack.c.l.b16 %v1346
  %v1422 = vunpack.c.h.b16 %v1346
  %v1423 = vunpack.c.l.b16 %v1347
  %v1424 = vunpack.c.h.b16 %v1347
  %v1425 = vunpack.c.l.b16 %v1348
  %v1426 = vunpack.c.h.b16 %v1348
  %v1427 = vunpack.c.l.b16 %v1349
  %v1428 = vunpack.c.h.b16 %v1349
  %v1429 = vunpack.c.l.b16 %v1350
  %v1430 = vunpack.c.h.b16 %v1350
  %v1431 = vunpack.c.l.b16 %v1351
  %v1432 = vunpack.c.h.b16 %v1351
  %v1433 = vunpack.c.l.b16 %v1352
  %v1434 = vunpack.c.h.b16 %v1352
  %v1435 = vunpack.c.l.b16 %v1353
  %v1436 = vunpack.c.h.b16 %v1353
  %v1437 = vunpack.c.l.b16 %v1354
  %v1438 = vunpack.c.h.b16 %v1354
  %v1439 = vunpack.c.l.b16 %v1355
  %v1440 = vunpack.c.h.b16 %v1355
  %v1441 = vunpack.c.l.b16 %v1356
  %v1442 = vunpack.c.h.b16 %v1356
  %v1443 = vunpack.c.l.b16 %v1357
  %v1444 = vunpack.c.h.b16 %v1357
  %v1445 = vunpack.c.l.b16 %v1358
  %v1446 = vunpack.c.h.b16 %v1358
  %v1447 = vunpack.c.l.b16 %v1359
  %v1448 = vunpack.c.h.b16 %v1359
  %v1449 = vunpack.c.l.b16 %v1360
  %v1450 = vunpack.c.h.b16 %v1360
  %v1451 = vunpack.c.l.b16 %v1361
  %v1452 = vunpack.c.h.b16 %v1361
  %v1453 = vunpack.c.l.b16 %v1362
  %v1454 = vunpack.c.h.b16 %v1362
  %v1455 = vunpack.c.l.b16 %v1363
  %v1456 = vunpack.c.h.b16 %v1363
  %v1457 = vpack.c.b16 %v1397, %v1395
  %v1458 = vpack.c.b16 %v1398, %v1396
  %v1459 = vpack.c.b16 %v1401, %v1399
  %v1460 = vpack.c.b16 %v1402, %v1400
  %v1461 = vpack.c.b16 %v1405, %v1403
  %v1462 = vpack.c.b16 %v1406, %v1404
  %v1463 = vpack.c.b16 %v1409, %v1407
  %v1464 = vpack.c.b16 %v1410, %v1408
  %v1465 = vpack.c.b16 %v1413, %v1411
  %v1466 = vpack.c.b16 %v1414, %v1412
  %v1467 = vpack.c.b16 %v1417, %v1415
  %v1468 = vpack.c.b16 %v1418, %v1416
  %v1469 = vpack.c.b16 %v1421, %v1419
  %v1470 = vpack.c.b16 %v1422, %v1420
  %v1471 = vpack.c.b16 %v1425, %v1423
  %v1472 = vpack.c.b16 %v1426, %v1424
  %v1473 = vpack.c.b16 %v1429, %v1427
  %v1474 = vpack.c.b16 %v1430, %v1428
  %v1475 = vpack.c.b16 %v1433, %v1431
  %v1476 = vpack.c.b16 %v1434, %v1432
  %v1477 = vpack.c.b16 %v1437, %v1435
  %v1478 = vpack.c.b16 %v1438, %v1436
  %v1479 = vpack.c.b16 %v1441, %v1439
  %v1480 = vpack.c.b16 %v1442, %v1440
  %v1481 = vpack.c.b16 %v1445, %v1443
  %v1482 = vpack.c.b16 %v1446, %v1444
  %v1483 = vpack.c.b16 %v1449, %v1447
  %v1484 = vpack.c.b16 %v1450, %v1448
  %v1485 = vpack.c.b16 %v1453, %v1451
  %v1486 = vpack.c.b16 %v1454, %v1452
  %v1487 = vpack.c.b16 %v1455, %v1455
  %v1488 = vpack.c.b16 %v1456, %v1456
  %v1506 = vsel %vm295, %v1458, 0
  %v1509 = vsel %vm295, %v1460, 0
  %v1512 = vsel %vm295, %v1462, 0
  %v1515 = vsel %vm295, %v1464, 0
  %v1518 = vsel %vm295, %v1466, 0
  %v1521 = vsel %vm295, %v1468, 0
  %v1524 = vsel %vm295, %v1470, 0
  %v1527 = vsel %vm295, %v1472, 0
  %v1530 = vsel %vm295, %v1474, 0
  %v1533 = vsel %vm295, %v1476, 0
  %v1536 = vsel %vm295, %v1478, 0
  %v1539 = vsel %vm295, %v1480, 0
  %v1542 = vsel %vm295, %v1482, 0
  %v1545 = vsel %vm295, %v1484, 0
  %v1548 = vsel %vm295, %v1486, 0
  %v1551 = vsel %vm295, %v1488, 0
  %1553 = vmatprep.subr.bf16.mxu0 0
  %1554 = vmatpush1.bf16.msra.mxu0 %v275
  %1555 = vmatprep.subr.bf16.mxu0 0
  %1556 = vmatpush1.bf16.msra.mxu0 %v274
  %1557 = vmatprep.subr.bf16.mxu0 0
  %1558 = vmatpush1.bf16.msra.mxu0 %v273
  %1559 = vmatprep.subr.bf16.mxu0 0
  %1560 = vmatpush1.bf16.msra.mxu0 %v272
  %1561 = vmatprep.subr.bf16.mxu0 0
  %1562 = vmatpush1.bf16.msra.mxu0 %v271
  %1563 = vmatprep.subr.bf16.mxu0 0
  %1564 = vmatpush1.bf16.msra.mxu0 %v270
  %1565 = vmatprep.subr.bf16.mxu0 0
  %1566 = vmatpush1.bf16.msra.mxu0 %v269
  %1567 = vmatprep.subr.bf16.mxu0 0
  %1568 = vmatpush1.bf16.msra.mxu0 %v268
  %1569 = vmatprep.subr.bf16.mxu0 0
  %1570 = vmatpush2.bf16.msra.mxu0 0
  %1571 = vmatprep.subr.bf16.mxu0 0
  %1572 = vmatpush2.bf16.msra.mxu0 0
  %1573 = vmatprep.subr.bf16.mxu0 0
  %1574 = vmatpush2.bf16.msra.mxu0 %v346
  %1575 = vmatprep.subr.bf16.mxu0 0
  %1576 = vmatpush2.bf16.msra.mxu0 %v280
  %1577 = vmatprep.subr.bf16.mxu0 0
  %1578 = vmatpush2.bf16.msra.mxu0 %v279
  %1579 = vmatprep.subr.bf16.mxu0 0
  %1580 = vmatpush2.bf16.msra.mxu0 %v278
  %1581 = vmatprep.subr.bf16.mxu0 0
  %1582 = vmatpush2.bf16.msra.mxu0 %v277
  %1583 = vmatprep.subr.bf16.mxu0 0
  %1584 = vmatpush2.bf16.msra.mxu0 %v276
  %1585 = vmatprep.mubr.bf16.mxu0 %v1506
  %1586 = vmatmul.mubr.bf16.gmra.mxu0 %v1457
  %v1587 = vpop.f32.mrf.mxu0
  %v1588 = vadd.f32 0.0, %v1587
  %v1589 = vpop.f32.mrf.mxu0
  %v1590 = vpop.f32.mrf.mxu0
  %v1591 = vadd.f32 0.0, %v1590
  %v1592 = vpop.f32.mrf.mxu0
  %1593 = vmatprep.mubr.bf16.mxu0 %v1509
  %1594 = vmatmul.mubr.bf16.gmra.mxu0 %v1459
  %v1595 = vpop.f32.mrf.mxu0
  %v1596 = vadd.f32 0.0, %v1595
  %v1597 = vpop.f32.mrf.mxu0
  %v1598 = vpop.f32.mrf.mxu0
  %v1599 = vadd.f32 0.0, %v1598
  %v1600 = vpop.f32.mrf.mxu0
  %1601 = vmatprep.mubr.bf16.mxu0 %v1512
  %1602 = vmatmul.mubr.bf16.gmra.mxu0 %v1461
  %v1603 = vpop.f32.mrf.mxu0
  %v1604 = vadd.f32 0.0, %v1603
  %v1605 = vpop.f32.mrf.mxu0
  %v1606 = vpop.f32.mrf.mxu0
  %v1607 = vadd.f32 0.0, %v1606
  %v1608 = vpop.f32.mrf.mxu0
  %1609 = vmatprep.mubr.bf16.mxu0 %v1515
  %1610 = vmatmul.mubr.bf16.gmra.mxu0 %v1463
  %v1611 = vpop.f32.mrf.mxu0
  %v1612 = vadd.f32 0.0, %v1611
  %v1613 = vpop.f32.mrf.mxu0
  %v1614 = vpop.f32.mrf.mxu0
  %v1615 = vadd.f32 0.0, %v1614
  %v1616 = vpop.f32.mrf.mxu0
  %1617 = vmatprep.mubr.bf16.mxu0 %v1518
  %1618 = vmatmul.mubr.bf16.gmra.mxu0 %v1465
  %v1619 = vpop.f32.mrf.mxu0
  %v1620 = vadd.f32 0.0, %v1619
  %v1621 = vpop.f32.mrf.mxu0
  %v1622 = vpop.f32.mrf.mxu0
  %v1623 = vadd.f32 0.0, %v1622
  %v1624 = vpop.f32.mrf.mxu0
  %1625 = vmatprep.mubr.bf16.mxu0 %v1521
  %1626 = vmatmul.mubr.bf16.gmra.mxu0 %v1467
  %v1627 = vpop.f32.mrf.mxu0
  %v1628 = vadd.f32 0.0, %v1627
  %v1629 = vpop.f32.mrf.mxu0
  %v1630 = vpop.f32.mrf.mxu0
  %v1631 = vadd.f32 0.0, %v1630
  %v1632 = vpop.f32.mrf.mxu0
  %1633 = vmatprep.mubr.bf16.mxu0 %v1524
  %1634 = vmatmul.mubr.bf16.gmra.mxu0 %v1469
  %v1635 = vpop.f32.mrf.mxu0
  %v1636 = vadd.f32 0.0, %v1635
  %v1637 = vpop.f32.mrf.mxu0
  %v1638 = vpop.f32.mrf.mxu0
  %v1639 = vadd.f32 0.0, %v1638
  %v1640 = vpop.f32.mrf.mxu0
  %1641 = vmatprep.mubr.bf16.mxu0 %v1527
  %1642 = vmatmul.mubr.bf16.gmra.mxu0 %v1471
  %v1643 = vpop.f32.mrf.mxu0
  %v1644 = vadd.f32 0.0, %v1643
  %v1645 = vpop.f32.mrf.mxu0
  %v1646 = vpop.f32.mrf.mxu0
  %v1647 = vadd.f32 0.0, %v1646
  %v1648 = vpop.f32.mrf.mxu0
  %1649 = vmatprep.mubr.bf16.mxu0 %v1530
  %1650 = vmatmul.mubr.bf16.gmra.mxu0 %v1473
  %v1651 = vpop.f32.mrf.mxu0
  %v1652 = vadd.f32 0.0, %v1651
  %v1653 = vpop.f32.mrf.mxu0
  %v1654 = vpop.f32.mrf.mxu0
  %v1655 = vadd.f32 0.0, %v1654
  %v1656 = vpop.f32.mrf.mxu0
  %1657 = vmatprep.mubr.bf16.mxu0 %v1533
  %1658 = vmatmul.mubr.bf16.gmra.mxu0 %v1475
  %v1659 = vpop.f32.mrf.mxu0
  %v1660 = vadd.f32 0.0, %v1659
  %v1661 = vpop.f32.mrf.mxu0
  %v1662 = vpop.f32.mrf.mxu0
  %v1663 = vadd.f32 0.0, %v1662
  %v1664 = vpop.f32.mrf.mxu0
  %1665 = vmatprep.mubr.bf16.mxu0 %v1536
  %1666 = vmatmul.mubr.bf16.gmra.mxu0 %v1477
  %v1667 = vpop.f32.mrf.mxu0
  %v1668 = vadd.f32 0.0, %v1667
  %v1669 = vpop.f32.mrf.mxu0
  %v1670 = vpop.f32.mrf.mxu0
  %v1671 = vadd.f32 0.0, %v1670
  %v1672 = vpop.f32.mrf.mxu0
  %1673 = vmatprep.mubr.bf16.mxu0 %v1539
  %1674 = vmatmul.mubr.bf16.gmra.mxu0 %v1479
  %v1675 = vpop.f32.mrf.mxu0
  %v1676 = vadd.f32 0.0, %v1675
  %v1677 = vpop.f32.mrf.mxu0
  %v1678 = vpop.f32.mrf.mxu0
  %v1679 = vadd.f32 0.0, %v1678
  %v1680 = vpop.f32.mrf.mxu0
  %1681 = vmatprep.mubr.bf16.mxu0 %v1542
  %1682 = vmatmul.mubr.bf16.gmra.mxu0 %v1481
  %v1683 = vpop.f32.mrf.mxu0
  %v1684 = vadd.f32 0.0, %v1683
  %v1685 = vpop.f32.mrf.mxu0
  %v1686 = vpop.f32.mrf.mxu0
  %v1687 = vadd.f32 0.0, %v1686
  %v1688 = vpop.f32.mrf.mxu0
  %1689 = vmatprep.mubr.bf16.mxu0 %v1545
  %1690 = vmatmul.mubr.bf16.gmra.mxu0 %v1483
  %v1691 = vpop.f32.mrf.mxu0
  %v1692 = vadd.f32 0.0, %v1691
  %v1693 = vpop.f32.mrf.mxu0
  %v1694 = vpop.f32.mrf.mxu0
  %v1695 = vadd.f32 0.0, %v1694
  %v1696 = vpop.f32.mrf.mxu0
  %1697 = vmatprep.mubr.bf16.mxu0 %v1548
  %1698 = vmatmul.mubr.bf16.gmra.mxu0 %v1485
  %v1699 = vpop.f32.mrf.mxu0
  %v1700 = vadd.f32 0.0, %v1699
  %v1701 = vpop.f32.mrf.mxu0
  %v1702 = vpop.f32.mrf.mxu0
  %v1703 = vadd.f32 0.0, %v1702
  %v1704 = vpop.f32.mrf.mxu0
  %1705 = vmatprep.mubr.bf16.mxu0 %v1551
  %1706 = vmatmul.mubr.bf16.gmra.mxu0 %v1487
  %v1707 = vpop.f32.mrf.mxu0
  %v1708 = vadd.f32 0.0, %v1707
  %v1709 = vpop.f32.mrf.mxu0
  %v1710 = vpop.f32.mrf.mxu0
  %v1711 = vpop.f32.mrf.mxu0
  %1712 = vdwg.mxu0
  %v1713 = vmax.f32 %v1301, %v1588
  %v1714 = vmax.f32 %v1302, %v1591
  %v1715 = vmax.f32 %v1303, %v1596
  %v1716 = vmax.f32 %v1304, %v1599
  %v1717 = vmax.f32 %v1305, %v1604
  %v1718 = vmax.f32 %v1306, %v1607
  %v1719 = vmax.f32 %v1307, %v1612
  %v1720 = vmax.f32 %v1308, %v1615
  %v1721 = vmax.f32 %v1309, %v1620
  %v1722 = vmax.f32 %v1310, %v1623
  %v1723 = vmax.f32 %v1311, %v1628
  %v1724 = vmax.f32 %v1312, %v1631
  %v1725 = vmax.f32 %v1313, %v1636
  %v1726 = vmax.f32 %v1314, %v1639
  %v1727 = vmax.f32 %v1315, %v1644
  %v1728 = vmax.f32 %v1316, %v1647
  %v1729 = vmax.f32 %v1317, %v1652
  %v1730 = vmax.f32 %v1318, %v1655
  %v1731 = vmax.f32 %v1319, %v1660
  %v1732 = vmax.f32 %v1320, %v1663
  %v1733 = vmax.f32 %v1321, %v1668
  %v1734 = vmax.f32 %v1322, %v1671
  %v1735 = vmax.f32 %v1323, %v1676
  %v1736 = vmax.f32 %v1324, %v1679
  %v1737 = vmax.f32 %v1325, %v1684
  %v1738 = vmax.f32 %v1326, %v1687
  %v1739 = vmax.f32 %v1327, %v1692
  %v1740 = vmax.f32 %v1328, %v1695
  %v1741 = vmax.f32 %v1329, %v1700
  %v1742 = vmax.f32 %v1330, %v1703
  %v1743 = vmax.f32 %v1331, %v1708
  %v1744 = vld [vmem:[%s2] sm:$0x1]
  %v1746 = vlaneseq
  %v1747 = vshrl.u32 %v1746, 7
  %v1748 = vsub.s32 0, %v1747
  %v1749 = vrot.slane %v1744, %v1748
  %v1751 = vadd.f32 %v1713, %v1749
  %v1752 = vadd.f32 %v1714, %v1749
  %v1753 = vadd.f32 %v1715, %v1749
  %v1754 = vadd.f32 %v1716, %v1749
  %v1755 = vadd.f32 %v1717, %v1749
  %v1756 = vadd.f32 %v1718, %v1749
  %v1757 = vadd.f32 %v1719, %v1749
  %v1758 = vadd.f32 %v1720, %v1749
  %v1759 = vadd.f32 %v1721, %v1749
  %v1760 = vadd.f32 %v1722, %v1749
  %v1761 = vadd.f32 %v1723, %v1749
  %v1762 = vadd.f32 %v1724, %v1749
  %v1763 = vadd.f32 %v1725, %v1749
  %v1764 = vadd.f32 %v1726, %v1749
  %v1765 = vadd.f32 %v1727, %v1749
  %v1766 = vadd.f32 %v1728, %v1749
  %v1767 = vadd.f32 %v1729, %v1749
  %v1768 = vadd.f32 %v1730, %v1749
  %v1769 = vadd.f32 %v1731, %v1749
  %v1770 = vadd.f32 %v1732, %v1749
  %v1771 = vadd.f32 %v1733, %v1749
  %v1772 = vadd.f32 %v1734, %v1749
  %v1773 = vadd.f32 %v1735, %v1749
  %v1774 = vadd.f32 %v1736, %v1749
  %v1775 = vadd.f32 %v1737, %v1749
  %v1776 = vadd.f32 %v1738, %v1749
  %v1777 = vadd.f32 %v1739, %v1749
  %v1778 = vadd.f32 %v1740, %v1749
  %v1779 = vadd.f32 %v1741, %v1749
  %v1780 = vadd.f32 %v1742, %v1749
  %v1781 = vadd.f32 %v1743, %v1749
  %v1782 = vmax.f32 %v1751, 0.0
  %v1783 = vmax.f32 %v1752, 0.0
  %v1784 = vmax.f32 %v1753, 0.0
  %v1785 = vmax.f32 %v1754, 0.0
  %v1786 = vmax.f32 %v1755, 0.0
  %v1787 = vmax.f32 %v1756, 0.0
  %v1788 = vmax.f32 %v1757, 0.0
  %v1789 = vmax.f32 %v1758, 0.0
  %v1790 = vmax.f32 %v1759, 0.0
  %v1791 = vmax.f32 %v1760, 0.0
  %v1792 = vmax.f32 %v1761, 0.0
  %v1793 = vmax.f32 %v1762, 0.0
  %v1794 = vmax.f32 %v1763, 0.0
  %v1795 = vmax.f32 %v1764, 0.0
  %v1796 = vmax.f32 %v1765, 0.0
  %v1797 = vmax.f32 %v1766, 0.0
  %v1798 = vmax.f32 %v1767, 0.0
  %v1799 = vmax.f32 %v1768, 0.0
  %v1800 = vmax.f32 %v1769, 0.0
  %v1801 = vmax.f32 %v1770, 0.0
  %v1802 = vmax.f32 %v1771, 0.0
  %v1803 = vmax.f32 %v1772, 0.0
  %v1804 = vmax.f32 %v1773, 0.0
  %v1805 = vmax.f32 %v1774, 0.0
  %v1806 = vmax.f32 %v1775, 0.0
  %v1807 = vmax.f32 %v1776, 0.0
  %v1808 = vmax.f32 %v1777, 0.0
  %v1809 = vmax.f32 %v1778, 0.0
  %v1810 = vmax.f32 %v1779, 0.0
  %v1811 = vmax.f32 %v1780, 0.0
  %v1812 = vmax.f32 %v1781, 0.0
  %v1813 = vpack.c.bf16 %v1783, %v1782
  %v1814 = vpack.c.bf16 %v1785, %v1784
  %v1815 = vpack.c.bf16 %v1787, %v1786
  %v1816 = vpack.c.bf16 %v1789, %v1788
  %v1817 = vpack.c.bf16 %v1791, %v1790
  %v1818 = vpack.c.bf16 %v1793, %v1792
  %v1819 = vpack.c.bf16 %v1795, %v1794
  %v1820 = vpack.c.bf16 %v1797, %v1796
  %v1821 = vpack.c.bf16 %v1799, %v1798
  %v1822 = vpack.c.bf16 %v1801, %v1800
  %v1823 = vpack.c.bf16 %v1803, %v1802
  %v1824 = vpack.c.bf16 %v1805, %v1804
  %v1825 = vpack.c.bf16 %v1807, %v1806
  %v1826 = vpack.c.bf16 %v1809, %v1808
  %v1827 = vpack.c.bf16 %v1811, %v1810
  %v1828 = vpack.c.bf16 %v1812, %v1812
  %v1845 = vunpack.c.l.b16 %v1813
  %v1846 = vunpack.c.h.b16 %v1813
  %v1847 = vunpack.c.l.b16 %v1814
  %v1848 = vunpack.c.h.b16 %v1814
  %v1849 = vunpack.c.l.b16 %v1815
  %v1850 = vunpack.c.h.b16 %v1815
  %v1851 = vunpack.c.l.b16 %v1816
  %v1852 = vunpack.c.h.b16 %v1816
  %v1853 = vunpack.c.l.b16 %v1817
  %v1854 = vunpack.c.h.b16 %v1817
  %v1855 = vunpack.c.l.b16 %v1818
  %v1856 = vunpack.c.h.b16 %v1818
  %v1857 = vunpack.c.l.b16 %v1819
  %v1858 = vunpack.c.h.b16 %v1819
  %v1859 = vunpack.c.l.b16 %v1820
  %v1860 = vunpack.c.h.b16 %v1820
  %v1861 = vunpack.c.l.b16 %v1821
  %v1862 = vunpack.c.h.b16 %v1821
  %v1863 = vunpack.c.l.b16 %v1822
  %v1864 = vunpack.c.h.b16 %v1822
  %v1865 = vunpack.c.l.b16 %v1823
  %v1866 = vunpack.c.h.b16 %v1823
  %v1867 = vunpack.c.l.b16 %v1824
  %v1868 = vunpack.c.h.b16 %v1824
  %v1869 = vunpack.c.l.b16 %v1825
  %v1870 = vunpack.c.h.b16 %v1825
  %v1871 = vunpack.c.l.b16 %v1826
  %v1872 = vunpack.c.h.b16 %v1826
  %v1873 = vunpack.c.l.b16 %v1827
  %v1874 = vunpack.c.h.b16 %v1827
  %v1875 = vunpack.c.l.b16 %v1828
  %v1876 = vpack.c.b16 %v1845, %v1845
  %v1877 = vpack.c.b16 %v1846, %v1846
  %v1878 = vpack.c.b16 %v1847, %v1847
  %v1879 = vpack.c.b16 %v1848, %v1848
  %v1880 = vpack.c.b16 %v1849, %v1849
  %v1881 = vpack.c.b16 %v1850, %v1850
  %v1882 = vpack.c.b16 %v1851, %v1851
  %v1883 = vpack.c.b16 %v1852, %v1852
  %v1884 = vpack.c.b16 %v1853, %v1853
  %v1885 = vpack.c.b16 %v1854, %v1854
  %v1886 = vpack.c.b16 %v1855, %v1855
  %v1887 = vpack.c.b16 %v1856, %v1856
  %v1888 = vpack.c.b16 %v1857, %v1857
  %v1889 = vpack.c.b16 %v1858, %v1858
  %v1890 = vpack.c.b16 %v1859, %v1859
  %v1891 = vpack.c.b16 %v1860, %v1860
  %v1892 = vpack.c.b16 %v1861, %v1861
  %v1893 = vpack.c.b16 %v1862, %v1862
  %v1894 = vpack.c.b16 %v1863, %v1863
  %v1895 = vpack.c.b16 %v1864, %v1864
  %v1896 = vpack.c.b16 %v1865, %v1865
  %v1897 = vpack.c.b16 %v1866, %v1866
  %v1898 = vpack.c.b16 %v1867, %v1867
  %v1899 = vpack.c.b16 %v1868, %v1868
  %v1900 = vpack.c.b16 %v1869, %v1869
  %v1901 = vpack.c.b16 %v1870, %v1870
  %v1902 = vpack.c.b16 %v1871, %v1871
  %v1903 = vpack.c.b16 %v1872, %v1872
  %v1904 = vpack.c.b16 %v1873, %v1873
  %v1905 = vpack.c.b16 %v1874, %v1874
  %v1906 = vpack.c.b16 %v1875, %v1875
  %1938 = vst [vmem:[%s3] sm:$0xf] %v1876
  %1939 = vst [vmem:[%s3 + $0x4] sm:$0xf] %v1877
  %1940 = vst [vmem:[%s3 + $0x8] sm:$0xf] %v1878
  %1941 = vst [vmem:[%s3 + $0xc] sm:$0xf] %v1879
  %1942 = vst [vmem:[%s3 + $0x10] sm:$0xf] %v1880
  %1943 = vst [vmem:[%s3 + $0x14] sm:$0xf] %v1881
  %1944 = vst [vmem:[%s3 + $0x18] sm:$0xf] %v1882
  %1945 = vst [vmem:[%s3 + $0x1c] sm:$0xf] %v1883
  %1946 = vst [vmem:[%s3 + $0x20] sm:$0xf] %v1884
  %1947 = vst [vmem:[%s3 + $0x24] sm:$0xf] %v1885
  %1948 = vst [vmem:[%s3 + $0x28] sm:$0xf] %v1886
  %1949 = vst [vmem:[%s3 + $0x2c] sm:$0xf] %v1887
  %1950 = vst [vmem:[%s3 + $0x30] sm:$0xf] %v1888
  %1951 = vst [vmem:[%s3 + $0x34] sm:$0xf] %v1889
  %1952 = vst [vmem:[%s3 + $0x38] sm:$0xf] %v1890
  %1953 = vst [vmem:[%s3 + $0x3c] sm:$0xf] %v1891
  %1954 = vst [vmem:[%s3 + $0x40] sm:$0xf] %v1892
  %1955 = vst [vmem:[%s3 + $0x44] sm:$0xf] %v1893
  %1956 = vst [vmem:[%s3 + $0x48] sm:$0xf] %v1894
  %1957 = vst [vmem:[%s3 + $0x4c] sm:$0xf] %v1895
  %1958 = vst [vmem:[%s3 + $0x50] sm:$0xf] %v1896
  %1959 = vst [vmem:[%s3 + $0x54] sm:$0xf] %v1897
  %1960 = vst [vmem:[%s3 + $0x58] sm:$0xf] %v1898
  %1961 = vst [vmem:[%s3 + $0x5c] sm:$0xf] %v1899
  %1962 = vst [vmem:[%s3 + $0x60] sm:$0xf] %v1900
  %1963 = vst [vmem:[%s3 + $0x64] sm:$0xf] %v1901
  %1964 = vst [vmem:[%s3 + $0x68] sm:$0xf] %v1902
  %1965 = vst [vmem:[%s3 + $0x6c] sm:$0xf] %v1903
  %1966 = vst [vmem:[%s3 + $0x70] sm:$0xf] %v1904
  %1967 = vst [vmem:[%s3 + $0x74] sm:$0xf] %v1905
  %1968 = vst [vmem:[%s3 + $0x78] sm:$0xf] %v1906
  // Predicated region
  $region14: #{cnn_forward.6} parent=0 // pred_check
    _
  $region15: #{cnn_forward.6} parent=0 // pred_check_branch
    %1970 = sbr.rel (0) target = $region17
  $region16: #{cnn_forward.6} parent=0 // pred_region
    _
  $region17: #{cnn_forward.6} parent=0 // pred_fallthru
    _
  // Predicated region
  $region18: #{cnn_forward.6} parent=0 // pred_check
    _
  $region19: #{cnn_forward.6} parent=0 // pred_check_branch
    %1972 = sbr.rel (0) target = $region21
  $region20: #{cnn_forward.6} parent=0 // pred_region
    _
  $region21: #{cnn_forward.6} parent=0 // pred_fallthru
    _

// kernel: cnn_forward.7
$region0: #{cnn_forward.7}
  #allocation0 [shape = 'u32[]', space=smem, size = 0x4, offset = 0x4, fixed_abs, tag = 'smem constant byte address 0x4 - core index']
  #allocation1 [shape = 'u32[144,128]{1,0:T(1,128)}', space=vmem, size = 0x12000, scoped, tag = 'internal scratch']
  %s0 = inlined_call_operand.vmem [shape: bf16[8,3872], index: 0, kind: input, shape index: {}]
  %s1 = inlined_call_operand.vmem [shape: bf16[3872,512], index: 1, kind: input, shape index: {}]
  %s2 = inlined_call_operand.vmem [shape: f32[1,512], index: 2, kind: input, shape index: {}]
  %s3 = inlined_call_operand.vmem [shape: bf16[512,256], index: 3, kind: input, shape index: {}]
  %s4 = inlined_call_operand.vmem [shape: f32[1,256], index: 4, kind: input, shape index: {}]
  %s5 = inlined_call_operand.vmem [shape: bf16[256,128], index: 5, kind: input, shape index: {}]
  %s6 = inlined_call_operand.vmem [shape: f32[1,128], index: 6, kind: input, shape index: {}]
  %s7 = inlined_call_operand.vmem [shape: f32[8,128], index: 7, kind: output, shape index: {}]
  %s8 = sld [smem:[#allocation0]]
  $region38: #{cnn_forward.7} parent=0
    _
  %s10 = ssub.s32 1, %s8
  %s11 = scalar_select 0, %s10, %s8
  // Predicated region
  $region2: #{cnn_forward.7} parent=0 // pred_check
    _
  $region3: #{cnn_forward.7} parent=0 // pred_check_branch
    %13 = sbr.rel (0) target = $region5
  $region4: #{cnn_forward.7} parent=0 // pred_region
    _
  $region5: #{cnn_forward.7} parent=0 // pred_fallthru
    _
  // Predicated region
  $region6: #{cnn_forward.7} parent=0 // pred_check
    _
  $region7: #{cnn_forward.7} parent=0 // pred_check_branch
    %15 = sbr.rel (0) target = $region9
  $region8: #{cnn_forward.7} parent=0 // pred_region
    _
  $region9: #{cnn_forward.7} parent=0 // pred_fallthru
    _
  // Predicated region
  $region10: #{cnn_forward.7} parent=0 // pred_check
    _
  $region11: #{cnn_forward.7} parent=0 // pred_check_branch
    %17 = sbr.rel (0) target = $region13
  $region12: #{cnn_forward.7} parent=0 // pred_region
    _
  $region13: #{cnn_forward.7} parent=0 // pred_fallthru
    _
  // Predicated region
  $region14: #{cnn_forward.7} parent=0 // pred_check
    _
  $region15: #{cnn_forward.7} parent=0 // pred_check_branch
    %19 = sbr.rel (0) target = $region17
  $region16: #{cnn_forward.7} parent=0 // pred_region
    _
  $region17: #{cnn_forward.7} parent=0 // pred_fallthru
    _
  // Predicated region
  $region18: #{cnn_forward.7} parent=0 // pred_check
    _
  $region19: #{cnn_forward.7} parent=0 // pred_check_branch
    %21 = sbr.rel (0) target = $region21
  $region20: #{cnn_forward.7} parent=0 // pred_region
    _
  $region21: #{cnn_forward.7} parent=0 // pred_fallthru
    _
  // Predicated region
  $region22: #{cnn_forward.7} parent=0 // pred_check
    _
  $region23: #{cnn_forward.7} parent=0 // pred_check_branch
    %23 = sbr.rel (0) target = $region25
  $region24: #{cnn_forward.7} parent=0 // pred_region
    _
  $region25: #{cnn_forward.7} parent=0 // pred_fallthru
    _
  // Predicated region
  $region26: #{cnn_forward.7} parent=0 // pred_check
    _
  $region27: #{cnn_forward.7} parent=0 // pred_check_branch
    %25 = sbr.rel (0) target = $region29
  $region28: #{cnn_forward.7} parent=0 // pred_region
    _
  $region29: #{cnn_forward.7} parent=0 // pred_fallthru
    _
  %v27 = vld [vmem:[%s0] sm:$0xff]
  %v28 = vld [vmem:[%s0 + $0x8] sm:$0xff]
  %v29 = vld [vmem:[%s0 + $0x10] sm:$0xff]
  %v30 = vld [vmem:[%s0 + $0x18] sm:$0xff]
  %v31 = vld [vmem:[%s0 + $0x20] sm:$0xff]
  %v32 = vld [vmem:[%s0 + $0x28] sm:$0xff]
  %v33 = vld [vmem:[%s0 + $0x30] sm:$0xff]
  %v34 = vld [vmem:[%s0 + $0x38] sm:$0xff]
  %v35 = vld [vmem:[%s0 + $0x40] sm:$0xff]
  %v36 = vld [vmem:[%s0 + $0x48] sm:$0xff]
  %v37 = vld [vmem:[%s0 + $0x50] sm:$0xff]
  %v38 = vld [vmem:[%s0 + $0x58] sm:$0xff]
  %v39 = vld [vmem:[%s0 + $0x60] sm:$0xff]
  %v40 = vld [vmem:[%s0 + $0x68] sm:$0xff]
  %v41 = vld [vmem:[%s0 + $0x70] sm:$0xff]
  %v42 = vld [vmem:[%s0 + $0x78] sm:$0xf]
  %v43 = vld [vmem:[%s1] sm:$0xff]
  %v44 = vld [vmem:[%s1 + $0x8] sm:$0xff]
  %v45 = vld [vmem:[%s1 + $0x10] sm:$0xff]
  %v46 = vld [vmem:[%s1 + $0x18] sm:$0xff]
  %v47 = vld [vmem:[%s1 + $0x20] sm:$0xff]
  %v48 = vld [vmem:[%s1 + $0x28] sm:$0xff]
  %v49 = vld [vmem:[%s1 + $0x30] sm:$0xff]
  %v50 = vld [vmem:[%s1 + $0x38] sm:$0xff]
  %v51 = vld [vmem:[%s1 + $0x40] sm:$0xff]
  %v52 = vld [vmem:[%s1 + $0x48] sm:$0xff]
  %v53 = vld [vmem:[%s1 + $0x50] sm:$0xff]
  %v54 = vld [vmem:[%s1 + $0x58] sm:$0xff]
  %v55 = vld [vmem:[%s1 + $0x60] sm:$0xff]
  %v56 = vld [vmem:[%s1 + $0x68] sm:$0xff]
  %v57 = vld [vmem:[%s1 + $0x70] sm:$0xff]
  %v58 = vld [vmem:[%s1 + $0x78] sm:$0xff]
  %v59 = vld [vmem:[%s1 + $0x80] sm:$0xff]
  %v60 = vld [vmem:[%s1 + $0x88] sm:$0xff]
  %v61 = vld [vmem:[%s1 + $0x90] sm:$0xff]
  %v62 = vld [vmem:[%s1 + $0x98] sm:$0xff]
  %v63 = vld [vmem:[%s1 + $0xa0] sm:$0xff]
  %v64 = vld [vmem:[%s1 + $0xa8] sm:$0xff]
  %v65 = vld [vmem:[%s1 + $0xb0] sm:$0xff]
  %v66 = vld [vmem:[%s1 + $0xb8] sm:$0xff]
  %v67 = vld [vmem:[%s1 + $0xc0] sm:$0xff]
  %v68 = vld [vmem:[%s1 + $0xc8] sm:$0xff]
  %v69 = vld [vmem:[%s1 + $0xd0] sm:$0xff]
  %v70 = vld [vmem:[%s1 + $0xd8] sm:$0xff]
  %v71 = vld [vmem:[%s1 + $0xe0] sm:$0xff]
  %v72 = vld [vmem:[%s1 + $0xe8] sm:$0xff]
  %v73 = vld [vmem:[%s1 + $0xf0] sm:$0xff]
  %v74 = vld [vmem:[%s1 + $0xf8] sm:$0xff]
  %v75 = vld [vmem:[%s1 + $0x100] sm:$0xff]
  %v76 = vld [vmem:[%s1 + $0x108] sm:$0xff]
  %v77 = vld [vmem:[%s1 + $0x110] sm:$0xff]
  %v78 = vld [vmem:[%s1 + $0x118] sm:$0xff]
  %v79 = vld [vmem:[%s1 + $0x120] sm:$0xff]
  %v80 = vld [vmem:[%s1 + $0x128] sm:$0xff]
  %v81 = vld [vmem:[%s1 + $0x130] sm:$0xff]
  %v82 = vld [vmem:[%s1 + $0x138] sm:$0xff]
  %v83 = vld [vmem:[%s1 + $0x140] sm:$0xff]
  %v84 = vld [vmem:[%s1 + $0x148] sm:$0xff]
  %v85 = vld [vmem:[%s1 + $0x150] sm:$0xff]
  %v86 = vld [vmem:[%s1 + $0x158] sm:$0xff]
  %v87 = vld [vmem:[%s1 + $0x160] sm:$0xff]
  %v88 = vld [vmem:[%s1 + $0x168] sm:$0xff]
  %v89 = vld [vmem:[%s1 + $0x170] sm:$0xff]
  %v90 = vld [vmem:[%s1 + $0x178] sm:$0xff]
  %v91 = vld [vmem:[%s1 + $0x180] sm:$0xff]
  %v92 = vld [vmem:[%s1 + $0x188] sm:$0xff]
  %v93 = vld [vmem:[%s1 + $0x190] sm:$0xff]
  %v94 = vld [vmem:[%s1 + $0x198] sm:$0xff]
  %v95 = vld [vmem:[%s1 + $0x1a0] sm:$0xff]
  %v96 = vld [vmem:[%s1 + $0x1a8] sm:$0xff]
  %v97 = vld [vmem:[%s1 + $0x1b0] sm:$0xff]
  %v98 = vld [vmem:[%s1 + $0x1b8] sm:$0xff]
  %v99 = vld [vmem:[%s1 + $0x1c0] sm:$0xff]
  %v100 = vld [vmem:[%s1 + $0x1c8] sm:$0xff]
  %v101 = vld [vmem:[%s1 + $0x1d0] sm:$0xff]
  %v102 = vld [vmem:[%s1 + $0x1d8] sm:$0xff]
  %v103 = vld [vmem:[%s1 + $0x1e0] sm:$0xff]
  %v104 = vld [vmem:[%s1 + $0x1e8] sm:$0xff]
  %v105 = vld [vmem:[%s1 + $0x1f0] sm:$0xff]
  %v106 = vld [vmem:[%s1 + $0x1f8] sm:$0xff]
  %v107 = vld [vmem:[%s1 + $0x200] sm:$0xff]
  %v108 = vld [vmem:[%s1 + $0x208] sm:$0xff]
  %v109 = vld [vmem:[%s1 + $0x210] sm:$0xff]
  %v110 = vld [vmem:[%s1 + $0x218] sm:$0xff]
  %v111 = vld [vmem:[%s1 + $0x220] sm:$0xff]
  %v112 = vld [vmem:[%s1 + $0x228] sm:$0xff]
  %v113 = vld [vmem:[%s1 + $0x230] sm:$0xff]
  %v114 = vld [vmem:[%s1 + $0x238] sm:$0xff]
  %v115 = vld [vmem:[%s1 + $0x240] sm:$0xff]
  %v116 = vld [vmem:[%s1 + $0x248] sm:$0xff]
  %v117 = vld [vmem:[%s1 + $0x250] sm:$0xff]
  %v118 = vld [vmem:[%s1 + $0x258] sm:$0xff]
  %v119 = vld [vmem:[%s1 + $0x260] sm:$0xff]
  %v120 = vld [vmem:[%s1 + $0x268] sm:$0xff]
  %v121 = vld [vmem:[%s1 + $0x270] sm:$0xff]
  %v122 = vld [vmem:[%s1 + $0x278] sm:$0xff]
  %v123 = vld [vmem:[%s1 + $0x280] sm:$0xff]
  %v124 = vld [vmem:[%s1 + $0x288] sm:$0xff]
  %v125 = vld [vmem:[%s1 + $0x290] sm:$0xff]
  %v126 = vld [vmem:[%s1 + $0x298] sm:$0xff]
  %v127 = vld [vmem:[%s1 + $0x2a0] sm:$0xff]
  %v128 = vld [vmem:[%s1 + $0x2a8] sm:$0xff]
  %v129 = vld [vmem:[%s1 + $0x2b0] sm:$0xff]
  %v130 = vld [vmem:[%s1 + $0x2b8] sm:$0xff]
  %v131 = vld [vmem:[%s1 + $0x2c0] sm:$0xff]
  %v132 = vld [vmem:[%s1 + $0x2c8] sm:$0xff]
  %v133 = vld [vmem:[%s1 + $0x2d0] sm:$0xff]
  %v134 = vld [vmem:[%s1 + $0x2d8] sm:$0xff]
  %v135 = vld [vmem:[%s1 + $0x2e0] sm:$0xff]
  %v136 = vld [vmem:[%s1 + $0x2e8] sm:$0xff]
  %v137 = vld [vmem:[%s1 + $0x2f0] sm:$0xff]
  %v138 = vld [vmem:[%s1 + $0x2f8] sm:$0xff]
  %v139 = vld [vmem:[%s1 + $0x300] sm:$0xff]
  %v140 = vld [vmem:[%s1 + $0x308] sm:$0xff]
  %v141 = vld [vmem:[%s1 + $0x310] sm:$0xff]
  %v142 = vld [vmem:[%s1 + $0x318] sm:$0xff]
  %v143 = vld [vmem:[%s1 + $0x320] sm:$0xff]
  %v144 = vld [vmem:[%s1 + $0x328] sm:$0xff]
  %v145 = vld [vmem:[%s1 + $0x330] sm:$0xff]
  %v146 = vld [vmem:[%s1 + $0x338] sm:$0xff]
  %v147 = vld [vmem:[%s1 + $0x340] sm:$0xff]
  %v148 = vld [vmem:[%s1 + $0x348] sm:$0xff]
  %v149 = vld [vmem:[%s1 + $0x350] sm:$0xff]
  %v150 = vld [vmem:[%s1 + $0x358] sm:$0xff]
  %v151 = vld [vmem:[%s1 + $0x360] sm:$0xff]
  %v152 = vld [vmem:[%s1 + $0x368] sm:$0xff]
  %v153 = vld [vmem:[%s1 + $0x370] sm:$0xff]
  %v154 = vld [vmem:[%s1 + $0x378] sm:$0xff]
  %v155 = vld [vmem:[%s1 + $0x380] sm:$0xff]
  %v156 = vld [vmem:[%s1 + $0x388] sm:$0xff]
  %v157 = vld [vmem:[%s1 + $0x390] sm:$0xff]
  %v158 = vld [vmem:[%s1 + $0x398] sm:$0xff]
  %v159 = vld [vmem:[%s1 + $0x3a0] sm:$0xff]
  %v160 = vld [vmem:[%s1 + $0x3a8] sm:$0xff]
  %v161 = vld [vmem:[%s1 + $0x3b0] sm:$0xff]
  %v162 = vld [vmem:[%s1 + $0x3b8] sm:$0xff]
  %v163 = vld [vmem:[%s1 + $0x3c0] sm:$0xff]
  %v164 = vld [vmem:[%s1 + $0x3c8] sm:$0xff]
  %v165 = vld [vmem:[%s1 + $0x3d0] sm:$0xff]
  %v166 = vld [vmem:[%s1 + $0x3d8] sm:$0xff]
  %v167 = vld [vmem:[%s1 + $0x3e0] sm:$0xff]
  %v168 = vld [vmem:[%s1 + $0x3e8] sm:$0xff]
  %v169 = vld [vmem:[%s1 + $0x3f0] sm:$0xff]
  %v170 = vld [vmem:[%s1 + $0x3f8] sm:$0xff]
  %v171 = vld [vmem:[%s1 + $0x400] sm:$0xff]
  %v172 = vld [vmem:[%s1 + $0x408] sm:$0xff]
  %v173 = vld [vmem:[%s1 + $0x410] sm:$0xff]
  %v174 = vld [vmem:[%s1 + $0x418] sm:$0xff]
  %v175 = vld [vmem:[%s1 + $0x420] sm:$0xff]
  %v176 = vld [vmem:[%s1 + $0x428] sm:$0xff]
  %v177 = vld [vmem:[%s1 + $0x430] sm:$0xff]
  %v178 = vld [vmem:[%s1 + $0x438] sm:$0xff]
  %v179 = vld [vmem:[%s1 + $0x440] sm:$0xff]
  %v180 = vld [vmem:[%s1 + $0x448] sm:$0xff]
  %v181 = vld [vmem:[%s1 + $0x450] sm:$0xff]
  %v182 = vld [vmem:[%s1 + $0x458] sm:$0xff]
  %v183 = vld [vmem:[%s1 + $0x460] sm:$0xff]
  %v184 = vld [vmem:[%s1 + $0x468] sm:$0xff]
  %v185 = vld [vmem:[%s1 + $0x470] sm:$0xff]
  %v186 = vld [vmem:[%s1 + $0x478] sm:$0xff]
  %v187 = vld [vmem:[%s1 + $0x480] sm:$0xff]
  %v188 = vld [vmem:[%s1 + $0x488] sm:$0xff]
  %v189 = vld [vmem:[%s1 + $0x490] sm:$0xff]
  %v190 = vld [vmem:[%s1 + $0x498] sm:$0xff]
  %v191 = vld [vmem:[%s1 + $0x4a0] sm:$0xff]
  %v192 = vld [vmem:[%s1 + $0x4a8] sm:$0xff]
  %v193 = vld [vmem:[%s1 + $0x4b0] sm:$0xff]
  %v194 = vld [vmem:[%s1 + $0x4b8] sm:$0xff]
  %v195 = vld [vmem:[%s1 + $0x4c0] sm:$0xff]
  %v196 = vld [vmem:[%s1 + $0x4c8] sm:$0xff]
  %v197 = vld [vmem:[%s1 + $0x4d0] sm:$0xff]
  %v198 = vld [vmem:[%s1 + $0x4d8] sm:$0xff]
  %v199 = vld [vmem:[%s1 + $0x4e0] sm:$0xff]
  %v200 = vld [vmem:[%s1 + $0x4e8] sm:$0xff]
  %v201 = vld [vmem:[%s1 + $0x4f0] sm:$0xff]
  %v202 = vld [vmem:[%s1 + $0x4f8] sm:$0xff]
  %v203 = vld [vmem:[%s1 + $0x500] sm:$0xff]
  %v204 = vld [vmem:[%s1 + $0x508] sm:$0xff]
  %v205 = vld [vmem:[%s1 + $0x510] sm:$0xff]
  %v206 = vld [vmem:[%s1 + $0x518] sm:$0xff]
  %v207 = vld [vmem:[%s1 + $0x520] sm:$0xff]
  %v208 = vld [vmem:[%s1 + $0x528] sm:$0xff]
  %v209 = vld [vmem:[%s1 + $0x530] sm:$0xff]
  %v210 = vld [vmem:[%s1 + $0x538] sm:$0xff]
  %v211 = vld [vmem:[%s1 + $0x540] sm:$0xff]
  %v212 = vld [vmem:[%s1 + $0x548] sm:$0xff]
  %v213 = vld [vmem:[%s1 + $0x550] sm:$0xff]
  %v214 = vld [vmem:[%s1 + $0x558] sm:$0xff]
  %v215 = vld [vmem:[%s1 + $0x560] sm:$0xff]
  %v216 = vld [vmem:[%s1 + $0x568] sm:$0xff]
  %v217 = vld [vmem:[%s1 + $0x570] sm:$0xff]
  %v218 = vld [vmem:[%s1 + $0x578] sm:$0xff]
  %v219 = vld [vmem:[%s1 + $0x580] sm:$0xff]
  %v220 = vld [vmem:[%s1 + $0x588] sm:$0xff]
  %v221 = vld [vmem:[%s1 + $0x590] sm:$0xff]
  %v222 = vld [vmem:[%s1 + $0x598] sm:$0xff]
  %v223 = vld [vmem:[%s1 + $0x5a0] sm:$0xff]
  %v224 = vld [vmem:[%s1 + $0x5a8] sm:$0xff]
  %v225 = vld [vmem:[%s1 + $0x5b0] sm:$0xff]
  %v226 = vld [vmem:[%s1 + $0x5b8] sm:$0xff]
  %v227 = vld [vmem:[%s1 + $0x5c0] sm:$0xff]
  %v228 = vld [vmem:[%s1 + $0x5c8] sm:$0xff]
  %v229 = vld [vmem:[%s1 + $0x5d0] sm:$0xff]
  %v230 = vld [vmem:[%s1 + $0x5d8] sm:$0xff]
  %v231 = vld [vmem:[%s1 + $0x5e0] sm:$0xff]
  %v232 = vld [vmem:[%s1 + $0x5e8] sm:$0xff]
  %v233 = vld [vmem:[%s1 + $0x5f0] sm:$0xff]
  %v234 = vld [vmem:[%s1 + $0x5f8] sm:$0xff]
  %v235 = vld [vmem:[%s1 + $0x600] sm:$0xff]
  %v236 = vld [vmem:[%s1 + $0x608] sm:$0xff]
  %v237 = vld [vmem:[%s1 + $0x610] sm:$0xff]
  %v238 = vld [vmem:[%s1 + $0x618] sm:$0xff]
  %v239 = vld [vmem:[%s1 + $0x620] sm:$0xff]
  %v240 = vld [vmem:[%s1 + $0x628] sm:$0xff]
  %v241 = vld [vmem:[%s1 + $0x630] sm:$0xff]
  %v242 = vld [vmem:[%s1 + $0x638] sm:$0xff]
  %v243 = vld [vmem:[%s1 + $0x640] sm:$0xff]
  %v244 = vld [vmem:[%s1 + $0x648] sm:$0xff]
  %v245 = vld [vmem:[%s1 + $0x650] sm:$0xff]
  %v246 = vld [vmem:[%s1 + $0x658] sm:$0xff]
  %v247 = vld [vmem:[%s1 + $0x660] sm:$0xff]
  %v248 = vld [vmem:[%s1 + $0x668] sm:$0xff]
  %v249 = vld [vmem:[%s1 + $0x670] sm:$0xff]
  %v250 = vld [vmem:[%s1 + $0x678] sm:$0xff]
  %v251 = vld [vmem:[%s1 + $0x680] sm:$0xff]
  %v252 = vld [vmem:[%s1 + $0x688] sm:$0xff]
  %v253 = vld [vmem:[%s1 + $0x690] sm:$0xff]
  %v254 = vld [vmem:[%s1 + $0x698] sm:$0xff]
  %v255 = vld [vmem:[%s1 + $0x6a0] sm:$0xff]
  %v256 = vld [vmem:[%s1 + $0x6a8] sm:$0xff]
  %v257 = vld [vmem:[%s1 + $0x6b0] sm:$0xff]
  %v258 = vld [vmem:[%s1 + $0x6b8] sm:$0xff]
  %v259 = vld [vmem:[%s1 + $0x6c0] sm:$0xff]
  %v260 = vld [vmem:[%s1 + $0x6c8] sm:$0xff]
  %v261 = vld [vmem:[%s1 + $0x6d0] sm:$0xff]
  %v262 = vld [vmem:[%s1 + $0x6d8] sm:$0xff]
  %v263 = vld [vmem:[%s1 + $0x6e0] sm:$0xff]
  %v264 = vld [vmem:[%s1 + $0x6e8] sm:$0xff]
  %v265 = vld [vmem:[%s1 + $0x6f0] sm:$0xff]
  %v266 = vld [vmem:[%s1 + $0x6f8] sm:$0xff]
  %v267 = vld [vmem:[%s1 + $0x700] sm:$0xff]
  %v268 = vld [vmem:[%s1 + $0x708] sm:$0xff]
  %v269 = vld [vmem:[%s1 + $0x710] sm:$0xff]
  %v270 = vld [vmem:[%s1 + $0x718] sm:$0xff]
  %v271 = vld [vmem:[%s1 + $0x720] sm:$0xff]
  %v272 = vld [vmem:[%s1 + $0x728] sm:$0xff]
  %v273 = vld [vmem:[%s1 + $0x730] sm:$0xff]
  %v274 = vld [vmem:[%s1 + $0x738] sm:$0xff]
  %v275 = vld [vmem:[%s1 + $0x740] sm:$0xff]
  %v276 = vld [vmem:[%s1 + $0x748] sm:$0xff]
  %v277 = vld [vmem:[%s1 + $0x750] sm:$0xff]
  %v278 = vld [vmem:[%s1 + $0x758] sm:$0xff]
  %v279 = vld [vmem:[%s1 + $0x760] sm:$0xff]
  %v280 = vld [vmem:[%s1 + $0x768] sm:$0xff]
  %v281 = vld [vmem:[%s1 + $0x770] sm:$0xff]
  %v282 = vld [vmem:[%s1 + $0x778] sm:$0xff]
  %v283 = vld [vmem:[%s1 + $0x780] sm:$0xff]
  %v284 = vld [vmem:[%s1 + $0x788] sm:$0xff]
  %v285 = vld [vmem:[%s1 + $0x790] sm:$0xff]
  %v286 = vld [vmem:[%s1 + $0x798] sm:$0xff]
  %v287 = vld [vmem:[%s1 + $0x7a0] sm:$0xff]
  %v288 = vld [vmem:[%s1 + $0x7a8] sm:$0xff]
  %v289 = vld [vmem:[%s1 + $0x7b0] sm:$0xff]
  %v290 = vld [vmem:[%s1 + $0x7b8] sm:$0xff]
  %v291 = vld [vmem:[%s1 + $0x7c0] sm:$0xff]
  %v292 = vld [vmem:[%s1 + $0x7c8] sm:$0xff]
  %v293 = vld [vmem:[%s1 + $0x7d0] sm:$0xff]
  %v294 = vld [vmem:[%s1 + $0x7d8] sm:$0xff]
  %v295 = vld [vmem:[%s1 + $0x7e0] sm:$0xff]
  %v296 = vld [vmem:[%s1 + $0x7e8] sm:$0xff]
  %v297 = vld [vmem:[%s1 + $0x7f0] sm:$0xff]
  %v298 = vld [vmem:[%s1 + $0x7f8] sm:$0xff]
  %v299 = vld [vmem:[%s1 + $0x800] sm:$0xff]
  %v300 = vld [vmem:[%s1 + $0x808] sm:$0xff]
  %v301 = vld [vmem:[%s1 + $0x810] sm:$0xff]
  %v302 = vld [vmem:[%s1 + $0x818] sm:$0xff]
  %v303 = vld [vmem:[%s1 + $0x820] sm:$0xff]
  %v304 = vld [vmem:[%s1 + $0x828] sm:$0xff]
  %v305 = vld [vmem:[%s1 + $0x830] sm:$0xff]
  %v306 = vld [vmem:[%s1 + $0x838] sm:$0xff]
  %v307 = vld [vmem:[%s1 + $0x840] sm:$0xff]
  %v308 = vld [vmem:[%s1 + $0x848] sm:$0xff]
  %v309 = vld [vmem:[%s1 + $0x850] sm:$0xff]
  %v310 = vld [vmem:[%s1 + $0x858] sm:$0xff]
  %v311 = vld [vmem:[%s1 + $0x860] sm:$0xff]
  %v312 = vld [vmem:[%s1 + $0x868] sm:$0xff]
  %v313 = vld [vmem:[%s1 + $0x870] sm:$0xff]
  %v314 = vld [vmem:[%s1 + $0x878] sm:$0xff]
  %v315 = vld [vmem:[%s1 + $0x880] sm:$0xff]
  %v316 = vld [vmem:[%s1 + $0x888] sm:$0xff]
  %v317 = vld [vmem:[%s1 + $0x890] sm:$0xff]
  %v318 = vld [vmem:[%s1 + $0x898] sm:$0xff]
  %v319 = vld [vmem:[%s1 + $0x8a0] sm:$0xff]
  %v320 = vld [vmem:[%s1 + $0x8a8] sm:$0xff]
  %v321 = vld [vmem:[%s1 + $0x8b0] sm:$0xff]
  %v322 = vld [vmem:[%s1 + $0x8b8] sm:$0xff]
  %v323 = vld [vmem:[%s1 + $0x8c0] sm:$0xff]
  %v324 = vld [vmem:[%s1 + $0x8c8] sm:$0xff]
  %v325 = vld [vmem:[%s1 + $0x8d0] sm:$0xff]
  %v326 = vld [vmem:[%s1 + $0x8d8] sm:$0xff]
  %v327 = vld [vmem:[%s1 + $0x8e0] sm:$0xff]
  %v328 = vld [vmem:[%s1 + $0x8e8] sm:$0xff]
  %v329 = vld [vmem:[%s1 + $0x8f0] sm:$0xff]
  %v330 = vld [vmem:[%s1 + $0x8f8] sm:$0xff]
  %v331 = vld [vmem:[%s1 + $0x900] sm:$0xff]
  %v332 = vld [vmem:[%s1 + $0x908] sm:$0xff]
  %v333 = vld [vmem:[%s1 + $0x910] sm:$0xff]
  %v334 = vld [vmem:[%s1 + $0x918] sm:$0xff]
  %v335 = vld [vmem:[%s1 + $0x920] sm:$0xff]
  %v336 = vld [vmem:[%s1 + $0x928] sm:$0xff]
  %v337 = vld [vmem:[%s1 + $0x930] sm:$0xff]
  %v338 = vld [vmem:[%s1 + $0x938] sm:$0xff]
  %v339 = vld [vmem:[%s1 + $0x940] sm:$0xff]
  %v340 = vld [vmem:[%s1 + $0x948] sm:$0xff]
  %v341 = vld [vmem:[%s1 + $0x950] sm:$0xff]
  %v342 = vld [vmem:[%s1 + $0x958] sm:$0xff]
  %v343 = vld [vmem:[%s1 + $0x960] sm:$0xff]
  %v344 = vld [vmem:[%s1 + $0x968] sm:$0xff]
  %v345 = vld [vmem:[%s1 + $0x970] sm:$0xff]
  %v346 = vld [vmem:[%s1 + $0x978] sm:$0xff]
  %v347 = vld [vmem:[%s1 + $0x980] sm:$0xff]
  %v348 = vld [vmem:[%s1 + $0x988] sm:$0xff]
  %v349 = vld [vmem:[%s1 + $0x990] sm:$0xff]
  %v350 = vld [vmem:[%s1 + $0x998] sm:$0xff]
  %v351 = vld [vmem:[%s1 + $0x9a0] sm:$0xff]
  %v352 = vld [vmem:[%s1 + $0x9a8] sm:$0xff]
  %v353 = vld [vmem:[%s1 + $0x9b0] sm:$0xff]
  %v354 = vld [vmem:[%s1 + $0x9b8] sm:$0xff]
  %v355 = vld [vmem:[%s1 + $0x9c0] sm:$0xff]
  %v356 = vld [vmem:[%s1 + $0x9c8] sm:$0xff]
  %v357 = vld [vmem:[%s1 + $0x9d0] sm:$0xff]
  %v358 = vld [vmem:[%s1 + $0x9d8] sm:$0xff]
  %v359 = vld [vmem:[%s1 + $0x9e0] sm:$0xff]
  %v360 = vld [vmem:[%s1 + $0x9e8] sm:$0xff]
  %v361 = vld [vmem:[%s1 + $0x9f0] sm:$0xff]
  %v362 = vld [vmem:[%s1 + $0x9f8] sm:$0xff]
  %v363 = vld [vmem:[%s1 + $0xa00] sm:$0xff]
  %v364 = vld [vmem:[%s1 + $0xa08] sm:$0xff]
  %v365 = vld [vmem:[%s1 + $0xa10] sm:$0xff]
  %v366 = vld [vmem:[%s1 + $0xa18] sm:$0xff]
  %v367 = vld [vmem:[%s1 + $0xa20] sm:$0xff]
  %v368 = vld [vmem:[%s1 + $0xa28] sm:$0xff]
  %v369 = vld [vmem:[%s1 + $0xa30] sm:$0xff]
  %v370 = vld [vmem:[%s1 + $0xa38] sm:$0xff]
  %v371 = vld [vmem:[%s1 + $0xa40] sm:$0xff]
  %v372 = vld [vmem:[%s1 + $0xa48] sm:$0xff]
  %v373 = vld [vmem:[%s1 + $0xa50] sm:$0xff]
  %v374 = vld [vmem:[%s1 + $0xa58] sm:$0xff]
  %v375 = vld [vmem:[%s1 + $0xa60] sm:$0xff]
  %v376 = vld [vmem:[%s1 + $0xa68] sm:$0xff]
  %v377 = vld [vmem:[%s1 + $0xa70] sm:$0xff]
  %v378 = vld [vmem:[%s1 + $0xa78] sm:$0xff]
  %v379 = vld [vmem:[%s1 + $0xa80] sm:$0xff]
  %v380 = vld [vmem:[%s1 + $0xa88] sm:$0xff]
  %v381 = vld [vmem:[%s1 + $0xa90] sm:$0xff]
  %v382 = vld [vmem:[%s1 + $0xa98] sm:$0xff]
  %v383 = vld [vmem:[%s1 + $0xaa0] sm:$0xff]
  %v384 = vld [vmem:[%s1 + $0xaa8] sm:$0xff]
  %v385 = vld [vmem:[%s1 + $0xab0] sm:$0xff]
  %v386 = vld [vmem:[%s1 + $0xab8] sm:$0xff]
  %v387 = vld [vmem:[%s1 + $0xac0] sm:$0xff]
  %v388 = vld [vmem:[%s1 + $0xac8] sm:$0xff]
  %v389 = vld [vmem:[%s1 + $0xad0] sm:$0xff]
  %v390 = vld [vmem:[%s1 + $0xad8] sm:$0xff]
  %v391 = vld [vmem:[%s1 + $0xae0] sm:$0xff]
  %v392 = vld [vmem:[%s1 + $0xae8] sm:$0xff]
  %v393 = vld [vmem:[%s1 + $0xaf0] sm:$0xff]
  %v394 = vld [vmem:[%s1 + $0xaf8] sm:$0xff]
  %v395 = vld [vmem:[%s1 + $0xb00] sm:$0xff]
  %v396 = vld [vmem:[%s1 + $0xb08] sm:$0xff]
  %v397 = vld [vmem:[%s1 + $0xb10] sm:$0xff]
  %v398 = vld [vmem:[%s1 + $0xb18] sm:$0xff]
  %v399 = vld [vmem:[%s1 + $0xb20] sm:$0xff]
  %v400 = vld [vmem:[%s1 + $0xb28] sm:$0xff]
  %v401 = vld [vmem:[%s1 + $0xb30] sm:$0xff]
  %v402 = vld [vmem:[%s1 + $0xb38] sm:$0xff]
  %v403 = vld [vmem:[%s1 + $0xb40] sm:$0xff]
  %v404 = vld [vmem:[%s1 + $0xb48] sm:$0xff]
  %v405 = vld [vmem:[%s1 + $0xb50] sm:$0xff]
  %v406 = vld [vmem:[%s1 + $0xb58] sm:$0xff]
  %v407 = vld [vmem:[%s1 + $0xb60] sm:$0xff]
  %v408 = vld [vmem:[%s1 + $0xb68] sm:$0xff]
  %v409 = vld [vmem:[%s1 + $0xb70] sm:$0xff]
  %v410 = vld [vmem:[%s1 + $0xb78] sm:$0xff]
  %v411 = vld [vmem:[%s1 + $0xb80] sm:$0xff]
  %v412 = vld [vmem:[%s1 + $0xb88] sm:$0xff]
  %v413 = vld [vmem:[%s1 + $0xb90] sm:$0xff]
  %v414 = vld [vmem:[%s1 + $0xb98] sm:$0xff]
  %v415 = vld [vmem:[%s1 + $0xba0] sm:$0xff]
  %v416 = vld [vmem:[%s1 + $0xba8] sm:$0xff]
  %v417 = vld [vmem:[%s1 + $0xbb0] sm:$0xff]
  %v418 = vld [vmem:[%s1 + $0xbb8] sm:$0xff]
  %v419 = vld [vmem:[%s1 + $0xbc0] sm:$0xff]
  %v420 = vld [vmem:[%s1 + $0xbc8] sm:$0xff]
  %v421 = vld [vmem:[%s1 + $0xbd0] sm:$0xff]
  %v422 = vld [vmem:[%s1 + $0xbd8] sm:$0xff]
  %v423 = vld [vmem:[%s1 + $0xbe0] sm:$0xff]
  %v424 = vld [vmem:[%s1 + $0xbe8] sm:$0xff]
  %v425 = vld [vmem:[%s1 + $0xbf0] sm:$0xff]
  %v426 = vld [vmem:[%s1 + $0xbf8] sm:$0xff]
  %v427 = vld [vmem:[%s1 + $0xc00] sm:$0xff]
  %v428 = vld [vmem:[%s1 + $0xc08] sm:$0xff]
  %v429 = vld [vmem:[%s1 + $0xc10] sm:$0xff]
  %v430 = vld [vmem:[%s1 + $0xc18] sm:$0xff]
  %v431 = vld [vmem:[%s1 + $0xc20] sm:$0xff]
  %v432 = vld [vmem:[%s1 + $0xc28] sm:$0xff]
  %v433 = vld [vmem:[%s1 + $0xc30] sm:$0xff]
  %v434 = vld [vmem:[%s1 + $0xc38] sm:$0xff]
  %v435 = vld [vmem:[%s1 + $0xc40] sm:$0xff]
  %v436 = vld [vmem:[%s1 + $0xc48] sm:$0xff]
  %v437 = vld [vmem:[%s1 + $0xc50] sm:$0xff]
  %v438 = vld [vmem:[%s1 + $0xc58] sm:$0xff]
  %v439 = vld [vmem:[%s1 + $0xc60] sm:$0xff]
  %v440 = vld [vmem:[%s1 + $0xc68] sm:$0xff]
  %v441 = vld [vmem:[%s1 + $0xc70] sm:$0xff]
  %v442 = vld [vmem:[%s1 + $0xc78] sm:$0xff]
  %v443 = vld [vmem:[%s1 + $0xc80] sm:$0xff]
  %v444 = vld [vmem:[%s1 + $0xc88] sm:$0xff]
  %v445 = vld [vmem:[%s1 + $0xc90] sm:$0xff]
  %v446 = vld [vmem:[%s1 + $0xc98] sm:$0xff]
  %v447 = vld [vmem:[%s1 + $0xca0] sm:$0xff]
  %v448 = vld [vmem:[%s1 + $0xca8] sm:$0xff]
  %v449 = vld [vmem:[%s1 + $0xcb0] sm:$0xff]
  %v450 = vld [vmem:[%s1 + $0xcb8] sm:$0xff]
  %v451 = vld [vmem:[%s1 + $0xcc0] sm:$0xff]
  %v452 = vld [vmem:[%s1 + $0xcc8] sm:$0xff]
  %v453 = vld [vmem:[%s1 + $0xcd0] sm:$0xff]
  %v454 = vld [vmem:[%s1 + $0xcd8] sm:$0xff]
  %v455 = vld [vmem:[%s1 + $0xce0] sm:$0xff]
  %v456 = vld [vmem:[%s1 + $0xce8] sm:$0xff]
  %v457 = vld [vmem:[%s1 + $0xcf0] sm:$0xff]
  %v458 = vld [vmem:[%s1 + $0xcf8] sm:$0xff]
  %v459 = vld [vmem:[%s1 + $0xd00] sm:$0xff]
  %v460 = vld [vmem:[%s1 + $0xd08] sm:$0xff]
  %v461 = vld [vmem:[%s1 + $0xd10] sm:$0xff]
  %v462 = vld [vmem:[%s1 + $0xd18] sm:$0xff]
  %v463 = vld [vmem:[%s1 + $0xd20] sm:$0xff]
  %v464 = vld [vmem:[%s1 + $0xd28] sm:$0xff]
  %v465 = vld [vmem:[%s1 + $0xd30] sm:$0xff]
  %v466 = vld [vmem:[%s1 + $0xd38] sm:$0xff]
  %v467 = vld [vmem:[%s1 + $0xd40] sm:$0xff]
  %v468 = vld [vmem:[%s1 + $0xd48] sm:$0xff]
  %v469 = vld [vmem:[%s1 + $0xd50] sm:$0xff]
  %v470 = vld [vmem:[%s1 + $0xd58] sm:$0xff]
  %v471 = vld [vmem:[%s1 + $0xd60] sm:$0xff]
  %v472 = vld [vmem:[%s1 + $0xd68] sm:$0xff]
  %v473 = vld [vmem:[%s1 + $0xd70] sm:$0xff]
  %v474 = vld [vmem:[%s1 + $0xd78] sm:$0xff]
  %v475 = vld [vmem:[%s1 + $0xd80] sm:$0xff]
  %v476 = vld [vmem:[%s1 + $0xd88] sm:$0xff]
  %v477 = vld [vmem:[%s1 + $0xd90] sm:$0xff]
  %v478 = vld [vmem:[%s1 + $0xd98] sm:$0xff]
  %v479 = vld [vmem:[%s1 + $0xda0] sm:$0xff]
  %v480 = vld [vmem:[%s1 + $0xda8] sm:$0xff]
  %v481 = vld [vmem:[%s1 + $0xdb0] sm:$0xff]
  %v482 = vld [vmem:[%s1 + $0xdb8] sm:$0xff]
  %v483 = vld [vmem:[%s1 + $0xdc0] sm:$0xff]
  %v484 = vld [vmem:[%s1 + $0xdc8] sm:$0xff]
  %v485 = vld [vmem:[%s1 + $0xdd0] sm:$0xff]
  %v486 = vld [vmem:[%s1 + $0xdd8] sm:$0xff]
  %v487 = vld [vmem:[%s1 + $0xde0] sm:$0xff]
  %v488 = vld [vmem:[%s1 + $0xde8] sm:$0xff]
  %v489 = vld [vmem:[%s1 + $0xdf0] sm:$0xff]
  %v490 = vld [vmem:[%s1 + $0xdf8] sm:$0xff]
  %v491 = vld [vmem:[%s1 + $0xe00] sm:$0xff]
  %v492 = vld [vmem:[%s1 + $0xe08] sm:$0xff]
  %v493 = vld [vmem:[%s1 + $0xe10] sm:$0xff]
  %v494 = vld [vmem:[%s1 + $0xe18] sm:$0xff]
  %v495 = vld [vmem:[%s1 + $0xe20] sm:$0xff]
  %v496 = vld [vmem:[%s1 + $0xe28] sm:$0xff]
  %v497 = vld [vmem:[%s1 + $0xe30] sm:$0xff]
  %v498 = vld [vmem:[%s1 + $0xe38] sm:$0xff]
  %v499 = vld [vmem:[%s1 + $0xe40] sm:$0xff]
  %v500 = vld [vmem:[%s1 + $0xe48] sm:$0xff]
  %v501 = vld [vmem:[%s1 + $0xe50] sm:$0xff]
  %v502 = vld [vmem:[%s1 + $0xe58] sm:$0xff]
  %v503 = vld [vmem:[%s1 + $0xe60] sm:$0xff]
  %v504 = vld [vmem:[%s1 + $0xe68] sm:$0xff]
  %v505 = vld [vmem:[%s1 + $0xe70] sm:$0xff]
  %v506 = vld [vmem:[%s1 + $0xe78] sm:$0xff]
  %v507 = vld [vmem:[%s1 + $0xe80] sm:$0xff]
  %v508 = vld [vmem:[%s1 + $0xe88] sm:$0xff]
  %v509 = vld [vmem:[%s1 + $0xe90] sm:$0xff]
  %v510 = vld [vmem:[%s1 + $0xe98] sm:$0xff]
  %v511 = vld [vmem:[%s1 + $0xea0] sm:$0xff]
  %v512 = vld [vmem:[%s1 + $0xea8] sm:$0xff]
  %v513 = vld [vmem:[%s1 + $0xeb0] sm:$0xff]
  %v514 = vld [vmem:[%s1 + $0xeb8] sm:$0xff]
  %v515 = vld [vmem:[%s1 + $0xec0] sm:$0xff]
  %v516 = vld [vmem:[%s1 + $0xec8] sm:$0xff]
  %v517 = vld [vmem:[%s1 + $0xed0] sm:$0xff]
  %v518 = vld [vmem:[%s1 + $0xed8] sm:$0xff]
  %v519 = vld [vmem:[%s1 + $0xee0] sm:$0xff]
  %v520 = vld [vmem:[%s1 + $0xee8] sm:$0xff]
  %v521 = vld [vmem:[%s1 + $0xef0] sm:$0xff]
  %v522 = vld [vmem:[%s1 + $0xef8] sm:$0xff]
  %v523 = vld [vmem:[%s1 + $0xf00] sm:$0xff]
  %v524 = vld [vmem:[%s1 + $0xf08] sm:$0xff]
  %v525 = vld [vmem:[%s1 + $0xf10] sm:$0xff]
  %v526 = vld [vmem:[%s1 + $0xf18] sm:$0xff]
  %v527 = vld [vmem:[%s1 + $0xf20] sm:$0xff]
  %v528 = vld [vmem:[%s1 + $0xf28] sm:$0xff]
  %v529 = vld [vmem:[%s1 + $0xf30] sm:$0xff]
  %v530 = vld [vmem:[%s1 + $0xf38] sm:$0xff]
  %v531 = vld [vmem:[%s1 + $0xf40] sm:$0xff]
  %v532 = vld [vmem:[%s1 + $0xf48] sm:$0xff]
  %v533 = vld [vmem:[%s1 + $0xf50] sm:$0xff]
  %v534 = vld [vmem:[%s1 + $0xf58] sm:$0xff]
  %v535 = vld [vmem:[%s1 + $0xf60] sm:$0xff]
  %v536 = vld [vmem:[%s1 + $0xf68] sm:$0xff]
  %v537 = vld [vmem:[%s1 + $0xf70] sm:$0xff]
  %v538 = vld [vmem:[%s1 + $0xf78] sm:$0xff]
  %v539 = vld [vmem:[%s1 + $0xf80] sm:$0xff]
  %v540 = vld [vmem:[%s1 + $0xf88] sm:$0xff]
  %v541 = vld [vmem:[%s1 + $0xf90] sm:$0xff]
  %v542 = vld [vmem:[%s1 + $0xf98] sm:$0xff]
  %v543 = vld [vmem:[%s1 + $0xfa0] sm:$0xff]
  %v544 = vld [vmem:[%s1 + $0xfa8] sm:$0xff]
  %v545 = vld [vmem:[%s1 + $0xfb0] sm:$0xff]
  %v546 = vld [vmem:[%s1 + $0xfb8] sm:$0xff]
  %v547 = vld [vmem:[%s1 + $0xfc0] sm:$0xff]
  %v548 = vld [vmem:[%s1 + $0xfc8] sm:$0xff]
  %v549 = vld [vmem:[%s1 + $0xfd0] sm:$0xff]
  %v550 = vld [vmem:[%s1 + $0xfd8] sm:$0xff]
  %v551 = vld [vmem:[%s1 + $0xfe0] sm:$0xff]
  %v552 = vld [vmem:[%s1 + $0xfe8] sm:$0xff]
  %v553 = vld [vmem:[%s1 + $0xff0] sm:$0xff]
  %v554 = vld [vmem:[%s1 + $0xff8] sm:$0xff]
  %v555 = vld [vmem:[%s1 + $0x1000] sm:$0xff]
  %v556 = vld [vmem:[%s1 + $0x1008] sm:$0xff]
  %v557 = vld [vmem:[%s1 + $0x1010] sm:$0xff]
  %v558 = vld [vmem:[%s1 + $0x1018] sm:$0xff]
  %v559 = vld [vmem:[%s1 + $0x1020] sm:$0xff]
  %v560 = vld [vmem:[%s1 + $0x1028] sm:$0xff]
  %v561 = vld [vmem:[%s1 + $0x1030] sm:$0xff]
  %v562 = vld [vmem:[%s1 + $0x1038] sm:$0xff]
  %v563 = vld [vmem:[%s1 + $0x1040] sm:$0xff]
  %v564 = vld [vmem:[%s1 + $0x1048] sm:$0xff]
  %v565 = vld [vmem:[%s1 + $0x1050] sm:$0xff]
  %v566 = vld [vmem:[%s1 + $0x1058] sm:$0xff]
  %v567 = vld [vmem:[%s1 + $0x1060] sm:$0xff]
  %v568 = vld [vmem:[%s1 + $0x1068] sm:$0xff]
  %v569 = vld [vmem:[%s1 + $0x1070] sm:$0xff]
  %v570 = vld [vmem:[%s1 + $0x1078] sm:$0xff]
  %v571 = vld [vmem:[%s1 + $0x1080] sm:$0xff]
  %v572 = vld [vmem:[%s1 + $0x1088] sm:$0xff]
  %v573 = vld [vmem:[%s1 + $0x1090] sm:$0xff]
  %v574 = vld [vmem:[%s1 + $0x1098] sm:$0xff]
  %v575 = vld [vmem:[%s1 + $0x10a0] sm:$0xff]
  %v576 = vld [vmem:[%s1 + $0x10a8] sm:$0xff]
  %v577 = vld [vmem:[%s1 + $0x10b0] sm:$0xff]
  %v578 = vld [vmem:[%s1 + $0x10b8] sm:$0xff]
  %v579 = vld [vmem:[%s1 + $0x10c0] sm:$0xff]
  %v580 = vld [vmem:[%s1 + $0x10c8] sm:$0xff]
  %v581 = vld [vmem:[%s1 + $0x10d0] sm:$0xff]
  %v582 = vld [vmem:[%s1 + $0x10d8] sm:$0xff]
  %v583 = vld [vmem:[%s1 + $0x10e0] sm:$0xff]
  %v584 = vld [vmem:[%s1 + $0x10e8] sm:$0xff]
  %v585 = vld [vmem:[%s1 + $0x10f0] sm:$0xff]
  %v586 = vld [vmem:[%s1 + $0x10f8] sm:$0xff]
  %v587 = vld [vmem:[%s1 + $0x1100] sm:$0xff]
  %v588 = vld [vmem:[%s1 + $0x1108] sm:$0xff]
  %v589 = vld [vmem:[%s1 + $0x1110] sm:$0xff]
  %v590 = vld [vmem:[%s1 + $0x1118] sm:$0xff]
  %v591 = vld [vmem:[%s1 + $0x1120] sm:$0xff]
  %v592 = vld [vmem:[%s1 + $0x1128] sm:$0xff]
  %v593 = vld [vmem:[%s1 + $0x1130] sm:$0xff]
  %v594 = vld [vmem:[%s1 + $0x1138] sm:$0xff]
  %v595 = vld [vmem:[%s1 + $0x1140] sm:$0xff]
  %v596 = vld [vmem:[%s1 + $0x1148] sm:$0xff]
  %v597 = vld [vmem:[%s1 + $0x1150] sm:$0xff]
  %v598 = vld [vmem:[%s1 + $0x1158] sm:$0xff]
  %v599 = vld [vmem:[%s1 + $0x1160] sm:$0xff]
  %v600 = vld [vmem:[%s1 + $0x1168] sm:$0xff]
  %v601 = vld [vmem:[%s1 + $0x1170] sm:$0xff]
  %v602 = vld [vmem:[%s1 + $0x1178] sm:$0xff]
  %v603 = vld [vmem:[%s1 + $0x1180] sm:$0xff]
  %v604 = vld [vmem:[%s1 + $0x1188] sm:$0xff]
  %v605 = vld [vmem:[%s1 + $0x1190] sm:$0xff]
  %v606 = vld [vmem:[%s1 + $0x1198] sm:$0xff]
  %v607 = vld [vmem:[%s1 + $0x11a0] sm:$0xff]
  %v608 = vld [vmem:[%s1 + $0x11a8] sm:$0xff]
  %v609 = vld [vmem:[%s1 + $0x11b0] sm:$0xff]
  %v610 = vld [vmem:[%s1 + $0x11b8] sm:$0xff]
  %v611 = vld [vmem:[%s1 + $0x11c0] sm:$0xff]
  %v612 = vld [vmem:[%s1 + $0x11c8] sm:$0xff]
  %v613 = vld [vmem:[%s1 + $0x11d0] sm:$0xff]
  %v614 = vld [vmem:[%s1 + $0x11d8] sm:$0xff]
  %v615 = vld [vmem:[%s1 + $0x11e0] sm:$0xff]
  %v616 = vld [vmem:[%s1 + $0x11e8] sm:$0xff]
  %v617 = vld [vmem:[%s1 + $0x11f0] sm:$0xff]
  %v618 = vld [vmem:[%s1 + $0x11f8] sm:$0xff]
  %v619 = vld [vmem:[%s1 + $0x1200] sm:$0xff]
  %v620 = vld [vmem:[%s1 + $0x1208] sm:$0xff]
  %v621 = vld [vmem:[%s1 + $0x1210] sm:$0xff]
  %v622 = vld [vmem:[%s1 + $0x1218] sm:$0xff]
  %v623 = vld [vmem:[%s1 + $0x1220] sm:$0xff]
  %v624 = vld [vmem:[%s1 + $0x1228] sm:$0xff]
  %v625 = vld [vmem:[%s1 + $0x1230] sm:$0xff]
  %v626 = vld [vmem:[%s1 + $0x1238] sm:$0xff]
  %v627 = vld [vmem:[%s1 + $0x1240] sm:$0xff]
  %v628 = vld [vmem:[%s1 + $0x1248] sm:$0xff]
  %v629 = vld [vmem:[%s1 + $0x1250] sm:$0xff]
  %v630 = vld [vmem:[%s1 + $0x1258] sm:$0xff]
  %v631 = vld [vmem:[%s1 + $0x1260] sm:$0xff]
  %v632 = vld [vmem:[%s1 + $0x1268] sm:$0xff]
  %v633 = vld [vmem:[%s1 + $0x1270] sm:$0xff]
  %v634 = vld [vmem:[%s1 + $0x1278] sm:$0xff]
  %v635 = vld [vmem:[%s1 + $0x1280] sm:$0xff]
  %v636 = vld [vmem:[%s1 + $0x1288] sm:$0xff]
  %v637 = vld [vmem:[%s1 + $0x1290] sm:$0xff]
  %v638 = vld [vmem:[%s1 + $0x1298] sm:$0xff]
  %v639 = vld [vmem:[%s1 + $0x12a0] sm:$0xff]
  %v640 = vld [vmem:[%s1 + $0x12a8] sm:$0xff]
  %v641 = vld [vmem:[%s1 + $0x12b0] sm:$0xff]
  %v642 = vld [vmem:[%s1 + $0x12b8] sm:$0xff]
  %v643 = vld [vmem:[%s1 + $0x12c0] sm:$0xff]
  %v644 = vld [vmem:[%s1 + $0x12c8] sm:$0xff]
  %v645 = vld [vmem:[%s1 + $0x12d0] sm:$0xff]
  %v646 = vld [vmem:[%s1 + $0x12d8] sm:$0xff]
  %v647 = vld [vmem:[%s1 + $0x12e0] sm:$0xff]
  %v648 = vld [vmem:[%s1 + $0x12e8] sm:$0xff]
  %v649 = vld [vmem:[%s1 + $0x12f0] sm:$0xff]
  %v650 = vld [vmem:[%s1 + $0x12f8] sm:$0xff]
  %v651 = vld [vmem:[%s1 + $0x1300] sm:$0xff]
  %v652 = vld [vmem:[%s1 + $0x1308] sm:$0xff]
  %v653 = vld [vmem:[%s1 + $0x1310] sm:$0xff]
  %v654 = vld [vmem:[%s1 + $0x1318] sm:$0xff]
  %v655 = vld [vmem:[%s1 + $0x1320] sm:$0xff]
  %v656 = vld [vmem:[%s1 + $0x1328] sm:$0xff]
  %v657 = vld [vmem:[%s1 + $0x1330] sm:$0xff]
  %v658 = vld [vmem:[%s1 + $0x1338] sm:$0xff]
  %v659 = vld [vmem:[%s1 + $0x1340] sm:$0xff]
  %v660 = vld [vmem:[%s1 + $0x1348] sm:$0xff]
  %v661 = vld [vmem:[%s1 + $0x1350] sm:$0xff]
  %v662 = vld [vmem:[%s1 + $0x1358] sm:$0xff]
  %v663 = vld [vmem:[%s1 + $0x1360] sm:$0xff]
  %v664 = vld [vmem:[%s1 + $0x1368] sm:$0xff]
  %v665 = vld [vmem:[%s1 + $0x1370] sm:$0xff]
  %v666 = vld [vmem:[%s1 + $0x1378] sm:$0xff]
  %v667 = vld [vmem:[%s1 + $0x1380] sm:$0xff]
  %v668 = vld [vmem:[%s1 + $0x1388] sm:$0xff]
  %v669 = vld [vmem:[%s1 + $0x1390] sm:$0xff]
  %v670 = vld [vmem:[%s1 + $0x1398] sm:$0xff]
  %v671 = vld [vmem:[%s1 + $0x13a0] sm:$0xff]
  %v672 = vld [vmem:[%s1 + $0x13a8] sm:$0xff]
  %v673 = vld [vmem:[%s1 + $0x13b0] sm:$0xff]
  %v674 = vld [vmem:[%s1 + $0x13b8] sm:$0xff]
  %v675 = vld [vmem:[%s1 + $0x13c0] sm:$0xff]
  %v676 = vld [vmem:[%s1 + $0x13c8] sm:$0xff]
  %v677 = vld [vmem:[%s1 + $0x13d0] sm:$0xff]
  %v678 = vld [vmem:[%s1 + $0x13d8] sm:$0xff]
  %v679 = vld [vmem:[%s1 + $0x13e0] sm:$0xff]
  %v680 = vld [vmem:[%s1 + $0x13e8] sm:$0xff]
  %v681 = vld [vmem:[%s1 + $0x13f0] sm:$0xff]
  %v682 = vld [vmem:[%s1 + $0x13f8] sm:$0xff]
  %v683 = vld [vmem:[%s1 + $0x1400] sm:$0xff]
  %v684 = vld [vmem:[%s1 + $0x1408] sm:$0xff]
  %v685 = vld [vmem:[%s1 + $0x1410] sm:$0xff]
  %v686 = vld [vmem:[%s1 + $0x1418] sm:$0xff]
  %v687 = vld [vmem:[%s1 + $0x1420] sm:$0xff]
  %v688 = vld [vmem:[%s1 + $0x1428] sm:$0xff]
  %v689 = vld [vmem:[%s1 + $0x1430] sm:$0xff]
  %v690 = vld [vmem:[%s1 + $0x1438] sm:$0xff]
  %v691 = vld [vmem:[%s1 + $0x1440] sm:$0xff]
  %v692 = vld [vmem:[%s1 + $0x1448] sm:$0xff]
  %v693 = vld [vmem:[%s1 + $0x1450] sm:$0xff]
  %v694 = vld [vmem:[%s1 + $0x1458] sm:$0xff]
  %v695 = vld [vmem:[%s1 + $0x1460] sm:$0xff]
  %v696 = vld [vmem:[%s1 + $0x1468] sm:$0xff]
  %v697 = vld [vmem:[%s1 + $0x1470] sm:$0xff]
  %v698 = vld [vmem:[%s1 + $0x1478] sm:$0xff]
  %v699 = vld [vmem:[%s1 + $0x1480] sm:$0xff]
  %v700 = vld [vmem:[%s1 + $0x1488] sm:$0xff]
  %v701 = vld [vmem:[%s1 + $0x1490] sm:$0xff]
  %v702 = vld [vmem:[%s1 + $0x1498] sm:$0xff]
  %v703 = vld [vmem:[%s1 + $0x14a0] sm:$0xff]
  %v704 = vld [vmem:[%s1 + $0x14a8] sm:$0xff]
  %v705 = vld [vmem:[%s1 + $0x14b0] sm:$0xff]
  %v706 = vld [vmem:[%s1 + $0x14b8] sm:$0xff]
  %v707 = vld [vmem:[%s1 + $0x14c0] sm:$0xff]
  %v708 = vld [vmem:[%s1 + $0x14c8] sm:$0xff]
  %v709 = vld [vmem:[%s1 + $0x14d0] sm:$0xff]
  %v710 = vld [vmem:[%s1 + $0x14d8] sm:$0xff]
  %v711 = vld [vmem:[%s1 + $0x14e0] sm:$0xff]
  %v712 = vld [vmem:[%s1 + $0x14e8] sm:$0xff]
  %v713 = vld [vmem:[%s1 + $0x14f0] sm:$0xff]
  %v714 = vld [vmem:[%s1 + $0x14f8] sm:$0xff]
  %v715 = vld [vmem:[%s1 + $0x1500] sm:$0xff]
  %v716 = vld [vmem:[%s1 + $0x1508] sm:$0xff]
  %v717 = vld [vmem:[%s1 + $0x1510] sm:$0xff]
  %v718 = vld [vmem:[%s1 + $0x1518] sm:$0xff]
  %v719 = vld [vmem:[%s1 + $0x1520] sm:$0xff]
  %v720 = vld [vmem:[%s1 + $0x1528] sm:$0xff]
  %v721 = vld [vmem:[%s1 + $0x1530] sm:$0xff]
  %v722 = vld [vmem:[%s1 + $0x1538] sm:$0xff]
  %v723 = vld [vmem:[%s1 + $0x1540] sm:$0xff]
  %v724 = vld [vmem:[%s1 + $0x1548] sm:$0xff]
  %v725 = vld [vmem:[%s1 + $0x1550] sm:$0xff]
  %v726 = vld [vmem:[%s1 + $0x1558] sm:$0xff]
  %v727 = vld [vmem:[%s1 + $0x1560] sm:$0xff]
  %v728 = vld [vmem:[%s1 + $0x1568] sm:$0xff]
  %v729 = vld [vmem:[%s1 + $0x1570] sm:$0xff]
  %v730 = vld [vmem:[%s1 + $0x1578] sm:$0xff]
  %v731 = vld [vmem:[%s1 + $0x1580] sm:$0xff]
  %v732 = vld [vmem:[%s1 + $0x1588] sm:$0xff]
  %v733 = vld [vmem:[%s1 + $0x1590] sm:$0xff]
  %v734 = vld [vmem:[%s1 + $0x1598] sm:$0xff]
  %v735 = vld [vmem:[%s1 + $0x15a0] sm:$0xff]
  %v736 = vld [vmem:[%s1 + $0x15a8] sm:$0xff]
  %v737 = vld [vmem:[%s1 + $0x15b0] sm:$0xff]
  %v738 = vld [vmem:[%s1 + $0x15b8] sm:$0xff]
  %v739 = vld [vmem:[%s1 + $0x15c0] sm:$0xff]
  %v740 = vld [vmem:[%s1 + $0x15c8] sm:$0xff]
  %v741 = vld [vmem:[%s1 + $0x15d0] sm:$0xff]
  %v742 = vld [vmem:[%s1 + $0x15d8] sm:$0xff]
  %v743 = vld [vmem:[%s1 + $0x15e0] sm:$0xff]
  %v744 = vld [vmem:[%s1 + $0x15e8] sm:$0xff]
  %v745 = vld [vmem:[%s1 + $0x15f0] sm:$0xff]
  %v746 = vld [vmem:[%s1 + $0x15f8] sm:$0xff]
  %v747 = vld [vmem:[%s1 + $0x1600] sm:$0xff]
  %v748 = vld [vmem:[%s1 + $0x1608] sm:$0xff]
  %v749 = vld [vmem:[%s1 + $0x1610] sm:$0xff]
  %v750 = vld [vmem:[%s1 + $0x1618] sm:$0xff]
  %v751 = vld [vmem:[%s1 + $0x1620] sm:$0xff]
  %v752 = vld [vmem:[%s1 + $0x1628] sm:$0xff]
  %v753 = vld [vmem:[%s1 + $0x1630] sm:$0xff]
  %v754 = vld [vmem:[%s1 + $0x1638] sm:$0xff]
  %v755 = vld [vmem:[%s1 + $0x1640] sm:$0xff]
  %v756 = vld [vmem:[%s1 + $0x1648] sm:$0xff]
  %v757 = vld [vmem:[%s1 + $0x1650] sm:$0xff]
  %v758 = vld [vmem:[%s1 + $0x1658] sm:$0xff]
  %v759 = vld [vmem:[%s1 + $0x1660] sm:$0xff]
  %v760 = vld [vmem:[%s1 + $0x1668] sm:$0xff]
  %v761 = vld [vmem:[%s1 + $0x1670] sm:$0xff]
  %v762 = vld [vmem:[%s1 + $0x1678] sm:$0xff]
  %v763 = vld [vmem:[%s1 + $0x1680] sm:$0xff]
  %v764 = vld [vmem:[%s1 + $0x1688] sm:$0xff]
  %v765 = vld [vmem:[%s1 + $0x1690] sm:$0xff]
  %v766 = vld [vmem:[%s1 + $0x1698] sm:$0xff]
  %v767 = vld [vmem:[%s1 + $0x16a0] sm:$0xff]
  %v768 = vld [vmem:[%s1 + $0x16a8] sm:$0xff]
  %v769 = vld [vmem:[%s1 + $0x16b0] sm:$0xff]
  %v770 = vld [vmem:[%s1 + $0x16b8] sm:$0xff]
  %v771 = vld [vmem:[%s1 + $0x16c0] sm:$0xff]
  %v772 = vld [vmem:[%s1 + $0x16c8] sm:$0xff]
  %v773 = vld [vmem:[%s1 + $0x16d0] sm:$0xff]
  %v774 = vld [vmem:[%s1 + $0x16d8] sm:$0xff]
  %v775 = vld [vmem:[%s1 + $0x16e0] sm:$0xff]
  %v776 = vld [vmem:[%s1 + $0x16e8] sm:$0xff]
  %v777 = vld [vmem:[%s1 + $0x16f0] sm:$0xff]
  %v778 = vld [vmem:[%s1 + $0x16f8] sm:$0xff]
  %v779 = vld [vmem:[%s1 + $0x1700] sm:$0xff]
  %v780 = vld [vmem:[%s1 + $0x1708] sm:$0xff]
  %v781 = vld [vmem:[%s1 + $0x1710] sm:$0xff]
  %v782 = vld [vmem:[%s1 + $0x1718] sm:$0xff]
  %v783 = vld [vmem:[%s1 + $0x1720] sm:$0xff]
  %v784 = vld [vmem:[%s1 + $0x1728] sm:$0xff]
  %v785 = vld [vmem:[%s1 + $0x1730] sm:$0xff]
  %v786 = vld [vmem:[%s1 + $0x1738] sm:$0xff]
  %v787 = vld [vmem:[%s1 + $0x1740] sm:$0xff]
  %v788 = vld [vmem:[%s1 + $0x1748] sm:$0xff]
  %v789 = vld [vmem:[%s1 + $0x1750] sm:$0xff]
  %v790 = vld [vmem:[%s1 + $0x1758] sm:$0xff]
  %v791 = vld [vmem:[%s1 + $0x1760] sm:$0xff]
  %v792 = vld [vmem:[%s1 + $0x1768] sm:$0xff]
  %v793 = vld [vmem:[%s1 + $0x1770] sm:$0xff]
  %v794 = vld [vmem:[%s1 + $0x1778] sm:$0xff]
  %v795 = vld [vmem:[%s1 + $0x1780] sm:$0xff]
  %v796 = vld [vmem:[%s1 + $0x1788] sm:$0xff]
  %v797 = vld [vmem:[%s1 + $0x1790] sm:$0xff]
  %v798 = vld [vmem:[%s1 + $0x1798] sm:$0xff]
  %v799 = vld [vmem:[%s1 + $0x17a0] sm:$0xff]
  %v800 = vld [vmem:[%s1 + $0x17a8] sm:$0xff]
  %v801 = vld [vmem:[%s1 + $0x17b0] sm:$0xff]
  %v802 = vld [vmem:[%s1 + $0x17b8] sm:$0xff]
  %v803 = vld [vmem:[%s1 + $0x17c0] sm:$0xff]
  %v804 = vld [vmem:[%s1 + $0x17c8] sm:$0xff]
  %v805 = vld [vmem:[%s1 + $0x17d0] sm:$0xff]
  %v806 = vld [vmem:[%s1 + $0x17d8] sm:$0xff]
  %v807 = vld [vmem:[%s1 + $0x17e0] sm:$0xff]
  %v808 = vld [vmem:[%s1 + $0x17e8] sm:$0xff]
  %v809 = vld [vmem:[%s1 + $0x17f0] sm:$0xff]
  %v810 = vld [vmem:[%s1 + $0x17f8] sm:$0xff]
  %v811 = vld [vmem:[%s1 + $0x1800] sm:$0xff]
  %v812 = vld [vmem:[%s1 + $0x1808] sm:$0xff]
  %v813 = vld [vmem:[%s1 + $0x1810] sm:$0xff]
  %v814 = vld [vmem:[%s1 + $0x1818] sm:$0xff]
  %v815 = vld [vmem:[%s1 + $0x1820] sm:$0xff]
  %v816 = vld [vmem:[%s1 + $0x1828] sm:$0xff]
  %v817 = vld [vmem:[%s1 + $0x1830] sm:$0xff]
  %v818 = vld [vmem:[%s1 + $0x1838] sm:$0xff]
  %v819 = vld [vmem:[%s1 + $0x1840] sm:$0xff]
  %v820 = vld [vmem:[%s1 + $0x1848] sm:$0xff]
  %v821 = vld [vmem:[%s1 + $0x1850] sm:$0xff]
  %v822 = vld [vmem:[%s1 + $0x1858] sm:$0xff]
  %v823 = vld [vmem:[%s1 + $0x1860] sm:$0xff]
  %v824 = vld [vmem:[%s1 + $0x1868] sm:$0xff]
  %v825 = vld [vmem:[%s1 + $0x1870] sm:$0xff]
  %v826 = vld [vmem:[%s1 + $0x1878] sm:$0xff]
  %v827 = vld [vmem:[%s1 + $0x1880] sm:$0xff]
  %v828 = vld [vmem:[%s1 + $0x1888] sm:$0xff]
  %v829 = vld [vmem:[%s1 + $0x1890] sm:$0xff]
  %v830 = vld [vmem:[%s1 + $0x1898] sm:$0xff]
  %v831 = vld [vmem:[%s1 + $0x18a0] sm:$0xff]
  %v832 = vld [vmem:[%s1 + $0x18a8] sm:$0xff]
  %v833 = vld [vmem:[%s1 + $0x18b0] sm:$0xff]
  %v834 = vld [vmem:[%s1 + $0x18b8] sm:$0xff]
  %v835 = vld [vmem:[%s1 + $0x18c0] sm:$0xff]
  %v836 = vld [vmem:[%s1 + $0x18c8] sm:$0xff]
  %v837 = vld [vmem:[%s1 + $0x18d0] sm:$0xff]
  %v838 = vld [vmem:[%s1 + $0x18d8] sm:$0xff]
  %v839 = vld [vmem:[%s1 + $0x18e0] sm:$0xff]
  %v840 = vld [vmem:[%s1 + $0x18e8] sm:$0xff]
  %v841 = vld [vmem:[%s1 + $0x18f0] sm:$0xff]
  %v842 = vld [vmem:[%s1 + $0x18f8] sm:$0xff]
  %v843 = vld [vmem:[%s1 + $0x1900] sm:$0xff]
  %v844 = vld [vmem:[%s1 + $0x1908] sm:$0xff]
  %v845 = vld [vmem:[%s1 + $0x1910] sm:$0xff]
  %v846 = vld [vmem:[%s1 + $0x1918] sm:$0xff]
  %v847 = vld [vmem:[%s1 + $0x1920] sm:$0xff]
  %v848 = vld [vmem:[%s1 + $0x1928] sm:$0xff]
  %v849 = vld [vmem:[%s1 + $0x1930] sm:$0xff]
  %v850 = vld [vmem:[%s1 + $0x1938] sm:$0xff]
  %v851 = vld [vmem:[%s1 + $0x1940] sm:$0xff]
  %v852 = vld [vmem:[%s1 + $0x1948] sm:$0xff]
  %v853 = vld [vmem:[%s1 + $0x1950] sm:$0xff]
  %v854 = vld [vmem:[%s1 + $0x1958] sm:$0xff]
  %v855 = vld [vmem:[%s1 + $0x1960] sm:$0xff]
  %v856 = vld [vmem:[%s1 + $0x1968] sm:$0xff]
  %v857 = vld [vmem:[%s1 + $0x1970] sm:$0xff]
  %v858 = vld [vmem:[%s1 + $0x1978] sm:$0xff]
  %v859 = vld [vmem:[%s1 + $0x1980] sm:$0xff]
  %v860 = vld [vmem:[%s1 + $0x1988] sm:$0xff]
  %v861 = vld [vmem:[%s1 + $0x1990] sm:$0xff]
  %v862 = vld [vmem:[%s1 + $0x1998] sm:$0xff]
  %v863 = vld [vmem:[%s1 + $0x19a0] sm:$0xff]
  %v864 = vld [vmem:[%s1 + $0x19a8] sm:$0xff]
  %v865 = vld [vmem:[%s1 + $0x19b0] sm:$0xff]
  %v866 = vld [vmem:[%s1 + $0x19b8] sm:$0xff]
  %v867 = vld [vmem:[%s1 + $0x19c0] sm:$0xff]
  %v868 = vld [vmem:[%s1 + $0x19c8] sm:$0xff]
  %v869 = vld [vmem:[%s1 + $0x19d0] sm:$0xff]
  %v870 = vld [vmem:[%s1 + $0x19d8] sm:$0xff]
  %v871 = vld [vmem:[%s1 + $0x19e0] sm:$0xff]
  %v872 = vld [vmem:[%s1 + $0x19e8] sm:$0xff]
  %v873 = vld [vmem:[%s1 + $0x19f0] sm:$0xff]
  %v874 = vld [vmem:[%s1 + $0x19f8] sm:$0xff]
  %v875 = vld [vmem:[%s1 + $0x1a00] sm:$0xff]
  %v876 = vld [vmem:[%s1 + $0x1a08] sm:$0xff]
  %v877 = vld [vmem:[%s1 + $0x1a10] sm:$0xff]
  %v878 = vld [vmem:[%s1 + $0x1a18] sm:$0xff]
  %v879 = vld [vmem:[%s1 + $0x1a20] sm:$0xff]
  %v880 = vld [vmem:[%s1 + $0x1a28] sm:$0xff]
  %v881 = vld [vmem:[%s1 + $0x1a30] sm:$0xff]
  %v882 = vld [vmem:[%s1 + $0x1a38] sm:$0xff]
  %v883 = vld [vmem:[%s1 + $0x1a40] sm:$0xff]
  %v884 = vld [vmem:[%s1 + $0x1a48] sm:$0xff]
  %v885 = vld [vmem:[%s1 + $0x1a50] sm:$0xff]
  %v886 = vld [vmem:[%s1 + $0x1a58] sm:$0xff]
  %v887 = vld [vmem:[%s1 + $0x1a60] sm:$0xff]
  %v888 = vld [vmem:[%s1 + $0x1a68] sm:$0xff]
  %v889 = vld [vmem:[%s1 + $0x1a70] sm:$0xff]
  %v890 = vld [vmem:[%s1 + $0x1a78] sm:$0xff]
  %v891 = vld [vmem:[%s1 + $0x1a80] sm:$0xff]
  %v892 = vld [vmem:[%s1 + $0x1a88] sm:$0xff]
  %v893 = vld [vmem:[%s1 + $0x1a90] sm:$0xff]
  %v894 = vld [vmem:[%s1 + $0x1a98] sm:$0xff]
  %v895 = vld [vmem:[%s1 + $0x1aa0] sm:$0xff]
  %v896 = vld [vmem:[%s1 + $0x1aa8] sm:$0xff]
  %v897 = vld [vmem:[%s1 + $0x1ab0] sm:$0xff]
  %v898 = vld [vmem:[%s1 + $0x1ab8] sm:$0xff]
  %v899 = vld [vmem:[%s1 + $0x1ac0] sm:$0xff]
  %v900 = vld [vmem:[%s1 + $0x1ac8] sm:$0xff]
  %v901 = vld [vmem:[%s1 + $0x1ad0] sm:$0xff]
  %v902 = vld [vmem:[%s1 + $0x1ad8] sm:$0xff]
  %v903 = vld [vmem:[%s1 + $0x1ae0] sm:$0xff]
  %v904 = vld [vmem:[%s1 + $0x1ae8] sm:$0xff]
  %v905 = vld [vmem:[%s1 + $0x1af0] sm:$0xff]
  %v906 = vld [vmem:[%s1 + $0x1af8] sm:$0xff]
  %v907 = vld [vmem:[%s1 + $0x1b00] sm:$0xff]
  %v908 = vld [vmem:[%s1 + $0x1b08] sm:$0xff]
  %v909 = vld [vmem:[%s1 + $0x1b10] sm:$0xff]
  %v910 = vld [vmem:[%s1 + $0x1b18] sm:$0xff]
  %v911 = vld [vmem:[%s1 + $0x1b20] sm:$0xff]
  %v912 = vld [vmem:[%s1 + $0x1b28] sm:$0xff]
  %v913 = vld [vmem:[%s1 + $0x1b30] sm:$0xff]
  %v914 = vld [vmem:[%s1 + $0x1b38] sm:$0xff]
  %v915 = vld [vmem:[%s1 + $0x1b40] sm:$0xff]
  %v916 = vld [vmem:[%s1 + $0x1b48] sm:$0xff]
  %v917 = vld [vmem:[%s1 + $0x1b50] sm:$0xff]
  %v918 = vld [vmem:[%s1 + $0x1b58] sm:$0xff]
  %v919 = vld [vmem:[%s1 + $0x1b60] sm:$0xff]
  %v920 = vld [vmem:[%s1 + $0x1b68] sm:$0xff]
  %v921 = vld [vmem:[%s1 + $0x1b70] sm:$0xff]
  %v922 = vld [vmem:[%s1 + $0x1b78] sm:$0xff]
  %v923 = vld [vmem:[%s1 + $0x1b80] sm:$0xff]
  %v924 = vld [vmem:[%s1 + $0x1b88] sm:$0xff]
  %v925 = vld [vmem:[%s1 + $0x1b90] sm:$0xff]
  %v926 = vld [vmem:[%s1 + $0x1b98] sm:$0xff]
  %v927 = vld [vmem:[%s1 + $0x1ba0] sm:$0xff]
  %v928 = vld [vmem:[%s1 + $0x1ba8] sm:$0xff]
  %v929 = vld [vmem:[%s1 + $0x1bb0] sm:$0xff]
  %v930 = vld [vmem:[%s1 + $0x1bb8] sm:$0xff]
  %v931 = vld [vmem:[%s1 + $0x1bc0] sm:$0xff]
  %v932 = vld [vmem:[%s1 + $0x1bc8] sm:$0xff]
  %v933 = vld [vmem:[%s1 + $0x1bd0] sm:$0xff]
  %v934 = vld [vmem:[%s1 + $0x1bd8] sm:$0xff]
  %v935 = vld [vmem:[%s1 + $0x1be0] sm:$0xff]
  %v936 = vld [vmem:[%s1 + $0x1be8] sm:$0xff]
  %v937 = vld [vmem:[%s1 + $0x1bf0] sm:$0xff]
  %v938 = vld [vmem:[%s1 + $0x1bf8] sm:$0xff]
  %v939 = vld [vmem:[%s1 + $0x1c00] sm:$0xff]
  %v940 = vld [vmem:[%s1 + $0x1c08] sm:$0xff]
  %v941 = vld [vmem:[%s1 + $0x1c10] sm:$0xff]
  %v942 = vld [vmem:[%s1 + $0x1c18] sm:$0xff]
  %v943 = vld [vmem:[%s1 + $0x1c20] sm:$0xff]
  %v944 = vld [vmem:[%s1 + $0x1c28] sm:$0xff]
  %v945 = vld [vmem:[%s1 + $0x1c30] sm:$0xff]
  %v946 = vld [vmem:[%s1 + $0x1c38] sm:$0xff]
  %v947 = vld [vmem:[%s1 + $0x1c40] sm:$0xff]
  %v948 = vld [vmem:[%s1 + $0x1c48] sm:$0xff]
  %v949 = vld [vmem:[%s1 + $0x1c50] sm:$0xff]
  %v950 = vld [vmem:[%s1 + $0x1c58] sm:$0xff]
  %v951 = vld [vmem:[%s1 + $0x1c60] sm:$0xff]
  %v952 = vld [vmem:[%s1 + $0x1c68] sm:$0xff]
  %v953 = vld [vmem:[%s1 + $0x1c70] sm:$0xff]
  %v954 = vld [vmem:[%s1 + $0x1c78] sm:$0xff]
  %v955 = vld [vmem:[%s1 + $0x1c80] sm:$0xff]
  %v956 = vld [vmem:[%s1 + $0x1c88] sm:$0xff]
  %v957 = vld [vmem:[%s1 + $0x1c90] sm:$0xff]
  %v958 = vld [vmem:[%s1 + $0x1c98] sm:$0xff]
  %v959 = vld [vmem:[%s1 + $0x1ca0] sm:$0xff]
  %v960 = vld [vmem:[%s1 + $0x1ca8] sm:$0xff]
  %v961 = vld [vmem:[%s1 + $0x1cb0] sm:$0xff]
  %v962 = vld [vmem:[%s1 + $0x1cb8] sm:$0xff]
  %v963 = vld [vmem:[%s1 + $0x1cc0] sm:$0xff]
  %v964 = vld [vmem:[%s1 + $0x1cc8] sm:$0xff]
  %v965 = vld [vmem:[%s1 + $0x1cd0] sm:$0xff]
  %v966 = vld [vmem:[%s1 + $0x1cd8] sm:$0xff]
  %v967 = vld [vmem:[%s1 + $0x1ce0] sm:$0xff]
  %v968 = vld [vmem:[%s1 + $0x1ce8] sm:$0xff]
  %v969 = vld [vmem:[%s1 + $0x1cf0] sm:$0xff]
  %v970 = vld [vmem:[%s1 + $0x1cf8] sm:$0xff]
  %v971 = vld [vmem:[%s1 + $0x1d00] sm:$0xff]
  %v972 = vld [vmem:[%s1 + $0x1d08] sm:$0xff]
  %v973 = vld [vmem:[%s1 + $0x1d10] sm:$0xff]
  %v974 = vld [vmem:[%s1 + $0x1d18] sm:$0xff]
  %v975 = vld [vmem:[%s1 + $0x1d20] sm:$0xff]
  %v976 = vld [vmem:[%s1 + $0x1d28] sm:$0xff]
  %v977 = vld [vmem:[%s1 + $0x1d30] sm:$0xff]
  %v978 = vld [vmem:[%s1 + $0x1d38] sm:$0xff]
  %v979 = vld [vmem:[%s1 + $0x1d40] sm:$0xff]
  %v980 = vld [vmem:[%s1 + $0x1d48] sm:$0xff]
  %v981 = vld [vmem:[%s1 + $0x1d50] sm:$0xff]
  %v982 = vld [vmem:[%s1 + $0x1d58] sm:$0xff]
  %v983 = vld [vmem:[%s1 + $0x1d60] sm:$0xff]
  %v984 = vld [vmem:[%s1 + $0x1d68] sm:$0xff]
  %v985 = vld [vmem:[%s1 + $0x1d70] sm:$0xff]
  %v986 = vld [vmem:[%s1 + $0x1d78] sm:$0xff]
  %v987 = vld [vmem:[%s1 + $0x1d80] sm:$0xff]
  %v988 = vld [vmem:[%s1 + $0x1d88] sm:$0xff]
  %v989 = vld [vmem:[%s1 + $0x1d90] sm:$0xff]
  %v990 = vld [vmem:[%s1 + $0x1d98] sm:$0xff]
  %v991 = vld [vmem:[%s1 + $0x1da0] sm:$0xff]
  %v992 = vld [vmem:[%s1 + $0x1da8] sm:$0xff]
  %v993 = vld [vmem:[%s1 + $0x1db0] sm:$0xff]
  %v994 = vld [vmem:[%s1 + $0x1db8] sm:$0xff]
  %v995 = vld [vmem:[%s1 + $0x1dc0] sm:$0xff]
  %v996 = vld [vmem:[%s1 + $0x1dc8] sm:$0xff]
  %v997 = vld [vmem:[%s1 + $0x1dd0] sm:$0xff]
  %v998 = vld [vmem:[%s1 + $0x1dd8] sm:$0xff]
  %v999 = vld [vmem:[%s1 + $0x1de0] sm:$0xff]
  %v1000 = vld [vmem:[%s1 + $0x1de8] sm:$0xff]
  %v1001 = vld [vmem:[%s1 + $0x1df0] sm:$0xff]
  %v1002 = vld [vmem:[%s1 + $0x1df8] sm:$0xff]
  %v1003 = vld [vmem:[%s1 + $0x1e00] sm:$0xff]
  %v1004 = vld [vmem:[%s1 + $0x1e08] sm:$0xff]
  %v1005 = vld [vmem:[%s1 + $0x1e10] sm:$0xff]
  %v1006 = vld [vmem:[%s1 + $0x1e18] sm:$0xff]
  %v1007 = vld [vmem:[%s1 + $0x1e20] sm:$0xff]
  %v1008 = vld [vmem:[%s1 + $0x1e28] sm:$0xff]
  %v1009 = vld [vmem:[%s1 + $0x1e30] sm:$0xff]
  %v1010 = vld [vmem:[%s1 + $0x1e38] sm:$0xff]
  %v1011 = vld [vmem:[%s2] sm:$0xf]
  %v1013 = vlaneseq
  %v1014 = vshrl.u32 %v1013, 7
  %v1015 = vsub.s32 0, %v1014
  %v1016 = vrot.slane %v1011, %v1015
  %v1017 = vlaneseq
  %v1018 = vshrl.u32 %v1017, 7
  %v1019 = vsub.s32 1, %v1018
  %v1020 = vrot.slane %v1011, %v1019
  %v1021 = vlaneseq
  %v1022 = vshrl.u32 %v1021, 7
  %v1023 = vsub.s32 2, %v1022
  %v1024 = vrot.slane %v1011, %v1023
  %v1025 = vlaneseq
  %v1026 = vshrl.u32 %v1025, 7
  %v1027 = vsub.s32 3, %v1026
  %v1028 = vrot.slane %v1011, %v1027
  %v1049 = vunpack.c.l.b16 %v27
  %v1050 = vunpack.c.h.b16 %v27
  %v1051 = vunpack.c.l.b16 %v28
  %v1052 = vunpack.c.h.b16 %v28
  %v1053 = vunpack.c.l.b16 %v29
  %v1054 = vunpack.c.h.b16 %v29
  %v1055 = vunpack.c.l.b16 %v30
  %v1056 = vunpack.c.h.b16 %v30
  %v1057 = vunpack.c.l.b16 %v31
  %v1058 = vunpack.c.h.b16 %v31
  %v1059 = vunpack.c.l.b16 %v32
  %v1060 = vunpack.c.h.b16 %v32
  %v1061 = vunpack.c.l.b16 %v33
  %v1062 = vunpack.c.h.b16 %v33
  %v1063 = vunpack.c.l.b16 %v34
  %v1064 = vunpack.c.h.b16 %v34
  %v1065 = vunpack.c.l.b16 %v35
  %v1066 = vunpack.c.h.b16 %v35
  %v1067 = vunpack.c.l.b16 %v36
  %v1068 = vunpack.c.h.b16 %v36
  %v1069 = vunpack.c.l.b16 %v37
  %v1070 = vunpack.c.h.b16 %v37
  %v1071 = vunpack.c.l.b16 %v38
  %v1072 = vunpack.c.h.b16 %v38
  %v1073 = vunpack.c.l.b16 %v39
  %v1074 = vunpack.c.h.b16 %v39
  %v1075 = vunpack.c.l.b16 %v40
  %v1076 = vunpack.c.h.b16 %v40
  %v1077 = vunpack.c.l.b16 %v41
  %v1078 = vunpack.c.h.b16 %v41
  %v1079 = vunpack.c.l.b16 %v42
  %v1080 = vpack.c.b16 %v1049, %v1049
  %v1081 = vpack.c.b16 %v1050, %v1050
  %v1082 = vpack.c.b16 %v1051, %v1051
  %v1083 = vpack.c.b16 %v1052, %v1052
  %v1084 = vpack.c.b16 %v1053, %v1053
  %v1085 = vpack.c.b16 %v1054, %v1054
  %v1086 = vpack.c.b16 %v1055, %v1055
  %v1087 = vpack.c.b16 %v1056, %v1056
  %v1088 = vpack.c.b16 %v1057, %v1057
  %v1089 = vpack.c.b16 %v1058, %v1058
  %v1090 = vpack.c.b16 %v1059, %v1059
  %v1091 = vpack.c.b16 %v1060, %v1060
  %v1092 = vpack.c.b16 %v1061, %v1061
  %v1093 = vpack.c.b16 %v1062, %v1062
  %v1094 = vpack.c.b16 %v1063, %v1063
  %v1095 = vpack.c.b16 %v1064, %v1064
  %v1096 = vpack.c.b16 %v1065, %v1065
  %v1097 = vpack.c.b16 %v1066, %v1066
  %v1098 = vpack.c.b16 %v1067, %v1067
  %v1099 = vpack.c.b16 %v1068, %v1068
  %v1100 = vpack.c.b16 %v1069, %v1069
  %v1101 = vpack.c.b16 %v1070, %v1070
  %v1102 = vpack.c.b16 %v1071, %v1071
  %v1103 = vpack.c.b16 %v1072, %v1072
  %v1104 = vpack.c.b16 %v1073, %v1073
  %v1105 = vpack.c.b16 %v1074, %v1074
  %v1106 = vpack.c.b16 %v1075, %v1075
  %v1107 = vpack.c.b16 %v1076, %v1076
  %v1108 = vpack.c.b16 %v1077, %v1077
  %v1109 = vpack.c.b16 %v1078, %v1078
  %v1110 = vpack.c.b16 %v1079, %v1079
  %v2109 = vunpack.c.l.b16 %v43
  %v2110 = vunpack.c.h.b16 %v43
  %v2111 = vunpack.c.l.b16 %v44
  %v2112 = vunpack.c.h.b16 %v44
  %v2113 = vunpack.c.l.b16 %v45
  %v2114 = vunpack.c.h.b16 %v45
  %v2115 = vunpack.c.l.b16 %v46
  %v2116 = vunpack.c.h.b16 %v46
  %v2117 = vunpack.c.l.b16 %v47
  %v2118 = vunpack.c.h.b16 %v47
  %v2119 = vunpack.c.l.b16 %v48
  %v2120 = vunpack.c.h.b16 %v48
  %v2121 = vunpack.c.l.b16 %v49
  %v2122 = vunpack.c.h.b16 %v49
  %v2123 = vunpack.c.l.b16 %v50
  %v2124 = vunpack.c.h.b16 %v50
  %v2125 = vunpack.c.l.b16 %v51
  %v2126 = vunpack.c.h.b16 %v51
  %v2127 = vunpack.c.l.b16 %v52
  %v2128 = vunpack.c.h.b16 %v52
  %v2129 = vunpack.c.l.b16 %v53
  %v2130 = vunpack.c.h.b16 %v53
  %v2131 = vunpack.c.l.b16 %v54
  %v2132 = vunpack.c.h.b16 %v54
  %v2133 = vunpack.c.l.b16 %v55
  %v2134 = vunpack.c.h.b16 %v55
  %v2135 = vunpack.c.l.b16 %v56
  %v2136 = vunpack.c.h.b16 %v56
  %v2137 = vunpack.c.l.b16 %v57
  %v2138 = vunpack.c.h.b16 %v57
  %v2139 = vunpack.c.l.b16 %v58
  %v2140 = vunpack.c.h.b16 %v58
  %v2141 = vunpack.c.l.b16 %v59
  %v2142 = vunpack.c.h.b16 %v59
  %v2143 = vunpack.c.l.b16 %v60
  %v2144 = vunpack.c.h.b16 %v60
  %v2145 = vunpack.c.l.b16 %v61
  %v2146 = vunpack.c.h.b16 %v61
  %v2147 = vunpack.c.l.b16 %v62
  %v2148 = vunpack.c.h.b16 %v62
  %v2149 = vunpack.c.l.b16 %v63
  %v2150 = vunpack.c.h.b16 %v63
  %v2151 = vunpack.c.l.b16 %v64
  %v2152 = vunpack.c.h.b16 %v64
  %v2153 = vunpack.c.l.b16 %v65
  %v2154 = vunpack.c.h.b16 %v65
  %v2155 = vunpack.c.l.b16 %v66
  %v2156 = vunpack.c.h.b16 %v66
  %v2157 = vunpack.c.l.b16 %v67
  %v2158 = vunpack.c.h.b16 %v67
  %v2159 = vunpack.c.l.b16 %v68
  %v2160 = vunpack.c.h.b16 %v68
  %v2161 = vunpack.c.l.b16 %v69
  %v2162 = vunpack.c.h.b16 %v69
  %v2163 = vunpack.c.l.b16 %v70
  %v2164 = vunpack.c.h.b16 %v70
  %v2165 = vunpack.c.l.b16 %v71
  %v2166 = vunpack.c.h.b16 %v71
  %v2167 = vunpack.c.l.b16 %v72
  %v2168 = vunpack.c.h.b16 %v72
  %v2169 = vunpack.c.l.b16 %v73
  %v2170 = vunpack.c.h.b16 %v73
  %v2171 = vunpack.c.l.b16 %v74
  %v2172 = vunpack.c.h.b16 %v74
  %v2173 = vunpack.c.l.b16 %v75
  %v2174 = vunpack.c.h.b16 %v75
  %v2175 = vunpack.c.l.b16 %v76
  %v2176 = vunpack.c.h.b16 %v76
  %v2177 = vunpack.c.l.b16 %v77
  %v2178 = vunpack.c.h.b16 %v77
  %v2179 = vunpack.c.l.b16 %v78
  %v2180 = vunpack.c.h.b16 %v78
  %v2181 = vunpack.c.l.b16 %v79
  %v2182 = vunpack.c.h.b16 %v79
  %v2183 = vunpack.c.l.b16 %v80
  %v2184 = vunpack.c.h.b16 %v80
  %v2185 = vunpack.c.l.b16 %v81
  %v2186 = vunpack.c.h.b16 %v81
  %v2187 = vunpack.c.l.b16 %v82
  %v2188 = vunpack.c.h.b16 %v82
  %v2189 = vunpack.c.l.b16 %v83
  %v2190 = vunpack.c.h.b16 %v83
  %v2191 = vunpack.c.l.b16 %v84
  %v2192 = vunpack.c.h.b16 %v84
  %v2193 = vunpack.c.l.b16 %v85
  %v2194 = vunpack.c.h.b16 %v85
  %v2195 = vunpack.c.l.b16 %v86
  %v2196 = vunpack.c.h.b16 %v86
  %v2197 = vunpack.c.l.b16 %v87
  %v2198 = vunpack.c.h.b16 %v87
  %v2199 = vunpack.c.l.b16 %v88
  %v2200 = vunpack.c.h.b16 %v88
  %v2201 = vunpack.c.l.b16 %v89
  %v2202 = vunpack.c.h.b16 %v89
  %v2203 = vunpack.c.l.b16 %v90
  %v2204 = vunpack.c.h.b16 %v90
  %v2205 = vunpack.c.l.b16 %v91
  %v2206 = vunpack.c.h.b16 %v91
  %v2207 = vunpack.c.l.b16 %v92
  %v2208 = vunpack.c.h.b16 %v92
  %v2209 = vunpack.c.l.b16 %v93
  %v2210 = vunpack.c.h.b16 %v93
  %v2211 = vunpack.c.l.b16 %v94
  %v2212 = vunpack.c.h.b16 %v94
  %v2213 = vunpack.c.l.b16 %v95
  %v2214 = vunpack.c.h.b16 %v95
  %v2215 = vunpack.c.l.b16 %v96
  %v2216 = vunpack.c.h.b16 %v96
  %v2217 = vunpack.c.l.b16 %v97
  %v2218 = vunpack.c.h.b16 %v97
  %v2219 = vunpack.c.l.b16 %v98
  %v2220 = vunpack.c.h.b16 %v98
  %v2221 = vunpack.c.l.b16 %v99
  %v2222 = vunpack.c.h.b16 %v99
  %v2223 = vunpack.c.l.b16 %v100
  %v2224 = vunpack.c.h.b16 %v100
  %v2225 = vunpack.c.l.b16 %v101
  %v2226 = vunpack.c.h.b16 %v101
  %v2227 = vunpack.c.l.b16 %v102
  %v2228 = vunpack.c.h.b16 %v102
  %v2229 = vunpack.c.l.b16 %v103
  %v2230 = vunpack.c.h.b16 %v103
  %v2231 = vunpack.c.l.b16 %v104
  %v2232 = vunpack.c.h.b16 %v104
  %v2233 = vunpack.c.l.b16 %v105
  %v2234 = vunpack.c.h.b16 %v105
  %v2235 = vunpack.c.l.b16 %v106
  %v2236 = vunpack.c.h.b16 %v106
  %v2237 = vunpack.c.l.b16 %v107
  %v2238 = vunpack.c.h.b16 %v107
  %v2239 = vunpack.c.l.b16 %v108
  %v2240 = vunpack.c.h.b16 %v108
  %v2241 = vunpack.c.l.b16 %v109
  %v2242 = vunpack.c.h.b16 %v109
  %v2243 = vunpack.c.l.b16 %v110
  %v2244 = vunpack.c.h.b16 %v110
  %v2245 = vunpack.c.l.b16 %v111
  %v2246 = vunpack.c.h.b16 %v111
  %v2247 = vunpack.c.l.b16 %v112
  %v2248 = vunpack.c.h.b16 %v112
  %v2249 = vunpack.c.l.b16 %v113
  %v2250 = vunpack.c.h.b16 %v113
  %v2251 = vunpack.c.l.b16 %v114
  %v2252 = vunpack.c.h.b16 %v114
  %v2253 = vunpack.c.l.b16 %v115
  %v2254 = vunpack.c.h.b16 %v115
  %v2255 = vunpack.c.l.b16 %v116
  %v2256 = vunpack.c.h.b16 %v116
  %v2257 = vunpack.c.l.b16 %v117
  %v2258 = vunpack.c.h.b16 %v117
  %v2259 = vunpack.c.l.b16 %v118
  %v2260 = vunpack.c.h.b16 %v118
  %v2261 = vunpack.c.l.b16 %v119
  %v2262 = vunpack.c.h.b16 %v119
  %v2263 = vunpack.c.l.b16 %v120
  %v2264 = vunpack.c.h.b16 %v120
  %v2265 = vunpack.c.l.b16 %v121
  %v2266 = vunpack.c.h.b16 %v121
  %v2267 = vunpack.c.l.b16 %v122
  %v2268 = vunpack.c.h.b16 %v122
  %v2269 = vunpack.c.l.b16 %v123
  %v2270 = vunpack.c.h.b16 %v123
  %v2271 = vunpack.c.l.b16 %v124
  %v2272 = vunpack.c.h.b16 %v124
  %v2273 = vunpack.c.l.b16 %v125
  %v2274 = vunpack.c.h.b16 %v125
  %v2275 = vunpack.c.l.b16 %v126
  %v2276 = vunpack.c.h.b16 %v126
  %v2277 = vunpack.c.l.b16 %v127
  %v2278 = vunpack.c.h.b16 %v127
  %v2279 = vunpack.c.l.b16 %v128
  %v2280 = vunpack.c.h.b16 %v128
  %v2281 = vunpack.c.l.b16 %v129
  %v2282 = vunpack.c.h.b16 %v129
  %v2283 = vunpack.c.l.b16 %v130
  %v2284 = vunpack.c.h.b16 %v130
  %v2285 = vunpack.c.l.b16 %v131
  %v2286 = vunpack.c.h.b16 %v131
  %v2287 = vunpack.c.l.b16 %v132
  %v2288 = vunpack.c.h.b16 %v132
  %v2289 = vunpack.c.l.b16 %v133
  %v2290 = vunpack.c.h.b16 %v133
  %v2291 = vunpack.c.l.b16 %v134
  %v2292 = vunpack.c.h.b16 %v134
  %v2293 = vunpack.c.l.b16 %v135
  %v2294 = vunpack.c.h.b16 %v135
  %v2295 = vunpack.c.l.b16 %v136
  %v2296 = vunpack.c.h.b16 %v136
  %v2297 = vunpack.c.l.b16 %v137
  %v2298 = vunpack.c.h.b16 %v137
  %v2299 = vunpack.c.l.b16 %v138
  %v2300 = vunpack.c.h.b16 %v138
  %v2301 = vunpack.c.l.b16 %v139
  %v2302 = vunpack.c.h.b16 %v139
  %v2303 = vunpack.c.l.b16 %v140
  %v2304 = vunpack.c.h.b16 %v140
  %v2305 = vunpack.c.l.b16 %v141
  %v2306 = vunpack.c.h.b16 %v141
  %v2307 = vunpack.c.l.b16 %v142
  %v2308 = vunpack.c.h.b16 %v142
  %v2309 = vunpack.c.l.b16 %v143
  %v2310 = vunpack.c.h.b16 %v143
  %v2311 = vunpack.c.l.b16 %v144
  %v2312 = vunpack.c.h.b16 %v144
  %v2313 = vunpack.c.l.b16 %v145
  %v2314 = vunpack.c.h.b16 %v145
  %v2315 = vunpack.c.l.b16 %v146
  %v2316 = vunpack.c.h.b16 %v146
  %v2317 = vunpack.c.l.b16 %v147
  %v2318 = vunpack.c.h.b16 %v147
  %v2319 = vunpack.c.l.b16 %v148
  %v2320 = vunpack.c.h.b16 %v148
  %v2321 = vunpack.c.l.b16 %v149
  %v2322 = vunpack.c.h.b16 %v149
  %v2323 = vunpack.c.l.b16 %v150
  %v2324 = vunpack.c.h.b16 %v150
  %v2325 = vunpack.c.l.b16 %v151
  %v2326 = vunpack.c.h.b16 %v151
  %v2327 = vunpack.c.l.b16 %v152
  %v2328 = vunpack.c.h.b16 %v152
  %v2329 = vunpack.c.l.b16 %v153
  %v2330 = vunpack.c.h.b16 %v153
  %v2331 = vunpack.c.l.b16 %v154
  %v2332 = vunpack.c.h.b16 %v154
  %v2333 = vunpack.c.l.b16 %v155
  %v2334 = vunpack.c.h.b16 %v155
  %v2335 = vunpack.c.l.b16 %v156
  %v2336 = vunpack.c.h.b16 %v156
  %v2337 = vunpack.c.l.b16 %v157
  %v2338 = vunpack.c.h.b16 %v157
  %v2339 = vunpack.c.l.b16 %v158
  %v2340 = vunpack.c.h.b16 %v158
  %v2341 = vunpack.c.l.b16 %v159
  %v2342 = vunpack.c.h.b16 %v159
  %v2343 = vunpack.c.l.b16 %v160
  %v2344 = vunpack.c.h.b16 %v160
  %v2345 = vunpack.c.l.b16 %v161
  %v2346 = vunpack.c.h.b16 %v161
  %v2347 = vunpack.c.l.b16 %v162
  %v2348 = vunpack.c.h.b16 %v162
  %v2349 = vunpack.c.l.b16 %v163
  %v2350 = vunpack.c.h.b16 %v163
  %v2351 = vunpack.c.l.b16 %v164
  %v2352 = vunpack.c.h.b16 %v164
  %v2353 = vunpack.c.l.b16 %v165
  %v2354 = vunpack.c.h.b16 %v165
  %v2355 = vunpack.c.l.b16 %v166
  %v2356 = vunpack.c.h.b16 %v166
  %v2357 = vunpack.c.l.b16 %v167
  %v2358 = vunpack.c.h.b16 %v167
  %v2359 = vunpack.c.l.b16 %v168
  %v2360 = vunpack.c.h.b16 %v168
  %v2361 = vunpack.c.l.b16 %v169
  %v2362 = vunpack.c.h.b16 %v169
  %v2363 = vunpack.c.l.b16 %v170
  %v2364 = vunpack.c.h.b16 %v170
  %v2365 = vunpack.c.l.b16 %v171
  %v2366 = vunpack.c.h.b16 %v171
  %v2367 = vunpack.c.l.b16 %v172
  %v2368 = vunpack.c.h.b16 %v172
  %v2369 = vunpack.c.l.b16 %v173
  %v2370 = vunpack.c.h.b16 %v173
  %v2371 = vunpack.c.l.b16 %v174
  %v2372 = vunpack.c.h.b16 %v174
  %v2373 = vunpack.c.l.b16 %v175
  %v2374 = vunpack.c.h.b16 %v175
  %v2375 = vunpack.c.l.b16 %v176
  %v2376 = vunpack.c.h.b16 %v176
  %v2377 = vunpack.c.l.b16 %v177
  %v2378 = vunpack.c.h.b16 %v177
  %v2379 = vunpack.c.l.b16 %v178
  %v2380 = vunpack.c.h.b16 %v178
  %v2381 = vunpack.c.l.b16 %v179
  %v2382 = vunpack.c.h.b16 %v179
  %v2383 = vunpack.c.l.b16 %v180
  %v2384 = vunpack.c.h.b16 %v180
  %v2385 = vunpack.c.l.b16 %v181
  %v2386 = vunpack.c.h.b16 %v181
  %v2387 = vunpack.c.l.b16 %v182
  %v2388 = vunpack.c.h.b16 %v182
  %v2389 = vunpack.c.l.b16 %v183
  %v2390 = vunpack.c.h.b16 %v183
  %v2391 = vunpack.c.l.b16 %v184
  %v2392 = vunpack.c.h.b16 %v184
  %v2393 = vunpack.c.l.b16 %v185
  %v2394 = vunpack.c.h.b16 %v185
  %v2395 = vunpack.c.l.b16 %v186
  %v2396 = vunpack.c.h.b16 %v186
  %v2397 = vunpack.c.l.b16 %v187
  %v2398 = vunpack.c.h.b16 %v187
  %v2399 = vunpack.c.l.b16 %v188
  %v2400 = vunpack.c.h.b16 %v188
  %v2401 = vunpack.c.l.b16 %v189
  %v2402 = vunpack.c.h.b16 %v189
  %v2403 = vunpack.c.l.b16 %v190
  %v2404 = vunpack.c.h.b16 %v190
  %v2405 = vunpack.c.l.b16 %v191
  %v2406 = vunpack.c.h.b16 %v191
  %v2407 = vunpack.c.l.b16 %v192
  %v2408 = vunpack.c.h.b16 %v192
  %v2409 = vunpack.c.l.b16 %v193
  %v2410 = vunpack.c.h.b16 %v193
  %v2411 = vunpack.c.l.b16 %v194
  %v2412 = vunpack.c.h.b16 %v194
  %v2413 = vunpack.c.l.b16 %v195
  %v2414 = vunpack.c.h.b16 %v195
  %v2415 = vunpack.c.l.b16 %v196
  %v2416 = vunpack.c.h.b16 %v196
  %v2417 = vunpack.c.l.b16 %v197
  %v2418 = vunpack.c.h.b16 %v197
  %v2419 = vunpack.c.l.b16 %v198
  %v2420 = vunpack.c.h.b16 %v198
  %v2421 = vunpack.c.l.b16 %v199
  %v2422 = vunpack.c.h.b16 %v199
  %v2423 = vunpack.c.l.b16 %v200
  %v2424 = vunpack.c.h.b16 %v200
  %v2425 = vunpack.c.l.b16 %v201
  %v2426 = vunpack.c.h.b16 %v201
  %v2427 = vunpack.c.l.b16 %v202
  %v2428 = vunpack.c.h.b16 %v202
  %v2429 = vunpack.c.l.b16 %v203
  %v2430 = vunpack.c.h.b16 %v203
  %v2431 = vunpack.c.l.b16 %v204
  %v2432 = vunpack.c.h.b16 %v204
  %v2433 = vunpack.c.l.b16 %v205
  %v2434 = vunpack.c.h.b16 %v205
  %v2435 = vunpack.c.l.b16 %v206
  %v2436 = vunpack.c.h.b16 %v206
  %v2437 = vunpack.c.l.b16 %v207
  %v2438 = vunpack.c.h.b16 %v207
  %v2439 = vunpack.c.l.b16 %v208
  %v2440 = vunpack.c.h.b16 %v208
  %v2441 = vunpack.c.l.b16 %v209
  %v2442 = vunpack.c.h.b16 %v209
  %v2443 = vunpack.c.l.b16 %v210
  %v2444 = vunpack.c.h.b16 %v210
  %v2445 = vunpack.c.l.b16 %v211
  %v2446 = vunpack.c.h.b16 %v211
  %v2447 = vunpack.c.l.b16 %v212
  %v2448 = vunpack.c.h.b16 %v212
  %v2449 = vunpack.c.l.b16 %v213
  %v2450 = vunpack.c.h.b16 %v213
  %v2451 = vunpack.c.l.b16 %v214
  %v2452 = vunpack.c.h.b16 %v214
  %v2453 = vunpack.c.l.b16 %v215
  %v2454 = vunpack.c.h.b16 %v215
  %v2455 = vunpack.c.l.b16 %v216
  %v2456 = vunpack.c.h.b16 %v216
  %v2457 = vunpack.c.l.b16 %v217
  %v2458 = vunpack.c.h.b16 %v217
  %v2459 = vunpack.c.l.b16 %v218
  %v2460 = vunpack.c.h.b16 %v218
  %v2461 = vunpack.c.l.b16 %v219
  %v2462 = vunpack.c.h.b16 %v219
  %v2463 = vunpack.c.l.b16 %v220
  %v2464 = vunpack.c.h.b16 %v220
  %v2465 = vunpack.c.l.b16 %v221
  %v2466 = vunpack.c.h.b16 %v221
  %v2467 = vunpack.c.l.b16 %v222
  %v2468 = vunpack.c.h.b16 %v222
  %v2469 = vunpack.c.l.b16 %v223
  %v2470 = vunpack.c.h.b16 %v223
  %v2471 = vunpack.c.l.b16 %v224
  %v2472 = vunpack.c.h.b16 %v224
  %v2473 = vunpack.c.l.b16 %v225
  %v2474 = vunpack.c.h.b16 %v225
  %v2475 = vunpack.c.l.b16 %v226
  %v2476 = vunpack.c.h.b16 %v226
  %v2477 = vunpack.c.l.b16 %v227
  %v2478 = vunpack.c.h.b16 %v227
  %v2479 = vunpack.c.l.b16 %v228
  %v2480 = vunpack.c.h.b16 %v228
  %v2481 = vunpack.c.l.b16 %v229
  %v2482 = vunpack.c.h.b16 %v229
  %v2483 = vunpack.c.l.b16 %v230
  %v2484 = vunpack.c.h.b16 %v230
  %v2485 = vunpack.c.l.b16 %v231
  %v2486 = vunpack.c.h.b16 %v231
  %v2487 = vunpack.c.l.b16 %v232
  %v2488 = vunpack.c.h.b16 %v232
  %v2489 = vunpack.c.l.b16 %v233
  %v2490 = vunpack.c.h.b16 %v233
  %v2491 = vunpack.c.l.b16 %v234
  %v2492 = vunpack.c.h.b16 %v234
  %v2493 = vunpack.c.l.b16 %v235
  %v2494 = vunpack.c.h.b16 %v235
  %v2495 = vunpack.c.l.b16 %v236
  %v2496 = vunpack.c.h.b16 %v236
  %v2497 = vunpack.c.l.b16 %v237
  %v2498 = vunpack.c.h.b16 %v237
  %v2499 = vunpack.c.l.b16 %v238
  %v2500 = vunpack.c.h.b16 %v238
  %v2501 = vunpack.c.l.b16 %v239
  %v2502 = vunpack.c.h.b16 %v239
  %v2503 = vunpack.c.l.b16 %v240
  %v2504 = vunpack.c.h.b16 %v240
  %v2505 = vunpack.c.l.b16 %v241
  %v2506 = vunpack.c.h.b16 %v241
  %v2507 = vunpack.c.l.b16 %v242
  %v2508 = vunpack.c.h.b16 %v242
  %v2509 = vunpack.c.l.b16 %v243
  %v2510 = vunpack.c.h.b16 %v243
  %v2511 = vunpack.c.l.b16 %v244
  %v2512 = vunpack.c.h.b16 %v244
  %v2513 = vunpack.c.l.b16 %v245
  %v2514 = vunpack.c.h.b16 %v245
  %v2515 = vunpack.c.l.b16 %v246
  %v2516 = vunpack.c.h.b16 %v246
  %v2517 = vunpack.c.l.b16 %v247
  %v2518 = vunpack.c.h.b16 %v247
  %v2519 = vunpack.c.l.b16 %v248
  %v2520 = vunpack.c.h.b16 %v248
  %v2521 = vunpack.c.l.b16 %v249
  %v2522 = vunpack.c.h.b16 %v249
  %v2523 = vunpack.c.l.b16 %v250
  %v2524 = vunpack.c.h.b16 %v250
  %v2525 = vunpack.c.l.b16 %v251
  %v2526 = vunpack.c.h.b16 %v251
  %v2527 = vunpack.c.l.b16 %v252
  %v2528 = vunpack.c.h.b16 %v252
  %v2529 = vunpack.c.l.b16 %v253
  %v2530 = vunpack.c.h.b16 %v253
  %v2531 = vunpack.c.l.b16 %v254
  %v2532 = vunpack.c.h.b16 %v254
  %v2533 = vunpack.c.l.b16 %v255
  %v2534 = vunpack.c.h.b16 %v255
  %v2535 = vunpack.c.l.b16 %v256
  %v2536 = vunpack.c.h.b16 %v256
  %v2537 = vunpack.c.l.b16 %v257
  %v2538 = vunpack.c.h.b16 %v257
  %v2539 = vunpack.c.l.b16 %v258
  %v2540 = vunpack.c.h.b16 %v258
  %v2541 = vunpack.c.l.b16 %v259
  %v2542 = vunpack.c.h.b16 %v259
  %v2543 = vunpack.c.l.b16 %v260
  %v2544 = vunpack.c.h.b16 %v260
  %v2545 = vunpack.c.l.b16 %v261
  %v2546 = vunpack.c.h.b16 %v261
  %v2547 = vunpack.c.l.b16 %v262
  %v2548 = vunpack.c.h.b16 %v262
  %v2549 = vunpack.c.l.b16 %v263
  %v2550 = vunpack.c.h.b16 %v263
  %v2551 = vunpack.c.l.b16 %v264
  %v2552 = vunpack.c.h.b16 %v264
  %v2553 = vunpack.c.l.b16 %v265
  %v2554 = vunpack.c.h.b16 %v265
  %v2555 = vunpack.c.l.b16 %v266
  %v2556 = vunpack.c.h.b16 %v266
  %v2557 = vunpack.c.l.b16 %v267
  %v2558 = vunpack.c.h.b16 %v267
  %v2559 = vunpack.c.l.b16 %v268
  %v2560 = vunpack.c.h.b16 %v268
  %v2561 = vunpack.c.l.b16 %v269
  %v2562 = vunpack.c.h.b16 %v269
  %v2563 = vunpack.c.l.b16 %v270
  %v2564 = vunpack.c.h.b16 %v270
  %v2565 = vunpack.c.l.b16 %v271
  %v2566 = vunpack.c.h.b16 %v271
  %v2567 = vunpack.c.l.b16 %v272
  %v2568 = vunpack.c.h.b16 %v272
  %v2569 = vunpack.c.l.b16 %v273
  %v2570 = vunpack.c.h.b16 %v273
  %v2571 = vunpack.c.l.b16 %v274
  %v2572 = vunpack.c.h.b16 %v274
  %v2573 = vunpack.c.l.b16 %v275
  %v2574 = vunpack.c.h.b16 %v275
  %v2575 = vunpack.c.l.b16 %v276
  %v2576 = vunpack.c.h.b16 %v276
  %v2577 = vunpack.c.l.b16 %v277
  %v2578 = vunpack.c.h.b16 %v277
  %v2579 = vunpack.c.l.b16 %v278
  %v2580 = vunpack.c.h.b16 %v278
  %v2581 = vunpack.c.l.b16 %v279
  %v2582 = vunpack.c.h.b16 %v279
  %v2583 = vunpack.c.l.b16 %v280
  %v2584 = vunpack.c.h.b16 %v280
  %v2585 = vunpack.c.l.b16 %v281
  %v2586 = vunpack.c.h.b16 %v281
  %v2587 = vunpack.c.l.b16 %v282
  %v2588 = vunpack.c.h.b16 %v282
  %v2589 = vunpack.c.l.b16 %v283
  %v2590 = vunpack.c.h.b16 %v283
  %v2591 = vunpack.c.l.b16 %v284
  %v2592 = vunpack.c.h.b16 %v284
  %v2593 = vunpack.c.l.b16 %v285
  %v2594 = vunpack.c.h.b16 %v285
  %v2595 = vunpack.c.l.b16 %v286
  %v2596 = vunpack.c.h.b16 %v286
  %v2597 = vunpack.c.l.b16 %v287
  %v2598 = vunpack.c.h.b16 %v287
  %v2599 = vunpack.c.l.b16 %v288
  %v2600 = vunpack.c.h.b16 %v288
  %v2601 = vunpack.c.l.b16 %v289
  %v2602 = vunpack.c.h.b16 %v289
  %v2603 = vunpack.c.l.b16 %v290
  %v2604 = vunpack.c.h.b16 %v290
  %v2605 = vunpack.c.l.b16 %v291
  %v2606 = vunpack.c.h.b16 %v291
  %v2607 = vunpack.c.l.b16 %v292
  %v2608 = vunpack.c.h.b16 %v292
  %v2609 = vunpack.c.l.b16 %v293
  %v2610 = vunpack.c.h.b16 %v293
  %v2611 = vunpack.c.l.b16 %v294
  %v2612 = vunpack.c.h.b16 %v294
  %v2613 = vunpack.c.l.b16 %v295
  %v2614 = vunpack.c.h.b16 %v295
  %v2615 = vunpack.c.l.b16 %v296
  %v2616 = vunpack.c.h.b16 %v296
  %v2617 = vunpack.c.l.b16 %v297
  %v2618 = vunpack.c.h.b16 %v297
  %v2619 = vunpack.c.l.b16 %v298
  %v2620 = vunpack.c.h.b16 %v298
  %v2621 = vunpack.c.l.b16 %v299
  %v2622 = vunpack.c.h.b16 %v299
  %v2623 = vunpack.c.l.b16 %v300
  %v2624 = vunpack.c.h.b16 %v300
  %v2625 = vunpack.c.l.b16 %v301
  %v2626 = vunpack.c.h.b16 %v301
  %v2627 = vunpack.c.l.b16 %v302
  %v2628 = vunpack.c.h.b16 %v302
  %v2629 = vunpack.c.l.b16 %v303
  %v2630 = vunpack.c.h.b16 %v303
  %v2631 = vunpack.c.l.b16 %v304
  %v2632 = vunpack.c.h.b16 %v304
  %v2633 = vunpack.c.l.b16 %v305
  %v2634 = vunpack.c.h.b16 %v305
  %v2635 = vunpack.c.l.b16 %v306
  %v2636 = vunpack.c.h.b16 %v306
  %v2637 = vunpack.c.l.b16 %v307
  %v2638 = vunpack.c.h.b16 %v307
  %v2639 = vunpack.c.l.b16 %v308
  %v2640 = vunpack.c.h.b16 %v308
  %v2641 = vunpack.c.l.b16 %v309
  %v2642 = vunpack.c.h.b16 %v309
  %v2643 = vunpack.c.l.b16 %v310
  %v2644 = vunpack.c.h.b16 %v310
  %v2645 = vunpack.c.l.b16 %v311
  %v2646 = vunpack.c.h.b16 %v311
  %v2647 = vunpack.c.l.b16 %v312
  %v2648 = vunpack.c.h.b16 %v312
  %v2649 = vunpack.c.l.b16 %v313
  %v2650 = vunpack.c.h.b16 %v313
  %v2651 = vunpack.c.l.b16 %v314
  %v2652 = vunpack.c.h.b16 %v314
  %v2653 = vunpack.c.l.b16 %v315
  %v2654 = vunpack.c.h.b16 %v315
  %v2655 = vunpack.c.l.b16 %v316
  %v2656 = vunpack.c.h.b16 %v316
  %v2657 = vunpack.c.l.b16 %v317
  %v2658 = vunpack.c.h.b16 %v317
  %v2659 = vunpack.c.l.b16 %v318
  %v2660 = vunpack.c.h.b16 %v318
  %v2661 = vunpack.c.l.b16 %v319
  %v2662 = vunpack.c.h.b16 %v319
  %v2663 = vunpack.c.l.b16 %v320
  %v2664 = vunpack.c.h.b16 %v320
  %v2665 = vunpack.c.l.b16 %v321
  %v2666 = vunpack.c.h.b16 %v321
  %v2667 = vunpack.c.l.b16 %v322
  %v2668 = vunpack.c.h.b16 %v322
  %v2669 = vunpack.c.l.b16 %v323
  %v2670 = vunpack.c.h.b16 %v323
  %v2671 = vunpack.c.l.b16 %v324
  %v2672 = vunpack.c.h.b16 %v324
  %v2673 = vunpack.c.l.b16 %v325
  %v2674 = vunpack.c.h.b16 %v325
  %v2675 = vunpack.c.l.b16 %v326
  %v2676 = vunpack.c.h.b16 %v326
  %v2677 = vunpack.c.l.b16 %v327
  %v2678 = vunpack.c.h.b16 %v327
  %v2679 = vunpack.c.l.b16 %v328
  %v2680 = vunpack.c.h.b16 %v328
  %v2681 = vunpack.c.l.b16 %v329
  %v2682 = vunpack.c.h.b16 %v329
  %v2683 = vunpack.c.l.b16 %v330
  %v2684 = vunpack.c.h.b16 %v330
  %v2685 = vunpack.c.l.b16 %v331
  %v2686 = vunpack.c.h.b16 %v331
  %v2687 = vunpack.c.l.b16 %v332
  %v2688 = vunpack.c.h.b16 %v332
  %v2689 = vunpack.c.l.b16 %v333
  %v2690 = vunpack.c.h.b16 %v333
  %v2691 = vunpack.c.l.b16 %v334
  %v2692 = vunpack.c.h.b16 %v334
  %v2693 = vunpack.c.l.b16 %v335
  %v2694 = vunpack.c.h.b16 %v335
  %v2695 = vunpack.c.l.b16 %v336
  %v2696 = vunpack.c.h.b16 %v336
  %v2697 = vunpack.c.l.b16 %v337
  %v2698 = vunpack.c.h.b16 %v337
  %v2699 = vunpack.c.l.b16 %v338
  %v2700 = vunpack.c.h.b16 %v338
  %v2701 = vunpack.c.l.b16 %v339
  %v2702 = vunpack.c.h.b16 %v339
  %v2703 = vunpack.c.l.b16 %v340
  %v2704 = vunpack.c.h.b16 %v340
  %v2705 = vunpack.c.l.b16 %v341
  %v2706 = vunpack.c.h.b16 %v341
  %v2707 = vunpack.c.l.b16 %v342
  %v2708 = vunpack.c.h.b16 %v342
  %v2709 = vunpack.c.l.b16 %v343
  %v2710 = vunpack.c.h.b16 %v343
  %v2711 = vunpack.c.l.b16 %v344
  %v2712 = vunpack.c.h.b16 %v344
  %v2713 = vunpack.c.l.b16 %v345
  %v2714 = vunpack.c.h.b16 %v345
  %v2715 = vunpack.c.l.b16 %v346
  %v2716 = vunpack.c.h.b16 %v346
  %v2717 = vunpack.c.l.b16 %v347
  %v2718 = vunpack.c.h.b16 %v347
  %v2719 = vunpack.c.l.b16 %v348
  %v2720 = vunpack.c.h.b16 %v348
  %v2721 = vunpack.c.l.b16 %v349
  %v2722 = vunpack.c.h.b16 %v349
  %v2723 = vunpack.c.l.b16 %v350
  %v2724 = vunpack.c.h.b16 %v350
  %v2725 = vunpack.c.l.b16 %v351
  %v2726 = vunpack.c.h.b16 %v351
  %v2727 = vunpack.c.l.b16 %v352
  %v2728 = vunpack.c.h.b16 %v352
  %v2729 = vunpack.c.l.b16 %v353
  %v2730 = vunpack.c.h.b16 %v353
  %v2731 = vunpack.c.l.b16 %v354
  %v2732 = vunpack.c.h.b16 %v354
  %v2733 = vunpack.c.l.b16 %v355
  %v2734 = vunpack.c.h.b16 %v355
  %v2735 = vunpack.c.l.b16 %v356
  %v2736 = vunpack.c.h.b16 %v356
  %v2737 = vunpack.c.l.b16 %v357
  %v2738 = vunpack.c.h.b16 %v357
  %v2739 = vunpack.c.l.b16 %v358
  %v2740 = vunpack.c.h.b16 %v358
  %v2741 = vunpack.c.l.b16 %v359
  %v2742 = vunpack.c.h.b16 %v359
  %v2743 = vunpack.c.l.b16 %v360
  %v2744 = vunpack.c.h.b16 %v360
  %v2745 = vunpack.c.l.b16 %v361
  %v2746 = vunpack.c.h.b16 %v361
  %v2747 = vunpack.c.l.b16 %v362
  %v2748 = vunpack.c.h.b16 %v362
  %v2749 = vunpack.c.l.b16 %v363
  %v2750 = vunpack.c.h.b16 %v363
  %v2751 = vunpack.c.l.b16 %v364
  %v2752 = vunpack.c.h.b16 %v364
  %v2753 = vunpack.c.l.b16 %v365
  %v2754 = vunpack.c.h.b16 %v365
  %v2755 = vunpack.c.l.b16 %v366
  %v2756 = vunpack.c.h.b16 %v366
  %v2757 = vunpack.c.l.b16 %v367
  %v2758 = vunpack.c.h.b16 %v367
  %v2759 = vunpack.c.l.b16 %v368
  %v2760 = vunpack.c.h.b16 %v368
  %v2761 = vunpack.c.l.b16 %v369
  %v2762 = vunpack.c.h.b16 %v369
  %v2763 = vunpack.c.l.b16 %v370
  %v2764 = vunpack.c.h.b16 %v370
  %v2765 = vunpack.c.l.b16 %v371
  %v2766 = vunpack.c.h.b16 %v371
  %v2767 = vunpack.c.l.b16 %v372
  %v2768 = vunpack.c.h.b16 %v372
  %v2769 = vunpack.c.l.b16 %v373
  %v2770 = vunpack.c.h.b16 %v373
  %v2771 = vunpack.c.l.b16 %v374
  %v2772 = vunpack.c.h.b16 %v374
  %v2773 = vunpack.c.l.b16 %v375
  %v2774 = vunpack.c.h.b16 %v375
  %v2775 = vunpack.c.l.b16 %v376
  %v2776 = vunpack.c.h.b16 %v376
  %v2777 = vunpack.c.l.b16 %v377
  %v2778 = vunpack.c.h.b16 %v377
  %v2779 = vunpack.c.l.b16 %v378
  %v2780 = vunpack.c.h.b16 %v378
  %v2781 = vunpack.c.l.b16 %v379
  %v2782 = vunpack.c.h.b16 %v379
  %v2783 = vunpack.c.l.b16 %v380
  %v2784 = vunpack.c.h.b16 %v380
  %v2785 = vunpack.c.l.b16 %v381
  %v2786 = vunpack.c.h.b16 %v381
  %v2787 = vunpack.c.l.b16 %v382
  %v2788 = vunpack.c.h.b16 %v382
  %v2789 = vunpack.c.l.b16 %v383
  %v2790 = vunpack.c.h.b16 %v383
  %v2791 = vunpack.c.l.b16 %v384
  %v2792 = vunpack.c.h.b16 %v384
  %v2793 = vunpack.c.l.b16 %v385
  %v2794 = vunpack.c.h.b16 %v385
  %v2795 = vunpack.c.l.b16 %v386
  %v2796 = vunpack.c.h.b16 %v386
  %v2797 = vunpack.c.l.b16 %v387
  %v2798 = vunpack.c.h.b16 %v387
  %v2799 = vunpack.c.l.b16 %v388
  %v2800 = vunpack.c.h.b16 %v388
  %v2801 = vunpack.c.l.b16 %v389
  %v2802 = vunpack.c.h.b16 %v389
  %v2803 = vunpack.c.l.b16 %v390
  %v2804 = vunpack.c.h.b16 %v390
  %v2805 = vunpack.c.l.b16 %v391
  %v2806 = vunpack.c.h.b16 %v391
  %v2807 = vunpack.c.l.b16 %v392
  %v2808 = vunpack.c.h.b16 %v392
  %v2809 = vunpack.c.l.b16 %v393
  %v2810 = vunpack.c.h.b16 %v393
  %v2811 = vunpack.c.l.b16 %v394
  %v2812 = vunpack.c.h.b16 %v394
  %v2813 = vunpack.c.l.b16 %v395
  %v2814 = vunpack.c.h.b16 %v395
  %v2815 = vunpack.c.l.b16 %v396
  %v2816 = vunpack.c.h.b16 %v396
  %v2817 = vunpack.c.l.b16 %v397
  %v2818 = vunpack.c.h.b16 %v397
  %v2819 = vunpack.c.l.b16 %v398
  %v2820 = vunpack.c.h.b16 %v398
  %v2821 = vunpack.c.l.b16 %v399
  %v2822 = vunpack.c.h.b16 %v399
  %v2823 = vunpack.c.l.b16 %v400
  %v2824 = vunpack.c.h.b16 %v400
  %v2825 = vunpack.c.l.b16 %v401
  %v2826 = vunpack.c.h.b16 %v401
  %v2827 = vunpack.c.l.b16 %v402
  %v2828 = vunpack.c.h.b16 %v402
  %v2829 = vunpack.c.l.b16 %v403
  %v2830 = vunpack.c.h.b16 %v403
  %v2831 = vunpack.c.l.b16 %v404
  %v2832 = vunpack.c.h.b16 %v404
  %v2833 = vunpack.c.l.b16 %v405
  %v2834 = vunpack.c.h.b16 %v405
  %v2835 = vunpack.c.l.b16 %v406
  %v2836 = vunpack.c.h.b16 %v406
  %v2837 = vunpack.c.l.b16 %v407
  %v2838 = vunpack.c.h.b16 %v407
  %v2839 = vunpack.c.l.b16 %v408
  %v2840 = vunpack.c.h.b16 %v408
  %v2841 = vunpack.c.l.b16 %v409
  %v2842 = vunpack.c.h.b16 %v409
  %v2843 = vunpack.c.l.b16 %v410
  %v2844 = vunpack.c.h.b16 %v410
  %v2845 = vunpack.c.l.b16 %v411
  %v2846 = vunpack.c.h.b16 %v411
  %v2847 = vunpack.c.l.b16 %v412
  %v2848 = vunpack.c.h.b16 %v412
  %v2849 = vunpack.c.l.b16 %v413
  %v2850 = vunpack.c.h.b16 %v413
  %v2851 = vunpack.c.l.b16 %v414
  %v2852 = vunpack.c.h.b16 %v414
  %v2853 = vunpack.c.l.b16 %v415
  %v2854 = vunpack.c.h.b16 %v415
  %v2855 = vunpack.c.l.b16 %v416
  %v2856 = vunpack.c.h.b16 %v416
  %v2857 = vunpack.c.l.b16 %v417
  %v2858 = vunpack.c.h.b16 %v417
  %v2859 = vunpack.c.l.b16 %v418
  %v2860 = vunpack.c.h.b16 %v418
  %v2861 = vunpack.c.l.b16 %v419
  %v2862 = vunpack.c.h.b16 %v419
  %v2863 = vunpack.c.l.b16 %v420
  %v2864 = vunpack.c.h.b16 %v420
  %v2865 = vunpack.c.l.b16 %v421
  %v2866 = vunpack.c.h.b16 %v421
  %v2867 = vunpack.c.l.b16 %v422
  %v2868 = vunpack.c.h.b16 %v422
  %v2869 = vunpack.c.l.b16 %v423
  %v2870 = vunpack.c.h.b16 %v423
  %v2871 = vunpack.c.l.b16 %v424
  %v2872 = vunpack.c.h.b16 %v424
  %v2873 = vunpack.c.l.b16 %v425
  %v2874 = vunpack.c.h.b16 %v425
  %v2875 = vunpack.c.l.b16 %v426
  %v2876 = vunpack.c.h.b16 %v426
  %v2877 = vunpack.c.l.b16 %v427
  %v2878 = vunpack.c.h.b16 %v427
  %v2879 = vunpack.c.l.b16 %v428
  %v2880 = vunpack.c.h.b16 %v428
  %v2881 = vunpack.c.l.b16 %v429
  %v2882 = vunpack.c.h.b16 %v429
  %v2883 = vunpack.c.l.b16 %v430
  %v2884 = vunpack.c.h.b16 %v430
  %v2885 = vunpack.c.l.b16 %v431
  %v2886 = vunpack.c.h.b16 %v431
  %v2887 = vunpack.c.l.b16 %v432
  %v2888 = vunpack.c.h.b16 %v432
  %v2889 = vunpack.c.l.b16 %v433
  %v2890 = vunpack.c.h.b16 %v433
  %v2891 = vunpack.c.l.b16 %v434
  %v2892 = vunpack.c.h.b16 %v434
  %v2893 = vunpack.c.l.b16 %v435
  %v2894 = vunpack.c.h.b16 %v435
  %v2895 = vunpack.c.l.b16 %v436
  %v2896 = vunpack.c.h.b16 %v436
  %v2897 = vunpack.c.l.b16 %v437
  %v2898 = vunpack.c.h.b16 %v437
  %v2899 = vunpack.c.l.b16 %v438
  %v2900 = vunpack.c.h.b16 %v438
  %v2901 = vunpack.c.l.b16 %v439
  %v2902 = vunpack.c.h.b16 %v439
  %v2903 = vunpack.c.l.b16 %v440
  %v2904 = vunpack.c.h.b16 %v440
  %v2905 = vunpack.c.l.b16 %v441
  %v2906 = vunpack.c.h.b16 %v441
  %v2907 = vunpack.c.l.b16 %v442
  %v2908 = vunpack.c.h.b16 %v442
  %v2909 = vunpack.c.l.b16 %v443
  %v2910 = vunpack.c.h.b16 %v443
  %v2911 = vunpack.c.l.b16 %v444
  %v2912 = vunpack.c.h.b16 %v444
  %v2913 = vunpack.c.l.b16 %v445
  %v2914 = vunpack.c.h.b16 %v445
  %v2915 = vunpack.c.l.b16 %v446
  %v2916 = vunpack.c.h.b16 %v446
  %v2917 = vunpack.c.l.b16 %v447
  %v2918 = vunpack.c.h.b16 %v447
  %v2919 = vunpack.c.l.b16 %v448
  %v2920 = vunpack.c.h.b16 %v448
  %v2921 = vunpack.c.l.b16 %v449
  %v2922 = vunpack.c.h.b16 %v449
  %v2923 = vunpack.c.l.b16 %v450
  %v2924 = vunpack.c.h.b16 %v450
  %v2925 = vunpack.c.l.b16 %v451
  %v2926 = vunpack.c.h.b16 %v451
  %v2927 = vunpack.c.l.b16 %v452
  %v2928 = vunpack.c.h.b16 %v452
  %v2929 = vunpack.c.l.b16 %v453
  %v2930 = vunpack.c.h.b16 %v453
  %v2931 = vunpack.c.l.b16 %v454
  %v2932 = vunpack.c.h.b16 %v454
  %v2933 = vunpack.c.l.b16 %v455
  %v2934 = vunpack.c.h.b16 %v455
  %v2935 = vunpack.c.l.b16 %v456
  %v2936 = vunpack.c.h.b16 %v456
  %v2937 = vunpack.c.l.b16 %v457
  %v2938 = vunpack.c.h.b16 %v457
  %v2939 = vunpack.c.l.b16 %v458
  %v2940 = vunpack.c.h.b16 %v458
  %v2941 = vunpack.c.l.b16 %v459
  %v2942 = vunpack.c.h.b16 %v459
  %v2943 = vunpack.c.l.b16 %v460
  %v2944 = vunpack.c.h.b16 %v460
  %v2945 = vunpack.c.l.b16 %v461
  %v2946 = vunpack.c.h.b16 %v461
  %v2947 = vunpack.c.l.b16 %v462
  %v2948 = vunpack.c.h.b16 %v462
  %v2949 = vunpack.c.l.b16 %v463
  %v2950 = vunpack.c.h.b16 %v463
  %v2951 = vunpack.c.l.b16 %v464
  %v2952 = vunpack.c.h.b16 %v464
  %v2953 = vunpack.c.l.b16 %v465
  %v2954 = vunpack.c.h.b16 %v465
  %v2955 = vunpack.c.l.b16 %v466
  %v2956 = vunpack.c.h.b16 %v466
  %v2957 = vunpack.c.l.b16 %v467
  %v2958 = vunpack.c.h.b16 %v467
  %v2959 = vunpack.c.l.b16 %v468
  %v2960 = vunpack.c.h.b16 %v468
  %v2961 = vunpack.c.l.b16 %v469
  %v2962 = vunpack.c.h.b16 %v469
  %v2963 = vunpack.c.l.b16 %v470
  %v2964 = vunpack.c.h.b16 %v470
  %v2965 = vunpack.c.l.b16 %v471
  %v2966 = vunpack.c.h.b16 %v471
  %v2967 = vunpack.c.l.b16 %v472
  %v2968 = vunpack.c.h.b16 %v472
  %v2969 = vunpack.c.l.b16 %v473
  %v2970 = vunpack.c.h.b16 %v473
  %v2971 = vunpack.c.l.b16 %v474
  %v2972 = vunpack.c.h.b16 %v474
  %v2973 = vunpack.c.l.b16 %v475
  %v2974 = vunpack.c.h.b16 %v475
  %v2975 = vunpack.c.l.b16 %v476
  %v2976 = vunpack.c.h.b16 %v476
  %v2977 = vunpack.c.l.b16 %v477
  %v2978 = vunpack.c.h.b16 %v477
  %v2979 = vunpack.c.l.b16 %v478
  %v2980 = vunpack.c.h.b16 %v478
  %v2981 = vunpack.c.l.b16 %v479
  %v2982 = vunpack.c.h.b16 %v479
  %v2983 = vunpack.c.l.b16 %v480
  %v2984 = vunpack.c.h.b16 %v480
  %v2985 = vunpack.c.l.b16 %v481
  %v2986 = vunpack.c.h.b16 %v481
  %v2987 = vunpack.c.l.b16 %v482
  %v2988 = vunpack.c.h.b16 %v482
  %v2989 = vunpack.c.l.b16 %v483
  %v2990 = vunpack.c.h.b16 %v483
  %v2991 = vunpack.c.l.b16 %v484
  %v2992 = vunpack.c.h.b16 %v484
  %v2993 = vunpack.c.l.b16 %v485
  %v2994 = vunpack.c.h.b16 %v485
  %v2995 = vunpack.c.l.b16 %v486
  %v2996 = vunpack.c.h.b16 %v486
  %v2997 = vunpack.c.l.b16 %v487
  %v2998 = vunpack.c.h.b16 %v487
  %v2999 = vunpack.c.l.b16 %v488
  %v3000 = vunpack.c.h.b16 %v488
  %v3001 = vunpack.c.l.b16 %v489
  %v3002 = vunpack.c.h.b16 %v489
  %v3003 = vunpack.c.l.b16 %v490
  %v3004 = vunpack.c.h.b16 %v490
  %v3005 = vunpack.c.l.b16 %v491
  %v3006 = vunpack.c.h.b16 %v491
  %v3007 = vunpack.c.l.b16 %v492
  %v3008 = vunpack.c.h.b16 %v492
  %v3009 = vunpack.c.l.b16 %v493
  %v3010 = vunpack.c.h.b16 %v493
  %v3011 = vunpack.c.l.b16 %v494
  %v3012 = vunpack.c.h.b16 %v494
  %v3013 = vunpack.c.l.b16 %v495
  %v3014 = vunpack.c.h.b16 %v495
  %v3015 = vunpack.c.l.b16 %v496
  %v3016 = vunpack.c.h.b16 %v496
  %v3017 = vunpack.c.l.b16 %v497
  %v3018 = vunpack.c.h.b16 %v497
  %v3019 = vunpack.c.l.b16 %v498
  %v3020 = vunpack.c.h.b16 %v498
  %v3021 = vunpack.c.l.b16 %v499
  %v3022 = vunpack.c.h.b16 %v499
  %v3023 = vunpack.c.l.b16 %v500
  %v3024 = vunpack.c.h.b16 %v500
  %v3025 = vunpack.c.l.b16 %v501
  %v3026 = vunpack.c.h.b16 %v501
  %v3027 = vunpack.c.l.b16 %v502
  %v3028 = vunpack.c.h.b16 %v502
  %v3029 = vunpack.c.l.b16 %v503
  %v3030 = vunpack.c.h.b16 %v503
  %v3031 = vunpack.c.l.b16 %v504
  %v3032 = vunpack.c.h.b16 %v504
  %v3033 = vunpack.c.l.b16 %v505
  %v3034 = vunpack.c.h.b16 %v505
  %v3035 = vunpack.c.l.b16 %v506
  %v3036 = vunpack.c.h.b16 %v506
  %v3037 = vunpack.c.l.b16 %v507
  %v3038 = vunpack.c.h.b16 %v507
  %v3039 = vunpack.c.l.b16 %v508
  %v3040 = vunpack.c.h.b16 %v508
  %v3041 = vunpack.c.l.b16 %v509
  %v3042 = vunpack.c.h.b16 %v509
  %v3043 = vunpack.c.l.b16 %v510
  %v3044 = vunpack.c.h.b16 %v510
  %v3045 = vunpack.c.l.b16 %v511
  %v3046 = vunpack.c.h.b16 %v511
  %v3047 = vunpack.c.l.b16 %v512
  %v3048 = vunpack.c.h.b16 %v512
  %v3049 = vunpack.c.l.b16 %v513
  %v3050 = vunpack.c.h.b16 %v513
  %v3051 = vunpack.c.l.b16 %v514
  %v3052 = vunpack.c.h.b16 %v514
  %v3053 = vunpack.c.l.b16 %v515
  %v3054 = vunpack.c.h.b16 %v515
  %v3055 = vunpack.c.l.b16 %v516
  %v3056 = vunpack.c.h.b16 %v516
  %v3057 = vunpack.c.l.b16 %v517
  %v3058 = vunpack.c.h.b16 %v517
  %v3059 = vunpack.c.l.b16 %v518
  %v3060 = vunpack.c.h.b16 %v518
  %v3061 = vunpack.c.l.b16 %v519
  %v3062 = vunpack.c.h.b16 %v519
  %v3063 = vunpack.c.l.b16 %v520
  %v3064 = vunpack.c.h.b16 %v520
  %v3065 = vunpack.c.l.b16 %v521
  %v3066 = vunpack.c.h.b16 %v521
  %v3067 = vunpack.c.l.b16 %v522
  %v3068 = vunpack.c.h.b16 %v522
  %v3069 = vunpack.c.l.b16 %v523
  %v3070 = vunpack.c.h.b16 %v523
  %v3071 = vunpack.c.l.b16 %v524
  %v3072 = vunpack.c.h.b16 %v524
  %v3073 = vunpack.c.l.b16 %v525
  %v3074 = vunpack.c.h.b16 %v525
  %v3075 = vunpack.c.l.b16 %v526
  %v3076 = vunpack.c.h.b16 %v526
  %v3077 = vunpack.c.l.b16 %v527
  %v3078 = vunpack.c.h.b16 %v527
  %v3079 = vunpack.c.l.b16 %v528
  %v3080 = vunpack.c.h.b16 %v528
  %v3081 = vunpack.c.l.b16 %v529
  %v3082 = vunpack.c.h.b16 %v529
  %v3083 = vunpack.c.l.b16 %v530
  %v3084 = vunpack.c.h.b16 %v530
  %v3085 = vunpack.c.l.b16 %v531
  %v3086 = vunpack.c.h.b16 %v531
  %v3087 = vunpack.c.l.b16 %v532
  %v3088 = vunpack.c.h.b16 %v532
  %v3089 = vunpack.c.l.b16 %v533
  %v3090 = vunpack.c.h.b16 %v533
  %v3091 = vunpack.c.l.b16 %v534
  %v3092 = vunpack.c.h.b16 %v534
  %v3093 = vunpack.c.l.b16 %v535
  %v3094 = vunpack.c.h.b16 %v535
  %v3095 = vunpack.c.l.b16 %v536
  %v3096 = vunpack.c.h.b16 %v536
  %v3097 = vunpack.c.l.b16 %v537
  %v3098 = vunpack.c.h.b16 %v537
  %v3099 = vunpack.c.l.b16 %v538
  %v3100 = vunpack.c.h.b16 %v538
  %v3101 = vunpack.c.l.b16 %v539
  %v3102 = vunpack.c.h.b16 %v539
  %v3103 = vunpack.c.l.b16 %v540
  %v3104 = vunpack.c.h.b16 %v540
  %v3105 = vunpack.c.l.b16 %v541
  %v3106 = vunpack.c.h.b16 %v541
  %v3107 = vunpack.c.l.b16 %v542
  %v3108 = vunpack.c.h.b16 %v542
  %v3109 = vunpack.c.l.b16 %v543
  %v3110 = vunpack.c.h.b16 %v543
  %v3111 = vunpack.c.l.b16 %v544
  %v3112 = vunpack.c.h.b16 %v544
  %v3113 = vunpack.c.l.b16 %v545
  %v3114 = vunpack.c.h.b16 %v545
  %v3115 = vunpack.c.l.b16 %v546
  %v3116 = vunpack.c.h.b16 %v546
  %v3117 = vunpack.c.l.b16 %v547
  %v3118 = vunpack.c.h.b16 %v547
  %v3119 = vunpack.c.l.b16 %v548
  %v3120 = vunpack.c.h.b16 %v548
  %v3121 = vunpack.c.l.b16 %v549
  %v3122 = vunpack.c.h.b16 %v549
  %v3123 = vunpack.c.l.b16 %v550
  %v3124 = vunpack.c.h.b16 %v550
  %v3125 = vunpack.c.l.b16 %v551
  %v3126 = vunpack.c.h.b16 %v551
  %v3127 = vunpack.c.l.b16 %v552
  %v3128 = vunpack.c.h.b16 %v552
  %v3129 = vunpack.c.l.b16 %v553
  %v3130 = vunpack.c.h.b16 %v553
  %v3131 = vunpack.c.l.b16 %v554
  %v3132 = vunpack.c.h.b16 %v554
  %v3133 = vunpack.c.l.b16 %v555
  %v3134 = vunpack.c.h.b16 %v555
  %v3135 = vunpack.c.l.b16 %v556
  %v3136 = vunpack.c.h.b16 %v556
  %v3137 = vunpack.c.l.b16 %v557
  %v3138 = vunpack.c.h.b16 %v557
  %v3139 = vunpack.c.l.b16 %v558
  %v3140 = vunpack.c.h.b16 %v558
  %v3141 = vunpack.c.l.b16 %v559
  %v3142 = vunpack.c.h.b16 %v559
  %v3143 = vunpack.c.l.b16 %v560
  %v3144 = vunpack.c.h.b16 %v560
  %v3145 = vunpack.c.l.b16 %v561
  %v3146 = vunpack.c.h.b16 %v561
  %v3147 = vunpack.c.l.b16 %v562
  %v3148 = vunpack.c.h.b16 %v562
  %v3149 = vunpack.c.l.b16 %v563
  %v3150 = vunpack.c.h.b16 %v563
  %v3151 = vunpack.c.l.b16 %v564
  %v3152 = vunpack.c.h.b16 %v564
  %v3153 = vunpack.c.l.b16 %v565
  %v3154 = vunpack.c.h.b16 %v565
  %v3155 = vunpack.c.l.b16 %v566
  %v3156 = vunpack.c.h.b16 %v566
  %v3157 = vunpack.c.l.b16 %v567
  %v3158 = vunpack.c.h.b16 %v567
  %v3159 = vunpack.c.l.b16 %v568
  %v3160 = vunpack.c.h.b16 %v568
  %v3161 = vunpack.c.l.b16 %v569
  %v3162 = vunpack.c.h.b16 %v569
  %v3163 = vunpack.c.l.b16 %v570
  %v3164 = vunpack.c.h.b16 %v570
  %v3165 = vunpack.c.l.b16 %v571
  %v3166 = vunpack.c.h.b16 %v571
  %v3167 = vunpack.c.l.b16 %v572
  %v3168 = vunpack.c.h.b16 %v572
  %v3169 = vunpack.c.l.b16 %v573
  %v3170 = vunpack.c.h.b16 %v573
  %v3171 = vunpack.c.l.b16 %v574
  %v3172 = vunpack.c.h.b16 %v574
  %v3173 = vunpack.c.l.b16 %v575
  %v3174 = vunpack.c.h.b16 %v575
  %v3175 = vunpack.c.l.b16 %v576
  %v3176 = vunpack.c.h.b16 %v576
  %v3177 = vunpack.c.l.b16 %v577
  %v3178 = vunpack.c.h.b16 %v577
  %v3179 = vunpack.c.l.b16 %v578
  %v3180 = vunpack.c.h.b16 %v578
  %v3181 = vunpack.c.l.b16 %v579
  %v3182 = vunpack.c.h.b16 %v579
  %v3183 = vunpack.c.l.b16 %v580
  %v3184 = vunpack.c.h.b16 %v580
  %v3185 = vunpack.c.l.b16 %v581
  %v3186 = vunpack.c.h.b16 %v581
  %v3187 = vunpack.c.l.b16 %v582
  %v3188 = vunpack.c.h.b16 %v582
  %v3189 = vunpack.c.l.b16 %v583
  %v3190 = vunpack.c.h.b16 %v583
  %v3191 = vunpack.c.l.b16 %v584
  %v3192 = vunpack.c.h.b16 %v584
  %v3193 = vunpack.c.l.b16 %v585
  %v3194 = vunpack.c.h.b16 %v585
  %v3195 = vunpack.c.l.b16 %v586
  %v3196 = vunpack.c.h.b16 %v586
  %v3197 = vunpack.c.l.b16 %v587
  %v3198 = vunpack.c.h.b16 %v587
  %v3199 = vunpack.c.l.b16 %v588
  %v3200 = vunpack.c.h.b16 %v588
  %v3201 = vunpack.c.l.b16 %v589
  %v3202 = vunpack.c.h.b16 %v589
  %v3203 = vunpack.c.l.b16 %v590
  %v3204 = vunpack.c.h.b16 %v590
  %v3205 = vunpack.c.l.b16 %v591
  %v3206 = vunpack.c.h.b16 %v591
  %v3207 = vunpack.c.l.b16 %v592
  %v3208 = vunpack.c.h.b16 %v592
  %v3209 = vunpack.c.l.b16 %v593
  %v3210 = vunpack.c.h.b16 %v593
  %v3211 = vunpack.c.l.b16 %v594
  %v3212 = vunpack.c.h.b16 %v594
  %v3213 = vunpack.c.l.b16 %v595
  %v3214 = vunpack.c.h.b16 %v595
  %v3215 = vunpack.c.l.b16 %v596
  %v3216 = vunpack.c.h.b16 %v596
  %v3217 = vunpack.c.l.b16 %v597
  %v3218 = vunpack.c.h.b16 %v597
  %v3219 = vunpack.c.l.b16 %v598
  %v3220 = vunpack.c.h.b16 %v598
  %v3221 = vunpack.c.l.b16 %v599
  %v3222 = vunpack.c.h.b16 %v599
  %v3223 = vunpack.c.l.b16 %v600
  %v3224 = vunpack.c.h.b16 %v600
  %v3225 = vunpack.c.l.b16 %v601
  %v3226 = vunpack.c.h.b16 %v601
  %v3227 = vunpack.c.l.b16 %v602
  %v3228 = vunpack.c.h.b16 %v602
  %v3229 = vunpack.c.l.b16 %v603
  %v3230 = vunpack.c.h.b16 %v603
  %v3231 = vunpack.c.l.b16 %v604
  %v3232 = vunpack.c.h.b16 %v604
  %v3233 = vunpack.c.l.b16 %v605
  %v3234 = vunpack.c.h.b16 %v605
  %v3235 = vunpack.c.l.b16 %v606
  %v3236 = vunpack.c.h.b16 %v606
  %v3237 = vunpack.c.l.b16 %v607
  %v3238 = vunpack.c.h.b16 %v607
  %v3239 = vunpack.c.l.b16 %v608
  %v3240 = vunpack.c.h.b16 %v608
  %v3241 = vunpack.c.l.b16 %v609
  %v3242 = vunpack.c.h.b16 %v609
  %v3243 = vunpack.c.l.b16 %v610
  %v3244 = vunpack.c.h.b16 %v610
  %v3245 = vunpack.c.l.b16 %v611
  %v3246 = vunpack.c.h.b16 %v611
  %v3247 = vunpack.c.l.b16 %v612
  %v3248 = vunpack.c.h.b16 %v612
  %v3249 = vunpack.c.l.b16 %v613
  %v3250 = vunpack.c.h.b16 %v613
  %v3251 = vunpack.c.l.b16 %v614
  %v3252 = vunpack.c.h.b16 %v614
  %v3253 = vunpack.c.l.b16 %v615
  %v3254 = vunpack.c.h.b16 %v615
  %v3255 = vunpack.c.l.b16 %v616
  %v3256 = vunpack.c.h.b16 %v616
  %v3257 = vunpack.c.l.b16 %v617
  %v3258 = vunpack.c.h.b16 %v617
  %v3259 = vunpack.c.l.b16 %v618
  %v3260 = vunpack.c.h.b16 %v618
  %v3261 = vunpack.c.l.b16 %v619
  %v3262 = vunpack.c.h.b16 %v619
  %v3263 = vunpack.c.l.b16 %v620
  %v3264 = vunpack.c.h.b16 %v620
  %v3265 = vunpack.c.l.b16 %v621
  %v3266 = vunpack.c.h.b16 %v621
  %v3267 = vunpack.c.l.b16 %v622
  %v3268 = vunpack.c.h.b16 %v622
  %v3269 = vunpack.c.l.b16 %v623
  %v3270 = vunpack.c.h.b16 %v623
  %v3271 = vunpack.c.l.b16 %v624
  %v3272 = vunpack.c.h.b16 %v624
  %v3273 = vunpack.c.l.b16 %v625
  %v3274 = vunpack.c.h.b16 %v625
  %v3275 = vunpack.c.l.b16 %v626
  %v3276 = vunpack.c.h.b16 %v626
  %v3277 = vunpack.c.l.b16 %v627
  %v3278 = vunpack.c.h.b16 %v627
  %v3279 = vunpack.c.l.b16 %v628
  %v3280 = vunpack.c.h.b16 %v628
  %v3281 = vunpack.c.l.b16 %v629
  %v3282 = vunpack.c.h.b16 %v629
  %v3283 = vunpack.c.l.b16 %v630
  %v3284 = vunpack.c.h.b16 %v630
  %v3285 = vunpack.c.l.b16 %v631
  %v3286 = vunpack.c.h.b16 %v631
  %v3287 = vunpack.c.l.b16 %v632
  %v3288 = vunpack.c.h.b16 %v632
  %v3289 = vunpack.c.l.b16 %v633
  %v3290 = vunpack.c.h.b16 %v633
  %v3291 = vunpack.c.l.b16 %v634
  %v3292 = vunpack.c.h.b16 %v634
  %v3293 = vunpack.c.l.b16 %v635
  %v3294 = vunpack.c.h.b16 %v635
  %v3295 = vunpack.c.l.b16 %v636
  %v3296 = vunpack.c.h.b16 %v636
  %v3297 = vunpack.c.l.b16 %v637
  %v3298 = vunpack.c.h.b16 %v637
  %v3299 = vunpack.c.l.b16 %v638
  %v3300 = vunpack.c.h.b16 %v638
  %v3301 = vunpack.c.l.b16 %v639
  %v3302 = vunpack.c.h.b16 %v639
  %v3303 = vunpack.c.l.b16 %v640
  %v3304 = vunpack.c.h.b16 %v640
  %v3305 = vunpack.c.l.b16 %v641
  %v3306 = vunpack.c.h.b16 %v641
  %v3307 = vunpack.c.l.b16 %v642
  %v3308 = vunpack.c.h.b16 %v642
  %v3309 = vunpack.c.l.b16 %v643
  %v3310 = vunpack.c.h.b16 %v643
  %v3311 = vunpack.c.l.b16 %v644
  %v3312 = vunpack.c.h.b16 %v644
  %v3313 = vunpack.c.l.b16 %v645
  %v3314 = vunpack.c.h.b16 %v645
  %v3315 = vunpack.c.l.b16 %v646
  %v3316 = vunpack.c.h.b16 %v646
  %v3317 = vunpack.c.l.b16 %v647
  %v3318 = vunpack.c.h.b16 %v647
  %v3319 = vunpack.c.l.b16 %v648
  %v3320 = vunpack.c.h.b16 %v648
  %v3321 = vunpack.c.l.b16 %v649
  %v3322 = vunpack.c.h.b16 %v649
  %v3323 = vunpack.c.l.b16 %v650
  %v3324 = vunpack.c.h.b16 %v650
  %v3325 = vunpack.c.l.b16 %v651
  %v3326 = vunpack.c.h.b16 %v651
  %v3327 = vunpack.c.l.b16 %v652
  %v3328 = vunpack.c.h.b16 %v652
  %v3329 = vunpack.c.l.b16 %v653
  %v3330 = vunpack.c.h.b16 %v653
  %v3331 = vunpack.c.l.b16 %v654
  %v3332 = vunpack.c.h.b16 %v654
  %v3333 = vunpack.c.l.b16 %v655
  %v3334 = vunpack.c.h.b16 %v655
  %v3335 = vunpack.c.l.b16 %v656
  %v3336 = vunpack.c.h.b16 %v656
  %v3337 = vunpack.c.l.b16 %v657
  %v3338 = vunpack.c.h.b16 %v657
  %v3339 = vunpack.c.l.b16 %v658
  %v3340 = vunpack.c.h.b16 %v658
  %v3341 = vunpack.c.l.b16 %v659
  %v3342 = vunpack.c.h.b16 %v659
  %v3343 = vunpack.c.l.b16 %v660
  %v3344 = vunpack.c.h.b16 %v660
  %v3345 = vunpack.c.l.b16 %v661
  %v3346 = vunpack.c.h.b16 %v661
  %v3347 = vunpack.c.l.b16 %v662
  %v3348 = vunpack.c.h.b16 %v662
  %v3349 = vunpack.c.l.b16 %v663
  %v3350 = vunpack.c.h.b16 %v663
  %v3351 = vunpack.c.l.b16 %v664
  %v3352 = vunpack.c.h.b16 %v664
  %v3353 = vunpack.c.l.b16 %v665
  %v3354 = vunpack.c.h.b16 %v665
  %v3355 = vunpack.c.l.b16 %v666
  %v3356 = vunpack.c.h.b16 %v666
  %v3357 = vunpack.c.l.b16 %v667
  %v3358 = vunpack.c.h.b16 %v667
  %v3359 = vunpack.c.l.b16 %v668
  %v3360 = vunpack.c.h.b16 %v668
  %v3361 = vunpack.c.l.b16 %v669
  %v3362 = vunpack.c.h.b16 %v669
  %v3363 = vunpack.c.l.b16 %v670
  %v3364 = vunpack.c.h.b16 %v670
  %v3365 = vunpack.c.l.b16 %v671
  %v3366 = vunpack.c.h.b16 %v671
  %v3367 = vunpack.c.l.b16 %v672
  %v3368 = vunpack.c.h.b16 %v672
  %v3369 = vunpack.c.l.b16 %v673
  %v3370 = vunpack.c.h.b16 %v673
  %v3371 = vunpack.c.l.b16 %v674
  %v3372 = vunpack.c.h.b16 %v674
  %v3373 = vunpack.c.l.b16 %v675
  %v3374 = vunpack.c.h.b16 %v675
  %v3375 = vunpack.c.l.b16 %v676
  %v3376 = vunpack.c.h.b16 %v676
  %v3377 = vunpack.c.l.b16 %v677
  %v3378 = vunpack.c.h.b16 %v677
  %v3379 = vunpack.c.l.b16 %v678
  %v3380 = vunpack.c.h.b16 %v678
  %v3381 = vunpack.c.l.b16 %v679
  %v3382 = vunpack.c.h.b16 %v679
  %v3383 = vunpack.c.l.b16 %v680
  %v3384 = vunpack.c.h.b16 %v680
  %v3385 = vunpack.c.l.b16 %v681
  %v3386 = vunpack.c.h.b16 %v681
  %v3387 = vunpack.c.l.b16 %v682
  %v3388 = vunpack.c.h.b16 %v682
  %v3389 = vunpack.c.l.b16 %v683
  %v3390 = vunpack.c.h.b16 %v683
  %v3391 = vunpack.c.l.b16 %v684
  %v3392 = vunpack.c.h.b16 %v684
  %v3393 = vunpack.c.l.b16 %v685
  %v3394 = vunpack.c.h.b16 %v685
  %v3395 = vunpack.c.l.b16 %v686
  %v3396 = vunpack.c.h.b16 %v686
  %v3397 = vunpack.c.l.b16 %v687
  %v3398 = vunpack.c.h.b16 %v687
  %v3399 = vunpack.c.l.b16 %v688
  %v3400 = vunpack.c.h.b16 %v688
  %v3401 = vunpack.c.l.b16 %v689
  %v3402 = vunpack.c.h.b16 %v689
  %v3403 = vunpack.c.l.b16 %v690
  %v3404 = vunpack.c.h.b16 %v690
  %v3405 = vunpack.c.l.b16 %v691
  %v3406 = vunpack.c.h.b16 %v691
  %v3407 = vunpack.c.l.b16 %v692
  %v3408 = vunpack.c.h.b16 %v692
  %v3409 = vunpack.c.l.b16 %v693
  %v3410 = vunpack.c.h.b16 %v693
  %v3411 = vunpack.c.l.b16 %v694
  %v3412 = vunpack.c.h.b16 %v694
  %v3413 = vunpack.c.l.b16 %v695
  %v3414 = vunpack.c.h.b16 %v695
  %v3415 = vunpack.c.l.b16 %v696
  %v3416 = vunpack.c.h.b16 %v696
  %v3417 = vunpack.c.l.b16 %v697
  %v3418 = vunpack.c.h.b16 %v697
  %v3419 = vunpack.c.l.b16 %v698
  %v3420 = vunpack.c.h.b16 %v698
  %v3421 = vunpack.c.l.b16 %v699
  %v3422 = vunpack.c.h.b16 %v699
  %v3423 = vunpack.c.l.b16 %v700
  %v3424 = vunpack.c.h.b16 %v700
  %v3425 = vunpack.c.l.b16 %v701
  %v3426 = vunpack.c.h.b16 %v701
  %v3427 = vunpack.c.l.b16 %v702
  %v3428 = vunpack.c.h.b16 %v702
  %v3429 = vunpack.c.l.b16 %v703
  %v3430 = vunpack.c.h.b16 %v703
  %v3431 = vunpack.c.l.b16 %v704
  %v3432 = vunpack.c.h.b16 %v704
  %v3433 = vunpack.c.l.b16 %v705
  %v3434 = vunpack.c.h.b16 %v705
  %v3435 = vunpack.c.l.b16 %v706
  %v3436 = vunpack.c.h.b16 %v706
  %v3437 = vunpack.c.l.b16 %v707
  %v3438 = vunpack.c.h.b16 %v707
  %v3439 = vunpack.c.l.b16 %v708
  %v3440 = vunpack.c.h.b16 %v708
  %v3441 = vunpack.c.l.b16 %v709
  %v3442 = vunpack.c.h.b16 %v709
  %v3443 = vunpack.c.l.b16 %v710
  %v3444 = vunpack.c.h.b16 %v710
  %v3445 = vunpack.c.l.b16 %v711
  %v3446 = vunpack.c.h.b16 %v711
  %v3447 = vunpack.c.l.b16 %v712
  %v3448 = vunpack.c.h.b16 %v712
  %v3449 = vunpack.c.l.b16 %v713
  %v3450 = vunpack.c.h.b16 %v713
  %v3451 = vunpack.c.l.b16 %v714
  %v3452 = vunpack.c.h.b16 %v714
  %v3453 = vunpack.c.l.b16 %v715
  %v3454 = vunpack.c.h.b16 %v715
  %v3455 = vunpack.c.l.b16 %v716
  %v3456 = vunpack.c.h.b16 %v716
  %v3457 = vunpack.c.l.b16 %v717
  %v3458 = vunpack.c.h.b16 %v717
  %v3459 = vunpack.c.l.b16 %v718
  %v3460 = vunpack.c.h.b16 %v718
  %v3461 = vunpack.c.l.b16 %v719
  %v3462 = vunpack.c.h.b16 %v719
  %v3463 = vunpack.c.l.b16 %v720
  %v3464 = vunpack.c.h.b16 %v720
  %v3465 = vunpack.c.l.b16 %v721
  %v3466 = vunpack.c.h.b16 %v721
  %v3467 = vunpack.c.l.b16 %v722
  %v3468 = vunpack.c.h.b16 %v722
  %v3469 = vunpack.c.l.b16 %v723
  %v3470 = vunpack.c.h.b16 %v723
  %v3471 = vunpack.c.l.b16 %v724
  %v3472 = vunpack.c.h.b16 %v724
  %v3473 = vunpack.c.l.b16 %v725
  %v3474 = vunpack.c.h.b16 %v725
  %v3475 = vunpack.c.l.b16 %v726
  %v3476 = vunpack.c.h.b16 %v726
  %v3477 = vunpack.c.l.b16 %v727
  %v3478 = vunpack.c.h.b16 %v727
  %v3479 = vunpack.c.l.b16 %v728
  %v3480 = vunpack.c.h.b16 %v728
  %v3481 = vunpack.c.l.b16 %v729
  %v3482 = vunpack.c.h.b16 %v729
  %v3483 = vunpack.c.l.b16 %v730
  %v3484 = vunpack.c.h.b16 %v730
  %v3485 = vunpack.c.l.b16 %v731
  %v3486 = vunpack.c.h.b16 %v731
  %v3487 = vunpack.c.l.b16 %v732
  %v3488 = vunpack.c.h.b16 %v732
  %v3489 = vunpack.c.l.b16 %v733
  %v3490 = vunpack.c.h.b16 %v733
  %v3491 = vunpack.c.l.b16 %v734
  %v3492 = vunpack.c.h.b16 %v734
  %v3493 = vunpack.c.l.b16 %v735
  %v3494 = vunpack.c.h.b16 %v735
  %v3495 = vunpack.c.l.b16 %v736
  %v3496 = vunpack.c.h.b16 %v736
  %v3497 = vunpack.c.l.b16 %v737
  %v3498 = vunpack.c.h.b16 %v737
  %v3499 = vunpack.c.l.b16 %v738
  %v3500 = vunpack.c.h.b16 %v738
  %v3501 = vunpack.c.l.b16 %v739
  %v3502 = vunpack.c.h.b16 %v739
  %v3503 = vunpack.c.l.b16 %v740
  %v3504 = vunpack.c.h.b16 %v740
  %v3505 = vunpack.c.l.b16 %v741
  %v3506 = vunpack.c.h.b16 %v741
  %v3507 = vunpack.c.l.b16 %v742
  %v3508 = vunpack.c.h.b16 %v742
  %v3509 = vunpack.c.l.b16 %v743
  %v3510 = vunpack.c.h.b16 %v743
  %v3511 = vunpack.c.l.b16 %v744
  %v3512 = vunpack.c.h.b16 %v744
  %v3513 = vunpack.c.l.b16 %v745
  %v3514 = vunpack.c.h.b16 %v745
  %v3515 = vunpack.c.l.b16 %v746
  %v3516 = vunpack.c.h.b16 %v746
  %v3517 = vunpack.c.l.b16 %v747
  %v3518 = vunpack.c.h.b16 %v747
  %v3519 = vunpack.c.l.b16 %v748
  %v3520 = vunpack.c.h.b16 %v748
  %v3521 = vunpack.c.l.b16 %v749
  %v3522 = vunpack.c.h.b16 %v749
  %v3523 = vunpack.c.l.b16 %v750
  %v3524 = vunpack.c.h.b16 %v750
  %v3525 = vunpack.c.l.b16 %v751
  %v3526 = vunpack.c.h.b16 %v751
  %v3527 = vunpack.c.l.b16 %v752
  %v3528 = vunpack.c.h.b16 %v752
  %v3529 = vunpack.c.l.b16 %v753
  %v3530 = vunpack.c.h.b16 %v753
  %v3531 = vunpack.c.l.b16 %v754
  %v3532 = vunpack.c.h.b16 %v754
  %v3533 = vunpack.c.l.b16 %v755
  %v3534 = vunpack.c.h.b16 %v755
  %v3535 = vunpack.c.l.b16 %v756
  %v3536 = vunpack.c.h.b16 %v756
  %v3537 = vunpack.c.l.b16 %v757
  %v3538 = vunpack.c.h.b16 %v757
  %v3539 = vunpack.c.l.b16 %v758
  %v3540 = vunpack.c.h.b16 %v758
  %v3541 = vunpack.c.l.b16 %v759
  %v3542 = vunpack.c.h.b16 %v759
  %v3543 = vunpack.c.l.b16 %v760
  %v3544 = vunpack.c.h.b16 %v760
  %v3545 = vunpack.c.l.b16 %v761
  %v3546 = vunpack.c.h.b16 %v761
  %v3547 = vunpack.c.l.b16 %v762
  %v3548 = vunpack.c.h.b16 %v762
  %v3549 = vunpack.c.l.b16 %v763
  %v3550 = vunpack.c.h.b16 %v763
  %v3551 = vunpack.c.l.b16 %v764
  %v3552 = vunpack.c.h.b16 %v764
  %v3553 = vunpack.c.l.b16 %v765
  %v3554 = vunpack.c.h.b16 %v765
  %v3555 = vunpack.c.l.b16 %v766
  %v3556 = vunpack.c.h.b16 %v766
  %v3557 = vunpack.c.l.b16 %v767
  %v3558 = vunpack.c.h.b16 %v767
  %v3559 = vunpack.c.l.b16 %v768
  %v3560 = vunpack.c.h.b16 %v768
  %v3561 = vunpack.c.l.b16 %v769
  %v3562 = vunpack.c.h.b16 %v769
  %v3563 = vunpack.c.l.b16 %v770
  %v3564 = vunpack.c.h.b16 %v770
  %v3565 = vunpack.c.l.b16 %v771
  %v3566 = vunpack.c.h.b16 %v771
  %v3567 = vunpack.c.l.b16 %v772
  %v3568 = vunpack.c.h.b16 %v772
  %v3569 = vunpack.c.l.b16 %v773
  %v3570 = vunpack.c.h.b16 %v773
  %v3571 = vunpack.c.l.b16 %v774
  %v3572 = vunpack.c.h.b16 %v774
  %v3573 = vunpack.c.l.b16 %v775
  %v3574 = vunpack.c.h.b16 %v775
  %v3575 = vunpack.c.l.b16 %v776
  %v3576 = vunpack.c.h.b16 %v776
  %v3577 = vunpack.c.l.b16 %v777
  %v3578 = vunpack.c.h.b16 %v777
  %v3579 = vunpack.c.l.b16 %v778
  %v3580 = vunpack.c.h.b16 %v778
  %v3581 = vunpack.c.l.b16 %v779
  %v3582 = vunpack.c.h.b16 %v779
  %v3583 = vunpack.c.l.b16 %v780
  %v3584 = vunpack.c.h.b16 %v780
  %v3585 = vunpack.c.l.b16 %v781
  %v3586 = vunpack.c.h.b16 %v781
  %v3587 = vunpack.c.l.b16 %v782
  %v3588 = vunpack.c.h.b16 %v782
  %v3589 = vunpack.c.l.b16 %v783
  %v3590 = vunpack.c.h.b16 %v783
  %v3591 = vunpack.c.l.b16 %v784
  %v3592 = vunpack.c.h.b16 %v784
  %v3593 = vunpack.c.l.b16 %v785
  %v3594 = vunpack.c.h.b16 %v785
  %v3595 = vunpack.c.l.b16 %v786
  %v3596 = vunpack.c.h.b16 %v786
  %v3597 = vunpack.c.l.b16 %v787
  %v3598 = vunpack.c.h.b16 %v787
  %v3599 = vunpack.c.l.b16 %v788
  %v3600 = vunpack.c.h.b16 %v788
  %v3601 = vunpack.c.l.b16 %v789
  %v3602 = vunpack.c.h.b16 %v789
  %v3603 = vunpack.c.l.b16 %v790
  %v3604 = vunpack.c.h.b16 %v790
  %v3605 = vunpack.c.l.b16 %v791
  %v3606 = vunpack.c.h.b16 %v791
  %v3607 = vunpack.c.l.b16 %v792
  %v3608 = vunpack.c.h.b16 %v792
  %v3609 = vunpack.c.l.b16 %v793
  %v3610 = vunpack.c.h.b16 %v793
  %v3611 = vunpack.c.l.b16 %v794
  %v3612 = vunpack.c.h.b16 %v794
  %v3613 = vunpack.c.l.b16 %v795
  %v3614 = vunpack.c.h.b16 %v795
  %v3615 = vunpack.c.l.b16 %v796
  %v3616 = vunpack.c.h.b16 %v796
  %v3617 = vunpack.c.l.b16 %v797
  %v3618 = vunpack.c.h.b16 %v797
  %v3619 = vunpack.c.l.b16 %v798
  %v3620 = vunpack.c.h.b16 %v798
  %v3621 = vunpack.c.l.b16 %v799
  %v3622 = vunpack.c.h.b16 %v799
  %v3623 = vunpack.c.l.b16 %v800
  %v3624 = vunpack.c.h.b16 %v800
  %v3625 = vunpack.c.l.b16 %v801
  %v3626 = vunpack.c.h.b16 %v801
  %v3627 = vunpack.c.l.b16 %v802
  %v3628 = vunpack.c.h.b16 %v802
  %v3629 = vunpack.c.l.b16 %v803
  %v3630 = vunpack.c.h.b16 %v803
  %v3631 = vunpack.c.l.b16 %v804
  %v3632 = vunpack.c.h.b16 %v804
  %v3633 = vunpack.c.l.b16 %v805
  %v3634 = vunpack.c.h.b16 %v805
  %v3635 = vunpack.c.l.b16 %v806
  %v3636 = vunpack.c.h.b16 %v806
  %v3637 = vunpack.c.l.b16 %v807
  %v3638 = vunpack.c.h.b16 %v807
  %v3639 = vunpack.c.l.b16 %v808
  %v3640 = vunpack.c.h.b16 %v808
  %v3641 = vunpack.c.l.b16 %v809
  %v3642 = vunpack.c.h.b16 %v809
  %v3643 = vunpack.c.l.b16 %v810
  %v3644 = vunpack.c.h.b16 %v810
  %v3645 = vunpack.c.l.b16 %v811
  %v3646 = vunpack.c.h.b16 %v811
  %v3647 = vunpack.c.l.b16 %v812
  %v3648 = vunpack.c.h.b16 %v812
  %v3649 = vunpack.c.l.b16 %v813
  %v3650 = vunpack.c.h.b16 %v813
  %v3651 = vunpack.c.l.b16 %v814
  %v3652 = vunpack.c.h.b16 %v814
  %v3653 = vunpack.c.l.b16 %v815
  %v3654 = vunpack.c.h.b16 %v815
  %v3655 = vunpack.c.l.b16 %v816
  %v3656 = vunpack.c.h.b16 %v816
  %v3657 = vunpack.c.l.b16 %v817
  %v3658 = vunpack.c.h.b16 %v817
  %v3659 = vunpack.c.l.b16 %v818
  %v3660 = vunpack.c.h.b16 %v818
  %v3661 = vunpack.c.l.b16 %v819
  %v3662 = vunpack.c.h.b16 %v819
  %v3663 = vunpack.c.l.b16 %v820
  %v3664 = vunpack.c.h.b16 %v820
  %v3665 = vunpack.c.l.b16 %v821
  %v3666 = vunpack.c.h.b16 %v821
  %v3667 = vunpack.c.l.b16 %v822
  %v3668 = vunpack.c.h.b16 %v822
  %v3669 = vunpack.c.l.b16 %v823
  %v3670 = vunpack.c.h.b16 %v823
  %v3671 = vunpack.c.l.b16 %v824
  %v3672 = vunpack.c.h.b16 %v824
  %v3673 = vunpack.c.l.b16 %v825
  %v3674 = vunpack.c.h.b16 %v825
  %v3675 = vunpack.c.l.b16 %v826
  %v3676 = vunpack.c.h.b16 %v826
  %v3677 = vunpack.c.l.b16 %v827
  %v3678 = vunpack.c.h.b16 %v827
  %v3679 = vunpack.c.l.b16 %v828
  %v3680 = vunpack.c.h.b16 %v828
  %v3681 = vunpack.c.l.b16 %v829
  %v3682 = vunpack.c.h.b16 %v829
  %v3683 = vunpack.c.l.b16 %v830
  %v3684 = vunpack.c.h.b16 %v830
  %v3685 = vunpack.c.l.b16 %v831
  %v3686 = vunpack.c.h.b16 %v831
  %v3687 = vunpack.c.l.b16 %v832
  %v3688 = vunpack.c.h.b16 %v832
  %v3689 = vunpack.c.l.b16 %v833
  %v3690 = vunpack.c.h.b16 %v833
  %v3691 = vunpack.c.l.b16 %v834
  %v3692 = vunpack.c.h.b16 %v834
  %v3693 = vunpack.c.l.b16 %v835
  %v3694 = vunpack.c.h.b16 %v835
  %v3695 = vunpack.c.l.b16 %v836
  %v3696 = vunpack.c.h.b16 %v836
  %v3697 = vunpack.c.l.b16 %v837
  %v3698 = vunpack.c.h.b16 %v837
  %v3699 = vunpack.c.l.b16 %v838
  %v3700 = vunpack.c.h.b16 %v838
  %v3701 = vunpack.c.l.b16 %v839
  %v3702 = vunpack.c.h.b16 %v839
  %v3703 = vunpack.c.l.b16 %v840
  %v3704 = vunpack.c.h.b16 %v840
  %v3705 = vunpack.c.l.b16 %v841
  %v3706 = vunpack.c.h.b16 %v841
  %v3707 = vunpack.c.l.b16 %v842
  %v3708 = vunpack.c.h.b16 %v842
  %v3709 = vunpack.c.l.b16 %v843
  %v3710 = vunpack.c.h.b16 %v843
  %v3711 = vunpack.c.l.b16 %v844
  %v3712 = vunpack.c.h.b16 %v844
  %v3713 = vunpack.c.l.b16 %v845
  %v3714 = vunpack.c.h.b16 %v845
  %v3715 = vunpack.c.l.b16 %v846
  %v3716 = vunpack.c.h.b16 %v846
  %v3717 = vunpack.c.l.b16 %v847
  %v3718 = vunpack.c.h.b16 %v847
  %v3719 = vunpack.c.l.b16 %v848
  %v3720 = vunpack.c.h.b16 %v848
  %v3721 = vunpack.c.l.b16 %v849
  %v3722 = vunpack.c.h.b16 %v849
  %v3723 = vunpack.c.l.b16 %v850
  %v3724 = vunpack.c.h.b16 %v850
  %v3725 = vunpack.c.l.b16 %v851
  %v3726 = vunpack.c.h.b16 %v851
  %v3727 = vunpack.c.l.b16 %v852
  %v3728 = vunpack.c.h.b16 %v852
  %v3729 = vunpack.c.l.b16 %v853
  %v3730 = vunpack.c.h.b16 %v853
  %v3731 = vunpack.c.l.b16 %v854
  %v3732 = vunpack.c.h.b16 %v854
  %v3733 = vunpack.c.l.b16 %v855
  %v3734 = vunpack.c.h.b16 %v855
  %v3735 = vunpack.c.l.b16 %v856
  %v3736 = vunpack.c.h.b16 %v856
  %v3737 = vunpack.c.l.b16 %v857
  %v3738 = vunpack.c.h.b16 %v857
  %v3739 = vunpack.c.l.b16 %v858
  %v3740 = vunpack.c.h.b16 %v858
  %v3741 = vunpack.c.l.b16 %v859
  %v3742 = vunpack.c.h.b16 %v859
  %v3743 = vunpack.c.l.b16 %v860
  %v3744 = vunpack.c.h.b16 %v860
  %v3745 = vunpack.c.l.b16 %v861
  %v3746 = vunpack.c.h.b16 %v861
  %v3747 = vunpack.c.l.b16 %v862
  %v3748 = vunpack.c.h.b16 %v862
  %v3749 = vunpack.c.l.b16 %v863
  %v3750 = vunpack.c.h.b16 %v863
  %v3751 = vunpack.c.l.b16 %v864
  %v3752 = vunpack.c.h.b16 %v864
  %v3753 = vunpack.c.l.b16 %v865
  %v3754 = vunpack.c.h.b16 %v865
  %v3755 = vunpack.c.l.b16 %v866
  %v3756 = vunpack.c.h.b16 %v866
  %v3757 = vunpack.c.l.b16 %v867
  %v3758 = vunpack.c.h.b16 %v867
  %v3759 = vunpack.c.l.b16 %v868
  %v3760 = vunpack.c.h.b16 %v868
  %v3761 = vunpack.c.l.b16 %v869
  %v3762 = vunpack.c.h.b16 %v869
  %v3763 = vunpack.c.l.b16 %v870
  %v3764 = vunpack.c.h.b16 %v870
  %v3765 = vunpack.c.l.b16 %v871
  %v3766 = vunpack.c.h.b16 %v871
  %v3767 = vunpack.c.l.b16 %v872
  %v3768 = vunpack.c.h.b16 %v872
  %v3769 = vunpack.c.l.b16 %v873
  %v3770 = vunpack.c.h.b16 %v873
  %v3771 = vunpack.c.l.b16 %v874
  %v3772 = vunpack.c.h.b16 %v874
  %v3773 = vunpack.c.l.b16 %v875
  %v3774 = vunpack.c.h.b16 %v875
  %v3775 = vunpack.c.l.b16 %v876
  %v3776 = vunpack.c.h.b16 %v876
  %v3777 = vunpack.c.l.b16 %v877
  %v3778 = vunpack.c.h.b16 %v877
  %v3779 = vunpack.c.l.b16 %v878
  %v3780 = vunpack.c.h.b16 %v878
  %v3781 = vunpack.c.l.b16 %v879
  %v3782 = vunpack.c.h.b16 %v879
  %v3783 = vunpack.c.l.b16 %v880
  %v3784 = vunpack.c.h.b16 %v880
  %v3785 = vunpack.c.l.b16 %v881
  %v3786 = vunpack.c.h.b16 %v881
  %v3787 = vunpack.c.l.b16 %v882
  %v3788 = vunpack.c.h.b16 %v882
  %v3789 = vunpack.c.l.b16 %v883
  %v3790 = vunpack.c.h.b16 %v883
  %v3791 = vunpack.c.l.b16 %v884
  %v3792 = vunpack.c.h.b16 %v884
  %v3793 = vunpack.c.l.b16 %v885
  %v3794 = vunpack.c.h.b16 %v885
  %v3795 = vunpack.c.l.b16 %v886
  %v3796 = vunpack.c.h.b16 %v886
  %v3797 = vunpack.c.l.b16 %v887
  %v3798 = vunpack.c.h.b16 %v887
  %v3799 = vunpack.c.l.b16 %v888
  %v3800 = vunpack.c.h.b16 %v888
  %v3801 = vunpack.c.l.b16 %v889
  %v3802 = vunpack.c.h.b16 %v889
  %v3803 = vunpack.c.l.b16 %v890
  %v3804 = vunpack.c.h.b16 %v890
  %v3805 = vunpack.c.l.b16 %v891
  %v3806 = vunpack.c.h.b16 %v891
  %v3807 = vunpack.c.l.b16 %v892
  %v3808 = vunpack.c.h.b16 %v892
  %v3809 = vunpack.c.l.b16 %v893
  %v3810 = vunpack.c.h.b16 %v893
  %v3811 = vunpack.c.l.b16 %v894
  %v3812 = vunpack.c.h.b16 %v894
  %v3813 = vunpack.c.l.b16 %v895
  %v3814 = vunpack.c.h.b16 %v895
  %v3815 = vunpack.c.l.b16 %v896
  %v3816 = vunpack.c.h.b16 %v896
  %v3817 = vunpack.c.l.b16 %v897
  %v3818 = vunpack.c.h.b16 %v897
  %v3819 = vunpack.c.l.b16 %v898
  %v3820 = vunpack.c.h.b16 %v898
  %v3821 = vunpack.c.l.b16 %v899
  %v3822 = vunpack.c.h.b16 %v899
  %v3823 = vunpack.c.l.b16 %v900
  %v3824 = vunpack.c.h.b16 %v900
  %v3825 = vunpack.c.l.b16 %v901
  %v3826 = vunpack.c.h.b16 %v901
  %v3827 = vunpack.c.l.b16 %v902
  %v3828 = vunpack.c.h.b16 %v902
  %v3829 = vunpack.c.l.b16 %v903
  %v3830 = vunpack.c.h.b16 %v903
  %v3831 = vunpack.c.l.b16 %v904
  %v3832 = vunpack.c.h.b16 %v904
  %v3833 = vunpack.c.l.b16 %v905
  %v3834 = vunpack.c.h.b16 %v905
  %v3835 = vunpack.c.l.b16 %v906
  %v3836 = vunpack.c.h.b16 %v906
  %v3837 = vunpack.c.l.b16 %v907
  %v3838 = vunpack.c.h.b16 %v907
  %v3839 = vunpack.c.l.b16 %v908
  %v3840 = vunpack.c.h.b16 %v908
  %v3841 = vunpack.c.l.b16 %v909
  %v3842 = vunpack.c.h.b16 %v909
  %v3843 = vunpack.c.l.b16 %v910
  %v3844 = vunpack.c.h.b16 %v910
  %v3845 = vunpack.c.l.b16 %v911
  %v3846 = vunpack.c.h.b16 %v911
  %v3847 = vunpack.c.l.b16 %v912
  %v3848 = vunpack.c.h.b16 %v912
  %v3849 = vunpack.c.l.b16 %v913
  %v3850 = vunpack.c.h.b16 %v913
  %v3851 = vunpack.c.l.b16 %v914
  %v3852 = vunpack.c.h.b16 %v914
  %v3853 = vunpack.c.l.b16 %v915
  %v3854 = vunpack.c.h.b16 %v915
  %v3855 = vunpack.c.l.b16 %v916
  %v3856 = vunpack.c.h.b16 %v916
  %v3857 = vunpack.c.l.b16 %v917
  %v3858 = vunpack.c.h.b16 %v917
  %v3859 = vunpack.c.l.b16 %v918
  %v3860 = vunpack.c.h.b16 %v918
  %v3861 = vunpack.c.l.b16 %v919
  %v3862 = vunpack.c.h.b16 %v919
  %v3863 = vunpack.c.l.b16 %v920
  %v3864 = vunpack.c.h.b16 %v920
  %v3865 = vunpack.c.l.b16 %v921
  %v3866 = vunpack.c.h.b16 %v921
  %v3867 = vunpack.c.l.b16 %v922
  %v3868 = vunpack.c.h.b16 %v922
  %v3869 = vunpack.c.l.b16 %v923
  %v3870 = vunpack.c.h.b16 %v923
  %v3871 = vunpack.c.l.b16 %v924
  %v3872 = vunpack.c.h.b16 %v924
  %v3873 = vunpack.c.l.b16 %v925
  %v3874 = vunpack.c.h.b16 %v925
  %v3875 = vunpack.c.l.b16 %v926
  %v3876 = vunpack.c.h.b16 %v926
  %v3877 = vunpack.c.l.b16 %v927
  %v3878 = vunpack.c.h.b16 %v927
  %v3879 = vunpack.c.l.b16 %v928
  %v3880 = vunpack.c.h.b16 %v928
  %v3881 = vunpack.c.l.b16 %v929
  %v3882 = vunpack.c.h.b16 %v929
  %v3883 = vunpack.c.l.b16 %v930
  %v3884 = vunpack.c.h.b16 %v930
  %v3885 = vunpack.c.l.b16 %v931
  %v3886 = vunpack.c.h.b16 %v931
  %v3887 = vunpack.c.l.b16 %v932
  %v3888 = vunpack.c.h.b16 %v932
  %v3889 = vunpack.c.l.b16 %v933
  %v3890 = vunpack.c.h.b16 %v933
  %v3891 = vunpack.c.l.b16 %v934
  %v3892 = vunpack.c.h.b16 %v934
  %v3893 = vunpack.c.l.b16 %v935
  %v3894 = vunpack.c.h.b16 %v935
  %v3895 = vunpack.c.l.b16 %v936
  %v3896 = vunpack.c.h.b16 %v936
  %v3897 = vunpack.c.l.b16 %v937
  %v3898 = vunpack.c.h.b16 %v937
  %v3899 = vunpack.c.l.b16 %v938
  %v3900 = vunpack.c.h.b16 %v938
  %v3901 = vunpack.c.l.b16 %v939
  %v3902 = vunpack.c.h.b16 %v939
  %v3903 = vunpack.c.l.b16 %v940
  %v3904 = vunpack.c.h.b16 %v940
  %v3905 = vunpack.c.l.b16 %v941
  %v3906 = vunpack.c.h.b16 %v941
  %v3907 = vunpack.c.l.b16 %v942
  %v3908 = vunpack.c.h.b16 %v942
  %v3909 = vunpack.c.l.b16 %v943
  %v3910 = vunpack.c.h.b16 %v943
  %v3911 = vunpack.c.l.b16 %v944
  %v3912 = vunpack.c.h.b16 %v944
  %v3913 = vunpack.c.l.b16 %v945
  %v3914 = vunpack.c.h.b16 %v945
  %v3915 = vunpack.c.l.b16 %v946
  %v3916 = vunpack.c.h.b16 %v946
  %v3917 = vunpack.c.l.b16 %v947
  %v3918 = vunpack.c.h.b16 %v947
  %v3919 = vunpack.c.l.b16 %v948
  %v3920 = vunpack.c.h.b16 %v948
  %v3921 = vunpack.c.l.b16 %v949
  %v3922 = vunpack.c.h.b16 %v949
  %v3923 = vunpack.c.l.b16 %v950
  %v3924 = vunpack.c.h.b16 %v950
  %v3925 = vunpack.c.l.b16 %v951
  %v3926 = vunpack.c.h.b16 %v951
  %v3927 = vunpack.c.l.b16 %v952
  %v3928 = vunpack.c.h.b16 %v952
  %v3929 = vunpack.c.l.b16 %v953
  %v3930 = vunpack.c.h.b16 %v953
  %v3931 = vunpack.c.l.b16 %v954
  %v3932 = vunpack.c.h.b16 %v954
  %v3933 = vunpack.c.l.b16 %v955
  %v3934 = vunpack.c.h.b16 %v955
  %v3935 = vunpack.c.l.b16 %v956
  %v3936 = vunpack.c.h.b16 %v956
  %v3937 = vunpack.c.l.b16 %v957
  %v3938 = vunpack.c.h.b16 %v957
  %v3939 = vunpack.c.l.b16 %v958
  %v3940 = vunpack.c.h.b16 %v958
  %v3941 = vunpack.c.l.b16 %v959
  %v3942 = vunpack.c.h.b16 %v959
  %v3943 = vunpack.c.l.b16 %v960
  %v3944 = vunpack.c.h.b16 %v960
  %v3945 = vunpack.c.l.b16 %v961
  %v3946 = vunpack.c.h.b16 %v961
  %v3947 = vunpack.c.l.b16 %v962
  %v3948 = vunpack.c.h.b16 %v962
  %v3949 = vunpack.c.l.b16 %v963
  %v3950 = vunpack.c.h.b16 %v963
  %v3951 = vunpack.c.l.b16 %v964
  %v3952 = vunpack.c.h.b16 %v964
  %v3953 = vunpack.c.l.b16 %v965
  %v3954 = vunpack.c.h.b16 %v965
  %v3955 = vunpack.c.l.b16 %v966
  %v3956 = vunpack.c.h.b16 %v966
  %v3957 = vunpack.c.l.b16 %v967
  %v3958 = vunpack.c.h.b16 %v967
  %v3959 = vunpack.c.l.b16 %v968
  %v3960 = vunpack.c.h.b16 %v968
  %v3961 = vunpack.c.l.b16 %v969
  %v3962 = vunpack.c.h.b16 %v969
  %v3963 = vunpack.c.l.b16 %v970
  %v3964 = vunpack.c.h.b16 %v970
  %v3965 = vunpack.c.l.b16 %v971
  %v3966 = vunpack.c.h.b16 %v971
  %v3967 = vunpack.c.l.b16 %v972
  %v3968 = vunpack.c.h.b16 %v972
  %v3969 = vunpack.c.l.b16 %v973
  %v3970 = vunpack.c.h.b16 %v973
  %v3971 = vunpack.c.l.b16 %v974
  %v3972 = vunpack.c.h.b16 %v974
  %v3973 = vunpack.c.l.b16 %v975
  %v3974 = vunpack.c.h.b16 %v975
  %v3975 = vunpack.c.l.b16 %v976
  %v3976 = vunpack.c.h.b16 %v976
  %v3977 = vunpack.c.l.b16 %v977
  %v3978 = vunpack.c.h.b16 %v977
  %v3979 = vunpack.c.l.b16 %v978
  %v3980 = vunpack.c.h.b16 %v978
  %v3981 = vunpack.c.l.b16 %v979
  %v3982 = vunpack.c.h.b16 %v979
  %v3983 = vunpack.c.l.b16 %v980
  %v3984 = vunpack.c.h.b16 %v980
  %v3985 = vunpack.c.l.b16 %v981
  %v3986 = vunpack.c.h.b16 %v981
  %v3987 = vunpack.c.l.b16 %v982
  %v3988 = vunpack.c.h.b16 %v982
  %v3989 = vunpack.c.l.b16 %v983
  %v3990 = vunpack.c.h.b16 %v983
  %v3991 = vunpack.c.l.b16 %v984
  %v3992 = vunpack.c.h.b16 %v984
  %v3993 = vunpack.c.l.b16 %v985
  %v3994 = vunpack.c.h.b16 %v985
  %v3995 = vunpack.c.l.b16 %v986
  %v3996 = vunpack.c.h.b16 %v986
  %v3997 = vunpack.c.l.b16 %v987
  %v3998 = vunpack.c.h.b16 %v987
  %v3999 = vunpack.c.l.b16 %v988
  %v4000 = vunpack.c.h.b16 %v988
  %v4001 = vunpack.c.l.b16 %v989
  %v4002 = vunpack.c.h.b16 %v989
  %v4003 = vunpack.c.l.b16 %v990
  %v4004 = vunpack.c.h.b16 %v990
  %v4005 = vunpack.c.l.b16 %v991
  %v4006 = vunpack.c.h.b16 %v991
  %v4007 = vunpack.c.l.b16 %v992
  %v4008 = vunpack.c.h.b16 %v992
  %v4009 = vunpack.c.l.b16 %v993
  %v4010 = vunpack.c.h.b16 %v993
  %v4011 = vunpack.c.l.b16 %v994
  %v4012 = vunpack.c.h.b16 %v994
  %v4013 = vunpack.c.l.b16 %v995
  %v4014 = vunpack.c.h.b16 %v995
  %v4015 = vunpack.c.l.b16 %v996
  %v4016 = vunpack.c.h.b16 %v996
  %v4017 = vunpack.c.l.b16 %v997
  %v4018 = vunpack.c.h.b16 %v997
  %v4019 = vunpack.c.l.b16 %v998
  %v4020 = vunpack.c.h.b16 %v998
  %v4021 = vunpack.c.l.b16 %v999
  %v4022 = vunpack.c.h.b16 %v999
  %v4023 = vunpack.c.l.b16 %v1000
  %v4024 = vunpack.c.h.b16 %v1000
  %v4025 = vunpack.c.l.b16 %v1001
  %v4026 = vunpack.c.h.b16 %v1001
  %v4027 = vunpack.c.l.b16 %v1002
  %v4028 = vunpack.c.h.b16 %v1002
  %v4029 = vunpack.c.l.b16 %v1003
  %v4030 = vunpack.c.h.b16 %v1003
  %v4031 = vunpack.c.l.b16 %v1004
  %v4032 = vunpack.c.h.b16 %v1004
  %v4033 = vunpack.c.l.b16 %v1005
  %v4034 = vunpack.c.h.b16 %v1005
  %v4035 = vunpack.c.l.b16 %v1006
  %v4036 = vunpack.c.h.b16 %v1006
  %v4037 = vunpack.c.l.b16 %v1007
  %v4038 = vunpack.c.h.b16 %v1007
  %v4039 = vunpack.c.l.b16 %v1008
  %v4040 = vunpack.c.h.b16 %v1008
  %v4041 = vunpack.c.l.b16 %v1009
  %v4042 = vunpack.c.h.b16 %v1009
  %v4043 = vunpack.c.l.b16 %v1010
  %v4044 = vunpack.c.h.b16 %v1010
  %v4045 = vpack.c.b16 %v2113, %v2109
  %v4046 = vpack.c.b16 %v2114, %v2110
  %v4047 = vpack.c.b16 %v2115, %v2111
  %v4048 = vpack.c.b16 %v2116, %v2112
  %v4049 = vpack.c.b16 %v2121, %v2117
  %v4050 = vpack.c.b16 %v2122, %v2118
  %v4051 = vpack.c.b16 %v2123, %v2119
  %v4052 = vpack.c.b16 %v2124, %v2120
  %v4053 = vpack.c.b16 %v2129, %v2125
  %v4054 = vpack.c.b16 %v2130, %v2126
  %v4055 = vpack.c.b16 %v2131, %v2127
  %v4056 = vpack.c.b16 %v2132, %v2128
  %v4057 = vpack.c.b16 %v2137, %v2133
  %v4058 = vpack.c.b16 %v2138, %v2134
  %v4059 = vpack.c.b16 %v2139, %v2135
  %v4060 = vpack.c.b16 %v2140, %v2136
  %v4061 = vpack.c.b16 %v2145, %v2141
  %v4062 = vpack.c.b16 %v2146, %v2142
  %v4063 = vpack.c.b16 %v2147, %v2143
  %v4064 = vpack.c.b16 %v2148, %v2144
  %v4065 = vpack.c.b16 %v2153, %v2149
  %v4066 = vpack.c.b16 %v2154, %v2150
  %v4067 = vpack.c.b16 %v2155, %v2151
  %v4068 = vpack.c.b16 %v2156, %v2152
  %v4069 = vpack.c.b16 %v2161, %v2157
  %v4070 = vpack.c.b16 %v2162, %v2158
  %v4071 = vpack.c.b16 %v2163, %v2159
  %v4072 = vpack.c.b16 %v2164, %v2160
  %v4073 = vpack.c.b16 %v2169, %v2165
  %v4074 = vpack.c.b16 %v2170, %v2166
  %v4075 = vpack.c.b16 %v2171, %v2167
  %v4076 = vpack.c.b16 %v2172, %v2168
  %v4077 = vpack.c.b16 %v2177, %v2173
  %v4078 = vpack.c.b16 %v2178, %v2174
  %v4079 = vpack.c.b16 %v2179, %v2175
  %v4080 = vpack.c.b16 %v2180, %v2176
  %v4081 = vpack.c.b16 %v2185, %v2181
  %v4082 = vpack.c.b16 %v2186, %v2182
  %v4083 = vpack.c.b16 %v2187, %v2183
  %v4084 = vpack.c.b16 %v2188, %v2184
  %v4085 = vpack.c.b16 %v2193, %v2189
  %v4086 = vpack.c.b16 %v2194, %v2190
  %v4087 = vpack.c.b16 %v2195, %v2191
  %v4088 = vpack.c.b16 %v2196, %v2192
  %v4089 = vpack.c.b16 %v2201, %v2197
  %v4090 = vpack.c.b16 %v2202, %v2198
  %v4091 = vpack.c.b16 %v2203, %v2199
  %v4092 = vpack.c.b16 %v2204, %v2200
  %v4093 = vpack.c.b16 %v2209, %v2205
  %v4094 = vpack.c.b16 %v2210, %v2206
  %v4095 = vpack.c.b16 %v2211, %v2207
  %v4096 = vpack.c.b16 %v2212, %v2208
  %v4097 = vpack.c.b16 %v2217, %v2213
  %v4098 = vpack.c.b16 %v2218, %v2214
  %v4099 = vpack.c.b16 %v2219, %v2215
  %v4100 = vpack.c.b16 %v2220, %v2216
  %v4101 = vpack.c.b16 %v2225, %v2221
  %v4102 = vpack.c.b16 %v2226, %v2222
  %v4103 = vpack.c.b16 %v2227, %v2223
  %v4104 = vpack.c.b16 %v2228, %v2224
  %v4105 = vpack.c.b16 %v2233, %v2229
  %v4106 = vpack.c.b16 %v2234, %v2230
  %v4107 = vpack.c.b16 %v2235, %v2231
  %v4108 = vpack.c.b16 %v2236, %v2232
  %v4109 = vpack.c.b16 %v2241, %v2237
  %v4110 = vpack.c.b16 %v2242, %v2238
  %v4111 = vpack.c.b16 %v2243, %v2239
  %v4112 = vpack.c.b16 %v2244, %v2240
  %v4113 = vpack.c.b16 %v2249, %v2245
  %v4114 = vpack.c.b16 %v2250, %v2246
  %v4115 = vpack.c.b16 %v2251, %v2247
  %v4116 = vpack.c.b16 %v2252, %v2248
  %v4117 = vpack.c.b16 %v2257, %v2253
  %v4118 = vpack.c.b16 %v2258, %v2254
  %v4119 = vpack.c.b16 %v2259, %v2255
  %v4120 = vpack.c.b16 %v2260, %v2256
  %v4121 = vpack.c.b16 %v2265, %v2261
  %v4122 = vpack.c.b16 %v2266, %v2262
  %v4123 = vpack.c.b16 %v2267, %v2263
  %v4124 = vpack.c.b16 %v2268, %v2264
  %v4125 = vpack.c.b16 %v2273, %v2269
  %v4126 = vpack.c.b16 %v2274, %v2270
  %v4127 = vpack.c.b16 %v2275, %v2271
  %v4128 = vpack.c.b16 %v2276, %v2272
  %v4129 = vpack.c.b16 %v2281, %v2277
  %v4130 = vpack.c.b16 %v2282, %v2278
  %v4131 = vpack.c.b16 %v2283, %v2279
  %v4132 = vpack.c.b16 %v2284, %v2280
  %v4133 = vpack.c.b16 %v2289, %v2285
  %v4134 = vpack.c.b16 %v2290, %v2286
  %v4135 = vpack.c.b16 %v2291, %v2287
  %v4136 = vpack.c.b16 %v2292, %v2288
  %v4137 = vpack.c.b16 %v2297, %v2293
  %v4138 = vpack.c.b16 %v2298, %v2294
  %v4139 = vpack.c.b16 %v2299, %v2295
  %v4140 = vpack.c.b16 %v2300, %v2296
  %v4141 = vpack.c.b16 %v2305, %v2301
  %v4142 = vpack.c.b16 %v2306, %v2302
  %v4143 = vpack.c.b16 %v2307, %v2303
  %v4144 = vpack.c.b16 %v2308, %v2304
  %v4145 = vpack.c.b16 %v2313, %v2309
  %v4146 = vpack.c.b16 %v2314, %v2310
  %v4147 = vpack.c.b16 %v2315, %v2311
  %v4148 = vpack.c.b16 %v2316, %v2312
  %v4149 = vpack.c.b16 %v2321, %v2317
  %v4150 = vpack.c.b16 %v2322, %v2318
  %v4151 = vpack.c.b16 %v2323, %v2319
  %v4152 = vpack.c.b16 %v2324, %v2320
  %v4153 = vpack.c.b16 %v2329, %v2325
  %v4154 = vpack.c.b16 %v2330, %v2326
  %v4155 = vpack.c.b16 %v2331, %v2327
  %v4156 = vpack.c.b16 %v2332, %v2328
  %v4157 = vpack.c.b16 %v2337, %v2333
  %v4158 = vpack.c.b16 %v2338, %v2334
  %v4159 = vpack.c.b16 %v2339, %v2335
  %v4160 = vpack.c.b16 %v2340, %v2336
  %v4161 = vpack.c.b16 %v2345, %v2341
  %v4162 = vpack.c.b16 %v2346, %v2342
  %v4163 = vpack.c.b16 %v2347, %v2343
  %v4164 = vpack.c.b16 %v2348, %v2344
  %v4165 = vpack.c.b16 %v2353, %v2349
  %v4166 = vpack.c.b16 %v2354, %v2350
  %v4167 = vpack.c.b16 %v2355, %v2351
  %v4168 = vpack.c.b16 %v2356, %v2352
  %v4169 = vpack.c.b16 %v2361, %v2357
  %v4170 = vpack.c.b16 %v2362, %v2358
  %v4171 = vpack.c.b16 %v2363, %v2359
  %v4172 = vpack.c.b16 %v2364, %v2360
  %v4173 = vpack.c.b16 %v2369, %v2365
  %v4174 = vpack.c.b16 %v2370, %v2366
  %v4175 = vpack.c.b16 %v2371, %v2367
  %v4176 = vpack.c.b16 %v2372, %v2368
  %v4177 = vpack.c.b16 %v2377, %v2373
  %v4178 = vpack.c.b16 %v2378, %v2374
  %v4179 = vpack.c.b16 %v2379, %v2375
  %v4180 = vpack.c.b16 %v2380, %v2376
  %v4181 = vpack.c.b16 %v2385, %v2381
  %v4182 = vpack.c.b16 %v2386, %v2382
  %v4183 = vpack.c.b16 %v2387, %v2383
  %v4184 = vpack.c.b16 %v2388, %v2384
  %v4185 = vpack.c.b16 %v2393, %v2389
  %v4186 = vpack.c.b16 %v2394, %v2390
  %v4187 = vpack.c.b16 %v2395, %v2391
  %v4188 = vpack.c.b16 %v2396, %v2392
  %v4189 = vpack.c.b16 %v2401, %v2397
  %v4190 = vpack.c.b16 %v2402, %v2398
  %v4191 = vpack.c.b16 %v2403, %v2399
  %v4192 = vpack.c.b16 %v2404, %v2400
  %v4193 = vpack.c.b16 %v2409, %v2405
  %v4194 = vpack.c.b16 %v2410, %v2406
  %v4195 = vpack.c.b16 %v2411, %v2407
  %v4196 = vpack.c.b16 %v2412, %v2408
  %v4197 = vpack.c.b16 %v2417, %v2413
  %v4198 = vpack.c.b16 %v2418, %v2414
  %v4199 = vpack.c.b16 %v2419, %v2415
  %v4200 = vpack.c.b16 %v2420, %v2416
  %v4201 = vpack.c.b16 %v2425, %v2421
  %v4202 = vpack.c.b16 %v2426, %v2422
  %v4203 = vpack.c.b16 %v2427, %v2423
  %v4204 = vpack.c.b16 %v2428, %v2424
  %v4205 = vpack.c.b16 %v2433, %v2429
  %v4206 = vpack.c.b16 %v2434, %v2430
  %v4207 = vpack.c.b16 %v2435, %v2431
  %v4208 = vpack.c.b16 %v2436, %v2432
  %v4209 = vpack.c.b16 %v2441, %v2437
  %v4210 = vpack.c.b16 %v2442, %v2438
  %v4211 = vpack.c.b16 %v2443, %v2439
  %v4212 = vpack.c.b16 %v2444, %v2440
  %v4213 = vpack.c.b16 %v2449, %v2445
  %v4214 = vpack.c.b16 %v2450, %v2446
  %v4215 = vpack.c.b16 %v2451, %v2447
  %v4216 = vpack.c.b16 %v2452, %v2448
  %v4217 = vpack.c.b16 %v2457, %v2453
  %v4218 = vpack.c.b16 %v2458, %v2454
  %v4219 = vpack.c.b16 %v2459, %v2455
  %v4220 = vpack.c.b16 %v2460, %v2456
  %v4221 = vpack.c.b16 %v2465, %v2461
  %v4222 = vpack.c.b16 %v2466, %v2462
  %v4223 = vpack.c.b16 %v2467, %v2463
  %v4224 = vpack.c.b16 %v2468, %v2464
  %v4225 = vpack.c.b16 %v2473, %v2469
  %v4226 = vpack.c.b16 %v2474, %v2470
  %v4227 = vpack.c.b16 %v2475, %v2471
  %v4228 = vpack.c.b16 %v2476, %v2472
  %v4229 = vpack.c.b16 %v2481, %v2477
  %v4230 = vpack.c.b16 %v2482, %v2478
  %v4231 = vpack.c.b16 %v2483, %v2479
  %v4232 = vpack.c.b16 %v2484, %v2480
  %v4233 = vpack.c.b16 %v2489, %v2485
  %v4234 = vpack.c.b16 %v2490, %v2486
  %v4235 = vpack.c.b16 %v2491, %v2487
  %v4236 = vpack.c.b16 %v2492, %v2488
  %v4237 = vpack.c.b16 %v2497, %v2493
  %v4238 = vpack.c.b16 %v2498, %v2494
  %v4239 = vpack.c.b16 %v2499, %v2495
  %v4240 = vpack.c.b16 %v2500, %v2496
  %v4241 = vpack.c.b16 %v2505, %v2501
  %v4242 = vpack.c.b16 %v2506, %v2502
  %v4243 = vpack.c.b16 %v2507, %v2503
  %v4244 = vpack.c.b16 %v2508, %v2504
  %v4245 = vpack.c.b16 %v2513, %v2509
  %v4246 = vpack.c.b16 %v2514, %v2510
  %v4247 = vpack.c.b16 %v2515, %v2511
  %v4248 = vpack.c.b16 %v2516, %v2512
  %v4249 = vpack.c.b16 %v2521, %v2517
  %v4250 = vpack.c.b16 %v2522, %v2518
  %v4251 = vpack.c.b16 %v2523, %v2519
  %v4252 = vpack.c.b16 %v2524, %v2520
  %v4253 = vpack.c.b16 %v2529, %v2525
  %v4254 = vpack.c.b16 %v2530, %v2526
  %v4255 = vpack.c.b16 %v2531, %v2527
  %v4256 = vpack.c.b16 %v2532, %v2528
  %v4257 = vpack.c.b16 %v2537, %v2533
  %v4258 = vpack.c.b16 %v2538, %v2534
  %v4259 = vpack.c.b16 %v2539, %v2535
  %v4260 = vpack.c.b16 %v2540, %v2536
  %v4261 = vpack.c.b16 %v2545, %v2541
  %v4262 = vpack.c.b16 %v2546, %v2542
  %v4263 = vpack.c.b16 %v2547, %v2543
  %v4264 = vpack.c.b16 %v2548, %v2544
  %v4265 = vpack.c.b16 %v2553, %v2549
  %v4266 = vpack.c.b16 %v2554, %v2550
  %v4267 = vpack.c.b16 %v2555, %v2551
  %v4268 = vpack.c.b16 %v2556, %v2552
  %v4269 = vpack.c.b16 %v2561, %v2557
  %v4270 = vpack.c.b16 %v2562, %v2558
  %v4271 = vpack.c.b16 %v2563, %v2559
  %v4272 = vpack.c.b16 %v2564, %v2560
  %v4273 = vpack.c.b16 %v2569, %v2565
  %v4274 = vpack.c.b16 %v2570, %v2566
  %v4275 = vpack.c.b16 %v2571, %v2567
  %v4276 = vpack.c.b16 %v2572, %v2568
  %v4277 = vpack.c.b16 %v2577, %v2573
  %v4278 = vpack.c.b16 %v2578, %v2574
  %v4279 = vpack.c.b16 %v2579, %v2575
  %v4280 = vpack.c.b16 %v2580, %v2576
  %v4281 = vpack.c.b16 %v2585, %v2581
  %v4282 = vpack.c.b16 %v2586, %v2582
  %v4283 = vpack.c.b16 %v2587, %v2583
  %v4284 = vpack.c.b16 %v2588, %v2584
  %v4285 = vpack.c.b16 %v2593, %v2589
  %v4286 = vpack.c.b16 %v2594, %v2590
  %v4287 = vpack.c.b16 %v2595, %v2591
  %v4288 = vpack.c.b16 %v2596, %v2592
  %v4289 = vpack.c.b16 %v2601, %v2597
  %v4290 = vpack.c.b16 %v2602, %v2598
  %v4291 = vpack.c.b16 %v2603, %v2599
  %v4292 = vpack.c.b16 %v2604, %v2600
  %v4293 = vpack.c.b16 %v2609, %v2605
  %v4294 = vpack.c.b16 %v2610, %v2606
  %v4295 = vpack.c.b16 %v2611, %v2607
  %v4296 = vpack.c.b16 %v2612, %v2608
  %v4297 = vpack.c.b16 %v2617, %v2613
  %v4298 = vpack.c.b16 %v2618, %v2614
  %v4299 = vpack.c.b16 %v2619, %v2615
  %v4300 = vpack.c.b16 %v2620, %v2616
  %v4301 = vpack.c.b16 %v2625, %v2621
  %v4302 = vpack.c.b16 %v2626, %v2622
  %v4303 = vpack.c.b16 %v2627, %v2623
  %v4304 = vpack.c.b16 %v2628, %v2624
  %v4305 = vpack.c.b16 %v2633, %v2629
  %v4306 = vpack.c.b16 %v2634, %v2630
  %v4307 = vpack.c.b16 %v2635, %v2631
  %v4308 = vpack.c.b16 %v2636, %v2632
  %v4309 = vpack.c.b16 %v2641, %v2637
  %v4310 = vpack.c.b16 %v2642, %v2638
  %v4311 = vpack.c.b16 %v2643, %v2639
  %v4312 = vpack.c.b16 %v2644, %v2640
  %v4313 = vpack.c.b16 %v2649, %v2645
  %v4314 = vpack.c.b16 %v2650, %v2646
  %v4315 = vpack.c.b16 %v2651, %v2647
  %v4316 = vpack.c.b16 %v2652, %v2648
  %v4317 = vpack.c.b16 %v2657, %v2653
  %v4318 = vpack.c.b16 %v2658, %v2654
  %v4319 = vpack.c.b16 %v2659, %v2655
  %v4320 = vpack.c.b16 %v2660, %v2656
  %v4321 = vpack.c.b16 %v2665, %v2661
  %v4322 = vpack.c.b16 %v2666, %v2662
  %v4323 = vpack.c.b16 %v2667, %v2663
  %v4324 = vpack.c.b16 %v2668, %v2664
  %v4325 = vpack.c.b16 %v2673, %v2669
  %v4326 = vpack.c.b16 %v2674, %v2670
  %v4327 = vpack.c.b16 %v2675, %v2671
  %v4328 = vpack.c.b16 %v2676, %v2672
  %v4329 = vpack.c.b16 %v2681, %v2677
  %v4330 = vpack.c.b16 %v2682, %v2678
  %v4331 = vpack.c.b16 %v2683, %v2679
  %v4332 = vpack.c.b16 %v2684, %v2680
  %v4333 = vpack.c.b16 %v2689, %v2685
  %v4334 = vpack.c.b16 %v2690, %v2686
  %v4335 = vpack.c.b16 %v2691, %v2687
  %v4336 = vpack.c.b16 %v2692, %v2688
  %v4337 = vpack.c.b16 %v2697, %v2693
  %v4338 = vpack.c.b16 %v2698, %v2694
  %v4339 = vpack.c.b16 %v2699, %v2695
  %v4340 = vpack.c.b16 %v2700, %v2696
  %v4341 = vpack.c.b16 %v2705, %v2701
  %v4342 = vpack.c.b16 %v2706, %v2702
  %v4343 = vpack.c.b16 %v2707, %v2703
  %v4344 = vpack.c.b16 %v2708, %v2704
  %v4345 = vpack.c.b16 %v2713, %v2709
  %v4346 = vpack.c.b16 %v2714, %v2710
  %v4347 = vpack.c.b16 %v2715, %v2711
  %v4348 = vpack.c.b16 %v2716, %v2712
  %v4349 = vpack.c.b16 %v2721, %v2717
  %v4350 = vpack.c.b16 %v2722, %v2718
  %v4351 = vpack.c.b16 %v2723, %v2719
  %v4352 = vpack.c.b16 %v2724, %v2720
  %v4353 = vpack.c.b16 %v2729, %v2725
  %v4354 = vpack.c.b16 %v2730, %v2726
  %v4355 = vpack.c.b16 %v2731, %v2727
  %v4356 = vpack.c.b16 %v2732, %v2728
  %v4357 = vpack.c.b16 %v2737, %v2733
  %v4358 = vpack.c.b16 %v2738, %v2734
  %v4359 = vpack.c.b16 %v2739, %v2735
  %v4360 = vpack.c.b16 %v2740, %v2736
  %v4361 = vpack.c.b16 %v2745, %v2741
  %v4362 = vpack.c.b16 %v2746, %v2742
  %v4363 = vpack.c.b16 %v2747, %v2743
  %v4364 = vpack.c.b16 %v2748, %v2744
  %v4365 = vpack.c.b16 %v2753, %v2749
  %v4366 = vpack.c.b16 %v2754, %v2750
  %v4367 = vpack.c.b16 %v2755, %v2751
  %v4368 = vpack.c.b16 %v2756, %v2752
  %v4369 = vpack.c.b16 %v2761, %v2757
  %v4370 = vpack.c.b16 %v2762, %v2758
  %v4371 = vpack.c.b16 %v2763, %v2759
  %v4372 = vpack.c.b16 %v2764, %v2760
  %v4373 = vpack.c.b16 %v2769, %v2765
  %v4374 = vpack.c.b16 %v2770, %v2766
  %v4375 = vpack.c.b16 %v2771, %v2767
  %v4376 = vpack.c.b16 %v2772, %v2768
  %v4377 = vpack.c.b16 %v2777, %v2773
  %v4378 = vpack.c.b16 %v2778, %v2774
  %v4379 = vpack.c.b16 %v2779, %v2775
  %v4380 = vpack.c.b16 %v2780, %v2776
  %v4381 = vpack.c.b16 %v2785, %v2781
  %v4382 = vpack.c.b16 %v2786, %v2782
  %v4383 = vpack.c.b16 %v2787, %v2783
  %v4384 = vpack.c.b16 %v2788, %v2784
  %v4385 = vpack.c.b16 %v2793, %v2789
  %v4386 = vpack.c.b16 %v2794, %v2790
  %v4387 = vpack.c.b16 %v2795, %v2791
  %v4388 = vpack.c.b16 %v2796, %v2792
  %v4389 = vpack.c.b16 %v2801, %v2797
  %v4390 = vpack.c.b16 %v2802, %v2798
  %v4391 = vpack.c.b16 %v2803, %v2799
  %v4392 = vpack.c.b16 %v2804, %v2800
  %v4393 = vpack.c.b16 %v2809, %v2805
  %v4394 = vpack.c.b16 %v2810, %v2806
  %v4395 = vpack.c.b16 %v2811, %v2807
  %v4396 = vpack.c.b16 %v2812, %v2808
  %v4397 = vpack.c.b16 %v2817, %v2813
  %v4398 = vpack.c.b16 %v2818, %v2814
  %v4399 = vpack.c.b16 %v2819, %v2815
  %v4400 = vpack.c.b16 %v2820, %v2816
  %v4401 = vpack.c.b16 %v2825, %v2821
  %v4402 = vpack.c.b16 %v2826, %v2822
  %v4403 = vpack.c.b16 %v2827, %v2823
  %v4404 = vpack.c.b16 %v2828, %v2824
  %v4405 = vpack.c.b16 %v2833, %v2829
  %v4406 = vpack.c.b16 %v2834, %v2830
  %v4407 = vpack.c.b16 %v2835, %v2831
  %v4408 = vpack.c.b16 %v2836, %v2832
  %v4409 = vpack.c.b16 %v2841, %v2837
  %v4410 = vpack.c.b16 %v2842, %v2838
  %v4411 = vpack.c.b16 %v2843, %v2839
  %v4412 = vpack.c.b16 %v2844, %v2840
  %v4413 = vpack.c.b16 %v2849, %v2845
  %v4414 = vpack.c.b16 %v2850, %v2846
  %v4415 = vpack.c.b16 %v2851, %v2847
  %v4416 = vpack.c.b16 %v2852, %v2848
  %v4417 = vpack.c.b16 %v2857, %v2853
  %v4418 = vpack.c.b16 %v2858, %v2854
  %v4419 = vpack.c.b16 %v2859, %v2855
  %v4420 = vpack.c.b16 %v2860, %v2856
  %v4421 = vpack.c.b16 %v2865, %v2861
  %v4422 = vpack.c.b16 %v2866, %v2862
  %v4423 = vpack.c.b16 %v2867, %v2863
  %v4424 = vpack.c.b16 %v2868, %v2864
  %v4425 = vpack.c.b16 %v2873, %v2869
  %v4426 = vpack.c.b16 %v2874, %v2870
  %v4427 = vpack.c.b16 %v2875, %v2871
  %v4428 = vpack.c.b16 %v2876, %v2872
  %v4429 = vpack.c.b16 %v2881, %v2877
  %v4430 = vpack.c.b16 %v2882, %v2878
  %v4431 = vpack.c.b16 %v2883, %v2879
  %v4432 = vpack.c.b16 %v2884, %v2880
  %v4433 = vpack.c.b16 %v2889, %v2885
  %v4434 = vpack.c.b16 %v2890, %v2886
  %v4435 = vpack.c.b16 %v2891, %v2887
  %v4436 = vpack.c.b16 %v2892, %v2888
  %v4437 = vpack.c.b16 %v2897, %v2893
  %v4438 = vpack.c.b16 %v2898, %v2894
  %v4439 = vpack.c.b16 %v2899, %v2895
  %v4440 = vpack.c.b16 %v2900, %v2896
  %v4441 = vpack.c.b16 %v2905, %v2901
  %v4442 = vpack.c.b16 %v2906, %v2902
  %v4443 = vpack.c.b16 %v2907, %v2903
  %v4444 = vpack.c.b16 %v2908, %v2904
  %v4445 = vpack.c.b16 %v2913, %v2909
  %v4446 = vpack.c.b16 %v2914, %v2910
  %v4447 = vpack.c.b16 %v2915, %v2911
  %v4448 = vpack.c.b16 %v2916, %v2912
  %v4449 = vpack.c.b16 %v2921, %v2917
  %v4450 = vpack.c.b16 %v2922, %v2918
  %v4451 = vpack.c.b16 %v2923, %v2919
  %v4452 = vpack.c.b16 %v2924, %v2920
  %v4453 = vpack.c.b16 %v2929, %v2925
  %v4454 = vpack.c.b16 %v2930, %v2926
  %v4455 = vpack.c.b16 %v2931, %v2927
  %v4456 = vpack.c.b16 %v2932, %v2928
  %v4457 = vpack.c.b16 %v2937, %v2933
  %v4458 = vpack.c.b16 %v2938, %v2934
  %v4459 = vpack.c.b16 %v2939, %v2935
  %v4460 = vpack.c.b16 %v2940, %v2936
  %v4461 = vpack.c.b16 %v2945, %v2941
  %v4462 = vpack.c.b16 %v2946, %v2942
  %v4463 = vpack.c.b16 %v2947, %v2943
  %v4464 = vpack.c.b16 %v2948, %v2944
  %v4465 = vpack.c.b16 %v2953, %v2949
  %v4466 = vpack.c.b16 %v2954, %v2950
  %v4467 = vpack.c.b16 %v2955, %v2951
  %v4468 = vpack.c.b16 %v2956, %v2952
  %v4469 = vpack.c.b16 %v2961, %v2957
  %v4470 = vpack.c.b16 %v2962, %v2958
  %v4471 = vpack.c.b16 %v2963, %v2959
  %v4472 = vpack.c.b16 %v2964, %v2960
  %v4473 = vpack.c.b16 %v2969, %v2965
  %v4474 = vpack.c.b16 %v2970, %v2966
  %v4475 = vpack.c.b16 %v2971, %v2967
  %v4476 = vpack.c.b16 %v2972, %v2968
  %v4477 = vpack.c.b16 %v2977, %v2973
  %v4478 = vpack.c.b16 %v2978, %v2974
  %v4479 = vpack.c.b16 %v2979, %v2975
  %v4480 = vpack.c.b16 %v2980, %v2976
  %v4481 = vpack.c.b16 %v2985, %v2981
  %v4482 = vpack.c.b16 %v2986, %v2982
  %v4483 = vpack.c.b16 %v2987, %v2983
  %v4484 = vpack.c.b16 %v2988, %v2984
  %v4485 = vpack.c.b16 %v2993, %v2989
  %v4486 = vpack.c.b16 %v2994, %v2990
  %v4487 = vpack.c.b16 %v2995, %v2991
  %v4488 = vpack.c.b16 %v2996, %v2992
  %v4489 = vpack.c.b16 %v3001, %v2997
  %v4490 = vpack.c.b16 %v3002, %v2998
  %v4491 = vpack.c.b16 %v3003, %v2999
  %v4492 = vpack.c.b16 %v3004, %v3000
  %v4493 = vpack.c.b16 %v3009, %v3005
  %v4494 = vpack.c.b16 %v3010, %v3006
  %v4495 = vpack.c.b16 %v3011, %v3007
  %v4496 = vpack.c.b16 %v3012, %v3008
  %v4497 = vpack.c.b16 %v3017, %v3013
  %v4498 = vpack.c.b16 %v3018, %v3014
  %v4499 = vpack.c.b16 %v3019, %v3015
  %v4500 = vpack.c.b16 %v3020, %v3016
  %v4501 = vpack.c.b16 %v3025, %v3021
  %v4502 = vpack.c.b16 %v3026, %v3022
  %v4503 = vpack.c.b16 %v3027, %v3023
  %v4504 = vpack.c.b16 %v3028, %v3024
  %v4505 = vpack.c.b16 %v3033, %v3029
  %v4506 = vpack.c.b16 %v3034, %v3030
  %v4507 = vpack.c.b16 %v3035, %v3031
  %v4508 = vpack.c.b16 %v3036, %v3032
  %v4509 = vpack.c.b16 %v3041, %v3037
  %v4510 = vpack.c.b16 %v3042, %v3038
  %v4511 = vpack.c.b16 %v3043, %v3039
  %v4512 = vpack.c.b16 %v3044, %v3040
  %v4513 = vpack.c.b16 %v3049, %v3045
  %v4514 = vpack.c.b16 %v3050, %v3046
  %v4515 = vpack.c.b16 %v3051, %v3047
  %v4516 = vpack.c.b16 %v3052, %v3048
  %v4517 = vpack.c.b16 %v3057, %v3053
  %v4518 = vpack.c.b16 %v3058, %v3054
  %v4519 = vpack.c.b16 %v3059, %v3055
  %v4520 = vpack.c.b16 %v3060, %v3056
  %v4521 = vpack.c.b16 %v3065, %v3061
  %v4522 = vpack.c.b16 %v3066, %v3062
  %v4523 = vpack.c.b16 %v3067, %v3063
  %v4524 = vpack.c.b16 %v3068, %v3064
  %v4525 = vpack.c.b16 %v3073, %v3069
  %v4526 = vpack.c.b16 %v3074, %v3070
  %v4527 = vpack.c.b16 %v3075, %v3071
  %v4528 = vpack.c.b16 %v3076, %v3072
  %v4529 = vpack.c.b16 %v3081, %v3077
  %v4530 = vpack.c.b16 %v3082, %v3078
  %v4531 = vpack.c.b16 %v3083, %v3079
  %v4532 = vpack.c.b16 %v3084, %v3080
  %v4533 = vpack.c.b16 %v3089, %v3085
  %v4534 = vpack.c.b16 %v3090, %v3086
  %v4535 = vpack.c.b16 %v3091, %v3087
  %v4536 = vpack.c.b16 %v3092, %v3088
  %v4537 = vpack.c.b16 %v3097, %v3093
  %v4538 = vpack.c.b16 %v3098, %v3094
  %v4539 = vpack.c.b16 %v3099, %v3095
  %v4540 = vpack.c.b16 %v3100, %v3096
  %v4541 = vpack.c.b16 %v3105, %v3101
  %v4542 = vpack.c.b16 %v3106, %v3102
  %v4543 = vpack.c.b16 %v3107, %v3103
  %v4544 = vpack.c.b16 %v3108, %v3104
  %v4545 = vpack.c.b16 %v3113, %v3109
  %v4546 = vpack.c.b16 %v3114, %v3110
  %v4547 = vpack.c.b16 %v3115, %v3111
  %v4548 = vpack.c.b16 %v3116, %v3112
  %v4549 = vpack.c.b16 %v3121, %v3117
  %v4550 = vpack.c.b16 %v3122, %v3118
  %v4551 = vpack.c.b16 %v3123, %v3119
  %v4552 = vpack.c.b16 %v3124, %v3120
  %v4553 = vpack.c.b16 %v3129, %v3125
  %v4554 = vpack.c.b16 %v3130, %v3126
  %v4555 = vpack.c.b16 %v3131, %v3127
  %v4556 = vpack.c.b16 %v3132, %v3128
  %v4557 = vpack.c.b16 %v3137, %v3133
  %v4558 = vpack.c.b16 %v3138, %v3134
  %v4559 = vpack.c.b16 %v3139, %v3135
  %v4560 = vpack.c.b16 %v3140, %v3136
  %v4561 = vpack.c.b16 %v3145, %v3141
  %v4562 = vpack.c.b16 %v3146, %v3142
  %v4563 = vpack.c.b16 %v3147, %v3143
  %v4564 = vpack.c.b16 %v3148, %v3144
  %v4565 = vpack.c.b16 %v3153, %v3149
  %v4566 = vpack.c.b16 %v3154, %v3150
  %v4567 = vpack.c.b16 %v3155, %v3151
  %v4568 = vpack.c.b16 %v3156, %v3152
  %v4569 = vpack.c.b16 %v3161, %v3157
  %v4570 = vpack.c.b16 %v3162, %v3158
  %v4571 = vpack.c.b16 %v3163, %v3159
  %v4572 = vpack.c.b16 %v3164, %v3160
  %v4573 = vpack.c.b16 %v3169, %v3165
  %v4574 = vpack.c.b16 %v3170, %v3166
  %v4575 = vpack.c.b16 %v3171, %v3167
  %v4576 = vpack.c.b16 %v3172, %v3168
  %v4577 = vpack.c.b16 %v3177, %v3173
  %v4578 = vpack.c.b16 %v3178, %v3174
  %v4579 = vpack.c.b16 %v3179, %v3175
  %v4580 = vpack.c.b16 %v3180, %v3176
  %v4581 = vpack.c.b16 %v3185, %v3181
  %v4582 = vpack.c.b16 %v3186, %v3182
  %v4583 = vpack.c.b16 %v3187, %v3183
  %v4584 = vpack.c.b16 %v3188, %v3184
  %v4585 = vpack.c.b16 %v3193, %v3189
  %v4586 = vpack.c.b16 %v3194, %v3190
  %v4587 = vpack.c.b16 %v3195, %v3191
  %v4588 = vpack.c.b16 %v3196, %v3192
  %v4589 = vpack.c.b16 %v3201, %v3197
  %v4590 = vpack.c.b16 %v3202, %v3198
  %v4591 = vpack.c.b16 %v3203, %v3199
  %v4592 = vpack.c.b16 %v3204, %v3200
  %v4593 = vpack.c.b16 %v3209, %v3205
  %v4594 = vpack.c.b16 %v3210, %v3206
  %v4595 = vpack.c.b16 %v3211, %v3207
  %v4596 = vpack.c.b16 %v3212, %v3208
  %v4597 = vpack.c.b16 %v3217, %v3213
  %v4598 = vpack.c.b16 %v3218, %v3214
  %v4599 = vpack.c.b16 %v3219, %v3215
  %v4600 = vpack.c.b16 %v3220, %v3216
  %v4601 = vpack.c.b16 %v3225, %v3221
  %v4602 = vpack.c.b16 %v3226, %v3222
  %v4603 = vpack.c.b16 %v3227, %v3223
  %v4604 = vpack.c.b16 %v3228, %v3224
  %v4605 = vpack.c.b16 %v3233, %v3229
  %v4606 = vpack.c.b16 %v3234, %v3230
  %v4607 = vpack.c.b16 %v3235, %v3231
  %v4608 = vpack.c.b16 %v3236, %v3232
  %v4609 = vpack.c.b16 %v3241, %v3237
  %v4610 = vpack.c.b16 %v3242, %v3238
  %v4611 = vpack.c.b16 %v3243, %v3239
  %v4612 = vpack.c.b16 %v3244, %v3240
  %v4613 = vpack.c.b16 %v3249, %v3245
  %v4614 = vpack.c.b16 %v3250, %v3246
  %v4615 = vpack.c.b16 %v3251, %v3247
  %v4616 = vpack.c.b16 %v3252, %v3248
  %v4617 = vpack.c.b16 %v3257, %v3253
  %v4618 = vpack.c.b16 %v3258, %v3254
  %v4619 = vpack.c.b16 %v3259, %v3255
  %v4620 = vpack.c.b16 %v3260, %v3256
  %v4621 = vpack.c.b16 %v3265, %v3261
  %v4622 = vpack.c.b16 %v3266, %v3262
  %v4623 = vpack.c.b16 %v3267, %v3263
  %v4624 = vpack.c.b16 %v3268, %v3264
  %v4625 = vpack.c.b16 %v3273, %v3269
  %v4626 = vpack.c.b16 %v3274, %v3270
  %v4627 = vpack.c.b16 %v3275, %v3271
  %v4628 = vpack.c.b16 %v3276, %v3272
  %v4629 = vpack.c.b16 %v3281, %v3277
  %v4630 = vpack.c.b16 %v3282, %v3278
  %v4631 = vpack.c.b16 %v3283, %v3279
  %v4632 = vpack.c.b16 %v3284, %v3280
  %v4633 = vpack.c.b16 %v3289, %v3285
  %v4634 = vpack.c.b16 %v3290, %v3286
  %v4635 = vpack.c.b16 %v3291, %v3287
  %v4636 = vpack.c.b16 %v3292, %v3288
  %v4637 = vpack.c.b16 %v3297, %v3293
  %v4638 = vpack.c.b16 %v3298, %v3294
  %v4639 = vpack.c.b16 %v3299, %v3295
  %v4640 = vpack.c.b16 %v3300, %v3296
  %v4641 = vpack.c.b16 %v3305, %v3301
  %v4642 = vpack.c.b16 %v3306, %v3302
  %v4643 = vpack.c.b16 %v3307, %v3303
  %v4644 = vpack.c.b16 %v3308, %v3304
  %v4645 = vpack.c.b16 %v3313, %v3309
  %v4646 = vpack.c.b16 %v3314, %v3310
  %v4647 = vpack.c.b16 %v3315, %v3311
  %v4648 = vpack.c.b16 %v3316, %v3312
  %v4649 = vpack.c.b16 %v3321, %v3317
  %v4650 = vpack.c.b16 %v3322, %v3318
  %v4651 = vpack.c.b16 %v3323, %v3319
  %v4652 = vpack.c.b16 %v3324, %v3320
  %v4653 = vpack.c.b16 %v3329, %v3325
  %v4654 = vpack.c.b16 %v3330, %v3326
  %v4655 = vpack.c.b16 %v3331, %v3327
  %v4656 = vpack.c.b16 %v3332, %v3328
  %v4657 = vpack.c.b16 %v3337, %v3333
  %v4658 = vpack.c.b16 %v3338, %v3334
  %v4659 = vpack.c.b16 %v3339, %v3335
  %v4660 = vpack.c.b16 %v3340, %v3336
  %v4661 = vpack.c.b16 %v3345, %v3341
  %v4662 = vpack.c.b16 %v3346, %v3342
  %v4663 = vpack.c.b16 %v3347, %v3343
  %v4664 = vpack.c.b16 %v3348, %v3344
  %v4665 = vpack.c.b16 %v3353, %v3349
  %v4666 = vpack.c.b16 %v3354, %v3350
  %v4667 = vpack.c.b16 %v3355, %v3351
  %v4668 = vpack.c.b16 %v3356, %v3352
  %v4669 = vpack.c.b16 %v3361, %v3357
  %v4670 = vpack.c.b16 %v3362, %v3358
  %v4671 = vpack.c.b16 %v3363, %v3359
  %v4672 = vpack.c.b16 %v3364, %v3360
  %v4673 = vpack.c.b16 %v3369, %v3365
  %v4674 = vpack.c.b16 %v3370, %v3366
  %v4675 = vpack.c.b16 %v3371, %v3367
  %v4676 = vpack.c.b16 %v3372, %v3368
  %v4677 = vpack.c.b16 %v3377, %v3373
  %v4678 = vpack.c.b16 %v3378, %v3374
  %v4679 = vpack.c.b16 %v3379, %v3375
  %v4680 = vpack.c.b16 %v3380, %v3376
  %v4681 = vpack.c.b16 %v3385, %v3381
  %v4682 = vpack.c.b16 %v3386, %v3382
  %v4683 = vpack.c.b16 %v3387, %v3383
  %v4684 = vpack.c.b16 %v3388, %v3384
  %v4685 = vpack.c.b16 %v3393, %v3389
  %v4686 = vpack.c.b16 %v3394, %v3390
  %v4687 = vpack.c.b16 %v3395, %v3391
  %v4688 = vpack.c.b16 %v3396, %v3392
  %v4689 = vpack.c.b16 %v3401, %v3397
  %v4690 = vpack.c.b16 %v3402, %v3398
  %v4691 = vpack.c.b16 %v3403, %v3399
  %v4692 = vpack.c.b16 %v3404, %v3400
  %v4693 = vpack.c.b16 %v3409, %v3405
  %v4694 = vpack.c.b16 %v3410, %v3406
  %v4695 = vpack.c.b16 %v3411, %v3407
  %v4696 = vpack.c.b16 %v3412, %v3408
  %v4697 = vpack.c.b16 %v3417, %v3413
  %v4698 = vpack.c.b16 %v3418, %v3414
  %v4699 = vpack.c.b16 %v3419, %v3415
  %v4700 = vpack.c.b16 %v3420, %v3416
  %v4701 = vpack.c.b16 %v3425, %v3421
  %v4702 = vpack.c.b16 %v3426, %v3422
  %v4703 = vpack.c.b16 %v3427, %v3423
  %v4704 = vpack.c.b16 %v3428, %v3424
  %v4705 = vpack.c.b16 %v3433, %v3429
  %v4706 = vpack.c.b16 %v3434, %v3430
  %v4707 = vpack.c.b16 %v3435, %v3431
  %v4708 = vpack.c.b16 %v3436, %v3432
  %v4709 = vpack.c.b16 %v3441, %v3437
  %v4710 = vpack.c.b16 %v3442, %v3438
  %v4711 = vpack.c.b16 %v3443, %v3439
  %v4712 = vpack.c.b16 %v3444, %v3440
  %v4713 = vpack.c.b16 %v3449, %v3445
  %v4714 = vpack.c.b16 %v3450, %v3446
  %v4715 = vpack.c.b16 %v3451, %v3447
  %v4716 = vpack.c.b16 %v3452, %v3448
  %v4717 = vpack.c.b16 %v3457, %v3453
  %v4718 = vpack.c.b16 %v3458, %v3454
  %v4719 = vpack.c.b16 %v3459, %v3455
  %v4720 = vpack.c.b16 %v3460, %v3456
  %v4721 = vpack.c.b16 %v3465, %v3461
  %v4722 = vpack.c.b16 %v3466, %v3462
  %v4723 = vpack.c.b16 %v3467, %v3463
  %v4724 = vpack.c.b16 %v3468, %v3464
  %v4725 = vpack.c.b16 %v3473, %v3469
  %v4726 = vpack.c.b16 %v3474, %v3470
  %v4727 = vpack.c.b16 %v3475, %v3471
  %v4728 = vpack.c.b16 %v3476, %v3472
  %v4729 = vpack.c.b16 %v3481, %v3477
  %v4730 = vpack.c.b16 %v3482, %v3478
  %v4731 = vpack.c.b16 %v3483, %v3479
  %v4732 = vpack.c.b16 %v3484, %v3480
  %v4733 = vpack.c.b16 %v3489, %v3485
  %v4734 = vpack.c.b16 %v3490, %v3486
  %v4735 = vpack.c.b16 %v3491, %v3487
  %v4736 = vpack.c.b16 %v3492, %v3488
  %v4737 = vpack.c.b16 %v3497, %v3493
  %v4738 = vpack.c.b16 %v3498, %v3494
  %v4739 = vpack.c.b16 %v3499, %v3495
  %v4740 = vpack.c.b16 %v3500, %v3496
  %v4741 = vpack.c.b16 %v3505, %v3501
  %v4742 = vpack.c.b16 %v3506, %v3502
  %v4743 = vpack.c.b16 %v3507, %v3503
  %v4744 = vpack.c.b16 %v3508, %v3504
  %v4745 = vpack.c.b16 %v3513, %v3509
  %v4746 = vpack.c.b16 %v3514, %v3510
  %v4747 = vpack.c.b16 %v3515, %v3511
  %v4748 = vpack.c.b16 %v3516, %v3512
  %v4749 = vpack.c.b16 %v3521, %v3517
  %v4750 = vpack.c.b16 %v3522, %v3518
  %v4751 = vpack.c.b16 %v3523, %v3519
  %v4752 = vpack.c.b16 %v3524, %v3520
  %v4753 = vpack.c.b16 %v3529, %v3525
  %v4754 = vpack.c.b16 %v3530, %v3526
  %v4755 = vpack.c.b16 %v3531, %v3527
  %v4756 = vpack.c.b16 %v3532, %v3528
  %v4757 = vpack.c.b16 %v3537, %v3533
  %v4758 = vpack.c.b16 %v3538, %v3534
  %v4759 = vpack.c.b16 %v3539, %v3535
  %v4760 = vpack.c.b16 %v3540, %v3536
  %v4761 = vpack.c.b16 %v3545, %v3541
  %v4762 = vpack.c.b16 %v3546, %v3542
  %v4763 = vpack.c.b16 %v3547, %v3543
  %v4764 = vpack.c.b16 %v3548, %v3544
  %v4765 = vpack.c.b16 %v3553, %v3549
  %v4766 = vpack.c.b16 %v3554, %v3550
  %v4767 = vpack.c.b16 %v3555, %v3551
  %v4768 = vpack.c.b16 %v3556, %v3552
  %v4769 = vpack.c.b16 %v3561, %v3557
  %v4770 = vpack.c.b16 %v3562, %v3558
  %v4771 = vpack.c.b16 %v3563, %v3559
  %v4772 = vpack.c.b16 %v3564, %v3560
  %v4773 = vpack.c.b16 %v3569, %v3565
  %v4774 = vpack.c.b16 %v3570, %v3566
  %v4775 = vpack.c.b16 %v3571, %v3567
  %v4776 = vpack.c.b16 %v3572, %v3568
  %v4777 = vpack.c.b16 %v3577, %v3573
  %v4778 = vpack.c.b16 %v3578, %v3574
  %v4779 = vpack.c.b16 %v3579, %v3575
  %v4780 = vpack.c.b16 %v3580, %v3576
  %v4781 = vpack.c.b16 %v3585, %v3581
  %v4782 = vpack.c.b16 %v3586, %v3582
  %v4783 = vpack.c.b16 %v3587, %v3583
  %v4784 = vpack.c.b16 %v3588, %v3584
  %v4785 = vpack.c.b16 %v3593, %v3589
  %v4786 = vpack.c.b16 %v3594, %v3590
  %v4787 = vpack.c.b16 %v3595, %v3591
  %v4788 = vpack.c.b16 %v3596, %v3592
  %v4789 = vpack.c.b16 %v3601, %v3597
  %v4790 = vpack.c.b16 %v3602, %v3598
  %v4791 = vpack.c.b16 %v3603, %v3599
  %v4792 = vpack.c.b16 %v3604, %v3600
  %v4793 = vpack.c.b16 %v3609, %v3605
  %v4794 = vpack.c.b16 %v3610, %v3606
  %v4795 = vpack.c.b16 %v3611, %v3607
  %v4796 = vpack.c.b16 %v3612, %v3608
  %v4797 = vpack.c.b16 %v3617, %v3613
  %v4798 = vpack.c.b16 %v3618, %v3614
  %v4799 = vpack.c.b16 %v3619, %v3615
  %v4800 = vpack.c.b16 %v3620, %v3616
  %v4801 = vpack.c.b16 %v3625, %v3621
  %v4802 = vpack.c.b16 %v3626, %v3622
  %v4803 = vpack.c.b16 %v3627, %v3623
  %v4804 = vpack.c.b16 %v3628, %v3624
  %v4805 = vpack.c.b16 %v3633, %v3629
  %v4806 = vpack.c.b16 %v3634, %v3630
  %v4807 = vpack.c.b16 %v3635, %v3631
  %v4808 = vpack.c.b16 %v3636, %v3632
  %v4809 = vpack.c.b16 %v3641, %v3637
  %v4810 = vpack.c.b16 %v3642, %v3638
  %v4811 = vpack.c.b16 %v3643, %v3639
  %v4812 = vpack.c.b16 %v3644, %v3640
  %v4813 = vpack.c.b16 %v3649, %v3645
  %v4814 = vpack.c.b16 %v3650, %v3646
  %v4815 = vpack.c.b16 %v3651, %v3647
  %v4816 = vpack.c.b16 %v3652, %v3648
  %v4817 = vpack.c.b16 %v3657, %v3653
  %v4818 = vpack.c.b16 %v3658, %v3654
  %v4819 = vpack.c.b16 %v3659, %v3655
  %v4820 = vpack.c.b16 %v3660, %v3656
  %v4821 = vpack.c.b16 %v3665, %v3661
  %v4822 = vpack.c.b16 %v3666, %v3662
  %v4823 = vpack.c.b16 %v3667, %v3663
  %v4824 = vpack.c.b16 %v3668, %v3664
  %v4825 = vpack.c.b16 %v3673, %v3669
  %v4826 = vpack.c.b16 %v3674, %v3670
  %v4827 = vpack.c.b16 %v3675, %v3671
  %v4828 = vpack.c.b16 %v3676, %v3672
  %v4829 = vpack.c.b16 %v3681, %v3677
  %v4830 = vpack.c.b16 %v3682, %v3678
  %v4831 = vpack.c.b16 %v3683, %v3679
  %v4832 = vpack.c.b16 %v3684, %v3680
  %v4833 = vpack.c.b16 %v3689, %v3685
  %v4834 = vpack.c.b16 %v3690, %v3686
  %v4835 = vpack.c.b16 %v3691, %v3687
  %v4836 = vpack.c.b16 %v3692, %v3688
  %v4837 = vpack.c.b16 %v3697, %v3693
  %v4838 = vpack.c.b16 %v3698, %v3694
  %v4839 = vpack.c.b16 %v3699, %v3695
  %v4840 = vpack.c.b16 %v3700, %v3696
  %v4841 = vpack.c.b16 %v3705, %v3701
  %v4842 = vpack.c.b16 %v3706, %v3702
  %v4843 = vpack.c.b16 %v3707, %v3703
  %v4844 = vpack.c.b16 %v3708, %v3704
  %v4845 = vpack.c.b16 %v3713, %v3709
  %v4846 = vpack.c.b16 %v3714, %v3710
  %v4847 = vpack.c.b16 %v3715, %v3711
  %v4848 = vpack.c.b16 %v3716, %v3712
  %v4849 = vpack.c.b16 %v3721, %v3717
  %v4850 = vpack.c.b16 %v3722, %v3718
  %v4851 = vpack.c.b16 %v3723, %v3719
  %v4852 = vpack.c.b16 %v3724, %v3720
  %v4853 = vpack.c.b16 %v3729, %v3725
  %v4854 = vpack.c.b16 %v3730, %v3726
  %v4855 = vpack.c.b16 %v3731, %v3727
  %v4856 = vpack.c.b16 %v3732, %v3728
  %v4857 = vpack.c.b16 %v3737, %v3733
  %v4858 = vpack.c.b16 %v3738, %v3734
  %v4859 = vpack.c.b16 %v3739, %v3735
  %v4860 = vpack.c.b16 %v3740, %v3736
  %v4861 = vpack.c.b16 %v3745, %v3741
  %v4862 = vpack.c.b16 %v3746, %v3742
  %v4863 = vpack.c.b16 %v3747, %v3743
  %v4864 = vpack.c.b16 %v3748, %v3744
  %v4865 = vpack.c.b16 %v3753, %v3749
  %v4866 = vpack.c.b16 %v3754, %v3750
  %v4867 = vpack.c.b16 %v3755, %v3751
  %v4868 = vpack.c.b16 %v3756, %v3752
  %v4869 = vpack.c.b16 %v3761, %v3757
  %v4870 = vpack.c.b16 %v3762, %v3758
  %v4871 = vpack.c.b16 %v3763, %v3759
  %v4872 = vpack.c.b16 %v3764, %v3760
  %v4873 = vpack.c.b16 %v3769, %v3765
  %v4874 = vpack.c.b16 %v3770, %v3766
  %v4875 = vpack.c.b16 %v3771, %v3767
  %v4876 = vpack.c.b16 %v3772, %v3768
  %v4877 = vpack.c.b16 %v3777, %v3773
  %v4878 = vpack.c.b16 %v3778, %v3774
  %v4879 = vpack.c.b16 %v3779, %v3775
  %v4880 = vpack.c.b16 %v3780, %v3776
  %v4881 = vpack.c.b16 %v3785, %v3781
  %v4882 = vpack.c.b16 %v3786, %v3782
  %v4883 = vpack.c.b16 %v3787, %v3783
  %v4884 = vpack.c.b16 %v3788, %v3784
  %v4885 = vpack.c.b16 %v3793, %v3789
  %v4886 = vpack.c.b16 %v3794, %v3790
  %v4887 = vpack.c.b16 %v3795, %v3791
  %v4888 = vpack.c.b16 %v3796, %v3792
  %v4889 = vpack.c.b16 %v3801, %v3797
  %v4890 = vpack.c.b16 %v3802, %v3798
  %v4891 = vpack.c.b16 %v3803, %v3799
  %v4892 = vpack.c.b16 %v3804, %v3800
  %v4893 = vpack.c.b16 %v3809, %v3805
  %v4894 = vpack.c.b16 %v3810, %v3806
  %v4895 = vpack.c.b16 %v3811, %v3807
  %v4896 = vpack.c.b16 %v3812, %v3808
  %v4897 = vpack.c.b16 %v3817, %v3813
  %v4898 = vpack.c.b16 %v3818, %v3814
  %v4899 = vpack.c.b16 %v3819, %v3815
  %v4900 = vpack.c.b16 %v3820, %v3816
  %v4901 = vpack.c.b16 %v3825, %v3821
  %v4902 = vpack.c.b16 %v3826, %v3822
  %v4903 = vpack.c.b16 %v3827, %v3823
  %v4904 = vpack.c.b16 %v3828, %v3824
  %v4905 = vpack.c.b16 %v3833, %v3829
  %v4906 = vpack.c.b16 %v3834, %v3830
  %v4907 = vpack.c.b16 %v3835, %v3831
  %v4908 = vpack.c.b16 %v3836, %v3832
  %v4909 = vpack.c.b16 %v3841, %v3837
  %v4910 = vpack.c.b16 %v3842, %v3838
  %v4911 = vpack.c.b16 %v3843, %v3839
  %v4912 = vpack.c.b16 %v3844, %v3840
  %v4913 = vpack.c.b16 %v3849, %v3845
  %v4914 = vpack.c.b16 %v3850, %v3846
  %v4915 = vpack.c.b16 %v3851, %v3847
  %v4916 = vpack.c.b16 %v3852, %v3848
  %v4917 = vpack.c.b16 %v3857, %v3853
  %v4918 = vpack.c.b16 %v3858, %v3854
  %v4919 = vpack.c.b16 %v3859, %v3855
  %v4920 = vpack.c.b16 %v3860, %v3856
  %v4921 = vpack.c.b16 %v3865, %v3861
  %v4922 = vpack.c.b16 %v3866, %v3862
  %v4923 = vpack.c.b16 %v3867, %v3863
  %v4924 = vpack.c.b16 %v3868, %v3864
  %v4925 = vpack.c.b16 %v3873, %v3869
  %v4926 = vpack.c.b16 %v3874, %v3870
  %v4927 = vpack.c.b16 %v3875, %v3871
  %v4928 = vpack.c.b16 %v3876, %v3872
  %v4929 = vpack.c.b16 %v3881, %v3877
  %v4930 = vpack.c.b16 %v3882, %v3878
  %v4931 = vpack.c.b16 %v3883, %v3879
  %v4932 = vpack.c.b16 %v3884, %v3880
  %v4933 = vpack.c.b16 %v3889, %v3885
  %v4934 = vpack.c.b16 %v3890, %v3886
  %v4935 = vpack.c.b16 %v3891, %v3887
  %v4936 = vpack.c.b16 %v3892, %v3888
  %v4937 = vpack.c.b16 %v3897, %v3893
  %v4938 = vpack.c.b16 %v3898, %v3894
  %v4939 = vpack.c.b16 %v3899, %v3895
  %v4940 = vpack.c.b16 %v3900, %v3896
  %v4941 = vpack.c.b16 %v3905, %v3901
  %v4942 = vpack.c.b16 %v3906, %v3902
  %v4943 = vpack.c.b16 %v3907, %v3903
  %v4944 = vpack.c.b16 %v3908, %v3904
  %v4945 = vpack.c.b16 %v3913, %v3909
  %v4946 = vpack.c.b16 %v3914, %v3910
  %v4947 = vpack.c.b16 %v3915, %v3911
  %v4948 = vpack.c.b16 %v3916, %v3912
  %v4949 = vpack.c.b16 %v3921, %v3917
  %v4950 = vpack.c.b16 %v3922, %v3918
  %v4951 = vpack.c.b16 %v3923, %v3919
  %v4952 = vpack.c.b16 %v3924, %v3920
  %v4953 = vpack.c.b16 %v3929, %v3925
  %v4954 = vpack.c.b16 %v3930, %v3926
  %v4955 = vpack.c.b16 %v3931, %v3927
  %v4956 = vpack.c.b16 %v3932, %v3928
  %v4957 = vpack.c.b16 %v3937, %v3933
  %v4958 = vpack.c.b16 %v3938, %v3934
  %v4959 = vpack.c.b16 %v3939, %v3935
  %v4960 = vpack.c.b16 %v3940, %v3936
  %v4961 = vpack.c.b16 %v3945, %v3941
  %v4962 = vpack.c.b16 %v3946, %v3942
  %v4963 = vpack.c.b16 %v3947, %v3943
  %v4964 = vpack.c.b16 %v3948, %v3944
  %v4965 = vpack.c.b16 %v3953, %v3949
  %v4966 = vpack.c.b16 %v3954, %v3950
  %v4967 = vpack.c.b16 %v3955, %v3951
  %v4968 = vpack.c.b16 %v3956, %v3952
  %v4969 = vpack.c.b16 %v3961, %v3957
  %v4970 = vpack.c.b16 %v3962, %v3958
  %v4971 = vpack.c.b16 %v3963, %v3959
  %v4972 = vpack.c.b16 %v3964, %v3960
  %v4973 = vpack.c.b16 %v3969, %v3965
  %v4974 = vpack.c.b16 %v3970, %v3966
  %v4975 = vpack.c.b16 %v3971, %v3967
  %v4976 = vpack.c.b16 %v3972, %v3968
  %v4977 = vpack.c.b16 %v3977, %v3973
  %v4978 = vpack.c.b16 %v3978, %v3974
  %v4979 = vpack.c.b16 %v3979, %v3975
  %v4980 = vpack.c.b16 %v3980, %v3976
  %v4981 = vpack.c.b16 %v3985, %v3981
  %v4982 = vpack.c.b16 %v3986, %v3982
  %v4983 = vpack.c.b16 %v3987, %v3983
  %v4984 = vpack.c.b16 %v3988, %v3984
  %v4985 = vpack.c.b16 %v3993, %v3989
  %v4986 = vpack.c.b16 %v3994, %v3990
  %v4987 = vpack.c.b16 %v3995, %v3991
  %v4988 = vpack.c.b16 %v3996, %v3992
  %v4989 = vpack.c.b16 %v4001, %v3997
  %v4990 = vpack.c.b16 %v4002, %v3998
  %v4991 = vpack.c.b16 %v4003, %v3999
  %v4992 = vpack.c.b16 %v4004, %v4000
  %v4993 = vpack.c.b16 %v4009, %v4005
  %v4994 = vpack.c.b16 %v4010, %v4006
  %v4995 = vpack.c.b16 %v4011, %v4007
  %v4996 = vpack.c.b16 %v4012, %v4008
  %v4997 = vpack.c.b16 %v4017, %v4013
  %v4998 = vpack.c.b16 %v4018, %v4014
  %v4999 = vpack.c.b16 %v4019, %v4015
  %v5000 = vpack.c.b16 %v4020, %v4016
  %v5001 = vpack.c.b16 %v4025, %v4021
  %v5002 = vpack.c.b16 %v4026, %v4022
  %v5003 = vpack.c.b16 %v4027, %v4023
  %v5004 = vpack.c.b16 %v4028, %v4024
  %v5005 = vpack.c.b16 %v4033, %v4029
  %v5006 = vpack.c.b16 %v4034, %v4030
  %v5007 = vpack.c.b16 %v4035, %v4031
  %v5008 = vpack.c.b16 %v4036, %v4032
  %v5009 = vpack.c.b16 %v4041, %v4037
  %v5010 = vpack.c.b16 %v4042, %v4038
  %v5011 = vpack.c.b16 %v4043, %v4039
  %v5012 = vpack.c.b16 %v4044, %v4040
  %vm5981 = vcmask 261120
  %v5983 = vsel %vm5981, %v1110, 0
  %5985 = vmatprep.subr.bf16.mxu0 %v4074
  %5986 = vmatpush1.bf16.msra.mxu0 %v4073
  %5987 = vmatprep.subr.bf16.mxu0 %v4070
  %5988 = vmatpush1.bf16.msra.mxu0 %v4069
  %5989 = vmatprep.subr.bf16.mxu0 %v4066
  %5990 = vmatpush1.bf16.msra.mxu0 %v4065
  %5991 = vmatprep.subr.bf16.mxu0 %v4062
  %5992 = vmatpush1.bf16.msra.mxu0 %v4061
  %5993 = vmatprep.subr.bf16.mxu0 %v4058
  %5994 = vmatpush1.bf16.msra.mxu0 %v4057
  %5995 = vmatprep.subr.bf16.mxu0 %v4054
  %5996 = vmatpush1.bf16.msra.mxu0 %v4053
  %5997 = vmatprep.subr.bf16.mxu0 %v4050
  %5998 = vmatpush1.bf16.msra.mxu0 %v4049
  %5999 = vmatprep.subr.bf16.mxu0 %v4046
  %6000 = vmatpush1.bf16.msra.mxu0 %v4045
  %6001 = vmatprep.subr.bf16.mxu0 %v4106
  %6002 = vmatpush2.bf16.msra.mxu0 %v4105
  %6003 = vmatprep.subr.bf16.mxu0 %v4102
  %6004 = vmatpush2.bf16.msra.mxu0 %v4101
  %6005 = vmatprep.subr.bf16.mxu0 %v4098
  %6006 = vmatpush2.bf16.msra.mxu0 %v4097
  %6007 = vmatprep.subr.bf16.mxu0 %v4094
  %6008 = vmatpush2.bf16.msra.mxu0 %v4093
  %6009 = vmatprep.subr.bf16.mxu0 %v4090
  %6010 = vmatpush2.bf16.msra.mxu0 %v4089
  %6011 = vmatprep.subr.bf16.mxu0 %v4086
  %6012 = vmatpush2.bf16.msra.mxu0 %v4085
  %6013 = vmatprep.subr.bf16.mxu0 %v4082
  %6014 = vmatpush2.bf16.msra.mxu0 %v4081
  %6015 = vmatprep.subr.bf16.mxu0 %v4078
  %6016 = vmatpush2.bf16.msra.mxu0 %v4077
  %6017 = vmatprep.mubr.bf16.mxu0 %v1081
  %6018 = vmatmul.mubr.bf16.gmra.mxu0 %v1080
  %v6019 = vpop.f32.mrf.mxu0
  %v6020 = vadd.f32 %v1016, %v6019
  %v6021 = vpop.f32.mrf.mxu0
  %v6022 = vadd.f32 %v1020, %v6021
  %v6023 = vpop.f32.mrf.mxu0
  %v6024 = vpop.f32.mrf.mxu0
  %6025 = vdwg.mxu0
  %6026 = vmatprep.subr.bf16.mxu0 %v4138
  %6027 = vmatpush1.bf16.msra.mxu0 %v4137
  %6028 = vmatprep.subr.bf16.mxu0 %v4134
  %6029 = vmatpush1.bf16.msra.mxu0 %v4133
  %6030 = vmatprep.subr.bf16.mxu0 %v4130
  %6031 = vmatpush1.bf16.msra.mxu0 %v4129
  %6032 = vmatprep.subr.bf16.mxu0 %v4126
  %6033 = vmatpush1.bf16.msra.mxu0 %v4125
  %6034 = vmatprep.subr.bf16.mxu0 %v4122
  %6035 = vmatpush1.bf16.msra.mxu0 %v4121
  %6036 = vmatprep.subr.bf16.mxu0 %v4118
  %6037 = vmatpush1.bf16.msra.mxu0 %v4117
  %6038 = vmatprep.subr.bf16.mxu0 %v4114
  %6039 = vmatpush1.bf16.msra.mxu0 %v4113
  %6040 = vmatprep.subr.bf16.mxu0 %v4110
  %6041 = vmatpush1.bf16.msra.mxu0 %v4109
  %6042 = vmatprep.subr.bf16.mxu0 %v4170
  %6043 = vmatpush2.bf16.msra.mxu0 %v4169
  %6044 = vmatprep.subr.bf16.mxu0 %v4166
  %6045 = vmatpush2.bf16.msra.mxu0 %v4165
  %6046 = vmatprep.subr.bf16.mxu0 %v4162
  %6047 = vmatpush2.bf16.msra.mxu0 %v4161
  %6048 = vmatprep.subr.bf16.mxu0 %v4158
  %6049 = vmatpush2.bf16.msra.mxu0 %v4157
  %6050 = vmatprep.subr.bf16.mxu0 %v4154
  %6051 = vmatpush2.bf16.msra.mxu0 %v4153
  %6052 = vmatprep.subr.bf16.mxu0 %v4150
  %6053 = vmatpush2.bf16.msra.mxu0 %v4149
  %6054 = vmatprep.subr.bf16.mxu0 %v4146
  %6055 = vmatpush2.bf16.msra.mxu0 %v4145
  %6056 = vmatprep.subr.bf16.mxu0 %v4142
  %6057 = vmatpush2.bf16.msra.mxu0 %v4141
  %6058 = vmatprep.mubr.bf16.mxu0 %v1083
  %6059 = vmatmul.mubr.bf16.gmra.mxu0 %v1082
  %v6060 = vpop.f32.mrf.mxu0
  %v6061 = vadd.f32 %v6020, %v6060
  %v6062 = vpop.f32.mrf.mxu0
  %v6063 = vadd.f32 %v6022, %v6062
  %v6064 = vpop.f32.mrf.mxu0
  %v6065 = vpop.f32.mrf.mxu0
  %6066 = vdwg.mxu0
  %6067 = vmatprep.subr.bf16.mxu0 %v4202
  %6068 = vmatpush1.bf16.msra.mxu0 %v4201
  %6069 = vmatprep.subr.bf16.mxu0 %v4198
  %6070 = vmatpush1.bf16.msra.mxu0 %v4197
  %6071 = vmatprep.subr.bf16.mxu0 %v4194
  %6072 = vmatpush1.bf16.msra.mxu0 %v4193
  %6073 = vmatprep.subr.bf16.mxu0 %v4190
  %6074 = vmatpush1.bf16.msra.mxu0 %v4189
  %6075 = vmatprep.subr.bf16.mxu0 %v4186
  %6076 = vmatpush1.bf16.msra.mxu0 %v4185
  %6077 = vmatprep.subr.bf16.mxu0 %v4182
  %6078 = vmatpush1.bf16.msra.mxu0 %v4181
  %6079 = vmatprep.subr.bf16.mxu0 %v4178
  %6080 = vmatpush1.bf16.msra.mxu0 %v4177
  %6081 = vmatprep.subr.bf16.mxu0 %v4174
  %6082 = vmatpush1.bf16.msra.mxu0 %v4173
  %6083 = vmatprep.subr.bf16.mxu0 %v4234
  %6084 = vmatpush2.bf16.msra.mxu0 %v4233
  %6085 = vmatprep.subr.bf16.mxu0 %v4230
  %6086 = vmatpush2.bf16.msra.mxu0 %v4229
  %6087 = vmatprep.subr.bf16.mxu0 %v4226
  %6088 = vmatpush2.bf16.msra.mxu0 %v4225
  %6089 = vmatprep.subr.bf16.mxu0 %v4222
  %6090 = vmatpush2.bf16.msra.mxu0 %v4221
  %6091 = vmatprep.subr.bf16.mxu0 %v4218
  %6092 = vmatpush2.bf16.msra.mxu0 %v4217
  %6093 = vmatprep.subr.bf16.mxu0 %v4214
  %6094 = vmatpush2.bf16.msra.mxu0 %v4213
  %6095 = vmatprep.subr.bf16.mxu0 %v4210
  %6096 = vmatpush2.bf16.msra.mxu0 %v4209
  %6097 = vmatprep.subr.bf16.mxu0 %v4206
  %6098 = vmatpush2.bf16.msra.mxu0 %v4205
  %6099 = vmatprep.mubr.bf16.mxu0 %v1085
  %6100 = vmatmul.mubr.bf16.gmra.mxu0 %v1084
  %v6101 = vpop.f32.mrf.mxu0
  %v6102 = vadd.f32 %v6061, %v6101
  %v6103 = vpop.f32.mrf.mxu0
  %v6104 = vadd.f32 %v6063, %v6103
  %v6105 = vpop.f32.mrf.mxu0
  %v6106 = vpop.f32.mrf.mxu0
  %6107 = vdwg.mxu0
  %6108 = vmatprep.subr.bf16.mxu0 %v4266
  %6109 = vmatpush1.bf16.msra.mxu0 %v4265
  %6110 = vmatprep.subr.bf16.mxu0 %v4262
  %6111 = vmatpush1.bf16.msra.mxu0 %v4261
  %6112 = vmatprep.subr.bf16.mxu0 %v4258
  %6113 = vmatpush1.bf16.msra.mxu0 %v4257
  %6114 = vmatprep.subr.bf16.mxu0 %v4254
  %6115 = vmatpush1.bf16.msra.mxu0 %v4253
  %6116 = vmatprep.subr.bf16.mxu0 %v4250
  %6117 = vmatpush1.bf16.msra.mxu0 %v4249
  %6118 = vmatprep.subr.bf16.mxu0 %v4246
  %6119 = vmatpush1.bf16.msra.mxu0 %v4245
  %6120 = vmatprep.subr.bf16.mxu0 %v4242
  %6121 = vmatpush1.bf16.msra.mxu0 %v4241
  %6122 = vmatprep.subr.bf16.mxu0 %v4238
  %6123 = vmatpush1.bf16.msra.mxu0 %v4237
  %6124 = vmatprep.subr.bf16.mxu0 %v4298
  %6125 = vmatpush2.bf16.msra.mxu0 %v4297
  %6126 = vmatprep.subr.bf16.mxu0 %v4294
  %6127 = vmatpush2.bf16.msra.mxu0 %v4293
  %6128 = vmatprep.subr.bf16.mxu0 %v4290
  %6129 = vmatpush2.bf16.msra.mxu0 %v4289
  %6130 = vmatprep.subr.bf16.mxu0 %v4286
  %6131 = vmatpush2.bf16.msra.mxu0 %v4285
  %6132 = vmatprep.subr.bf16.mxu0 %v4282
  %6133 = vmatpush2.bf16.msra.mxu0 %v4281
  %6134 = vmatprep.subr.bf16.mxu0 %v4278
  %6135 = vmatpush2.bf16.msra.mxu0 %v4277
  %6136 = vmatprep.subr.bf16.mxu0 %v4274
  %6137 = vmatpush2.bf16.msra.mxu0 %v4273
  %6138 = vmatprep.subr.bf16.mxu0 %v4270
  %6139 = vmatpush2.bf16.msra.mxu0 %v4269
  %6140 = vmatprep.mubr.bf16.mxu0 %v1087
  %6141 = vmatmul.mubr.bf16.gmra.mxu0 %v1086
  %v6142 = vpop.f32.mrf.mxu0
  %v6143 = vadd.f32 %v6102, %v6142
  %v6144 = vpop.f32.mrf.mxu0
  %v6145 = vadd.f32 %v6104, %v6144
  %v6146 = vpop.f32.mrf.mxu0
  %v6147 = vpop.f32.mrf.mxu0
  %6148 = vdwg.mxu0
  %6149 = vmatprep.subr.bf16.mxu0 %v4330
  %6150 = vmatpush1.bf16.msra.mxu0 %v4329
  %6151 = vmatprep.subr.bf16.mxu0 %v4326
  %6152 = vmatpush1.bf16.msra.mxu0 %v4325
  %6153 = vmatprep.subr.bf16.mxu0 %v4322
  %6154 = vmatpush1.bf16.msra.mxu0 %v4321
  %6155 = vmatprep.subr.bf16.mxu0 %v4318
  %6156 = vmatpush1.bf16.msra.mxu0 %v4317
  %6157 = vmatprep.subr.bf16.mxu0 %v4314
  %6158 = vmatpush1.bf16.msra.mxu0 %v4313
  %6159 = vmatprep.subr.bf16.mxu0 %v4310
  %6160 = vmatpush1.bf16.msra.mxu0 %v4309
  %6161 = vmatprep.subr.bf16.mxu0 %v4306
  %6162 = vmatpush1.bf16.msra.mxu0 %v4305
  %6163 = vmatprep.subr.bf16.mxu0 %v4302
  %6164 = vmatpush1.bf16.msra.mxu0 %v4301
  %6165 = vmatprep.subr.bf16.mxu0 %v4362
  %6166 = vmatpush2.bf16.msra.mxu0 %v4361
  %6167 = vmatprep.subr.bf16.mxu0 %v4358
  %6168 = vmatpush2.bf16.msra.mxu0 %v4357
  %6169 = vmatprep.subr.bf16.mxu0 %v4354
  %6170 = vmatpush2.bf16.msra.mxu0 %v4353
  %6171 = vmatprep.subr.bf16.mxu0 %v4350
  %6172 = vmatpush2.bf16.msra.mxu0 %v4349
  %6173 = vmatprep.subr.bf16.mxu0 %v4346
  %6174 = vmatpush2.bf16.msra.mxu0 %v4345
  %6175 = vmatprep.subr.bf16.mxu0 %v4342
  %6176 = vmatpush2.bf16.msra.mxu0 %v4341
  %6177 = vmatprep.subr.bf16.mxu0 %v4338
  %6178 = vmatpush2.bf16.msra.mxu0 %v4337
  %6179 = vmatprep.subr.bf16.mxu0 %v4334
  %6180 = vmatpush2.bf16.msra.mxu0 %v4333
  %6181 = vmatprep.mubr.bf16.mxu0 %v1089
  %6182 = vmatmul.mubr.bf16.gmra.mxu0 %v1088
  %v6183 = vpop.f32.mrf.mxu0
  %v6184 = vadd.f32 %v6143, %v6183
  %v6185 = vpop.f32.mrf.mxu0
  %v6186 = vadd.f32 %v6145, %v6185
  %v6187 = vpop.f32.mrf.mxu0
  %v6188 = vpop.f32.mrf.mxu0
  %6189 = vdwg.mxu0
  %6190 = vmatprep.subr.bf16.mxu0 %v4394
  %6191 = vmatpush1.bf16.msra.mxu0 %v4393
  %6192 = vmatprep.subr.bf16.mxu0 %v4390
  %6193 = vmatpush1.bf16.msra.mxu0 %v4389
  %6194 = vmatprep.subr.bf16.mxu0 %v4386
  %6195 = vmatpush1.bf16.msra.mxu0 %v4385
  %6196 = vmatprep.subr.bf16.mxu0 %v4382
  %6197 = vmatpush1.bf16.msra.mxu0 %v4381
  %6198 = vmatprep.subr.bf16.mxu0 %v4378
  %6199 = vmatpush1.bf16.msra.mxu0 %v4377
  %6200 = vmatprep.subr.bf16.mxu0 %v4374
  %6201 = vmatpush1.bf16.msra.mxu0 %v4373
  %6202 = vmatprep.subr.bf16.mxu0 %v4370
  %6203 = vmatpush1.bf16.msra.mxu0 %v4369
  %6204 = vmatprep.subr.bf16.mxu0 %v4366
  %6205 = vmatpush1.bf16.msra.mxu0 %v4365
  %6206 = vmatprep.subr.bf16.mxu0 %v4426
  %6207 = vmatpush2.bf16.msra.mxu0 %v4425
  %6208 = vmatprep.subr.bf16.mxu0 %v4422
  %6209 = vmatpush2.bf16.msra.mxu0 %v4421
  %6210 = vmatprep.subr.bf16.mxu0 %v4418
  %6211 = vmatpush2.bf16.msra.mxu0 %v4417
  %6212 = vmatprep.subr.bf16.mxu0 %v4414
  %6213 = vmatpush2.bf16.msra.mxu0 %v4413
  %6214 = vmatprep.subr.bf16.mxu0 %v4410
  %6215 = vmatpush2.bf16.msra.mxu0 %v4409
  %6216 = vmatprep.subr.bf16.mxu0 %v4406
  %6217 = vmatpush2.bf16.msra.mxu0 %v4405
  %6218 = vmatprep.subr.bf16.mxu0 %v4402
  %6219 = vmatpush2.bf16.msra.mxu0 %v4401
  %6220 = vmatprep.subr.bf16.mxu0 %v4398
  %6221 = vmatpush2.bf16.msra.mxu0 %v4397
  %6222 = vmatprep.mubr.bf16.mxu0 %v1091
  %6223 = vmatmul.mubr.bf16.gmra.mxu0 %v1090
  %v6224 = vpop.f32.mrf.mxu0
  %v6225 = vadd.f32 %v6184, %v6224
  %v6226 = vpop.f32.mrf.mxu0
  %v6227 = vadd.f32 %v6186, %v6226
  %v6228 = vpop.f32.mrf.mxu0
  %v6229 = vpop.f32.mrf.mxu0
  %6230 = vdwg.mxu0
  %6231 = vmatprep.subr.bf16.mxu0 %v4458
  %6232 = vmatpush1.bf16.msra.mxu0 %v4457
  %6233 = vmatprep.subr.bf16.mxu0 %v4454
  %6234 = vmatpush1.bf16.msra.mxu0 %v4453
  %6235 = vmatprep.subr.bf16.mxu0 %v4450
  %6236 = vmatpush1.bf16.msra.mxu0 %v4449
  %6237 = vmatprep.subr.bf16.mxu0 %v4446
  %6238 = vmatpush1.bf16.msra.mxu0 %v4445
  %6239 = vmatprep.subr.bf16.mxu0 %v4442
  %6240 = vmatpush1.bf16.msra.mxu0 %v4441
  %6241 = vmatprep.subr.bf16.mxu0 %v4438
  %6242 = vmatpush1.bf16.msra.mxu0 %v4437
  %6243 = vmatprep.subr.bf16.mxu0 %v4434
  %6244 = vmatpush1.bf16.msra.mxu0 %v4433
  %6245 = vmatprep.subr.bf16.mxu0 %v4430
  %6246 = vmatpush1.bf16.msra.mxu0 %v4429
  %6247 = vmatprep.subr.bf16.mxu0 %v4490
  %6248 = vmatpush2.bf16.msra.mxu0 %v4489
  %6249 = vmatprep.subr.bf16.mxu0 %v4486
  %6250 = vmatpush2.bf16.msra.mxu0 %v4485
  %6251 = vmatprep.subr.bf16.mxu0 %v4482
  %6252 = vmatpush2.bf16.msra.mxu0 %v4481
  %6253 = vmatprep.subr.bf16.mxu0 %v4478
  %6254 = vmatpush2.bf16.msra.mxu0 %v4477
  %6255 = vmatprep.subr.bf16.mxu0 %v4474
  %6256 = vmatpush2.bf16.msra.mxu0 %v4473
  %6257 = vmatprep.subr.bf16.mxu0 %v4470
  %6258 = vmatpush2.bf16.msra.mxu0 %v4469
  %6259 = vmatprep.subr.bf16.mxu0 %v4466
  %6260 = vmatpush2.bf16.msra.mxu0 %v4465
  %6261 = vmatprep.subr.bf16.mxu0 %v4462
  %6262 = vmatpush2.bf16.msra.mxu0 %v4461
  %6263 = vmatprep.mubr.bf16.mxu0 %v1093
  %6264 = vmatmul.mubr.bf16.gmra.mxu0 %v1092
  %v6265 = vpop.f32.mrf.mxu0
  %v6266 = vadd.f32 %v6225, %v6265
  %v6267 = vpop.f32.mrf.mxu0
  %v6268 = vadd.f32 %v6227, %v6267
  %v6269 = vpop.f32.mrf.mxu0
  %v6270 = vpop.f32.mrf.mxu0
  %6271 = vdwg.mxu0
  %6272 = vmatprep.subr.bf16.mxu0 %v4522
  %6273 = vmatpush1.bf16.msra.mxu0 %v4521
  %6274 = vmatprep.subr.bf16.mxu0 %v4518
  %6275 = vmatpush1.bf16.msra.mxu0 %v4517
  %6276 = vmatprep.subr.bf16.mxu0 %v4514
  %6277 = vmatpush1.bf16.msra.mxu0 %v4513
  %6278 = vmatprep.subr.bf16.mxu0 %v4510
  %6279 = vmatpush1.bf16.msra.mxu0 %v4509
  %6280 = vmatprep.subr.bf16.mxu0 %v4506
  %6281 = vmatpush1.bf16.msra.mxu0 %v4505
  %6282 = vmatprep.subr.bf16.mxu0 %v4502
  %6283 = vmatpush1.bf16.msra.mxu0 %v4501
  %6284 = vmatprep.subr.bf16.mxu0 %v4498
  %6285 = vmatpush1.bf16.msra.mxu0 %v4497
  %6286 = vmatprep.subr.bf16.mxu0 %v4494
  %6287 = vmatpush1.bf16.msra.mxu0 %v4493
  %6288 = vmatprep.subr.bf16.mxu0 %v4554
  %6289 = vmatpush2.bf16.msra.mxu0 %v4553
  %6290 = vmatprep.subr.bf16.mxu0 %v4550
  %6291 = vmatpush2.bf16.msra.mxu0 %v4549
  %6292 = vmatprep.subr.bf16.mxu0 %v4546
  %6293 = vmatpush2.bf16.msra.mxu0 %v4545
  %6294 = vmatprep.subr.bf16.mxu0 %v4542
  %6295 = vmatpush2.bf16.msra.mxu0 %v4541
  %6296 = vmatprep.subr.bf16.mxu0 %v4538
  %6297 = vmatpush2.bf16.msra.mxu0 %v4537
  %6298 = vmatprep.subr.bf16.mxu0 %v4534
  %6299 = vmatpush2.bf16.msra.mxu0 %v4533
  %6300 = vmatprep.subr.bf16.mxu0 %v4530
  %6301 = vmatpush2.bf16.msra.mxu0 %v4529
  %6302 = vmatprep.subr.bf16.mxu0 %v4526
  %6303 = vmatpush2.bf16.msra.mxu0 %v4525
  %6304 = vmatprep.mubr.bf16.mxu0 %v1095
  %6305 = vmatmul.mubr.bf16.gmra.mxu0 %v1094
  %v6306 = vpop.f32.mrf.mxu0
  %v6307 = vadd.f32 %v6266, %v6306
  %v6308 = vpop.f32.mrf.mxu0
  %v6309 = vadd.f32 %v6268, %v6308
  %v6310 = vpop.f32.mrf.mxu0
  %v6311 = vpop.f32.mrf.mxu0
  %6312 = vdwg.mxu0
  %6313 = vmatprep.subr.bf16.mxu0 %v4586
  %6314 = vmatpush1.bf16.msra.mxu0 %v4585
  %6315 = vmatprep.subr.bf16.mxu0 %v4582
  %6316 = vmatpush1.bf16.msra.mxu0 %v4581
  %6317 = vmatprep.subr.bf16.mxu0 %v4578
  %6318 = vmatpush1.bf16.msra.mxu0 %v4577
  %6319 = vmatprep.subr.bf16.mxu0 %v4574
  %6320 = vmatpush1.bf16.msra.mxu0 %v4573
  %6321 = vmatprep.subr.bf16.mxu0 %v4570
  %6322 = vmatpush1.bf16.msra.mxu0 %v4569
  %6323 = vmatprep.subr.bf16.mxu0 %v4566
  %6324 = vmatpush1.bf16.msra.mxu0 %v4565
  %6325 = vmatprep.subr.bf16.mxu0 %v4562
  %6326 = vmatpush1.bf16.msra.mxu0 %v4561
  %6327 = vmatprep.subr.bf16.mxu0 %v4558
  %6328 = vmatpush1.bf16.msra.mxu0 %v4557
  %6329 = vmatprep.subr.bf16.mxu0 %v4618
  %6330 = vmatpush2.bf16.msra.mxu0 %v4617
  %6331 = vmatprep.subr.bf16.mxu0 %v4614
  %6332 = vmatpush2.bf16.msra.mxu0 %v4613
  %6333 = vmatprep.subr.bf16.mxu0 %v4610
  %6334 = vmatpush2.bf16.msra.mxu0 %v4609
  %6335 = vmatprep.subr.bf16.mxu0 %v4606
  %6336 = vmatpush2.bf16.msra.mxu0 %v4605
  %6337 = vmatprep.subr.bf16.mxu0 %v4602
  %6338 = vmatpush2.bf16.msra.mxu0 %v4601
  %6339 = vmatprep.subr.bf16.mxu0 %v4598
  %6340 = vmatpush2.bf16.msra.mxu0 %v4597
  %6341 = vmatprep.subr.bf16.mxu0 %v4594
  %6342 = vmatpush2.bf16.msra.mxu0 %v4593
  %6343 = vmatprep.subr.bf16.mxu0 %v4590
  %6344 = vmatpush2.bf16.msra.mxu0 %v4589
  %6345 = vmatprep.mubr.bf16.mxu0 %v1097
  %6346 = vmatmul.mubr.bf16.gmra.mxu0 %v1096
  %v6347 = vpop.f32.mrf.mxu0
  %v6348 = vadd.f32 %v6307, %v6347
  %v6349 = vpop.f32.mrf.mxu0
  %v6350 = vadd.f32 %v6309, %v6349
  %v6351 = vpop.f32.mrf.mxu0
  %v6352 = vpop.f32.mrf.mxu0
  %6353 = vdwg.mxu0
  %6354 = vmatprep.subr.bf16.mxu0 %v4650
  %6355 = vmatpush1.bf16.msra.mxu0 %v4649
  %6356 = vmatprep.subr.bf16.mxu0 %v4646
  %6357 = vmatpush1.bf16.msra.mxu0 %v4645
  %6358 = vmatprep.subr.bf16.mxu0 %v4642
  %6359 = vmatpush1.bf16.msra.mxu0 %v4641
  %6360 = vmatprep.subr.bf16.mxu0 %v4638
  %6361 = vmatpush1.bf16.msra.mxu0 %v4637
  %6362 = vmatprep.subr.bf16.mxu0 %v4634
  %6363 = vmatpush1.bf16.msra.mxu0 %v4633
  %6364 = vmatprep.subr.bf16.mxu0 %v4630
  %6365 = vmatpush1.bf16.msra.mxu0 %v4629
  %6366 = vmatprep.subr.bf16.mxu0 %v4626
  %6367 = vmatpush1.bf16.msra.mxu0 %v4625
  %6368 = vmatprep.subr.bf16.mxu0 %v4622
  %6369 = vmatpush1.bf16.msra.mxu0 %v4621
  %6370 = vmatprep.subr.bf16.mxu0 %v4682
  %6371 = vmatpush2.bf16.msra.mxu0 %v4681
  %6372 = vmatprep.subr.bf16.mxu0 %v4678
  %6373 = vmatpush2.bf16.msra.mxu0 %v4677
  %6374 = vmatprep.subr.bf16.mxu0 %v4674
  %6375 = vmatpush2.bf16.msra.mxu0 %v4673
  %6376 = vmatprep.subr.bf16.mxu0 %v4670
  %6377 = vmatpush2.bf16.msra.mxu0 %v4669
  %6378 = vmatprep.subr.bf16.mxu0 %v4666
  %6379 = vmatpush2.bf16.msra.mxu0 %v4665
  %6380 = vmatprep.subr.bf16.mxu0 %v4662
  %6381 = vmatpush2.bf16.msra.mxu0 %v4661
  %6382 = vmatprep.subr.bf16.mxu0 %v4658
  %6383 = vmatpush2.bf16.msra.mxu0 %v4657
  %6384 = vmatprep.subr.bf16.mxu0 %v4654
  %6385 = vmatpush2.bf16.msra.mxu0 %v4653
  %6386 = vmatprep.mubr.bf16.mxu0 %v1099
  %6387 = vmatmul.mubr.bf16.gmra.mxu0 %v1098
  %v6388 = vpop.f32.mrf.mxu0
  %v6389 = vadd.f32 %v6348, %v6388
  %v6390 = vpop.f32.mrf.mxu0
  %v6391 = vadd.f32 %v6350, %v6390
  %v6392 = vpop.f32.mrf.mxu0
  %v6393 = vpop.f32.mrf.mxu0
  %6394 = vdwg.mxu0
  %6395 = vmatprep.subr.bf16.mxu0 %v4714
  %6396 = vmatpush1.bf16.msra.mxu0 %v4713
  %6397 = vmatprep.subr.bf16.mxu0 %v4710
  %6398 = vmatpush1.bf16.msra.mxu0 %v4709
  %6399 = vmatprep.subr.bf16.mxu0 %v4706
  %6400 = vmatpush1.bf16.msra.mxu0 %v4705
  %6401 = vmatprep.subr.bf16.mxu0 %v4702
  %6402 = vmatpush1.bf16.msra.mxu0 %v4701
  %6403 = vmatprep.subr.bf16.mxu0 %v4698
  %6404 = vmatpush1.bf16.msra.mxu0 %v4697
  %6405 = vmatprep.subr.bf16.mxu0 %v4694
  %6406 = vmatpush1.bf16.msra.mxu0 %v4693
  %6407 = vmatprep.subr.bf16.mxu0 %v4690
  %6408 = vmatpush1.bf16.msra.mxu0 %v4689
  %6409 = vmatprep.subr.bf16.mxu0 %v4686
  %6410 = vmatpush1.bf16.msra.mxu0 %v4685
  %6411 = vmatprep.subr.bf16.mxu0 %v4746
  %6412 = vmatpush2.bf16.msra.mxu0 %v4745
  %6413 = vmatprep.subr.bf16.mxu0 %v4742
  %6414 = vmatpush2.bf16.msra.mxu0 %v4741
  %6415 = vmatprep.subr.bf16.mxu0 %v4738
  %6416 = vmatpush2.bf16.msra.mxu0 %v4737
  %6417 = vmatprep.subr.bf16.mxu0 %v4734
  %6418 = vmatpush2.bf16.msra.mxu0 %v4733
  %6419 = vmatprep.subr.bf16.mxu0 %v4730
  %6420 = vmatpush2.bf16.msra.mxu0 %v4729
  %6421 = vmatprep.subr.bf16.mxu0 %v4726
  %6422 = vmatpush2.bf16.msra.mxu0 %v4725
  %6423 = vmatprep.subr.bf16.mxu0 %v4722
  %6424 = vmatpush2.bf16.msra.mxu0 %v4721
  %6425 = vmatprep.subr.bf16.mxu0 %v4718
  %6426 = vmatpush2.bf16.msra.mxu0 %v4717
  %6427 = vmatprep.mubr.bf16.mxu0 %v1101
  %6428 = vmatmul.mubr.bf16.gmra.mxu0 %v1100
  %v6429 = vpop.f32.mrf.mxu0
  %v6430 = vadd.f32 %v6389, %v6429
  %v6431 = vpop.f32.mrf.mxu0
  %v6432 = vadd.f32 %v6391, %v6431
  %v6433 = vpop.f32.mrf.mxu0
  %v6434 = vpop.f32.mrf.mxu0
  %6435 = vdwg.mxu0
  %6436 = vmatprep.subr.bf16.mxu0 %v4778
  %6437 = vmatpush1.bf16.msra.mxu0 %v4777
  %6438 = vmatprep.subr.bf16.mxu0 %v4774
  %6439 = vmatpush1.bf16.msra.mxu0 %v4773
  %6440 = vmatprep.subr.bf16.mxu0 %v4770
  %6441 = vmatpush1.bf16.msra.mxu0 %v4769
  %6442 = vmatprep.subr.bf16.mxu0 %v4766
  %6443 = vmatpush1.bf16.msra.mxu0 %v4765
  %6444 = vmatprep.subr.bf16.mxu0 %v4762
  %6445 = vmatpush1.bf16.msra.mxu0 %v4761
  %6446 = vmatprep.subr.bf16.mxu0 %v4758
  %6447 = vmatpush1.bf16.msra.mxu0 %v4757
  %6448 = vmatprep.subr.bf16.mxu0 %v4754
  %6449 = vmatpush1.bf16.msra.mxu0 %v4753
  %6450 = vmatprep.subr.bf16.mxu0 %v4750
  %6451 = vmatpush1.bf16.msra.mxu0 %v4749
  %6452 = vmatprep.subr.bf16.mxu0 %v4810
  %6453 = vmatpush2.bf16.msra.mxu0 %v4809
  %6454 = vmatprep.subr.bf16.mxu0 %v4806
  %6455 = vmatpush2.bf16.msra.mxu0 %v4805
  %6456 = vmatprep.subr.bf16.mxu0 %v4802
  %6457 = vmatpush2.bf16.msra.mxu0 %v4801
  %6458 = vmatprep.subr.bf16.mxu0 %v4798
  %6459 = vmatpush2.bf16.msra.mxu0 %v4797
  %6460 = vmatprep.subr.bf16.mxu0 %v4794
  %6461 = vmatpush2.bf16.msra.mxu0 %v4793
  %6462 = vmatprep.subr.bf16.mxu0 %v4790
  %6463 = vmatpush2.bf16.msra.mxu0 %v4789
  %6464 = vmatprep.subr.bf16.mxu0 %v4786
  %6465 = vmatpush2.bf16.msra.mxu0 %v4785
  %6466 = vmatprep.subr.bf16.mxu0 %v4782
  %6467 = vmatpush2.bf16.msra.mxu0 %v4781
  %6468 = vmatprep.mubr.bf16.mxu0 %v1103
  %6469 = vmatmul.mubr.bf16.gmra.mxu0 %v1102
  %v6470 = vpop.f32.mrf.mxu0
  %v6471 = vadd.f32 %v6430, %v6470
  %v6472 = vpop.f32.mrf.mxu0
  %v6473 = vadd.f32 %v6432, %v6472
  %v6474 = vpop.f32.mrf.mxu0
  %v6475 = vpop.f32.mrf.mxu0
  %6476 = vdwg.mxu0
  %6477 = vmatprep.subr.bf16.mxu0 %v4842
  %6478 = vmatpush1.bf16.msra.mxu0 %v4841
  %6479 = vmatprep.subr.bf16.mxu0 %v4838
  %6480 = vmatpush1.bf16.msra.mxu0 %v4837
  %6481 = vmatprep.subr.bf16.mxu0 %v4834
  %6482 = vmatpush1.bf16.msra.mxu0 %v4833
  %6483 = vmatprep.subr.bf16.mxu0 %v4830
  %6484 = vmatpush1.bf16.msra.mxu0 %v4829
  %6485 = vmatprep.subr.bf16.mxu0 %v4826
  %6486 = vmatpush1.bf16.msra.mxu0 %v4825
  %6487 = vmatprep.subr.bf16.mxu0 %v4822
  %6488 = vmatpush1.bf16.msra.mxu0 %v4821
  %6489 = vmatprep.subr.bf16.mxu0 %v4818
  %6490 = vmatpush1.bf16.msra.mxu0 %v4817
  %6491 = vmatprep.subr.bf16.mxu0 %v4814
  %6492 = vmatpush1.bf16.msra.mxu0 %v4813
  %6493 = vmatprep.subr.bf16.mxu0 %v4874
  %6494 = vmatpush2.bf16.msra.mxu0 %v4873
  %6495 = vmatprep.subr.bf16.mxu0 %v4870
  %6496 = vmatpush2.bf16.msra.mxu0 %v4869
  %6497 = vmatprep.subr.bf16.mxu0 %v4866
  %6498 = vmatpush2.bf16.msra.mxu0 %v4865
  %6499 = vmatprep.subr.bf16.mxu0 %v4862
  %6500 = vmatpush2.bf16.msra.mxu0 %v4861
  %6501 = vmatprep.subr.bf16.mxu0 %v4858
  %6502 = vmatpush2.bf16.msra.mxu0 %v4857
  %6503 = vmatprep.subr.bf16.mxu0 %v4854
  %6504 = vmatpush2.bf16.msra.mxu0 %v4853
  %6505 = vmatprep.subr.bf16.mxu0 %v4850
  %6506 = vmatpush2.bf16.msra.mxu0 %v4849
  %6507 = vmatprep.subr.bf16.mxu0 %v4846
  %6508 = vmatpush2.bf16.msra.mxu0 %v4845
  %6509 = vmatprep.mubr.bf16.mxu0 %v1105
  %6510 = vmatmul.mubr.bf16.gmra.mxu0 %v1104
  %v6511 = vpop.f32.mrf.mxu0
  %v6512 = vadd.f32 %v6471, %v6511
  %v6513 = vpop.f32.mrf.mxu0
  %v6514 = vadd.f32 %v6473, %v6513
  %v6515 = vpop.f32.mrf.mxu0
  %v6516 = vpop.f32.mrf.mxu0
  %6517 = vdwg.mxu0
  %6518 = vmatprep.subr.bf16.mxu0 %v4906
  %6519 = vmatpush1.bf16.msra.mxu0 %v4905
  %6520 = vmatprep.subr.bf16.mxu0 %v4902
  %6521 = vmatpush1.bf16.msra.mxu0 %v4901
  %6522 = vmatprep.subr.bf16.mxu0 %v4898
  %6523 = vmatpush1.bf16.msra.mxu0 %v4897
  %6524 = vmatprep.subr.bf16.mxu0 %v4894
  %6525 = vmatpush1.bf16.msra.mxu0 %v4893
  %6526 = vmatprep.subr.bf16.mxu0 %v4890
  %6527 = vmatpush1.bf16.msra.mxu0 %v4889
  %6528 = vmatprep.subr.bf16.mxu0 %v4886
  %6529 = vmatpush1.bf16.msra.mxu0 %v4885
  %6530 = vmatprep.subr.bf16.mxu0 %v4882
  %6531 = vmatpush1.bf16.msra.mxu0 %v4881
  %6532 = vmatprep.subr.bf16.mxu0 %v4878
  %6533 = vmatpush1.bf16.msra.mxu0 %v4877
  %6534 = vmatprep.subr.bf16.mxu0 %v4938
  %6535 = vmatpush2.bf16.msra.mxu0 %v4937
  %6536 = vmatprep.subr.bf16.mxu0 %v4934
  %6537 = vmatpush2.bf16.msra.mxu0 %v4933
  %6538 = vmatprep.subr.bf16.mxu0 %v4930
  %6539 = vmatpush2.bf16.msra.mxu0 %v4929
  %6540 = vmatprep.subr.bf16.mxu0 %v4926
  %6541 = vmatpush2.bf16.msra.mxu0 %v4925
  %6542 = vmatprep.subr.bf16.mxu0 %v4922
  %6543 = vmatpush2.bf16.msra.mxu0 %v4921
  %6544 = vmatprep.subr.bf16.mxu0 %v4918
  %6545 = vmatpush2.bf16.msra.mxu0 %v4917
  %6546 = vmatprep.subr.bf16.mxu0 %v4914
  %6547 = vmatpush2.bf16.msra.mxu0 %v4913
  %6548 = vmatprep.subr.bf16.mxu0 %v4910
  %6549 = vmatpush2.bf16.msra.mxu0 %v4909
  %6550 = vmatprep.mubr.bf16.mxu0 %v1107
  %6551 = vmatmul.mubr.bf16.gmra.mxu0 %v1106
  %v6552 = vpop.f32.mrf.mxu0
  %v6553 = vadd.f32 %v6512, %v6552
  %v6554 = vpop.f32.mrf.mxu0
  %v6555 = vadd.f32 %v6514, %v6554
  %v6556 = vpop.f32.mrf.mxu0
  %v6557 = vpop.f32.mrf.mxu0
  %6558 = vdwg.mxu0
  %6559 = vmatprep.subr.bf16.mxu0 %v4970
  %6560 = vmatpush1.bf16.msra.mxu0 %v4969
  %6561 = vmatprep.subr.bf16.mxu0 %v4966
  %6562 = vmatpush1.bf16.msra.mxu0 %v4965
  %6563 = vmatprep.subr.bf16.mxu0 %v4962
  %6564 = vmatpush1.bf16.msra.mxu0 %v4961
  %6565 = vmatprep.subr.bf16.mxu0 %v4958
  %6566 = vmatpush1.bf16.msra.mxu0 %v4957
  %6567 = vmatprep.subr.bf16.mxu0 %v4954
  %6568 = vmatpush1.bf16.msra.mxu0 %v4953
  %6569 = vmatprep.subr.bf16.mxu0 %v4950
  %6570 = vmatpush1.bf16.msra.mxu0 %v4949
  %6571 = vmatprep.subr.bf16.mxu0 %v4946
  %6572 = vmatpush1.bf16.msra.mxu0 %v4945
  %6573 = vmatprep.subr.bf16.mxu0 %v4942
  %6574 = vmatpush1.bf16.msra.mxu0 %v4941
  %6575 = vmatprep.subr.bf16.mxu0 %v5002
  %6576 = vmatpush2.bf16.msra.mxu0 %v5001
  %6577 = vmatprep.subr.bf16.mxu0 %v4998
  %6578 = vmatpush2.bf16.msra.mxu0 %v4997
  %6579 = vmatprep.subr.bf16.mxu0 %v4994
  %6580 = vmatpush2.bf16.msra.mxu0 %v4993
  %6581 = vmatprep.subr.bf16.mxu0 %v4990
  %6582 = vmatpush2.bf16.msra.mxu0 %v4989
  %6583 = vmatprep.subr.bf16.mxu0 %v4986
  %6584 = vmatpush2.bf16.msra.mxu0 %v4985
  %6585 = vmatprep.subr.bf16.mxu0 %v4982
  %6586 = vmatpush2.bf16.msra.mxu0 %v4981
  %6587 = vmatprep.subr.bf16.mxu0 %v4978
  %6588 = vmatpush2.bf16.msra.mxu0 %v4977
  %6589 = vmatprep.subr.bf16.mxu0 %v4974
  %6590 = vmatpush2.bf16.msra.mxu0 %v4973
  %6591 = vmatprep.mubr.bf16.mxu0 %v1109
  %6592 = vmatmul.mubr.bf16.gmra.mxu0 %v1108
  %v6593 = vpop.f32.mrf.mxu0
  %v6594 = vadd.f32 %v6553, %v6593
  %v6595 = vpop.f32.mrf.mxu0
  %v6596 = vadd.f32 %v6555, %v6595
  %v6597 = vpop.f32.mrf.mxu0
  %v6598 = vpop.f32.mrf.mxu0
  %6599 = vdwg.mxu0
  %6600 = vmatprep.subr.bf16.mxu0 0
  %6601 = vmatpush1.bf16.msra.mxu0 0
  %6602 = vmatprep.subr.bf16.mxu0 0
  %6603 = vmatpush1.bf16.msra.mxu0 0
  %6604 = vmatprep.subr.bf16.mxu0 0
  %6605 = vmatpush1.bf16.msra.mxu0 0
  %6606 = vmatprep.subr.bf16.mxu0 0
  %6607 = vmatpush1.bf16.msra.mxu0 0
  %6608 = vmatprep.subr.bf16.mxu0 0
  %6609 = vmatpush1.bf16.msra.mxu0 0
  %6610 = vmatprep.subr.bf16.mxu0 0
  %6611 = vmatpush1.bf16.msra.mxu0 0
  %6612 = vmatprep.subr.bf16.mxu0 %v5010
  %6613 = vmatpush1.bf16.msra.mxu0 %v5009
  %6614 = vmatprep.subr.bf16.mxu0 %v5006
  %6615 = vmatpush1.bf16.msra.mxu0 %v5005
  %6616 = vmatprep.subr.bf16.mxu0 0
  %6617 = vmatpush2.bf16.msra.mxu0 0
  %6618 = vmatprep.subr.bf16.mxu0 0
  %6619 = vmatpush2.bf16.msra.mxu0 0
  %6620 = vmatprep.subr.bf16.mxu0 0
  %6621 = vmatpush2.bf16.msra.mxu0 0
  %6622 = vmatprep.subr.bf16.mxu0 0
  %6623 = vmatpush2.bf16.msra.mxu0 0
  %6624 = vmatprep.subr.bf16.mxu0 0
  %6625 = vmatpush2.bf16.msra.mxu0 0
  %6626 = vmatprep.subr.bf16.mxu0 0
  %6627 = vmatpush2.bf16.msra.mxu0 0
  %6628 = vmatprep.subr.bf16.mxu0 0
  %6629 = vmatpush2.bf16.msra.mxu0 0
  %6630 = vmatprep.subr.bf16.mxu0 0
  %6631 = vmatpush2.bf16.msra.mxu0 0
  %6632 = vmatprep.mubr.bf16.mxu0 0
  %6633 = vmatmul.mubr.bf16.gmra.mxu0 %v5983
  %v6634 = vpop.f32.mrf.mxu0
  %v6635 = vadd.f32 %v6594, %v6634
  %v6636 = vpop.f32.mrf.mxu0
  %v6637 = vadd.f32 %v6596, %v6636
  %v6638 = vpop.f32.mrf.mxu0
  %v6639 = vpop.f32.mrf.mxu0
  %6640 = vdwg.mxu0
  %6641 = vmatprep.subr.bf16.mxu0 %v4076
  %6642 = vmatpush1.bf16.msra.mxu0 %v4075
  %6643 = vmatprep.subr.bf16.mxu0 %v4072
  %6644 = vmatpush1.bf16.msra.mxu0 %v4071
  %6645 = vmatprep.subr.bf16.mxu0 %v4068
  %6646 = vmatpush1.bf16.msra.mxu0 %v4067
  %6647 = vmatprep.subr.bf16.mxu0 %v4064
  %6648 = vmatpush1.bf16.msra.mxu0 %v4063
  %6649 = vmatprep.subr.bf16.mxu0 %v4060
  %6650 = vmatpush1.bf16.msra.mxu0 %v4059
  %6651 = vmatprep.subr.bf16.mxu0 %v4056
  %6652 = vmatpush1.bf16.msra.mxu0 %v4055
  %6653 = vmatprep.subr.bf16.mxu0 %v4052
  %6654 = vmatpush1.bf16.msra.mxu0 %v4051
  %6655 = vmatprep.subr.bf16.mxu0 %v4048
  %6656 = vmatpush1.bf16.msra.mxu0 %v4047
  %6657 = vmatprep.subr.bf16.mxu0 %v4108
  %6658 = vmatpush2.bf16.msra.mxu0 %v4107
  %6659 = vmatprep.subr.bf16.mxu0 %v4104
  %6660 = vmatpush2.bf16.msra.mxu0 %v4103
  %6661 = vmatprep.subr.bf16.mxu0 %v4100
  %6662 = vmatpush2.bf16.msra.mxu0 %v4099
  %6663 = vmatprep.subr.bf16.mxu0 %v4096
  %6664 = vmatpush2.bf16.msra.mxu0 %v4095
  %6665 = vmatprep.subr.bf16.mxu0 %v4092
  %6666 = vmatpush2.bf16.msra.mxu0 %v4091
  %6667 = vmatprep.subr.bf16.mxu0 %v4088
  %6668 = vmatpush2.bf16.msra.mxu0 %v4087
  %6669 = vmatprep.subr.bf16.mxu0 %v4084
  %6670 = vmatpush2.bf16.msra.mxu0 %v4083
  %6671 = vmatprep.subr.bf16.mxu0 %v4080
  %6672 = vmatpush2.bf16.msra.mxu0 %v4079
  %6673 = vmatprep.mubr.bf16.mxu0 %v1081
  %6674 = vmatmul.mubr.bf16.gmra.mxu0 %v1080
  %v6675 = vpop.f32.mrf.mxu0
  %v6676 = vadd.f32 %v1024, %v6675
  %v6677 = vpop.f32.mrf.mxu0
  %v6678 = vadd.f32 %v1028, %v6677
  %v6679 = vpop.f32.mrf.mxu0
  %v6680 = vpop.f32.mrf.mxu0
  %6681 = vdwg.mxu0
  %6682 = vmatprep.subr.bf16.mxu0 %v4140
  %6683 = vmatpush1.bf16.msra.mxu0 %v4139
  %6684 = vmatprep.subr.bf16.mxu0 %v4136
  %6685 = vmatpush1.bf16.msra.mxu0 %v4135
  %6686 = vmatprep.subr.bf16.mxu0 %v4132
  %6687 = vmatpush1.bf16.msra.mxu0 %v4131
  %6688 = vmatprep.subr.bf16.mxu0 %v4128
  %6689 = vmatpush1.bf16.msra.mxu0 %v4127
  %6690 = vmatprep.subr.bf16.mxu0 %v4124
  %6691 = vmatpush1.bf16.msra.mxu0 %v4123
  %6692 = vmatprep.subr.bf16.mxu0 %v4120
  %6693 = vmatpush1.bf16.msra.mxu0 %v4119
  %6694 = vmatprep.subr.bf16.mxu0 %v4116
  %6695 = vmatpush1.bf16.msra.mxu0 %v4115
  %6696 = vmatprep.subr.bf16.mxu0 %v4112
  %6697 = vmatpush1.bf16.msra.mxu0 %v4111
  %6698 = vmatprep.subr.bf16.mxu0 %v4172
  %6699 = vmatpush2.bf16.msra.mxu0 %v4171
  %6700 = vmatprep.subr.bf16.mxu0 %v4168
  %6701 = vmatpush2.bf16.msra.mxu0 %v4167
  %6702 = vmatprep.subr.bf16.mxu0 %v4164
  %6703 = vmatpush2.bf16.msra.mxu0 %v4163
  %6704 = vmatprep.subr.bf16.mxu0 %v4160
  %6705 = vmatpush2.bf16.msra.mxu0 %v4159
  %6706 = vmatprep.subr.bf16.mxu0 %v4156
  %6707 = vmatpush2.bf16.msra.mxu0 %v4155
  %6708 = vmatprep.subr.bf16.mxu0 %v4152
  %6709 = vmatpush2.bf16.msra.mxu0 %v4151
  %6710 = vmatprep.subr.bf16.mxu0 %v4148
  %6711 = vmatpush2.bf16.msra.mxu0 %v4147
  %6712 = vmatprep.subr.bf16.mxu0 %v4144
  %6713 = vmatpush2.bf16.msra.mxu0 %v4143
  %6714 = vmatprep.mubr.bf16.mxu0 %v1083
  %6715 = vmatmul.mubr.bf16.gmra.mxu0 %v1082
  %v6716 = vpop.f32.mrf.mxu0
  %v6717 = vadd.f32 %v6676, %v6716
  %v6718 = vpop.f32.mrf.mxu0
  %v6719 = vadd.f32 %v6678, %v6718
  %v6720 = vpop.f32.mrf.mxu0
  %v6721 = vpop.f32.mrf.mxu0
  %6722 = vdwg.mxu0
  %6723 = vmatprep.subr.bf16.mxu0 %v4204
  %6724 = vmatpush1.bf16.msra.mxu0 %v4203
  %6725 = vmatprep.subr.bf16.mxu0 %v4200
  %6726 = vmatpush1.bf16.msra.mxu0 %v4199
  %6727 = vmatprep.subr.bf16.mxu0 %v4196
  %6728 = vmatpush1.bf16.msra.mxu0 %v4195
  %6729 = vmatprep.subr.bf16.mxu0 %v4192
  %6730 = vmatpush1.bf16.msra.mxu0 %v4191
  %6731 = vmatprep.subr.bf16.mxu0 %v4188
  %6732 = vmatpush1.bf16.msra.mxu0 %v4187
  %6733 = vmatprep.subr.bf16.mxu0 %v4184
  %6734 = vmatpush1.bf16.msra.mxu0 %v4183
  %6735 = vmatprep.subr.bf16.mxu0 %v4180
  %6736 = vmatpush1.bf16.msra.mxu0 %v4179
  %6737 = vmatprep.subr.bf16.mxu0 %v4176
  %6738 = vmatpush1.bf16.msra.mxu0 %v4175
  %6739 = vmatprep.subr.bf16.mxu0 %v4236
  %6740 = vmatpush2.bf16.msra.mxu0 %v4235
  %6741 = vmatprep.subr.bf16.mxu0 %v4232
  %6742 = vmatpush2.bf16.msra.mxu0 %v4231
  %6743 = vmatprep.subr.bf16.mxu0 %v4228
  %6744 = vmatpush2.bf16.msra.mxu0 %v4227
  %6745 = vmatprep.subr.bf16.mxu0 %v4224
  %6746 = vmatpush2.bf16.msra.mxu0 %v4223
  %6747 = vmatprep.subr.bf16.mxu0 %v4220
  %6748 = vmatpush2.bf16.msra.mxu0 %v4219
  %6749 = vmatprep.subr.bf16.mxu0 %v4216
  %6750 = vmatpush2.bf16.msra.mxu0 %v4215
  %6751 = vmatprep.subr.bf16.mxu0 %v4212
  %6752 = vmatpush2.bf16.msra.mxu0 %v4211
  %6753 = vmatprep.subr.bf16.mxu0 %v4208
  %6754 = vmatpush2.bf16.msra.mxu0 %v4207
  %6755 = vmatprep.mubr.bf16.mxu0 %v1085
  %6756 = vmatmul.mubr.bf16.gmra.mxu0 %v1084
  %v6757 = vpop.f32.mrf.mxu0
  %v6758 = vadd.f32 %v6717, %v6757
  %v6759 = vpop.f32.mrf.mxu0
  %v6760 = vadd.f32 %v6719, %v6759
  %v6761 = vpop.f32.mrf.mxu0
  %v6762 = vpop.f32.mrf.mxu0
  %6763 = vdwg.mxu0
  %6764 = vmatprep.subr.bf16.mxu0 %v4268
  %6765 = vmatpush1.bf16.msra.mxu0 %v4267
  %6766 = vmatprep.subr.bf16.mxu0 %v4264
  %6767 = vmatpush1.bf16.msra.mxu0 %v4263
  %6768 = vmatprep.subr.bf16.mxu0 %v4260
  %6769 = vmatpush1.bf16.msra.mxu0 %v4259
  %6770 = vmatprep.subr.bf16.mxu0 %v4256
  %6771 = vmatpush1.bf16.msra.mxu0 %v4255
  %6772 = vmatprep.subr.bf16.mxu0 %v4252
  %6773 = vmatpush1.bf16.msra.mxu0 %v4251
  %6774 = vmatprep.subr.bf16.mxu0 %v4248
  %6775 = vmatpush1.bf16.msra.mxu0 %v4247
  %6776 = vmatprep.subr.bf16.mxu0 %v4244
  %6777 = vmatpush1.bf16.msra.mxu0 %v4243
  %6778 = vmatprep.subr.bf16.mxu0 %v4240
  %6779 = vmatpush1.bf16.msra.mxu0 %v4239
  %6780 = vmatprep.subr.bf16.mxu0 %v4300
  %6781 = vmatpush2.bf16.msra.mxu0 %v4299
  %6782 = vmatprep.subr.bf16.mxu0 %v4296
  %6783 = vmatpush2.bf16.msra.mxu0 %v4295
  %6784 = vmatprep.subr.bf16.mxu0 %v4292
  %6785 = vmatpush2.bf16.msra.mxu0 %v4291
  %6786 = vmatprep.subr.bf16.mxu0 %v4288
  %6787 = vmatpush2.bf16.msra.mxu0 %v4287
  %6788 = vmatprep.subr.bf16.mxu0 %v4284
  %6789 = vmatpush2.bf16.msra.mxu0 %v4283
  %6790 = vmatprep.subr.bf16.mxu0 %v4280
  %6791 = vmatpush2.bf16.msra.mxu0 %v4279
  %6792 = vmatprep.subr.bf16.mxu0 %v4276
  %6793 = vmatpush2.bf16.msra.mxu0 %v4275
  %6794 = vmatprep.subr.bf16.mxu0 %v4272
  %6795 = vmatpush2.bf16.msra.mxu0 %v4271
  %6796 = vmatprep.mubr.bf16.mxu0 %v1087
  %6797 = vmatmul.mubr.bf16.gmra.mxu0 %v1086
  %v6798 = vpop.f32.mrf.mxu0
  %v6799 = vadd.f32 %v6758, %v6798
  %v6800 = vpop.f32.mrf.mxu0
  %v6801 = vadd.f32 %v6760, %v6800
  %v6802 = vpop.f32.mrf.mxu0
  %v6803 = vpop.f32.mrf.mxu0
  %6804 = vdwg.mxu0
  %6805 = vmatprep.subr.bf16.mxu0 %v4332
  %6806 = vmatpush1.bf16.msra.mxu0 %v4331
  %6807 = vmatprep.subr.bf16.mxu0 %v4328
  %6808 = vmatpush1.bf16.msra.mxu0 %v4327
  %6809 = vmatprep.subr.bf16.mxu0 %v4324
  %6810 = vmatpush1.bf16.msra.mxu0 %v4323
  %6811 = vmatprep.subr.bf16.mxu0 %v4320
  %6812 = vmatpush1.bf16.msra.mxu0 %v4319
  %6813 = vmatprep.subr.bf16.mxu0 %v4316
  %6814 = vmatpush1.bf16.msra.mxu0 %v4315
  %6815 = vmatprep.subr.bf16.mxu0 %v4312
  %6816 = vmatpush1.bf16.msra.mxu0 %v4311
  %6817 = vmatprep.subr.bf16.mxu0 %v4308
  %6818 = vmatpush1.bf16.msra.mxu0 %v4307
  %6819 = vmatprep.subr.bf16.mxu0 %v4304
  %6820 = vmatpush1.bf16.msra.mxu0 %v4303
  %6821 = vmatprep.subr.bf16.mxu0 %v4364
  %6822 = vmatpush2.bf16.msra.mxu0 %v4363
  %6823 = vmatprep.subr.bf16.mxu0 %v4360
  %6824 = vmatpush2.bf16.msra.mxu0 %v4359
  %6825 = vmatprep.subr.bf16.mxu0 %v4356
  %6826 = vmatpush2.bf16.msra.mxu0 %v4355
  %6827 = vmatprep.subr.bf16.mxu0 %v4352
  %6828 = vmatpush2.bf16.msra.mxu0 %v4351
  %6829 = vmatprep.subr.bf16.mxu0 %v4348
  %6830 = vmatpush2.bf16.msra.mxu0 %v4347
  %6831 = vmatprep.subr.bf16.mxu0 %v4344
  %6832 = vmatpush2.bf16.msra.mxu0 %v4343
  %6833 = vmatprep.subr.bf16.mxu0 %v4340
  %6834 = vmatpush2.bf16.msra.mxu0 %v4339
  %6835 = vmatprep.subr.bf16.mxu0 %v4336
  %6836 = vmatpush2.bf16.msra.mxu0 %v4335
  %6837 = vmatprep.mubr.bf16.mxu0 %v1089
  %6838 = vmatmul.mubr.bf16.gmra.mxu0 %v1088
  %v6839 = vpop.f32.mrf.mxu0
  %v6840 = vadd.f32 %v6799, %v6839
  %v6841 = vpop.f32.mrf.mxu0
  %v6842 = vadd.f32 %v6801, %v6841
  %v6843 = vpop.f32.mrf.mxu0
  %v6844 = vpop.f32.mrf.mxu0
  %6845 = vdwg.mxu0
  %6846 = vmatprep.subr.bf16.mxu0 %v4396
  %6847 = vmatpush1.bf16.msra.mxu0 %v4395
  %6848 = vmatprep.subr.bf16.mxu0 %v4392
  %6849 = vmatpush1.bf16.msra.mxu0 %v4391
  %6850 = vmatprep.subr.bf16.mxu0 %v4388
  %6851 = vmatpush1.bf16.msra.mxu0 %v4387
  %6852 = vmatprep.subr.bf16.mxu0 %v4384
  %6853 = vmatpush1.bf16.msra.mxu0 %v4383
  %6854 = vmatprep.subr.bf16.mxu0 %v4380
  %6855 = vmatpush1.bf16.msra.mxu0 %v4379
  %6856 = vmatprep.subr.bf16.mxu0 %v4376
  %6857 = vmatpush1.bf16.msra.mxu0 %v4375
  %6858 = vmatprep.subr.bf16.mxu0 %v4372
  %6859 = vmatpush1.bf16.msra.mxu0 %v4371
  %6860 = vmatprep.subr.bf16.mxu0 %v4368
  %6861 = vmatpush1.bf16.msra.mxu0 %v4367
  %6862 = vmatprep.subr.bf16.mxu0 %v4428
  %6863 = vmatpush2.bf16.msra.mxu0 %v4427
  %6864 = vmatprep.subr.bf16.mxu0 %v4424
  %6865 = vmatpush2.bf16.msra.mxu0 %v4423
  %6866 = vmatprep.subr.bf16.mxu0 %v4420
  %6867 = vmatpush2.bf16.msra.mxu0 %v4419
  %6868 = vmatprep.subr.bf16.mxu0 %v4416
  %6869 = vmatpush2.bf16.msra.mxu0 %v4415
  %6870 = vmatprep.subr.bf16.mxu0 %v4412
  %6871 = vmatpush2.bf16.msra.mxu0 %v4411
  %6872 = vmatprep.subr.bf16.mxu0 %v4408
  %6873 = vmatpush2.bf16.msra.mxu0 %v4407
  %6874 = vmatprep.subr.bf16.mxu0 %v4404
  %6875 = vmatpush2.bf16.msra.mxu0 %v4403
  %6876 = vmatprep.subr.bf16.mxu0 %v4400
  %6877 = vmatpush2.bf16.msra.mxu0 %v4399
  %6878 = vmatprep.mubr.bf16.mxu0 %v1091
  %6879 = vmatmul.mubr.bf16.gmra.mxu0 %v1090
  %v6880 = vpop.f32.mrf.mxu0
  %v6881 = vadd.f32 %v6840, %v6880
  %v6882 = vpop.f32.mrf.mxu0
  %v6883 = vadd.f32 %v6842, %v6882
  %v6884 = vpop.f32.mrf.mxu0
  %v6885 = vpop.f32.mrf.mxu0
  %6886 = vdwg.mxu0
  %6887 = vmatprep.subr.bf16.mxu0 %v4460
  %6888 = vmatpush1.bf16.msra.mxu0 %v4459
  %6889 = vmatprep.subr.bf16.mxu0 %v4456
  %6890 = vmatpush1.bf16.msra.mxu0 %v4455
  %6891 = vmatprep.subr.bf16.mxu0 %v4452
  %6892 = vmatpush1.bf16.msra.mxu0 %v4451
  %6893 = vmatprep.subr.bf16.mxu0 %v4448
  %6894 = vmatpush1.bf16.msra.mxu0 %v4447
  %6895 = vmatprep.subr.bf16.mxu0 %v4444
  %6896 = vmatpush1.bf16.msra.mxu0 %v4443
  %6897 = vmatprep.subr.bf16.mxu0 %v4440
  %6898 = vmatpush1.bf16.msra.mxu0 %v4439
  %6899 = vmatprep.subr.bf16.mxu0 %v4436
  %6900 = vmatpush1.bf16.msra.mxu0 %v4435
  %6901 = vmatprep.subr.bf16.mxu0 %v4432
  %6902 = vmatpush1.bf16.msra.mxu0 %v4431
  %6903 = vmatprep.subr.bf16.mxu0 %v4492
  %6904 = vmatpush2.bf16.msra.mxu0 %v4491
  %6905 = vmatprep.subr.bf16.mxu0 %v4488
  %6906 = vmatpush2.bf16.msra.mxu0 %v4487
  %6907 = vmatprep.subr.bf16.mxu0 %v4484
  %6908 = vmatpush2.bf16.msra.mxu0 %v4483
  %6909 = vmatprep.subr.bf16.mxu0 %v4480
  %6910 = vmatpush2.bf16.msra.mxu0 %v4479
  %6911 = vmatprep.subr.bf16.mxu0 %v4476
  %6912 = vmatpush2.bf16.msra.mxu0 %v4475
  %6913 = vmatprep.subr.bf16.mxu0 %v4472
  %6914 = vmatpush2.bf16.msra.mxu0 %v4471
  %6915 = vmatprep.subr.bf16.mxu0 %v4468
  %6916 = vmatpush2.bf16.msra.mxu0 %v4467
  %6917 = vmatprep.subr.bf16.mxu0 %v4464
  %6918 = vmatpush2.bf16.msra.mxu0 %v4463
  %6919 = vmatprep.mubr.bf16.mxu0 %v1093
  %6920 = vmatmul.mubr.bf16.gmra.mxu0 %v1092
  %v6921 = vpop.f32.mrf.mxu0
  %v6922 = vadd.f32 %v6881, %v6921
  %v6923 = vpop.f32.mrf.mxu0
  %v6924 = vadd.f32 %v6883, %v6923
  %v6925 = vpop.f32.mrf.mxu0
  %v6926 = vpop.f32.mrf.mxu0
  %6927 = vdwg.mxu0
  %6928 = vmatprep.subr.bf16.mxu0 %v4524
  %6929 = vmatpush1.bf16.msra.mxu0 %v4523
  %6930 = vmatprep.subr.bf16.mxu0 %v4520
  %6931 = vmatpush1.bf16.msra.mxu0 %v4519
  %6932 = vmatprep.subr.bf16.mxu0 %v4516
  %6933 = vmatpush1.bf16.msra.mxu0 %v4515
  %6934 = vmatprep.subr.bf16.mxu0 %v4512
  %6935 = vmatpush1.bf16.msra.mxu0 %v4511
  %6936 = vmatprep.subr.bf16.mxu0 %v4508
  %6937 = vmatpush1.bf16.msra.mxu0 %v4507
  %6938 = vmatprep.subr.bf16.mxu0 %v4504
  %6939 = vmatpush1.bf16.msra.mxu0 %v4503
  %6940 = vmatprep.subr.bf16.mxu0 %v4500
  %6941 = vmatpush1.bf16.msra.mxu0 %v4499
  %6942 = vmatprep.subr.bf16.mxu0 %v4496
  %6943 = vmatpush1.bf16.msra.mxu0 %v4495
  %6944 = vmatprep.subr.bf16.mxu0 %v4556
  %6945 = vmatpush2.bf16.msra.mxu0 %v4555
  %6946 = vmatprep.subr.bf16.mxu0 %v4552
  %6947 = vmatpush2.bf16.msra.mxu0 %v4551
  %6948 = vmatprep.subr.bf16.mxu0 %v4548
  %6949 = vmatpush2.bf16.msra.mxu0 %v4547
  %6950 = vmatprep.subr.bf16.mxu0 %v4544
  %6951 = vmatpush2.bf16.msra.mxu0 %v4543
  %6952 = vmatprep.subr.bf16.mxu0 %v4540
  %6953 = vmatpush2.bf16.msra.mxu0 %v4539
  %6954 = vmatprep.subr.bf16.mxu0 %v4536
  %6955 = vmatpush2.bf16.msra.mxu0 %v4535
  %6956 = vmatprep.subr.bf16.mxu0 %v4532
  %6957 = vmatpush2.bf16.msra.mxu0 %v4531
  %6958 = vmatprep.subr.bf16.mxu0 %v4528
  %6959 = vmatpush2.bf16.msra.mxu0 %v4527
  %6960 = vmatprep.mubr.bf16.mxu0 %v1095
  %6961 = vmatmul.mubr.bf16.gmra.mxu0 %v1094
  %v6962 = vpop.f32.mrf.mxu0
  %v6963 = vadd.f32 %v6922, %v6962
  %v6964 = vpop.f32.mrf.mxu0
  %v6965 = vadd.f32 %v6924, %v6964
  %v6966 = vpop.f32.mrf.mxu0
  %v6967 = vpop.f32.mrf.mxu0
  %6968 = vdwg.mxu0
  %6969 = vmatprep.subr.bf16.mxu0 %v4588
  %6970 = vmatpush1.bf16.msra.mxu0 %v4587
  %6971 = vmatprep.subr.bf16.mxu0 %v4584
  %6972 = vmatpush1.bf16.msra.mxu0 %v4583
  %6973 = vmatprep.subr.bf16.mxu0 %v4580
  %6974 = vmatpush1.bf16.msra.mxu0 %v4579
  %6975 = vmatprep.subr.bf16.mxu0 %v4576
  %6976 = vmatpush1.bf16.msra.mxu0 %v4575
  %6977 = vmatprep.subr.bf16.mxu0 %v4572
  %6978 = vmatpush1.bf16.msra.mxu0 %v4571
  %6979 = vmatprep.subr.bf16.mxu0 %v4568
  %6980 = vmatpush1.bf16.msra.mxu0 %v4567
  %6981 = vmatprep.subr.bf16.mxu0 %v4564
  %6982 = vmatpush1.bf16.msra.mxu0 %v4563
  %6983 = vmatprep.subr.bf16.mxu0 %v4560
  %6984 = vmatpush1.bf16.msra.mxu0 %v4559
  %6985 = vmatprep.subr.bf16.mxu0 %v4620
  %6986 = vmatpush2.bf16.msra.mxu0 %v4619
  %6987 = vmatprep.subr.bf16.mxu0 %v4616
  %6988 = vmatpush2.bf16.msra.mxu0 %v4615
  %6989 = vmatprep.subr.bf16.mxu0 %v4612
  %6990 = vmatpush2.bf16.msra.mxu0 %v4611
  %6991 = vmatprep.subr.bf16.mxu0 %v4608
  %6992 = vmatpush2.bf16.msra.mxu0 %v4607
  %6993 = vmatprep.subr.bf16.mxu0 %v4604
  %6994 = vmatpush2.bf16.msra.mxu0 %v4603
  %6995 = vmatprep.subr.bf16.mxu0 %v4600
  %6996 = vmatpush2.bf16.msra.mxu0 %v4599
  %6997 = vmatprep.subr.bf16.mxu0 %v4596
  %6998 = vmatpush2.bf16.msra.mxu0 %v4595
  %6999 = vmatprep.subr.bf16.mxu0 %v4592
  %7000 = vmatpush2.bf16.msra.mxu0 %v4591
  %7001 = vmatprep.mubr.bf16.mxu0 %v1097
  %7002 = vmatmul.mubr.bf16.gmra.mxu0 %v1096
  %v7003 = vpop.f32.mrf.mxu0
  %v7004 = vadd.f32 %v6963, %v7003
  %v7005 = vpop.f32.mrf.mxu0
  %v7006 = vadd.f32 %v6965, %v7005
  %v7007 = vpop.f32.mrf.mxu0
  %v7008 = vpop.f32.mrf.mxu0
  %7009 = vdwg.mxu0
  %7010 = vmatprep.subr.bf16.mxu0 %v4652
  %7011 = vmatpush1.bf16.msra.mxu0 %v4651
  %7012 = vmatprep.subr.bf16.mxu0 %v4648
  %7013 = vmatpush1.bf16.msra.mxu0 %v4647
  %7014 = vmatprep.subr.bf16.mxu0 %v4644
  %7015 = vmatpush1.bf16.msra.mxu0 %v4643
  %7016 = vmatprep.subr.bf16.mxu0 %v4640
  %7017 = vmatpush1.bf16.msra.mxu0 %v4639
  %7018 = vmatprep.subr.bf16.mxu0 %v4636
  %7019 = vmatpush1.bf16.msra.mxu0 %v4635
  %7020 = vmatprep.subr.bf16.mxu0 %v4632
  %7021 = vmatpush1.bf16.msra.mxu0 %v4631
  %7022 = vmatprep.subr.bf16.mxu0 %v4628
  %7023 = vmatpush1.bf16.msra.mxu0 %v4627
  %7024 = vmatprep.subr.bf16.mxu0 %v4624
  %7025 = vmatpush1.bf16.msra.mxu0 %v4623
  %7026 = vmatprep.subr.bf16.mxu0 %v4684
  %7027 = vmatpush2.bf16.msra.mxu0 %v4683
  %7028 = vmatprep.subr.bf16.mxu0 %v4680
  %7029 = vmatpush2.bf16.msra.mxu0 %v4679
  %7030 = vmatprep.subr.bf16.mxu0 %v4676
  %7031 = vmatpush2.bf16.msra.mxu0 %v4675
  %7032 = vmatprep.subr.bf16.mxu0 %v4672
  %7033 = vmatpush2.bf16.msra.mxu0 %v4671
  %7034 = vmatprep.subr.bf16.mxu0 %v4668
  %7035 = vmatpush2.bf16.msra.mxu0 %v4667
  %7036 = vmatprep.subr.bf16.mxu0 %v4664
  %7037 = vmatpush2.bf16.msra.mxu0 %v4663
  %7038 = vmatprep.subr.bf16.mxu0 %v4660
  %7039 = vmatpush2.bf16.msra.mxu0 %v4659
  %7040 = vmatprep.subr.bf16.mxu0 %v4656
  %7041 = vmatpush2.bf16.msra.mxu0 %v4655
  %7042 = vmatprep.mubr.bf16.mxu0 %v1099
  %7043 = vmatmul.mubr.bf16.gmra.mxu0 %v1098
  %v7044 = vpop.f32.mrf.mxu0
  %v7045 = vadd.f32 %v7004, %v7044
  %v7046 = vpop.f32.mrf.mxu0
  %v7047 = vadd.f32 %v7006, %v7046
  %v7048 = vpop.f32.mrf.mxu0
  %v7049 = vpop.f32.mrf.mxu0
  %7050 = vdwg.mxu0
  %7051 = vmatprep.subr.bf16.mxu0 %v4716
  %7052 = vmatpush1.bf16.msra.mxu0 %v4715
  %7053 = vmatprep.subr.bf16.mxu0 %v4712
  %7054 = vmatpush1.bf16.msra.mxu0 %v4711
  %7055 = vmatprep.subr.bf16.mxu0 %v4708
  %7056 = vmatpush1.bf16.msra.mxu0 %v4707
  %7057 = vmatprep.subr.bf16.mxu0 %v4704
  %7058 = vmatpush1.bf16.msra.mxu0 %v4703
  %7059 = vmatprep.subr.bf16.mxu0 %v4700
  %7060 = vmatpush1.bf16.msra.mxu0 %v4699
  %7061 = vmatprep.subr.bf16.mxu0 %v4696
  %7062 = vmatpush1.bf16.msra.mxu0 %v4695
  %7063 = vmatprep.subr.bf16.mxu0 %v4692
  %7064 = vmatpush1.bf16.msra.mxu0 %v4691
  %7065 = vmatprep.subr.bf16.mxu0 %v4688
  %7066 = vmatpush1.bf16.msra.mxu0 %v4687
  %7067 = vmatprep.subr.bf16.mxu0 %v4748
  %7068 = vmatpush2.bf16.msra.mxu0 %v4747
  %7069 = vmatprep.subr.bf16.mxu0 %v4744
  %7070 = vmatpush2.bf16.msra.mxu0 %v4743
  %7071 = vmatprep.subr.bf16.mxu0 %v4740
  %7072 = vmatpush2.bf16.msra.mxu0 %v4739
  %7073 = vmatprep.subr.bf16.mxu0 %v4736
  %7074 = vmatpush2.bf16.msra.mxu0 %v4735
  %7075 = vmatprep.subr.bf16.mxu0 %v4732
  %7076 = vmatpush2.bf16.msra.mxu0 %v4731
  %7077 = vmatprep.subr.bf16.mxu0 %v4728
  %7078 = vmatpush2.bf16.msra.mxu0 %v4727
  %7079 = vmatprep.subr.bf16.mxu0 %v4724
  %7080 = vmatpush2.bf16.msra.mxu0 %v4723
  %7081 = vmatprep.subr.bf16.mxu0 %v4720
  %7082 = vmatpush2.bf16.msra.mxu0 %v4719
  %7083 = vmatprep.mubr.bf16.mxu0 %v1101
  %7084 = vmatmul.mubr.bf16.gmra.mxu0 %v1100
  %v7085 = vpop.f32.mrf.mxu0
  %v7086 = vadd.f32 %v7045, %v7085
  %v7087 = vpop.f32.mrf.mxu0
  %v7088 = vadd.f32 %v7047, %v7087
  %v7089 = vpop.f32.mrf.mxu0
  %v7090 = vpop.f32.mrf.mxu0
  %7091 = vdwg.mxu0
  %7092 = vmatprep.subr.bf16.mxu0 %v4780
  %7093 = vmatpush1.bf16.msra.mxu0 %v4779
  %7094 = vmatprep.subr.bf16.mxu0 %v4776
  %7095 = vmatpush1.bf16.msra.mxu0 %v4775
  %7096 = vmatprep.subr.bf16.mxu0 %v4772
  %7097 = vmatpush1.bf16.msra.mxu0 %v4771
  %7098 = vmatprep.subr.bf16.mxu0 %v4768
  %7099 = vmatpush1.bf16.msra.mxu0 %v4767
  %7100 = vmatprep.subr.bf16.mxu0 %v4764
  %7101 = vmatpush1.bf16.msra.mxu0 %v4763
  %7102 = vmatprep.subr.bf16.mxu0 %v4760
  %7103 = vmatpush1.bf16.msra.mxu0 %v4759
  %7104 = vmatprep.subr.bf16.mxu0 %v4756
  %7105 = vmatpush1.bf16.msra.mxu0 %v4755
  %7106 = vmatprep.subr.bf16.mxu0 %v4752
  %7107 = vmatpush1.bf16.msra.mxu0 %v4751
  %7108 = vmatprep.subr.bf16.mxu0 %v4812
  %7109 = vmatpush2.bf16.msra.mxu0 %v4811
  %7110 = vmatprep.subr.bf16.mxu0 %v4808
  %7111 = vmatpush2.bf16.msra.mxu0 %v4807
  %7112 = vmatprep.subr.bf16.mxu0 %v4804
  %7113 = vmatpush2.bf16.msra.mxu0 %v4803
  %7114 = vmatprep.subr.bf16.mxu0 %v4800
  %7115 = vmatpush2.bf16.msra.mxu0 %v4799
  %7116 = vmatprep.subr.bf16.mxu0 %v4796
  %7117 = vmatpush2.bf16.msra.mxu0 %v4795
  %7118 = vmatprep.subr.bf16.mxu0 %v4792
  %7119 = vmatpush2.bf16.msra.mxu0 %v4791
  %7120 = vmatprep.subr.bf16.mxu0 %v4788
  %7121 = vmatpush2.bf16.msra.mxu0 %v4787
  %7122 = vmatprep.subr.bf16.mxu0 %v4784
  %7123 = vmatpush2.bf16.msra.mxu0 %v4783
  %7124 = vmatprep.mubr.bf16.mxu0 %v1103
  %7125 = vmatmul.mubr.bf16.gmra.mxu0 %v1102
  %v7126 = vpop.f32.mrf.mxu0
  %v7127 = vadd.f32 %v7086, %v7126
  %v7128 = vpop.f32.mrf.mxu0
  %v7129 = vadd.f32 %v7088, %v7128
  %v7130 = vpop.f32.mrf.mxu0
  %v7131 = vpop.f32.mrf.mxu0
  %7132 = vdwg.mxu0
  %7133 = vmatprep.subr.bf16.mxu0 %v4844
  %7134 = vmatpush1.bf16.msra.mxu0 %v4843
  %7135 = vmatprep.subr.bf16.mxu0 %v4840
  %7136 = vmatpush1.bf16.msra.mxu0 %v4839
  %7137 = vmatprep.subr.bf16.mxu0 %v4836
  %7138 = vmatpush1.bf16.msra.mxu0 %v4835
  %7139 = vmatprep.subr.bf16.mxu0 %v4832
  %7140 = vmatpush1.bf16.msra.mxu0 %v4831
  %7141 = vmatprep.subr.bf16.mxu0 %v4828
  %7142 = vmatpush1.bf16.msra.mxu0 %v4827
  %7143 = vmatprep.subr.bf16.mxu0 %v4824
  %7144 = vmatpush1.bf16.msra.mxu0 %v4823
  %7145 = vmatprep.subr.bf16.mxu0 %v4820
  %7146 = vmatpush1.bf16.msra.mxu0 %v4819
  %7147 = vmatprep.subr.bf16.mxu0 %v4816
  %7148 = vmatpush1.bf16.msra.mxu0 %v4815
  %7149 = vmatprep.subr.bf16.mxu0 %v4876
  %7150 = vmatpush2.bf16.msra.mxu0 %v4875
  %7151 = vmatprep.subr.bf16.mxu0 %v4872
  %7152 = vmatpush2.bf16.msra.mxu0 %v4871
  %7153 = vmatprep.subr.bf16.mxu0 %v4868
  %7154 = vmatpush2.bf16.msra.mxu0 %v4867
  %7155 = vmatprep.subr.bf16.mxu0 %v4864
  %7156 = vmatpush2.bf16.msra.mxu0 %v4863
  %7157 = vmatprep.subr.bf16.mxu0 %v4860
  %7158 = vmatpush2.bf16.msra.mxu0 %v4859
  %7159 = vmatprep.subr.bf16.mxu0 %v4856
  %7160 = vmatpush2.bf16.msra.mxu0 %v4855
  %7161 = vmatprep.subr.bf16.mxu0 %v4852
  %7162 = vmatpush2.bf16.msra.mxu0 %v4851
  %7163 = vmatprep.subr.bf16.mxu0 %v4848
  %7164 = vmatpush2.bf16.msra.mxu0 %v4847
  %7165 = vmatprep.mubr.bf16.mxu0 %v1105
  %7166 = vmatmul.mubr.bf16.gmra.mxu0 %v1104
  %v7167 = vpop.f32.mrf.mxu0
  %v7168 = vadd.f32 %v7127, %v7167
  %v7169 = vpop.f32.mrf.mxu0
  %v7170 = vadd.f32 %v7129, %v7169
  %v7171 = vpop.f32.mrf.mxu0
  %v7172 = vpop.f32.mrf.mxu0
  %7173 = vdwg.mxu0
  %7174 = vmatprep.subr.bf16.mxu0 %v4908
  %7175 = vmatpush1.bf16.msra.mxu0 %v4907
  %7176 = vmatprep.subr.bf16.mxu0 %v4904
  %7177 = vmatpush1.bf16.msra.mxu0 %v4903
  %7178 = vmatprep.subr.bf16.mxu0 %v4900
  %7179 = vmatpush1.bf16.msra.mxu0 %v4899
  %7180 = vmatprep.subr.bf16.mxu0 %v4896
  %7181 = vmatpush1.bf16.msra.mxu0 %v4895
  %7182 = vmatprep.subr.bf16.mxu0 %v4892
  %7183 = vmatpush1.bf16.msra.mxu0 %v4891
  %7184 = vmatprep.subr.bf16.mxu0 %v4888
  %7185 = vmatpush1.bf16.msra.mxu0 %v4887
  %7186 = vmatprep.subr.bf16.mxu0 %v4884
  %7187 = vmatpush1.bf16.msra.mxu0 %v4883
  %7188 = vmatprep.subr.bf16.mxu0 %v4880
  %7189 = vmatpush1.bf16.msra.mxu0 %v4879
  %7190 = vmatprep.subr.bf16.mxu0 %v4940
  %7191 = vmatpush2.bf16.msra.mxu0 %v4939
  %7192 = vmatprep.subr.bf16.mxu0 %v4936
  %7193 = vmatpush2.bf16.msra.mxu0 %v4935
  %7194 = vmatprep.subr.bf16.mxu0 %v4932
  %7195 = vmatpush2.bf16.msra.mxu0 %v4931
  %7196 = vmatprep.subr.bf16.mxu0 %v4928
  %7197 = vmatpush2.bf16.msra.mxu0 %v4927
  %7198 = vmatprep.subr.bf16.mxu0 %v4924
  %7199 = vmatpush2.bf16.msra.mxu0 %v4923
  %7200 = vmatprep.subr.bf16.mxu0 %v4920
  %7201 = vmatpush2.bf16.msra.mxu0 %v4919
  %7202 = vmatprep.subr.bf16.mxu0 %v4916
  %7203 = vmatpush2.bf16.msra.mxu0 %v4915
  %7204 = vmatprep.subr.bf16.mxu0 %v4912
  %7205 = vmatpush2.bf16.msra.mxu0 %v4911
  %7206 = vmatprep.mubr.bf16.mxu0 %v1107
  %7207 = vmatmul.mubr.bf16.gmra.mxu0 %v1106
  %v7208 = vpop.f32.mrf.mxu0
  %v7209 = vadd.f32 %v7168, %v7208
  %v7210 = vpop.f32.mrf.mxu0
  %v7211 = vadd.f32 %v7170, %v7210
  %v7212 = vpop.f32.mrf.mxu0
  %v7213 = vpop.f32.mrf.mxu0
  %7214 = vdwg.mxu0
  %7215 = vmatprep.subr.bf16.mxu0 %v4972
  %7216 = vmatpush1.bf16.msra.mxu0 %v4971
  %7217 = vmatprep.subr.bf16.mxu0 %v4968
  %7218 = vmatpush1.bf16.msra.mxu0 %v4967
  %7219 = vmatprep.subr.bf16.mxu0 %v4964
  %7220 = vmatpush1.bf16.msra.mxu0 %v4963
  %7221 = vmatprep.subr.bf16.mxu0 %v4960
  %7222 = vmatpush1.bf16.msra.mxu0 %v4959
  %7223 = vmatprep.subr.bf16.mxu0 %v4956
  %7224 = vmatpush1.bf16.msra.mxu0 %v4955
  %7225 = vmatprep.subr.bf16.mxu0 %v4952
  %7226 = vmatpush1.bf16.msra.mxu0 %v4951
  %7227 = vmatprep.subr.bf16.mxu0 %v4948
  %7228 = vmatpush1.bf16.msra.mxu0 %v4947
  %7229 = vmatprep.subr.bf16.mxu0 %v4944
  %7230 = vmatpush1.bf16.msra.mxu0 %v4943
  %7231 = vmatprep.subr.bf16.mxu0 %v5004
  %7232 = vmatpush2.bf16.msra.mxu0 %v5003
  %7233 = vmatprep.subr.bf16.mxu0 %v5000
  %7234 = vmatpush2.bf16.msra.mxu0 %v4999
  %7235 = vmatprep.subr.bf16.mxu0 %v4996
  %7236 = vmatpush2.bf16.msra.mxu0 %v4995
  %7237 = vmatprep.subr.bf16.mxu0 %v4992
  %7238 = vmatpush2.bf16.msra.mxu0 %v4991
  %7239 = vmatprep.subr.bf16.mxu0 %v4988
  %7240 = vmatpush2.bf16.msra.mxu0 %v4987
  %7241 = vmatprep.subr.bf16.mxu0 %v4984
  %7242 = vmatpush2.bf16.msra.mxu0 %v4983
  %7243 = vmatprep.subr.bf16.mxu0 %v4980
  %7244 = vmatpush2.bf16.msra.mxu0 %v4979
  %7245 = vmatprep.subr.bf16.mxu0 %v4976
  %7246 = vmatpush2.bf16.msra.mxu0 %v4975
  %7247 = vmatprep.mubr.bf16.mxu0 %v1109
  %7248 = vmatmul.mubr.bf16.gmra.mxu0 %v1108
  %v7249 = vpop.f32.mrf.mxu0
  %v7250 = vadd.f32 %v7209, %v7249
  %v7251 = vpop.f32.mrf.mxu0
  %v7252 = vadd.f32 %v7211, %v7251
  %v7253 = vpop.f32.mrf.mxu0
  %v7254 = vpop.f32.mrf.mxu0
  %7255 = vdwg.mxu0
  %7256 = vmatprep.subr.bf16.mxu0 0
  %7257 = vmatpush1.bf16.msra.mxu0 0
  %7258 = vmatprep.subr.bf16.mxu0 0
  %7259 = vmatpush1.bf16.msra.mxu0 0
  %7260 = vmatprep.subr.bf16.mxu0 0
  %7261 = vmatpush1.bf16.msra.mxu0 0
  %7262 = vmatprep.subr.bf16.mxu0 0
  %7263 = vmatpush1.bf16.msra.mxu0 0
  %7264 = vmatprep.subr.bf16.mxu0 0
  %7265 = vmatpush1.bf16.msra.mxu0 0
  %7266 = vmatprep.subr.bf16.mxu0 0
  %7267 = vmatpush1.bf16.msra.mxu0 0
  %7268 = vmatprep.subr.bf16.mxu0 %v5012
  %7269 = vmatpush1.bf16.msra.mxu0 %v5011
  %7270 = vmatprep.subr.bf16.mxu0 %v5008
  %7271 = vmatpush1.bf16.msra.mxu0 %v5007
  %7272 = vmatprep.subr.bf16.mxu0 0
  %7273 = vmatpush2.bf16.msra.mxu0 0
  %7274 = vmatprep.subr.bf16.mxu0 0
  %7275 = vmatpush2.bf16.msra.mxu0 0
  %7276 = vmatprep.subr.bf16.mxu0 0
  %7277 = vmatpush2.bf16.msra.mxu0 0
  %7278 = vmatprep.subr.bf16.mxu0 0
  %7279 = vmatpush2.bf16.msra.mxu0 0
  %7280 = vmatprep.subr.bf16.mxu0 0
  %7281 = vmatpush2.bf16.msra.mxu0 0
  %7282 = vmatprep.subr.bf16.mxu0 0
  %7283 = vmatpush2.bf16.msra.mxu0 0
  %7284 = vmatprep.subr.bf16.mxu0 0
  %7285 = vmatpush2.bf16.msra.mxu0 0
  %7286 = vmatprep.subr.bf16.mxu0 0
  %7287 = vmatpush2.bf16.msra.mxu0 0
  %7288 = vmatprep.mubr.bf16.mxu0 0
  %7289 = vmatmul.mubr.bf16.gmra.mxu0 %v5983
  %v7290 = vpop.f32.mrf.mxu0
  %v7291 = vadd.f32 %v7250, %v7290
  %v7292 = vpop.f32.mrf.mxu0
  %v7293 = vadd.f32 %v7252, %v7292
  %v7294 = vpop.f32.mrf.mxu0
  %v7295 = vpop.f32.mrf.mxu0
  %7296 = vdwg.mxu0
  %v7297 = vmax.f32 %v6635, 0.0
  %v7298 = vmax.f32 %v6637, 0.0
  %v7299 = vmax.f32 %v7291, 0.0
  %v7300 = vmax.f32 %v7293, 0.0
  %v7301 = vpack.c.bf16 %v7297, %v7297
  %v7302 = vpack.c.bf16 %v7298, %v7298
  %v7303 = vpack.c.bf16 %v7299, %v7299
  %v7304 = vpack.c.bf16 %v7300, %v7300
  %v7305 = vld [vmem:[%s3] sm:$0xff]
  %v7306 = vld [vmem:[%s3 + $0x8] sm:$0xff]
  %v7307 = vld [vmem:[%s3 + $0x10] sm:$0xff]
  %v7308 = vld [vmem:[%s3 + $0x18] sm:$0xff]
  %v7309 = vld [vmem:[%s3 + $0x20] sm:$0xff]
  %v7310 = vld [vmem:[%s3 + $0x28] sm:$0xff]
  %v7311 = vld [vmem:[%s3 + $0x30] sm:$0xff]
  %v7312 = vld [vmem:[%s3 + $0x38] sm:$0xff]
  %v7313 = vld [vmem:[%s3 + $0x40] sm:$0xff]
  %v7314 = vld [vmem:[%s3 + $0x48] sm:$0xff]
  %v7315 = vld [vmem:[%s3 + $0x50] sm:$0xff]
  %v7316 = vld [vmem:[%s3 + $0x58] sm:$0xff]
  %v7317 = vld [vmem:[%s3 + $0x60] sm:$0xff]
  %v7318 = vld [vmem:[%s3 + $0x68] sm:$0xff]
  %v7319 = vld [vmem:[%s3 + $0x70] sm:$0xff]
  %v7320 = vld [vmem:[%s3 + $0x78] sm:$0xff]
  %v7321 = vld [vmem:[%s3 + $0x80] sm:$0xff]
  %v7322 = vld [vmem:[%s3 + $0x88] sm:$0xff]
  %v7323 = vld [vmem:[%s3 + $0x90] sm:$0xff]
  %v7324 = vld [vmem:[%s3 + $0x98] sm:$0xff]
  %v7325 = vld [vmem:[%s3 + $0xa0] sm:$0xff]
  %v7326 = vld [vmem:[%s3 + $0xa8] sm:$0xff]
  %v7327 = vld [vmem:[%s3 + $0xb0] sm:$0xff]
  %v7328 = vld [vmem:[%s3 + $0xb8] sm:$0xff]
  %v7329 = vld [vmem:[%s3 + $0xc0] sm:$0xff]
  %v7330 = vld [vmem:[%s3 + $0xc8] sm:$0xff]
  %v7331 = vld [vmem:[%s3 + $0xd0] sm:$0xff]
  %v7332 = vld [vmem:[%s3 + $0xd8] sm:$0xff]
  %v7333 = vld [vmem:[%s3 + $0xe0] sm:$0xff]
  %v7334 = vld [vmem:[%s3 + $0xe8] sm:$0xff]
  %v7335 = vld [vmem:[%s3 + $0xf0] sm:$0xff]
  %v7336 = vld [vmem:[%s3 + $0xf8] sm:$0xff]
  %v7337 = vld [vmem:[%s3 + $0x100] sm:$0xff]
  %v7338 = vld [vmem:[%s3 + $0x108] sm:$0xff]
  %v7339 = vld [vmem:[%s3 + $0x110] sm:$0xff]
  %v7340 = vld [vmem:[%s3 + $0x118] sm:$0xff]
  %v7341 = vld [vmem:[%s3 + $0x120] sm:$0xff]
  %v7342 = vld [vmem:[%s3 + $0x128] sm:$0xff]
  %v7343 = vld [vmem:[%s3 + $0x130] sm:$0xff]
  %v7344 = vld [vmem:[%s3 + $0x138] sm:$0xff]
  %v7345 = vld [vmem:[%s3 + $0x140] sm:$0xff]
  %v7346 = vld [vmem:[%s3 + $0x148] sm:$0xff]
  %v7347 = vld [vmem:[%s3 + $0x150] sm:$0xff]
  %v7348 = vld [vmem:[%s3 + $0x158] sm:$0xff]
  %v7349 = vld [vmem:[%s3 + $0x160] sm:$0xff]
  %v7350 = vld [vmem:[%s3 + $0x168] sm:$0xff]
  %v7351 = vld [vmem:[%s3 + $0x170] sm:$0xff]
  %v7352 = vld [vmem:[%s3 + $0x178] sm:$0xff]
  %v7353 = vld [vmem:[%s3 + $0x180] sm:$0xff]
  %v7354 = vld [vmem:[%s3 + $0x188] sm:$0xff]
  %v7355 = vld [vmem:[%s3 + $0x190] sm:$0xff]
  %v7356 = vld [vmem:[%s3 + $0x198] sm:$0xff]
  %v7357 = vld [vmem:[%s3 + $0x1a0] sm:$0xff]
  %v7358 = vld [vmem:[%s3 + $0x1a8] sm:$0xff]
  %v7359 = vld [vmem:[%s3 + $0x1b0] sm:$0xff]
  %v7360 = vld [vmem:[%s3 + $0x1b8] sm:$0xff]
  %v7361 = vld [vmem:[%s3 + $0x1c0] sm:$0xff]
  %v7362 = vld [vmem:[%s3 + $0x1c8] sm:$0xff]
  %v7363 = vld [vmem:[%s3 + $0x1d0] sm:$0xff]
  %v7364 = vld [vmem:[%s3 + $0x1d8] sm:$0xff]
  %v7365 = vld [vmem:[%s3 + $0x1e0] sm:$0xff]
  %v7366 = vld [vmem:[%s3 + $0x1e8] sm:$0xff]
  %v7367 = vld [vmem:[%s3 + $0x1f0] sm:$0xff]
  %v7368 = vld [vmem:[%s3 + $0x1f8] sm:$0xff]
  %v7369 = vld [vmem:[%s4] sm:$0x3]
  %v7371 = vlaneseq
  %v7372 = vshrl.u32 %v7371, 7
  %v7373 = vsub.s32 0, %v7372
  %v7374 = vrot.slane %v7369, %v7373
  %v7375 = vlaneseq
  %v7376 = vshrl.u32 %v7375, 7
  %v7377 = vsub.s32 1, %v7376
  %v7378 = vrot.slane %v7369, %v7377
  %v7445 = vunpack.c.l.b16 %v7305
  %v7446 = vunpack.c.h.b16 %v7305
  %v7447 = vunpack.c.l.b16 %v7306
  %v7448 = vunpack.c.h.b16 %v7306
  %v7449 = vunpack.c.l.b16 %v7307
  %v7450 = vunpack.c.h.b16 %v7307
  %v7451 = vunpack.c.l.b16 %v7308
  %v7452 = vunpack.c.h.b16 %v7308
  %v7453 = vunpack.c.l.b16 %v7309
  %v7454 = vunpack.c.h.b16 %v7309
  %v7455 = vunpack.c.l.b16 %v7310
  %v7456 = vunpack.c.h.b16 %v7310
  %v7457 = vunpack.c.l.b16 %v7311
  %v7458 = vunpack.c.h.b16 %v7311
  %v7459 = vunpack.c.l.b16 %v7312
  %v7460 = vunpack.c.h.b16 %v7312
  %v7461 = vunpack.c.l.b16 %v7313
  %v7462 = vunpack.c.h.b16 %v7313
  %v7463 = vunpack.c.l.b16 %v7314
  %v7464 = vunpack.c.h.b16 %v7314
  %v7465 = vunpack.c.l.b16 %v7315
  %v7466 = vunpack.c.h.b16 %v7315
  %v7467 = vunpack.c.l.b16 %v7316
  %v7468 = vunpack.c.h.b16 %v7316
  %v7469 = vunpack.c.l.b16 %v7317
  %v7470 = vunpack.c.h.b16 %v7317
  %v7471 = vunpack.c.l.b16 %v7318
  %v7472 = vunpack.c.h.b16 %v7318
  %v7473 = vunpack.c.l.b16 %v7319
  %v7474 = vunpack.c.h.b16 %v7319
  %v7475 = vunpack.c.l.b16 %v7320
  %v7476 = vunpack.c.h.b16 %v7320
  %v7477 = vunpack.c.l.b16 %v7321
  %v7478 = vunpack.c.h.b16 %v7321
  %v7479 = vunpack.c.l.b16 %v7322
  %v7480 = vunpack.c.h.b16 %v7322
  %v7481 = vunpack.c.l.b16 %v7323
  %v7482 = vunpack.c.h.b16 %v7323
  %v7483 = vunpack.c.l.b16 %v7324
  %v7484 = vunpack.c.h.b16 %v7324
  %v7485 = vunpack.c.l.b16 %v7325
  %v7486 = vunpack.c.h.b16 %v7325
  %v7487 = vunpack.c.l.b16 %v7326
  %v7488 = vunpack.c.h.b16 %v7326
  %v7489 = vunpack.c.l.b16 %v7327
  %v7490 = vunpack.c.h.b16 %v7327
  %v7491 = vunpack.c.l.b16 %v7328
  %v7492 = vunpack.c.h.b16 %v7328
  %v7493 = vunpack.c.l.b16 %v7329
  %v7494 = vunpack.c.h.b16 %v7329
  %v7495 = vunpack.c.l.b16 %v7330
  %v7496 = vunpack.c.h.b16 %v7330
  %v7497 = vunpack.c.l.b16 %v7331
  %v7498 = vunpack.c.h.b16 %v7331
  %v7499 = vunpack.c.l.b16 %v7332
  %v7500 = vunpack.c.h.b16 %v7332
  %v7501 = vunpack.c.l.b16 %v7333
  %v7502 = vunpack.c.h.b16 %v7333
  %v7503 = vunpack.c.l.b16 %v7334
  %v7504 = vunpack.c.h.b16 %v7334
  %v7505 = vunpack.c.l.b16 %v7335
  %v7506 = vunpack.c.h.b16 %v7335
  %v7507 = vunpack.c.l.b16 %v7336
  %v7508 = vunpack.c.h.b16 %v7336
  %v7509 = vunpack.c.l.b16 %v7337
  %v7510 = vunpack.c.h.b16 %v7337
  %v7511 = vunpack.c.l.b16 %v7338
  %v7512 = vunpack.c.h.b16 %v7338
  %v7513 = vunpack.c.l.b16 %v7339
  %v7514 = vunpack.c.h.b16 %v7339
  %v7515 = vunpack.c.l.b16 %v7340
  %v7516 = vunpack.c.h.b16 %v7340
  %v7517 = vunpack.c.l.b16 %v7341
  %v7518 = vunpack.c.h.b16 %v7341
  %v7519 = vunpack.c.l.b16 %v7342
  %v7520 = vunpack.c.h.b16 %v7342
  %v7521 = vunpack.c.l.b16 %v7343
  %v7522 = vunpack.c.h.b16 %v7343
  %v7523 = vunpack.c.l.b16 %v7344
  %v7524 = vunpack.c.h.b16 %v7344
  %v7525 = vunpack.c.l.b16 %v7345
  %v7526 = vunpack.c.h.b16 %v7345
  %v7527 = vunpack.c.l.b16 %v7346
  %v7528 = vunpack.c.h.b16 %v7346
  %v7529 = vunpack.c.l.b16 %v7347
  %v7530 = vunpack.c.h.b16 %v7347
  %v7531 = vunpack.c.l.b16 %v7348
  %v7532 = vunpack.c.h.b16 %v7348
  %v7533 = vunpack.c.l.b16 %v7349
  %v7534 = vunpack.c.h.b16 %v7349
  %v7535 = vunpack.c.l.b16 %v7350
  %v7536 = vunpack.c.h.b16 %v7350
  %v7537 = vunpack.c.l.b16 %v7351
  %v7538 = vunpack.c.h.b16 %v7351
  %v7539 = vunpack.c.l.b16 %v7352
  %v7540 = vunpack.c.h.b16 %v7352
  %v7541 = vunpack.c.l.b16 %v7353
  %v7542 = vunpack.c.h.b16 %v7353
  %v7543 = vunpack.c.l.b16 %v7354
  %v7544 = vunpack.c.h.b16 %v7354
  %v7545 = vunpack.c.l.b16 %v7355
  %v7546 = vunpack.c.h.b16 %v7355
  %v7547 = vunpack.c.l.b16 %v7356
  %v7548 = vunpack.c.h.b16 %v7356
  %v7549 = vunpack.c.l.b16 %v7357
  %v7550 = vunpack.c.h.b16 %v7357
  %v7551 = vunpack.c.l.b16 %v7358
  %v7552 = vunpack.c.h.b16 %v7358
  %v7553 = vunpack.c.l.b16 %v7359
  %v7554 = vunpack.c.h.b16 %v7359
  %v7555 = vunpack.c.l.b16 %v7360
  %v7556 = vunpack.c.h.b16 %v7360
  %v7557 = vunpack.c.l.b16 %v7361
  %v7558 = vunpack.c.h.b16 %v7361
  %v7559 = vunpack.c.l.b16 %v7362
  %v7560 = vunpack.c.h.b16 %v7362
  %v7561 = vunpack.c.l.b16 %v7363
  %v7562 = vunpack.c.h.b16 %v7363
  %v7563 = vunpack.c.l.b16 %v7364
  %v7564 = vunpack.c.h.b16 %v7364
  %v7565 = vunpack.c.l.b16 %v7365
  %v7566 = vunpack.c.h.b16 %v7365
  %v7567 = vunpack.c.l.b16 %v7366
  %v7568 = vunpack.c.h.b16 %v7366
  %v7569 = vunpack.c.l.b16 %v7367
  %v7570 = vunpack.c.h.b16 %v7367
  %v7571 = vunpack.c.l.b16 %v7368
  %v7572 = vunpack.c.h.b16 %v7368
  %v7573 = vpack.c.b16 %v7447, %v7445
  %v7574 = vpack.c.b16 %v7448, %v7446
  %v7575 = vpack.c.b16 %v7451, %v7449
  %v7576 = vpack.c.b16 %v7452, %v7450
  %v7577 = vpack.c.b16 %v7455, %v7453
  %v7578 = vpack.c.b16 %v7456, %v7454
  %v7579 = vpack.c.b16 %v7459, %v7457
  %v7580 = vpack.c.b16 %v7460, %v7458
  %v7581 = vpack.c.b16 %v7463, %v7461
  %v7582 = vpack.c.b16 %v7464, %v7462
  %v7583 = vpack.c.b16 %v7467, %v7465
  %v7584 = vpack.c.b16 %v7468, %v7466
  %v7585 = vpack.c.b16 %v7471, %v7469
  %v7586 = vpack.c.b16 %v7472, %v7470
  %v7587 = vpack.c.b16 %v7475, %v7473
  %v7588 = vpack.c.b16 %v7476, %v7474
  %v7589 = vpack.c.b16 %v7479, %v7477
  %v7590 = vpack.c.b16 %v7480, %v7478
  %v7591 = vpack.c.b16 %v7483, %v7481
  %v7592 = vpack.c.b16 %v7484, %v7482
  %v7593 = vpack.c.b16 %v7487, %v7485
  %v7594 = vpack.c.b16 %v7488, %v7486
  %v7595 = vpack.c.b16 %v7491, %v7489
  %v7596 = vpack.c.b16 %v7492, %v7490
  %v7597 = vpack.c.b16 %v7495, %v7493
  %v7598 = vpack.c.b16 %v7496, %v7494
  %v7599 = vpack.c.b16 %v7499, %v7497
  %v7600 = vpack.c.b16 %v7500, %v7498
  %v7601 = vpack.c.b16 %v7503, %v7501
  %v7602 = vpack.c.b16 %v7504, %v7502
  %v7603 = vpack.c.b16 %v7507, %v7505
  %v7604 = vpack.c.b16 %v7508, %v7506
  %v7605 = vpack.c.b16 %v7511, %v7509
  %v7606 = vpack.c.b16 %v7512, %v7510
  %v7607 = vpack.c.b16 %v7515, %v7513
  %v7608 = vpack.c.b16 %v7516, %v7514
  %v7609 = vpack.c.b16 %v7519, %v7517
  %v7610 = vpack.c.b16 %v7520, %v7518
  %v7611 = vpack.c.b16 %v7523, %v7521
  %v7612 = vpack.c.b16 %v7524, %v7522
  %v7613 = vpack.c.b16 %v7527, %v7525
  %v7614 = vpack.c.b16 %v7528, %v7526
  %v7615 = vpack.c.b16 %v7531, %v7529
  %v7616 = vpack.c.b16 %v7532, %v7530
  %v7617 = vpack.c.b16 %v7535, %v7533
  %v7618 = vpack.c.b16 %v7536, %v7534
  %v7619 = vpack.c.b16 %v7539, %v7537
  %v7620 = vpack.c.b16 %v7540, %v7538
  %v7621 = vpack.c.b16 %v7543, %v7541
  %v7622 = vpack.c.b16 %v7544, %v7542
  %v7623 = vpack.c.b16 %v7547, %v7545
  %v7624 = vpack.c.b16 %v7548, %v7546
  %v7625 = vpack.c.b16 %v7551, %v7549
  %v7626 = vpack.c.b16 %v7552, %v7550
  %v7627 = vpack.c.b16 %v7555, %v7553
  %v7628 = vpack.c.b16 %v7556, %v7554
  %v7629 = vpack.c.b16 %v7559, %v7557
  %v7630 = vpack.c.b16 %v7560, %v7558
  %v7631 = vpack.c.b16 %v7563, %v7561
  %v7632 = vpack.c.b16 %v7564, %v7562
  %v7633 = vpack.c.b16 %v7567, %v7565
  %v7634 = vpack.c.b16 %v7568, %v7566
  %v7635 = vpack.c.b16 %v7571, %v7569
  %v7636 = vpack.c.b16 %v7572, %v7570
  %7701 = vmatprep.subr.bf16.mxu0 %v7588
  %7702 = vmatpush1.bf16.msra.mxu0 %v7587
  %7703 = vmatprep.subr.bf16.mxu0 %v7586
  %7704 = vmatpush1.bf16.msra.mxu0 %v7585
  %7705 = vmatprep.subr.bf16.mxu0 %v7584
  %7706 = vmatpush1.bf16.msra.mxu0 %v7583
  %7707 = vmatprep.subr.bf16.mxu0 %v7582
  %7708 = vmatpush1.bf16.msra.mxu0 %v7581
  %7709 = vmatprep.subr.bf16.mxu0 %v7580
  %7710 = vmatpush1.bf16.msra.mxu0 %v7579
  %7711 = vmatprep.subr.bf16.mxu0 %v7578
  %7712 = vmatpush1.bf16.msra.mxu0 %v7577
  %7713 = vmatprep.subr.bf16.mxu0 %v7576
  %7714 = vmatpush1.bf16.msra.mxu0 %v7575
  %7715 = vmatprep.subr.bf16.mxu0 %v7574
  %7716 = vmatpush1.bf16.msra.mxu0 %v7573
  %7717 = vmatprep.subr.bf16.mxu0 %v7604
  %7718 = vmatpush2.bf16.msra.mxu0 %v7603
  %7719 = vmatprep.subr.bf16.mxu0 %v7602
  %7720 = vmatpush2.bf16.msra.mxu0 %v7601
  %7721 = vmatprep.subr.bf16.mxu0 %v7600
  %7722 = vmatpush2.bf16.msra.mxu0 %v7599
  %7723 = vmatprep.subr.bf16.mxu0 %v7598
  %7724 = vmatpush2.bf16.msra.mxu0 %v7597
  %7725 = vmatprep.subr.bf16.mxu0 %v7596
  %7726 = vmatpush2.bf16.msra.mxu0 %v7595
  %7727 = vmatprep.subr.bf16.mxu0 %v7594
  %7728 = vmatpush2.bf16.msra.mxu0 %v7593
  %7729 = vmatprep.subr.bf16.mxu0 %v7592
  %7730 = vmatpush2.bf16.msra.mxu0 %v7591
  %7731 = vmatprep.subr.bf16.mxu0 %v7590
  %7732 = vmatpush2.bf16.msra.mxu0 %v7589
  %7733 = vmatprep.mubr.bf16.mxu0 %v7302
  %7734 = vmatmul.mubr.bf16.gmra.mxu0 %v7301
  %v7735 = vpop.f32.mrf.mxu0
  %v7736 = vadd.f32 %v7374, %v7735
  %v7737 = vpop.f32.mrf.mxu0
  %v7738 = vadd.f32 %v7378, %v7737
  %v7739 = vpop.f32.mrf.mxu0
  %v7740 = vpop.f32.mrf.mxu0
  %7741 = vdwg.mxu0
  %7742 = vmatprep.subr.bf16.mxu0 %v7620
  %7743 = vmatpush1.bf16.msra.mxu0 %v7619
  %7744 = vmatprep.subr.bf16.mxu0 %v7618
  %7745 = vmatpush1.bf16.msra.mxu0 %v7617
  %7746 = vmatprep.subr.bf16.mxu0 %v7616
  %7747 = vmatpush1.bf16.msra.mxu0 %v7615
  %7748 = vmatprep.subr.bf16.mxu0 %v7614
  %7749 = vmatpush1.bf16.msra.mxu0 %v7613
  %7750 = vmatprep.subr.bf16.mxu0 %v7612
  %7751 = vmatpush1.bf16.msra.mxu0 %v7611
  %7752 = vmatprep.subr.bf16.mxu0 %v7610
  %7753 = vmatpush1.bf16.msra.mxu0 %v7609
  %7754 = vmatprep.subr.bf16.mxu0 %v7608
  %7755 = vmatpush1.bf16.msra.mxu0 %v7607
  %7756 = vmatprep.subr.bf16.mxu0 %v7606
  %7757 = vmatpush1.bf16.msra.mxu0 %v7605
  %7758 = vmatprep.subr.bf16.mxu0 %v7636
  %7759 = vmatpush2.bf16.msra.mxu0 %v7635
  %7760 = vmatprep.subr.bf16.mxu0 %v7634
  %7761 = vmatpush2.bf16.msra.mxu0 %v7633
  %7762 = vmatprep.subr.bf16.mxu0 %v7632
  %7763 = vmatpush2.bf16.msra.mxu0 %v7631
  %7764 = vmatprep.subr.bf16.mxu0 %v7630
  %7765 = vmatpush2.bf16.msra.mxu0 %v7629
  %7766 = vmatprep.subr.bf16.mxu0 %v7628
  %7767 = vmatpush2.bf16.msra.mxu0 %v7627
  %7768 = vmatprep.subr.bf16.mxu0 %v7626
  %7769 = vmatpush2.bf16.msra.mxu0 %v7625
  %7770 = vmatprep.subr.bf16.mxu0 %v7624
  %7771 = vmatpush2.bf16.msra.mxu0 %v7623
  %7772 = vmatprep.subr.bf16.mxu0 %v7622
  %7773 = vmatpush2.bf16.msra.mxu0 %v7621
  %7774 = vmatprep.mubr.bf16.mxu0 %v7304
  %7775 = vmatmul.mubr.bf16.gmra.mxu0 %v7303
  %v7776 = vpop.f32.mrf.mxu0
  %v7777 = vadd.f32 %v7736, %v7776
  %v7778 = vpop.f32.mrf.mxu0
  %v7779 = vadd.f32 %v7738, %v7778
  %v7780 = vpop.f32.mrf.mxu0
  %v7781 = vpop.f32.mrf.mxu0
  %7782 = vdwg.mxu0
  %v7783 = vmax.f32 %v7777, 0.0
  %v7784 = vmax.f32 %v7779, 0.0
  %v7785 = vpack.c.bf16 %v7783, %v7783
  %v7786 = vpack.c.bf16 %v7784, %v7784
  %v7787 = vld [vmem:[%s5] sm:$0xf]
  %v7788 = vld [vmem:[%s5 + $0x4] sm:$0xf]
  %v7789 = vld [vmem:[%s5 + $0x8] sm:$0xf]
  %v7790 = vld [vmem:[%s5 + $0xc] sm:$0xf]
  %v7791 = vld [vmem:[%s5 + $0x10] sm:$0xf]
  %v7792 = vld [vmem:[%s5 + $0x14] sm:$0xf]
  %v7793 = vld [vmem:[%s5 + $0x18] sm:$0xf]
  %v7794 = vld [vmem:[%s5 + $0x1c] sm:$0xf]
  %v7795 = vld [vmem:[%s5 + $0x20] sm:$0xf]
  %v7796 = vld [vmem:[%s5 + $0x24] sm:$0xf]
  %v7797 = vld [vmem:[%s5 + $0x28] sm:$0xf]
  %v7798 = vld [vmem:[%s5 + $0x2c] sm:$0xf]
  %v7799 = vld [vmem:[%s5 + $0x30] sm:$0xf]
  %v7800 = vld [vmem:[%s5 + $0x34] sm:$0xf]
  %v7801 = vld [vmem:[%s5 + $0x38] sm:$0xf]
  %v7802 = vld [vmem:[%s5 + $0x3c] sm:$0xf]
  %v7803 = vld [vmem:[%s5 + $0x40] sm:$0xf]
  %v7804 = vld [vmem:[%s5 + $0x44] sm:$0xf]
  %v7805 = vld [vmem:[%s5 + $0x48] sm:$0xf]
  %v7806 = vld [vmem:[%s5 + $0x4c] sm:$0xf]
  %v7807 = vld [vmem:[%s5 + $0x50] sm:$0xf]
  %v7808 = vld [vmem:[%s5 + $0x54] sm:$0xf]
  %v7809 = vld [vmem:[%s5 + $0x58] sm:$0xf]
  %v7810 = vld [vmem:[%s5 + $0x5c] sm:$0xf]
  %v7811 = vld [vmem:[%s5 + $0x60] sm:$0xf]
  %v7812 = vld [vmem:[%s5 + $0x64] sm:$0xf]
  %v7813 = vld [vmem:[%s5 + $0x68] sm:$0xf]
  %v7814 = vld [vmem:[%s5 + $0x6c] sm:$0xf]
  %v7815 = vld [vmem:[%s5 + $0x70] sm:$0xf]
  %v7816 = vld [vmem:[%s5 + $0x74] sm:$0xf]
  %v7817 = vld [vmem:[%s5 + $0x78] sm:$0xf]
  %v7818 = vld [vmem:[%s5 + $0x7c] sm:$0xf]
  %v7819 = vld [vmem:[%s6] sm:$0x1]
  %v7821 = vlaneseq
  %v7822 = vshrl.u32 %v7821, 7
  %v7823 = vsub.s32 0, %v7822
  %v7824 = vrot.slane %v7819, %v7823
  %v7858 = vunpack.c.l.b16 %v7787
  %v7859 = vunpack.c.l.b16 %v7788
  %v7860 = vunpack.c.l.b16 %v7789
  %v7861 = vunpack.c.l.b16 %v7790
  %v7862 = vunpack.c.l.b16 %v7791
  %v7863 = vunpack.c.l.b16 %v7792
  %v7864 = vunpack.c.l.b16 %v7793
  %v7865 = vunpack.c.l.b16 %v7794
  %v7866 = vunpack.c.l.b16 %v7795
  %v7867 = vunpack.c.l.b16 %v7796
  %v7868 = vunpack.c.l.b16 %v7797
  %v7869 = vunpack.c.l.b16 %v7798
  %v7870 = vunpack.c.l.b16 %v7799
  %v7871 = vunpack.c.l.b16 %v7800
  %v7872 = vunpack.c.l.b16 %v7801
  %v7873 = vunpack.c.l.b16 %v7802
  %v7874 = vunpack.c.l.b16 %v7803
  %v7875 = vunpack.c.l.b16 %v7804
  %v7876 = vunpack.c.l.b16 %v7805
  %v7877 = vunpack.c.l.b16 %v7806
  %v7878 = vunpack.c.l.b16 %v7807
  %v7879 = vunpack.c.l.b16 %v7808
  %v7880 = vunpack.c.l.b16 %v7809
  %v7881 = vunpack.c.l.b16 %v7810
  %v7882 = vunpack.c.l.b16 %v7811
  %v7883 = vunpack.c.l.b16 %v7812
  %v7884 = vunpack.c.l.b16 %v7813
  %v7885 = vunpack.c.l.b16 %v7814
  %v7886 = vunpack.c.l.b16 %v7815
  %v7887 = vunpack.c.l.b16 %v7816
  %v7888 = vunpack.c.l.b16 %v7817
  %v7889 = vunpack.c.l.b16 %v7818
  %v7890 = vpack.c.b16 %v7859, %v7858
  %v7891 = vpack.c.b16 %v7861, %v7860
  %v7892 = vpack.c.b16 %v7863, %v7862
  %v7893 = vpack.c.b16 %v7865, %v7864
  %v7894 = vpack.c.b16 %v7867, %v7866
  %v7895 = vpack.c.b16 %v7869, %v7868
  %v7896 = vpack.c.b16 %v7871, %v7870
  %v7897 = vpack.c.b16 %v7873, %v7872
  %v7898 = vpack.c.b16 %v7875, %v7874
  %v7899 = vpack.c.b16 %v7877, %v7876
  %v7900 = vpack.c.b16 %v7879, %v7878
  %v7901 = vpack.c.b16 %v7881, %v7880
  %v7902 = vpack.c.b16 %v7883, %v7882
  %v7903 = vpack.c.b16 %v7885, %v7884
  %v7904 = vpack.c.b16 %v7887, %v7886
  %v7905 = vpack.c.b16 %v7889, %v7888
  %7922 = vmatprep.subr.bf16.mxu0 0
  %7923 = vmatpush1.bf16.msra.mxu0 %v7897
  %7924 = vmatprep.subr.bf16.mxu0 0
  %7925 = vmatpush1.bf16.msra.mxu0 %v7896
  %7926 = vmatprep.subr.bf16.mxu0 0
  %7927 = vmatpush1.bf16.msra.mxu0 %v7895
  %7928 = vmatprep.subr.bf16.mxu0 0
  %7929 = vmatpush1.bf16.msra.mxu0 %v7894
  %7930 = vmatprep.subr.bf16.mxu0 0
  %7931 = vmatpush1.bf16.msra.mxu0 %v7893
  %7932 = vmatprep.subr.bf16.mxu0 0
  %7933 = vmatpush1.bf16.msra.mxu0 %v7892
  %7934 = vmatprep.subr.bf16.mxu0 0
  %7935 = vmatpush1.bf16.msra.mxu0 %v7891
  %7936 = vmatprep.subr.bf16.mxu0 0
  %7937 = vmatpush1.bf16.msra.mxu0 %v7890
  %7938 = vmatprep.subr.bf16.mxu0 0
  %7939 = vmatpush2.bf16.msra.mxu0 %v7905
  %7940 = vmatprep.subr.bf16.mxu0 0
  %7941 = vmatpush2.bf16.msra.mxu0 %v7904
  %7942 = vmatprep.subr.bf16.mxu0 0
  %7943 = vmatpush2.bf16.msra.mxu0 %v7903
  %7944 = vmatprep.subr.bf16.mxu0 0
  %7945 = vmatpush2.bf16.msra.mxu0 %v7902
  %7946 = vmatprep.subr.bf16.mxu0 0
  %7947 = vmatpush2.bf16.msra.mxu0 %v7901
  %7948 = vmatprep.subr.bf16.mxu0 0
  %7949 = vmatpush2.bf16.msra.mxu0 %v7900
  %7950 = vmatprep.subr.bf16.mxu0 0
  %7951 = vmatpush2.bf16.msra.mxu0 %v7899
  %7952 = vmatprep.subr.bf16.mxu0 0
  %7953 = vmatpush2.bf16.msra.mxu0 %v7898
  %7954 = vmatprep.mubr.bf16.mxu0 %v7786
  %7955 = vmatmul.mubr.bf16.gmra.mxu0 %v7785
  %v7956 = vpop.f32.mrf.mxu0
  %v7957 = vadd.f32 %v7824, %v7956
  %v7958 = vpop.f32.mrf.mxu0
  %v7959 = vpop.f32.mrf.mxu0
  %v7960 = vpop.f32.mrf.mxu0
  %7961 = vdwg.mxu0
  %7962 = vst [vmem:[%s7] sm:$0xff] %v7957
  // Predicated region
  $region30: #{cnn_forward.7} parent=0 // pred_check
    _
  $region31: #{cnn_forward.7} parent=0 // pred_check_branch
    %7964 = sbr.rel (0) target = $region33
  $region32: #{cnn_forward.7} parent=0 // pred_region
    _
  $region33: #{cnn_forward.7} parent=0 // pred_fallthru
    _
  // Predicated region
  $region34: #{cnn_forward.7} parent=0 // pred_check
    _
  $region35: #{cnn_forward.7} parent=0 // pred_check_branch
    %7966 = sbr.rel (0) target = $region37
  $region36: #{cnn_forward.7} parent=0 // pred_region
    _
  $region37: #{cnn_forward.7} parent=0 // pred_fallthru
    _

</llo_original>
